<compile_context>
chip_gen: v7x
topology: tpu7x:2x2x1
jax: 0.10.0
libtpu: 0.0.40
codegen_flags: <defaults>
</compile_context>

<pallas_src>
import functools

import jax
import jax.numpy as jnp
import numpy as np
from jax import lax
from jax.experimental import pallas as pl
from jax.experimental.pallas import tpu as pltpu


# ----------------------------------------------------------------------------
# Fused RSN_ATTENTION kernel (one grid step == NB batch elements on the lanes)
# ----------------------------------------------------------------------------
def _rsn_attention_kernel(
    xcol_ref,   # (9*C, NB*NP)  pre-built 3x3 im2col over the 4-padded grid
    mask_ref,   # (1,   NB*NP)  1.0 on interior (original HxW) positions
    w1_ref,     # (C, 9*C)      3x3 conv weights, [o, tap*C + i]
    sb1_ref,    # (C, 2)        folded BN (scale, bias) for prm_1
    w21_ref,    # (C, C)        1x1 conv prm_2_1, [o, i]
    sb21_ref,   # (C, 2)
    w22_ref,    # (C, C)        1x1 conv prm_2_2, [o, i]
    sb22_ref,   # (C, 2)
    w31_ref,    # (C, C)        1x1 conv prm_3_1, [o, i]
    sb31_ref,   # (C, 2)
    wdw_ref,    # (C, 81)       depthwise 9x9 weights, [c, ky*9 + kx]
    sb32_ref,   # (C, 2)
    o_ref,      # (C, NB*NP)    padded-grid output slab
    *, H, W, C, NB, NP, Wp):
  L = NB * NP

  def scale_bias(ref):
    sb = ref[...]
    return sb[:, 0:1], sb[:, 1:2]          # (C, 1) columns, broadcast over lanes

  mask = mask_ref[...]                     # (1, L)

  # ---- prm_1: 3x3 conv (+BN+ReLU) as ONE MXU dot on the pre-built im2col ----
  s1, b1 = scale_bias(sb1_ref)
  y1 = jnp.dot(w1_ref[...], xcol_ref[...], preferred_element_type=jnp.float32)
  # Mask once: out1 is zero everywhere outside the original HxW interiors, so
  # it can feed the GAP, the 1x1 conv and the final combine unchanged.
  out1 = jnp.maximum(y1 * s1 + b1, 0.0) * mask               # (C, L)

  # ---- prm_2: GAP -> 1x1(+BN+ReLU) -> 1x1(+BN+ReLU) -> sigmoid -------------
  # Per-batch sums via vreg-aligned lane slices (k*NP is a multiple of 128);
  # the two tiny 1x1 convs handle all NB batch columns in one dot each.
  sums = [jnp.sum(out1[:, k * NP:(k + 1) * NP], axis=1, keepdims=True)
          for k in range(NB)]
  m_all = jnp.concatenate(sums, axis=1) * (1.0 / (H * W))     # (C, NB)
  s21, b21 = scale_bias(sb21_ref)
  s22, b22 = scale_bias(sb22_ref)
  a = jnp.dot(w21_ref[...], m_all, preferred_element_type=jnp.float32)
  a = jnp.maximum(a * s21 + b21, 0.0)
  a = jnp.dot(w22_ref[...], a, preferred_element_type=jnp.float32)
  a = jnp.maximum(a * s22 + b22, 0.0)
  att = jax.nn.sigmoid(a)                                     # (C, NB)

  # ---- prm_3_1: 1x1 conv + BN + ReLU ---------------------------------------
  s31, b31 = scale_bias(sb31_ref)
  t = jnp.dot(w31_ref[...], out1, preferred_element_type=jnp.float32)
  t = jnp.maximum(t * s31 + b31, 0.0) * mask   # zero pad ring for the depthwise

  # ---- prm_3_2: depthwise 9x9 conv + BN + ReLU + sigmoid -------------------
  # Taps are generated by incremental lane rotations (XLU) of the masked t
  # slab; no unaligned VMEM loads.  pltpu.roll follows jnp.roll semantics:
  # roll(t, s)[p] == t[(p - s) % L], so the tap value t[p + off] is
  # roll(t, -off)[p].  Interior positions never read wrapped or cross-batch
  # lanes because every batch block carries its own 4-wide zero ring
  # (|off| <= 4*Wp + 4 and interior + off stays inside the 576-entry grid,
  # which is < NP).
  wdw = wdw_ref[...]                                          # (C, 81)
  acc = jnp.zeros((C, L), jnp.float32)
  # Start at tap (dy, dx) = (+4, +4): off = 4*Wp + 4, shift = (-off) mod L.
  row = pltpu.roll(t, L - (4 * Wp + 4), axis=1)
  for ai in range(9):                       # dy = 4 - ai
    cur = row
    for bi in range(9):                     # dx = 4 - bi
      widx = (8 - ai) * 9 + (8 - bi)        # weight index (dy+4)*9 + (dx+4)
      acc = acc + cur * wdw[:, widx:widx + 1]
      if bi < 8:
        cur = pltpu.roll(cur, 1, axis=1)    # off -> off - 1
    if ai < 8:
      row = pltpu.roll(row, Wp, axis=1)     # off -> off - Wp
  s32, b32 = scale_bias(sb32_ref)
  a3 = jax.nn.sigmoid(jnp.maximum(acc * s32 + b32, 0.0))      # (C, L)

  # ---- final combine: out = out1 * (1 + att * a3), per aligned batch block --
  for k in range(NB):
    lo, hi = k * NP, (k + 1) * NP
    o_ref[:, lo:hi] = (out1[:, lo:hi]
                       * (1.0 + att[:, k:k + 1] * a3[:, lo:hi])
                       ).astype(o_ref.dtype)


# ----------------------------------------------------------------------------
# Wrapper: NCHW in, NCHW out, single pallas_call
# ----------------------------------------------------------------------------
def _default_batches_per_step(B):
  # v7x has 2 TensorCores per chip: keep a grid over B so the "parallel" axis
  # puts one batch on each core.  Single-TC chips (v5e / v6e) prefer one wide
  # step with batch stacked on the lane axis (halves per-step overhead).
  try:
    kind = jax.devices()[0].device_kind.lower()
  except Exception:
    kind = ""
  if "v7" in kind or "7x" in kind:
    return 1
  return max(B, 1)


def rsn_attention_forward(x_nchw, params, batches_per_step=None):
  B, C, H, W = x_nchw.shape
  Hp, Wp = H + 8, W + 8
  Ns = Hp * Wp                               # padded-grid spatial size
  NP = ((Ns + 127) // 128) * 128             # lane-padded per-batch block
  NB = (batches_per_step if batches_per_step is not None
        else _default_batches_per_step(B))
  if B % NB != 0:
    NB = 1
  G = B // NB
  p = params

  # ---- wrapper-side input prep (cheap XLA ops on tiny arrays) ---------------
  # 3x3 im2col over the 4-padded (Hp, Wp) grid; extra pad of 1 for tap reach.
  xp = jnp.pad(x_nchw, ((0, 0), (0, 0), (5, 5), (5, 5)))
  taps = [xp[:, :, 1 + dy:1 + dy + Hp, 1 + dx:1 + dx + Wp]
          for dy in (-1, 0, 1) for dx in (-1, 0, 1)]
  xcol = jnp.stack(taps, axis=1).reshape(B, 9 * C, Ns)       # [tap*C+i, p]
  xcol = jnp.pad(xcol, ((0, 0), (0, 0), (0, NP - Ns)))
  xcol = (xcol.reshape(G, NB, 9 * C, NP).transpose(0, 2, 1, 3)
              .reshape(G, 9 * C, NB * NP))

  # interior (original HxW) mask over the lane-padded flat grid
  m2 = np.zeros((Hp, Wp), np.float32)
  m2[4:4 + H, 4:4 + W] = 1.0
  m1 = np.zeros((NP,), np.float32)
  m1[:Ns] = m2.reshape(-1)
  mask = jnp.asarray(np.tile(m1, NB)[None, :])                # (1, NB*NP)

  # kernel-layout weights (channel-on-sublane); tiny host-side transposes
  w1col = jnp.transpose(p["w1"], (3, 0, 1, 2)).reshape(C, 9 * C)  # [o, tap*C+i]
  w21k, w22k, w31k = p["w21"].T, p["w22"].T, p["w31"].T           # (Cout, Cin)
  wdwk = p["wdw"].reshape(81, C).T                                # (C, 81)
  sb1k, sb21k, sb22k = p["sb1"].T, p["sb21"].T, p["sb22"].T       # (C, 2)
  sb31k, sb32k = p["sb31"].T, p["sb32"].T

  kernel = functools.partial(_rsn_attention_kernel,
                             H=H, W=W, C=C, NB=NB, NP=NP, Wp=Wp)

  def cspec(shape):
    return pl.BlockSpec(shape, lambda g: (0,) * len(shape))

  out = pl.pallas_call(
      kernel,
      out_shape=jax.ShapeDtypeStruct((G, C, NB * NP), x_nchw.dtype),
      grid=(G,),
      in_specs=[
          pl.BlockSpec((None, 9 * C, NB * NP), lambda g: (g, 0, 0)),  # im2col
          cspec((1, NB * NP)),                                        # mask
          cspec((C, 9 * C)), cspec((C, 2)),                           # w1,  sb1
          cspec((C, C)), cspec((C, 2)),                               # w21, sb21
          cspec((C, C)), cspec((C, 2)),                               # w22, sb22
          cspec((C, C)), cspec((C, 2)),                               # w31, sb31
          cspec((C, 81)), cspec((C, 2)),                              # wdw, sb32
      ],
      out_specs=pl.BlockSpec((None, C, NB * NP), lambda g: (g, 0, 0)),
      compiler_params=pltpu.CompilerParams(
          dimension_semantics=("parallel",)),       # one batch per TC on v7x
  )(xcol, mask, w1col, sb1k, w21k, sb21k, w22k, sb22k,
    w31k, sb31k, wdwk, sb32k)

  # undo the lane grouping, drop the lane pad, slice the interior
  out = out.reshape(G, C, NB, NP).transpose(0, 2, 1, 3).reshape(B, C, NP)
  out = out[:, :, :Ns].reshape(B, C, Hp, Wp)[:, :, 4:4 + H, 4:4 + W]
  return out


# ----------------------------------------------------------------------------
# Parameter construction (deterministic), BN folding
# ----------------------------------------------------------------------------
def _fold_bn(conv_bias, gamma, beta, mean, var, eps=1e-5):
  scale = gamma / jnp.sqrt(var + eps)
  bias = (conv_bias - mean) * scale + beta
  return jnp.stack([scale, bias], axis=0).astype(jnp.float32)      # (2, C)


def make_params(key, C):
  keys = jax.random.split(key, 32)
  k = iter(keys)

  def bn(kk):
    k1, k2, k3, k4 = jax.random.split(kk, 4)
    gamma = 1.0 + 0.1 * jax.random.normal(k1, (C,))
    beta = 0.1 * jax.random.normal(k2, (C,))
    mean = 0.1 * jax.random.normal(k3, (C,))
    var = jax.random.uniform(k4, (C,), minval=0.5, maxval=1.5)
    return gamma, beta, mean, var

  params = {}
  # prm_1: 3x3 conv, HWIO
  w1 = 0.1 * jax.random.normal(next(k), (3, 3, C, C), jnp.float32)
  b1 = 0.1 * jax.random.normal(next(k), (C,), jnp.float32)
  params["w1"] = w1
  params["sb1"] = _fold_bn(b1, *bn(next(k)))
  # prm_2_1 / prm_2_2: 1x1 convs, stored as (Cin, Cout)
  w21 = 0.1 * jax.random.normal(next(k), (C, C), jnp.float32)
  b21 = 0.1 * jax.random.normal(next(k), (C,), jnp.float32)
  params["w21"] = w21
  params["sb21"] = _fold_bn(b21, *bn(next(k)))
  w22 = 0.1 * jax.random.normal(next(k), (C, C), jnp.float32)
  b22 = 0.1 * jax.random.normal(next(k), (C,), jnp.float32)
  params["w22"] = w22
  params["sb22"] = _fold_bn(b22, *bn(next(k)))
  # prm_3_1: 1x1 conv
  w31 = 0.1 * jax.random.normal(next(k), (C, C), jnp.float32)
  b31 = 0.1 * jax.random.normal(next(k), (C,), jnp.float32)
  params["w31"] = w31
  params["sb31"] = _fold_bn(b31, *bn(next(k)))
  # prm_3_2: 9x9 depthwise conv (groups=C), weight per channel (9, 9, C)
  wdw = 0.05 * jax.random.normal(next(k), (9, 9, C), jnp.float32)
  bdw = 0.1 * jax.random.normal(next(k), (C,), jnp.float32)
  params["wdw"] = wdw
  params["sb32"] = _fold_bn(bdw, *bn(next(k)))
  return params


# ----------------------------------------------------------------------------
# Pure-JAX reference (same folded-BN parameterization), NCHW in / NCHW out
# ----------------------------------------------------------------------------
def reference_nchw(x_nchw, p):
  x = jnp.transpose(x_nchw, (0, 2, 3, 1))
  dn = ("NHWC", "HWIO", "NHWC")
  hp = lax.Precision.HIGHEST
  y = lax.conv_general_dilated(x, p["w1"], (1, 1), [(1, 1), (1, 1)],
                               dimension_numbers=dn, precision=hp)
  out1 = jnp.maximum(y * p["sb1"][0] + p["sb1"][1], 0.0)
  m = jnp.mean(out1, axis=(1, 2), keepdims=True)
  y = jnp.einsum("bijc,cd->bijd", m, p["w21"], precision=hp)
  y = jnp.maximum(y * p["sb21"][0] + p["sb21"][1], 0.0)
  y = jnp.einsum("bijc,cd->bijd", y, p["w22"], precision=hp)
  y = jnp.maximum(y * p["sb22"][0] + p["sb22"][1], 0.0)
  att = jax.nn.sigmoid(y)
  t = jnp.einsum("bhwc,cd->bhwd", out1, p["w31"], precision=hp)
  t = jnp.maximum(t * p["sb31"][0] + p["sb31"][1], 0.0)
  C = x.shape[-1]
  y = lax.conv_general_dilated(t, p["wdw"][:, :, None, :], (1, 1),
                               [(4, 4), (4, 4)], dimension_numbers=dn,
                               feature_group_count=C, precision=hp)
  y = jnp.maximum(y * p["sb32"][0] + p["sb32"][1], 0.0)
  a3 = jax.nn.sigmoid(y)
  out = out1 * (1.0 + att * a3)
  return jnp.transpose(out, (0, 3, 1, 2))


if __name__ == "__main__":
  B, C, H, W = 2, 8, 16, 16          # output_chl_num = 8
  key = jax.random.PRNGKey(0)
  kx, kp = jax.random.split(key)

  # PyTorch-style NCHW input.
  x_nchw = jax.random.normal(kx, (B, C, H, W), jnp.float32)
  params = make_params(kp, C)

  fwd = jax.jit(rsn_attention_forward)
  out = jax.block_until_ready(fwd(x_nchw, params))
  ref = jax.block_until_ready(reference_nchw(x_nchw, params))

  out_np, ref_np = np.asarray(out), np.asarray(ref)
  if not np.allclose(out_np, ref_np, atol=5e-3, rtol=5e-3):
    max_err = float(np.max(np.abs(out_np - ref_np)))
    raise AssertionError(
        f"Pallas RSN_ATTENTION output mismatch vs reference (max abs err {max_err})")

  print("KERNEL_OK")
</pallas_src>

<mosaic_0001>
module attributes {stable_mosaic.version = 11 : i64} {
  func.func @_rsn_attention_kernel(%arg0: i32, %arg1: memref<1x72x1280xf32, #tpu.memory_space<vmem>>, %arg2: memref<1x1280xf32, #tpu.memory_space<vmem>>, %arg3: memref<8x72xf32, #tpu.memory_space<vmem>>, %arg4: memref<8x2xf32, #tpu.memory_space<vmem>>, %arg5: memref<8x8xf32, #tpu.memory_space<vmem>>, %arg6: memref<8x2xf32, #tpu.memory_space<vmem>>, %arg7: memref<8x8xf32, #tpu.memory_space<vmem>>, %arg8: memref<8x2xf32, #tpu.memory_space<vmem>>, %arg9: memref<8x8xf32, #tpu.memory_space<vmem>>, %arg10: memref<8x2xf32, #tpu.memory_space<vmem>>, %arg11: memref<8x81xf32, #tpu.memory_space<vmem>>, %arg12: memref<8x2xf32, #tpu.memory_space<vmem>>, %arg13: memref<1x8x1280xf32, #tpu.memory_space<vmem>>) attributes {dimension_semantics = [#tpu.dimension_semantics<parallel>], iteration_bounds = array<i64: 1>, scalar_prefetch = 0 : i64, scratch_operands = 0 : i64, tpu.core_type = #tpu.core_type<tc>, window_params = [{transform_indices = @transform_0, window_bounds = array<i64: 1, 72, 1280>}, {pipeline_mode = #tpu.pipeline_mode<synchronous>, transform_indices = @transform_1, window_bounds = array<i64: 1, 1280>}, {pipeline_mode = #tpu.pipeline_mode<synchronous>, transform_indices = @transform_2, window_bounds = array<i64: 8, 72>}, {pipeline_mode = #tpu.pipeline_mode<synchronous>, transform_indices = @transform_3, window_bounds = array<i64: 8, 2>}, {pipeline_mode = #tpu.pipeline_mode<synchronous>, transform_indices = @transform_4, window_bounds = array<i64: 8, 8>}, {pipeline_mode = #tpu.pipeline_mode<synchronous>, transform_indices = @transform_5, window_bounds = array<i64: 8, 2>}, {pipeline_mode = #tpu.pipeline_mode<synchronous>, transform_indices = @transform_6, window_bounds = array<i64: 8, 8>}, {pipeline_mode = #tpu.pipeline_mode<synchronous>, transform_indices = @transform_7, window_bounds = array<i64: 8, 2>}, {pipeline_mode = #tpu.pipeline_mode<synchronous>, transform_indices = @transform_8, window_bounds = array<i64: 8, 8>}, {pipeline_mode = #tpu.pipeline_mode<synchronous>, transform_indices = @transform_9, window_bounds = array<i64: 8, 2>}, {pipeline_mode = #tpu.pipeline_mode<synchronous>, transform_indices = @transform_10, window_bounds = array<i64: 8, 81>}, {pipeline_mode = #tpu.pipeline_mode<synchronous>, transform_indices = @transform_11, window_bounds = array<i64: 8, 2>}, {transform_indices = @transform_12, window_bounds = array<i64: 1, 8, 1280>}]} {
    %c0 = arith.constant 0 : index
    %c0_0 = arith.constant 0 : index
    %0 = vector.load %arg2[%c0, %c0_0] : memref<1x1280xf32, #tpu.memory_space<vmem>>, vector<1x1280xf32>
    %c0_1 = arith.constant 0 : index
    %c0_2 = arith.constant 0 : index
    %1 = vector.load %arg4[%c0_1, %c0_2] : memref<8x2xf32, #tpu.memory_space<vmem>>, vector<8x2xf32>
    %2 = vector.extract_strided_slice %1 {offsets = [0, 0], sizes = [8, 1], strides = [1, 1]} : vector<8x2xf32> to vector<8x1xf32>
    %3 = vector.extract_strided_slice %1 {offsets = [0, 1], sizes = [8, 1], strides = [1, 1]} : vector<8x2xf32> to vector<8x1xf32>
    %c0_3 = arith.constant 0 : index
    %c0_4 = arith.constant 0 : index
    %4 = vector.load %arg3[%c0_3, %c0_4] : memref<8x72xf32, #tpu.memory_space<vmem>>, vector<8x72xf32>
    %c0_5 = arith.constant 0 : index
    %c0_6 = arith.constant 0 : index
    %c0_7 = arith.constant 0 : index
    %5 = vector.load %arg1[%c0_5, %c0_6, %c0_7] : memref<1x72x1280xf32, #tpu.memory_space<vmem>>, vector<1x72x1280xf32>
    %6 = vector.shape_cast %5 : vector<1x72x1280xf32> to vector<72x1280xf32>
    %cst = arith.constant dense<0.000000e+00> : vector<8x1280xf32>
    %7 = tpu.matmul %4, %6, %cst {dimension_numbers = #tpu.dot_dimension_numbers<[1], [0], [0], [1], [0, 0, 1, 1], [], []>} : vector<8x72xf32>, vector<72x1280xf32>, vector<8x1280xf32> -> vector<8x1280xf32>
    %8 = vector.broadcast %2 : vector<8x1xf32> to vector<8x1280xf32>
    %9 = arith.mulf %7, %8 : vector<8x1280xf32>
    %10 = vector.broadcast %3 : vector<8x1xf32> to vector<8x1280xf32>
    %11 = arith.addf %9, %10 : vector<8x1280xf32>
    %cst_8 = arith.constant 0.000000e+00 : f32
    %12 = vector.broadcast %cst_8 : f32 to vector<8x1280xf32>
    %13 = arith.maximumf %11, %12 : vector<8x1280xf32>
    %14 = vector.broadcast %0 : vector<1x1280xf32> to vector<8x1280xf32>
    %15 = arith.mulf %13, %14 : vector<8x1280xf32>
    %16 = vector.extract_strided_slice %15 {offsets = [0, 0], sizes = [8, 640], strides = [1, 1]} : vector<8x1280xf32> to vector<8x640xf32>
    %cst_9 = arith.constant dense<0.000000e+00> : vector<8xf32>
    %17 = vector.multi_reduction <add>, %16, %cst_9 [1] : vector<8x640xf32> to vector<8xf32>
    %18 = vector.shape_cast %17 : vector<8xf32> to vector<8x1xf32>
    %19 = vector.extract_strided_slice %15 {offsets = [0, 640], sizes = [8, 640], strides = [1, 1]} : vector<8x1280xf32> to vector<8x640xf32>
    %cst_10 = arith.constant dense<0.000000e+00> : vector<8xf32>
    %20 = vector.multi_reduction <add>, %19, %cst_10 [1] : vector<8x640xf32> to vector<8xf32>
    %21 = vector.shape_cast %20 : vector<8xf32> to vector<8x1xf32>
    %22 = tpu.concatenate %18, %21 in 1 : vector<8x1xf32>, vector<8x1xf32> -> vector<8x2xf32>
    %cst_11 = arith.constant 3.906250e-03 : f32
    %23 = vector.broadcast %cst_11 : f32 to vector<8x2xf32>
    %24 = arith.mulf %22, %23 : vector<8x2xf32>
    %c0_12 = arith.constant 0 : index
    %c0_13 = arith.constant 0 : index
    %25 = vector.load %arg6[%c0_12, %c0_13] : memref<8x2xf32, #tpu.memory_space<vmem>>, vector<8x2xf32>
    %26 = vector.extract_strided_slice %25 {offsets = [0, 0], sizes = [8, 1], strides = [1, 1]} : vector<8x2xf32> to vector<8x1xf32>
    %27 = vector.extract_strided_slice %25 {offsets = [0, 1], sizes = [8, 1], strides = [1, 1]} : vector<8x2xf32> to vector<8x1xf32>
    %c0_14 = arith.constant 0 : index
    %c0_15 = arith.constant 0 : index
    %28 = vector.load %arg8[%c0_14, %c0_15] : memref<8x2xf32, #tpu.memory_space<vmem>>, vector<8x2xf32>
    %29 = vector.extract_strided_slice %28 {offsets = [0, 0], sizes = [8, 1], strides = [1, 1]} : vector<8x2xf32> to vector<8x1xf32>
    %30 = vector.extract_strided_slice %28 {offsets = [0, 1], sizes = [8, 1], strides = [1, 1]} : vector<8x2xf32> to vector<8x1xf32>
    %c0_16 = arith.constant 0 : index
    %c0_17 = arith.constant 0 : index
    %31 = vector.load %arg5[%c0_16, %c0_17] : memref<8x8xf32, #tpu.memory_space<vmem>>, vector<8x8xf32>
    %cst_18 = arith.constant dense<0.000000e+00> : vector<8x2xf32>
    %32 = tpu.matmul %31, %24, %cst_18 {dimension_numbers = #tpu.dot_dimension_numbers<[1], [0], [0], [1], [0, 0, 1, 1], [], []>} : vector<8x8xf32>, vector<8x2xf32>, vector<8x2xf32> -> vector<8x2xf32>
    %33 = vector.broadcast %26 : vector<8x1xf32> to vector<8x2xf32>
    %34 = arith.mulf %32, %33 : vector<8x2xf32>
    %35 = vector.broadcast %27 : vector<8x1xf32> to vector<8x2xf32>
    %36 = arith.addf %34, %35 : vector<8x2xf32>
    %cst_19 = arith.constant 0.000000e+00 : f32
    %37 = vector.broadcast %cst_19 : f32 to vector<8x2xf32>
    %38 = arith.maximumf %36, %37 : vector<8x2xf32>
    %c0_20 = arith.constant 0 : index
    %c0_21 = arith.constant 0 : index
    %39 = vector.load %arg7[%c0_20, %c0_21] : memref<8x8xf32, #tpu.memory_space<vmem>>, vector<8x8xf32>
    %cst_22 = arith.constant dense<0.000000e+00> : vector<8x2xf32>
    %40 = tpu.matmul %39, %38, %cst_22 {dimension_numbers = #tpu.dot_dimension_numbers<[1], [0], [0], [1], [0, 0, 1, 1], [], []>} : vector<8x8xf32>, vector<8x2xf32>, vector<8x2xf32> -> vector<8x2xf32>
    %41 = vector.broadcast %29 : vector<8x1xf32> to vector<8x2xf32>
    %42 = arith.mulf %40, %41 : vector<8x2xf32>
    %43 = vector.broadcast %30 : vector<8x1xf32> to vector<8x2xf32>
    %44 = arith.addf %42, %43 : vector<8x2xf32>
    %cst_23 = arith.constant 0.000000e+00 : f32
    %45 = vector.broadcast %cst_23 : f32 to vector<8x2xf32>
    %46 = arith.maximumf %44, %45 : vector<8x2xf32>
    %47 = arith.negf %46 : vector<8x2xf32>
    %48 = math.exp %47 : vector<8x2xf32>
    %cst_24 = arith.constant 1.000000e+00 : f32
    %49 = vector.broadcast %cst_24 : f32 to vector<8x2xf32>
    %50 = arith.addf %49, %48 : vector<8x2xf32>
    %51 = arith.divf %49, %50 : vector<8x2xf32>
    %c0_25 = arith.constant 0 : index
    %c0_26 = arith.constant 0 : index
    %52 = vector.load %arg10[%c0_25, %c0_26] : memref<8x2xf32, #tpu.memory_space<vmem>>, vector<8x2xf32>
    %53 = vector.extract_strided_slice %52 {offsets = [0, 0], sizes = [8, 1], strides = [1, 1]} : vector<8x2xf32> to vector<8x1xf32>
    %54 = vector.extract_strided_slice %52 {offsets = [0, 1], sizes = [8, 1], strides = [1, 1]} : vector<8x2xf32> to vector<8x1xf32>
    %c0_27 = arith.constant 0 : index
    %c0_28 = arith.constant 0 : index
    %55 = vector.load %arg9[%c0_27, %c0_28] : memref<8x8xf32, #tpu.memory_space<vmem>>, vector<8x8xf32>
    %cst_29 = arith.constant dense<0.000000e+00> : vector<8x1280xf32>
    %56 = tpu.matmul %55, %15, %cst_29 {dimension_numbers = #tpu.dot_dimension_numbers<[1], [0], [0], [1], [0, 0, 1, 1], [], []>} : vector<8x8xf32>, vector<8x1280xf32>, vector<8x1280xf32> -> vector<8x1280xf32>
    %57 = vector.broadcast %53 : vector<8x1xf32> to vector<8x1280xf32>
    %58 = arith.mulf %56, %57 : vector<8x1280xf32>
    %59 = vector.broadcast %54 : vector<8x1xf32> to vector<8x1280xf32>
    %60 = arith.addf %58, %59 : vector<8x1280xf32>
    %cst_30 = arith.constant 0.000000e+00 : f32
    %61 = vector.broadcast %cst_30 : f32 to vector<8x1280xf32>
    %62 = arith.maximumf %60, %61 : vector<8x1280xf32>
    %63 = vector.broadcast %0 : vector<1x1280xf32> to vector<8x1280xf32>
    %64 = arith.mulf %62, %63 : vector<8x1280xf32>
    %c0_31 = arith.constant 0 : index
    %c0_32 = arith.constant 0 : index
    %65 = vector.load %arg11[%c0_31, %c0_32] : memref<8x81xf32, #tpu.memory_space<vmem>>, vector<8x81xf32>
    %cst_33 = arith.constant 0.000000e+00 : f32
    %66 = vector.broadcast %cst_33 : f32 to vector<8x1280xf32>
    %c1180_i32 = arith.constant 1180 : i32
    %67 = tpu.dynamic_rotate %64 by %c1180_i32 dim 1 : vector<8x1280xf32>, i32 -> vector<8x1280xf32>
    %68 = vector.extract_strided_slice %65 {offsets = [0, 80], sizes = [8, 1], strides = [1, 1]} : vector<8x81xf32> to vector<8x1xf32>
    %69 = vector.broadcast %68 : vector<8x1xf32> to vector<8x1280xf32>
    %70 = arith.mulf %67, %69 : vector<8x1280xf32>
    %71 = arith.addf %66, %70 : vector<8x1280xf32>
    %c1_i32 = arith.constant 1 : i32
    %72 = tpu.dynamic_rotate %67 by %c1_i32 dim 1 : vector<8x1280xf32>, i32 -> vector<8x1280xf32>
    %73 = vector.extract_strided_slice %65 {offsets = [0, 79], sizes = [8, 1], strides = [1, 1]} : vector<8x81xf32> to vector<8x1xf32>
    %74 = vector.broadcast %73 : vector<8x1xf32> to vector<8x1280xf32>
    %75 = arith.mulf %72, %74 : vector<8x1280xf32>
    %76 = arith.addf %71, %75 : vector<8x1280xf32>
    %c1_i32_34 = arith.constant 1 : i32
    %77 = tpu.dynamic_rotate %72 by %c1_i32_34 dim 1 : vector<8x1280xf32>, i32 -> vector<8x1280xf32>
    %78 = vector.extract_strided_slice %65 {offsets = [0, 78], sizes = [8, 1], strides = [1, 1]} : vector<8x81xf32> to vector<8x1xf32>
    %79 = vector.broadcast %78 : vector<8x1xf32> to vector<8x1280xf32>
    %80 = arith.mulf %77, %79 : vector<8x1280xf32>
    %81 = arith.addf %76, %80 : vector<8x1280xf32>
    %c1_i32_35 = arith.constant 1 : i32
    %82 = tpu.dynamic_rotate %77 by %c1_i32_35 dim 1 : vector<8x1280xf32>, i32 -> vector<8x1280xf32>
    %83 = vector.extract_strided_slice %65 {offsets = [0, 77], sizes = [8, 1], strides = [1, 1]} : vector<8x81xf32> to vector<8x1xf32>
    %84 = vector.broadcast %83 : vector<8x1xf32> to vector<8x1280xf32>
    %85 = arith.mulf %82, %84 : vector<8x1280xf32>
    %86 = arith.addf %81, %85 : vector<8x1280xf32>
    %c1_i32_36 = arith.constant 1 : i32
    %87 = tpu.dynamic_rotate %82 by %c1_i32_36 dim 1 : vector<8x1280xf32>, i32 -> vector<8x1280xf32>
    %88 = vector.extract_strided_slice %65 {offsets = [0, 76], sizes = [8, 1], strides = [1, 1]} : vector<8x81xf32> to vector<8x1xf32>
    %89 = vector.broadcast %88 : vector<8x1xf32> to vector<8x1280xf32>
    %90 = arith.mulf %87, %89 : vector<8x1280xf32>
    %91 = arith.addf %86, %90 : vector<8x1280xf32>
    %c1_i32_37 = arith.constant 1 : i32
    %92 = tpu.dynamic_rotate %87 by %c1_i32_37 dim 1 : vector<8x1280xf32>, i32 -> vector<8x1280xf32>
    %93 = vector.extract_strided_slice %65 {offsets = [0, 75], sizes = [8, 1], strides = [1, 1]} : vector<8x81xf32> to vector<8x1xf32>
    %94 = vector.broadcast %93 : vector<8x1xf32> to vector<8x1280xf32>
    %95 = arith.mulf %92, %94 : vector<8x1280xf32>
    %96 = arith.addf %91, %95 : vector<8x1280xf32>
    %c1_i32_38 = arith.constant 1 : i32
    %97 = tpu.dynamic_rotate %92 by %c1_i32_38 dim 1 : vector<8x1280xf32>, i32 -> vector<8x1280xf32>
    %98 = vector.extract_strided_slice %65 {offsets = [0, 74], sizes = [8, 1], strides = [1, 1]} : vector<8x81xf32> to vector<8x1xf32>
    %99 = vector.broadcast %98 : vector<8x1xf32> to vector<8x1280xf32>
    %100 = arith.mulf %97, %99 : vector<8x1280xf32>
    %101 = arith.addf %96, %100 : vector<8x1280xf32>
    %c1_i32_39 = arith.constant 1 : i32
    %102 = tpu.dynamic_rotate %97 by %c1_i32_39 dim 1 : vector<8x1280xf32>, i32 -> vector<8x1280xf32>
    %103 = vector.extract_strided_slice %65 {offsets = [0, 73], sizes = [8, 1], strides = [1, 1]} : vector<8x81xf32> to vector<8x1xf32>
    %104 = vector.broadcast %103 : vector<8x1xf32> to vector<8x1280xf32>
    %105 = arith.mulf %102, %104 : vector<8x1280xf32>
    %106 = arith.addf %101, %105 : vector<8x1280xf32>
    %c1_i32_40 = arith.constant 1 : i32
    %107 = tpu.dynamic_rotate %102 by %c1_i32_40 dim 1 : vector<8x1280xf32>, i32 -> vector<8x1280xf32>
    %108 = vector.extract_strided_slice %65 {offsets = [0, 72], sizes = [8, 1], strides = [1, 1]} : vector<8x81xf32> to vector<8x1xf32>
    %109 = vector.broadcast %108 : vector<8x1xf32> to vector<8x1280xf32>
    %110 = arith.mulf %107, %109 : vector<8x1280xf32>
    %111 = arith.addf %106, %110 : vector<8x1280xf32>
    %c24_i32 = arith.constant 24 : i32
    %112 = tpu.dynamic_rotate %67 by %c24_i32 dim 1 : vector<8x1280xf32>, i32 -> vector<8x1280xf32>
    %113 = vector.extract_strided_slice %65 {offsets = [0, 71], sizes = [8, 1], strides = [1, 1]} : vector<8x81xf32> to vector<8x1xf32>
    %114 = vector.broadcast %113 : vector<8x1xf32> to vector<8x1280xf32>
    %115 = arith.mulf %112, %114 : vector<8x1280xf32>
    %116 = arith.addf %111, %115 : vector<8x1280xf32>
    %c1_i32_41 = arith.constant 1 : i32
    %117 = tpu.dynamic_rotate %112 by %c1_i32_41 dim 1 : vector<8x1280xf32>, i32 -> vector<8x1280xf32>
    %118 = vector.extract_strided_slice %65 {offsets = [0, 70], sizes = [8, 1], strides = [1, 1]} : vector<8x81xf32> to vector<8x1xf32>
    %119 = vector.broadcast %118 : vector<8x1xf32> to vector<8x1280xf32>
    %120 = arith.mulf %117, %119 : vector<8x1280xf32>
    %121 = arith.addf %116, %120 : vector<8x1280xf32>
    %c1_i32_42 = arith.constant 1 : i32
    %122 = tpu.dynamic_rotate %117 by %c1_i32_42 dim 1 : vector<8x1280xf32>, i32 -> vector<8x1280xf32>
    %123 = vector.extract_strided_slice %65 {offsets = [0, 69], sizes = [8, 1], strides = [1, 1]} : vector<8x81xf32> to vector<8x1xf32>
    %124 = vector.broadcast %123 : vector<8x1xf32> to vector<8x1280xf32>
    %125 = arith.mulf %122, %124 : vector<8x1280xf32>
    %126 = arith.addf %121, %125 : vector<8x1280xf32>
    %c1_i32_43 = arith.constant 1 : i32
    %127 = tpu.dynamic_rotate %122 by %c1_i32_43 dim 1 : vector<8x1280xf32>, i32 -> vector<8x1280xf32>
    %128 = vector.extract_strided_slice %65 {offsets = [0, 68], sizes = [8, 1], strides = [1, 1]} : vector<8x81xf32> to vector<8x1xf32>
    %129 = vector.broadcast %128 : vector<8x1xf32> to vector<8x1280xf32>
    %130 = arith.mulf %127, %129 : vector<8x1280xf32>
    %131 = arith.addf %126, %130 : vector<8x1280xf32>
    %c1_i32_44 = arith.constant 1 : i32
    %132 = tpu.dynamic_rotate %127 by %c1_i32_44 dim 1 : vector<8x1280xf32>, i32 -> vector<8x1280xf32>
    %133 = vector.extract_strided_slice %65 {offsets = [0, 67], sizes = [8, 1], strides = [1, 1]} : vector<8x81xf32> to vector<8x1xf32>
    %134 = vector.broadcast %133 : vector<8x1xf32> to vector<8x1280xf32>
    %135 = arith.mulf %132, %134 : vector<8x1280xf32>
    %136 = arith.addf %131, %135 : vector<8x1280xf32>
    %c1_i32_45 = arith.constant 1 : i32
    %137 = tpu.dynamic_rotate %132 by %c1_i32_45 dim 1 : vector<8x1280xf32>, i32 -> vector<8x1280xf32>
    %138 = vector.extract_strided_slice %65 {offsets = [0, 66], sizes = [8, 1], strides = [1, 1]} : vector<8x81xf32> to vector<8x1xf32>
    %139 = vector.broadcast %138 : vector<8x1xf32> to vector<8x1280xf32>
    %140 = arith.mulf %137, %139 : vector<8x1280xf32>
    %141 = arith.addf %136, %140 : vector<8x1280xf32>
    %c1_i32_46 = arith.constant 1 : i32
    %142 = tpu.dynamic_rotate %137 by %c1_i32_46 dim 1 : vector<8x1280xf32>, i32 -> vector<8x1280xf32>
    %143 = vector.extract_strided_slice %65 {offsets = [0, 65], sizes = [8, 1], strides = [1, 1]} : vector<8x81xf32> to vector<8x1xf32>
    %144 = vector.broadcast %143 : vector<8x1xf32> to vector<8x1280xf32>
    %145 = arith.mulf %142, %144 : vector<8x1280xf32>
    %146 = arith.addf %141, %145 : vector<8x1280xf32>
    %c1_i32_47 = arith.constant 1 : i32
    %147 = tpu.dynamic_rotate %142 by %c1_i32_47 dim 1 : vector<8x1280xf32>, i32 -> vector<8x1280xf32>
    %148 = vector.extract_strided_slice %65 {offsets = [0, 64], sizes = [8, 1], strides = [1, 1]} : vector<8x81xf32> to vector<8x1xf32>
    %149 = vector.broadcast %148 : vector<8x1xf32> to vector<8x1280xf32>
    %150 = arith.mulf %147, %149 : vector<8x1280xf32>
    %151 = arith.addf %146, %150 : vector<8x1280xf32>
    %c1_i32_48 = arith.constant 1 : i32
    %152 = tpu.dynamic_rotate %147 by %c1_i32_48 dim 1 : vector<8x1280xf32>, i32 -> vector<8x1280xf32>
    %153 = vector.extract_strided_slice %65 {offsets = [0, 63], sizes = [8, 1], strides = [1, 1]} : vector<8x81xf32> to vector<8x1xf32>
    %154 = vector.broadcast %153 : vector<8x1xf32> to vector<8x1280xf32>
    %155 = arith.mulf %152, %154 : vector<8x1280xf32>
    %156 = arith.addf %151, %155 : vector<8x1280xf32>
    %c24_i32_49 = arith.constant 24 : i32
    %157 = tpu.dynamic_rotate %112 by %c24_i32_49 dim 1 : vector<8x1280xf32>, i32 -> vector<8x1280xf32>
    %158 = vector.extract_strided_slice %65 {offsets = [0, 62], sizes = [8, 1], strides = [1, 1]} : vector<8x81xf32> to vector<8x1xf32>
    %159 = vector.broadcast %158 : vector<8x1xf32> to vector<8x1280xf32>
    %160 = arith.mulf %157, %159 : vector<8x1280xf32>
    %161 = arith.addf %156, %160 : vector<8x1280xf32>
    %c1_i32_50 = arith.constant 1 : i32
    %162 = tpu.dynamic_rotate %157 by %c1_i32_50 dim 1 : vector<8x1280xf32>, i32 -> vector<8x1280xf32>
    %163 = vector.extract_strided_slice %65 {offsets = [0, 61], sizes = [8, 1], strides = [1, 1]} : vector<8x81xf32> to vector<8x1xf32>
    %164 = vector.broadcast %163 : vector<8x1xf32> to vector<8x1280xf32>
    %165 = arith.mulf %162, %164 : vector<8x1280xf32>
    %166 = arith.addf %161, %165 : vector<8x1280xf32>
    %c1_i32_51 = arith.constant 1 : i32
    %167 = tpu.dynamic_rotate %162 by %c1_i32_51 dim 1 : vector<8x1280xf32>, i32 -> vector<8x1280xf32>
    %168 = vector.extract_strided_slice %65 {offsets = [0, 60], sizes = [8, 1], strides = [1, 1]} : vector<8x81xf32> to vector<8x1xf32>
    %169 = vector.broadcast %168 : vector<8x1xf32> to vector<8x1280xf32>
    %170 = arith.mulf %167, %169 : vector<8x1280xf32>
    %171 = arith.addf %166, %170 : vector<8x1280xf32>
    %c1_i32_52 = arith.constant 1 : i32
    %172 = tpu.dynamic_rotate %167 by %c1_i32_52 dim 1 : vector<8x1280xf32>, i32 -> vector<8x1280xf32>
    %173 = vector.extract_strided_slice %65 {offsets = [0, 59], sizes = [8, 1], strides = [1, 1]} : vector<8x81xf32> to vector<8x1xf32>
    %174 = vector.broadcast %173 : vector<8x1xf32> to vector<8x1280xf32>
    %175 = arith.mulf %172, %174 : vector<8x1280xf32>
    %176 = arith.addf %171, %175 : vector<8x1280xf32>
    %c1_i32_53 = arith.constant 1 : i32
    %177 = tpu.dynamic_rotate %172 by %c1_i32_53 dim 1 : vector<8x1280xf32>, i32 -> vector<8x1280xf32>
    %178 = vector.extract_strided_slice %65 {offsets = [0, 58], sizes = [8, 1], strides = [1, 1]} : vector<8x81xf32> to vector<8x1xf32>
    %179 = vector.broadcast %178 : vector<8x1xf32> to vector<8x1280xf32>
    %180 = arith.mulf %177, %179 : vector<8x1280xf32>
    %181 = arith.addf %176, %180 : vector<8x1280xf32>
    %c1_i32_54 = arith.constant 1 : i32
    %182 = tpu.dynamic_rotate %177 by %c1_i32_54 dim 1 : vector<8x1280xf32>, i32 -> vector<8x1280xf32>
    %183 = vector.extract_strided_slice %65 {offsets = [0, 57], sizes = [8, 1], strides = [1, 1]} : vector<8x81xf32> to vector<8x1xf32>
    %184 = vector.broadcast %183 : vector<8x1xf32> to vector<8x1280xf32>
    %185 = arith.mulf %182, %184 : vector<8x1280xf32>
    %186 = arith.addf %181, %185 : vector<8x1280xf32>
    %c1_i32_55 = arith.constant 1 : i32
    %187 = tpu.dynamic_rotate %182 by %c1_i32_55 dim 1 : vector<8x1280xf32>, i32 -> vector<8x1280xf32>
    %188 = vector.extract_strided_slice %65 {offsets = [0, 56], sizes = [8, 1], strides = [1, 1]} : vector<8x81xf32> to vector<8x1xf32>
    %189 = vector.broadcast %188 : vector<8x1xf32> to vector<8x1280xf32>
    %190 = arith.mulf %187, %189 : vector<8x1280xf32>
    %191 = arith.addf %186, %190 : vector<8x1280xf32>
    %c1_i32_56 = arith.constant 1 : i32
    %192 = tpu.dynamic_rotate %187 by %c1_i32_56 dim 1 : vector<8x1280xf32>, i32 -> vector<8x1280xf32>
    %193 = vector.extract_strided_slice %65 {offsets = [0, 55], sizes = [8, 1], strides = [1, 1]} : vector<8x81xf32> to vector<8x1xf32>
    %194 = vector.broadcast %193 : vector<8x1xf32> to vector<8x1280xf32>
    %195 = arith.mulf %192, %194 : vector<8x1280xf32>
    %196 = arith.addf %191, %195 : vector<8x1280xf32>
    %c1_i32_57 = arith.constant 1 : i32
    %197 = tpu.dynamic_rotate %192 by %c1_i32_57 dim 1 : vector<8x1280xf32>, i32 -> vector<8x1280xf32>
    %198 = vector.extract_strided_slice %65 {offsets = [0, 54], sizes = [8, 1], strides = [1, 1]} : vector<8x81xf32> to vector<8x1xf32>
    %199 = vector.broadcast %198 : vector<8x1xf32> to vector<8x1280xf32>
    %200 = arith.mulf %197, %199 : vector<8x1280xf32>
    %201 = arith.addf %196, %200 : vector<8x1280xf32>
    %c24_i32_58 = arith.constant 24 : i32
    %202 = tpu.dynamic_rotate %157 by %c24_i32_58 dim 1 : vector<8x1280xf32>, i32 -> vector<8x1280xf32>
    %203 = vector.extract_strided_slice %65 {offsets = [0, 53], sizes = [8, 1], strides = [1, 1]} : vector<8x81xf32> to vector<8x1xf32>
    %204 = vector.broadcast %203 : vector<8x1xf32> to vector<8x1280xf32>
    %205 = arith.mulf %202, %204 : vector<8x1280xf32>
    %206 = arith.addf %201, %205 : vector<8x1280xf32>
    %c1_i32_59 = arith.constant 1 : i32
    %207 = tpu.dynamic_rotate %202 by %c1_i32_59 dim 1 : vector<8x1280xf32>, i32 -> vector<8x1280xf32>
    %208 = vector.extract_strided_slice %65 {offsets = [0, 52], sizes = [8, 1], strides = [1, 1]} : vector<8x81xf32> to vector<8x1xf32>
    %209 = vector.broadcast %208 : vector<8x1xf32> to vector<8x1280xf32>
    %210 = arith.mulf %207, %209 : vector<8x1280xf32>
    %211 = arith.addf %206, %210 : vector<8x1280xf32>
    %c1_i32_60 = arith.constant 1 : i32
    %212 = tpu.dynamic_rotate %207 by %c1_i32_60 dim 1 : vector<8x1280xf32>, i32 -> vector<8x1280xf32>
    %213 = vector.extract_strided_slice %65 {offsets = [0, 51], sizes = [8, 1], strides = [1, 1]} : vector<8x81xf32> to vector<8x1xf32>
    %214 = vector.broadcast %213 : vector<8x1xf32> to vector<8x1280xf32>
    %215 = arith.mulf %212, %214 : vector<8x1280xf32>
    %216 = arith.addf %211, %215 : vector<8x1280xf32>
    %c1_i32_61 = arith.constant 1 : i32
    %217 = tpu.dynamic_rotate %212 by %c1_i32_61 dim 1 : vector<8x1280xf32>, i32 -> vector<8x1280xf32>
    %218 = vector.extract_strided_slice %65 {offsets = [0, 50], sizes = [8, 1], strides = [1, 1]} : vector<8x81xf32> to vector<8x1xf32>
    %219 = vector.broadcast %218 : vector<8x1xf32> to vector<8x1280xf32>
    %220 = arith.mulf %217, %219 : vector<8x1280xf32>
    %221 = arith.addf %216, %220 : vector<8x1280xf32>
    %c1_i32_62 = arith.constant 1 : i32
    %222 = tpu.dynamic_rotate %217 by %c1_i32_62 dim 1 : vector<8x1280xf32>, i32 -> vector<8x1280xf32>
    %223 = vector.extract_strided_slice %65 {offsets = [0, 49], sizes = [8, 1], strides = [1, 1]} : vector<8x81xf32> to vector<8x1xf32>
    %224 = vector.broadcast %223 : vector<8x1xf32> to vector<8x1280xf32>
    %225 = arith.mulf %222, %224 : vector<8x1280xf32>
    %226 = arith.addf %221, %225 : vector<8x1280xf32>
    %c1_i32_63 = arith.constant 1 : i32
    %227 = tpu.dynamic_rotate %222 by %c1_i32_63 dim 1 : vector<8x1280xf32>, i32 -> vector<8x1280xf32>
    %228 = vector.extract_strided_slice %65 {offsets = [0, 48], sizes = [8, 1], strides = [1, 1]} : vector<8x81xf32> to vector<8x1xf32>
    %229 = vector.broadcast %228 : vector<8x1xf32> to vector<8x1280xf32>
    %230 = arith.mulf %227, %229 : vector<8x1280xf32>
    %231 = arith.addf %226, %230 : vector<8x1280xf32>
    %c1_i32_64 = arith.constant 1 : i32
    %232 = tpu.dynamic_rotate %227 by %c1_i32_64 dim 1 : vector<8x1280xf32>, i32 -> vector<8x1280xf32>
    %233 = vector.extract_strided_slice %65 {offsets = [0, 47], sizes = [8, 1], strides = [1, 1]} : vector<8x81xf32> to vector<8x1xf32>
    %234 = vector.broadcast %233 : vector<8x1xf32> to vector<8x1280xf32>
    %235 = arith.mulf %232, %234 : vector<8x1280xf32>
    %236 = arith.addf %231, %235 : vector<8x1280xf32>
    %c1_i32_65 = arith.constant 1 : i32
    %237 = tpu.dynamic_rotate %232 by %c1_i32_65 dim 1 : vector<8x1280xf32>, i32 -> vector<8x1280xf32>
    %238 = vector.extract_strided_slice %65 {offsets = [0, 46], sizes = [8, 1], strides = [1, 1]} : vector<8x81xf32> to vector<8x1xf32>
    %239 = vector.broadcast %238 : vector<8x1xf32> to vector<8x1280xf32>
    %240 = arith.mulf %237, %239 : vector<8x1280xf32>
    %241 = arith.addf %236, %240 : vector<8x1280xf32>
    %c1_i32_66 = arith.constant 1 : i32
    %242 = tpu.dynamic_rotate %237 by %c1_i32_66 dim 1 : vector<8x1280xf32>, i32 -> vector<8x1280xf32>
    %243 = vector.extract_strided_slice %65 {offsets = [0, 45], sizes = [8, 1], strides = [1, 1]} : vector<8x81xf32> to vector<8x1xf32>
    %244 = vector.broadcast %243 : vector<8x1xf32> to vector<8x1280xf32>
    %245 = arith.mulf %242, %244 : vector<8x1280xf32>
    %246 = arith.addf %241, %245 : vector<8x1280xf32>
    %c24_i32_67 = arith.constant 24 : i32
    %247 = tpu.dynamic_rotate %202 by %c24_i32_67 dim 1 : vector<8x1280xf32>, i32 -> vector<8x1280xf32>
    %248 = vector.extract_strided_slice %65 {offsets = [0, 44], sizes = [8, 1], strides = [1, 1]} : vector<8x81xf32> to vector<8x1xf32>
    %249 = vector.broadcast %248 : vector<8x1xf32> to vector<8x1280xf32>
    %250 = arith.mulf %247, %249 : vector<8x1280xf32>
    %251 = arith.addf %246, %250 : vector<8x1280xf32>
    %c1_i32_68 = arith.constant 1 : i32
    %252 = tpu.dynamic_rotate %247 by %c1_i32_68 dim 1 : vector<8x1280xf32>, i32 -> vector<8x1280xf32>
    %253 = vector.extract_strided_slice %65 {offsets = [0, 43], sizes = [8, 1], strides = [1, 1]} : vector<8x81xf32> to vector<8x1xf32>
    %254 = vector.broadcast %253 : vector<8x1xf32> to vector<8x1280xf32>
    %255 = arith.mulf %252, %254 : vector<8x1280xf32>
    %256 = arith.addf %251, %255 : vector<8x1280xf32>
    %c1_i32_69 = arith.constant 1 : i32
    %257 = tpu.dynamic_rotate %252 by %c1_i32_69 dim 1 : vector<8x1280xf32>, i32 -> vector<8x1280xf32>
    %258 = vector.extract_strided_slice %65 {offsets = [0, 42], sizes = [8, 1], strides = [1, 1]} : vector<8x81xf32> to vector<8x1xf32>
    %259 = vector.broadcast %258 : vector<8x1xf32> to vector<8x1280xf32>
    %260 = arith.mulf %257, %259 : vector<8x1280xf32>
    %261 = arith.addf %256, %260 : vector<8x1280xf32>
    %c1_i32_70 = arith.constant 1 : i32
    %262 = tpu.dynamic_rotate %257 by %c1_i32_70 dim 1 : vector<8x1280xf32>, i32 -> vector<8x1280xf32>
    %263 = vector.extract_strided_slice %65 {offsets = [0, 41], sizes = [8, 1], strides = [1, 1]} : vector<8x81xf32> to vector<8x1xf32>
    %264 = vector.broadcast %263 : vector<8x1xf32> to vector<8x1280xf32>
    %265 = arith.mulf %262, %264 : vector<8x1280xf32>
    %266 = arith.addf %261, %265 : vector<8x1280xf32>
    %c1_i32_71 = arith.constant 1 : i32
    %267 = tpu.dynamic_rotate %262 by %c1_i32_71 dim 1 : vector<8x1280xf32>, i32 -> vector<8x1280xf32>
    %268 = vector.extract_strided_slice %65 {offsets = [0, 40], sizes = [8, 1], strides = [1, 1]} : vector<8x81xf32> to vector<8x1xf32>
    %269 = vector.broadcast %268 : vector<8x1xf32> to vector<8x1280xf32>
    %270 = arith.mulf %267, %269 : vector<8x1280xf32>
    %271 = arith.addf %266, %270 : vector<8x1280xf32>
    %c1_i32_72 = arith.constant 1 : i32
    %272 = tpu.dynamic_rotate %267 by %c1_i32_72 dim 1 : vector<8x1280xf32>, i32 -> vector<8x1280xf32>
    %273 = vector.extract_strided_slice %65 {offsets = [0, 39], sizes = [8, 1], strides = [1, 1]} : vector<8x81xf32> to vector<8x1xf32>
    %274 = vector.broadcast %273 : vector<8x1xf32> to vector<8x1280xf32>
    %275 = arith.mulf %272, %274 : vector<8x1280xf32>
    %276 = arith.addf %271, %275 : vector<8x1280xf32>
    %c1_i32_73 = arith.constant 1 : i32
    %277 = tpu.dynamic_rotate %272 by %c1_i32_73 dim 1 : vector<8x1280xf32>, i32 -> vector<8x1280xf32>
    %278 = vector.extract_strided_slice %65 {offsets = [0, 38], sizes = [8, 1], strides = [1, 1]} : vector<8x81xf32> to vector<8x1xf32>
    %279 = vector.broadcast %278 : vector<8x1xf32> to vector<8x1280xf32>
    %280 = arith.mulf %277, %279 : vector<8x1280xf32>
    %281 = arith.addf %276, %280 : vector<8x1280xf32>
    %c1_i32_74 = arith.constant 1 : i32
    %282 = tpu.dynamic_rotate %277 by %c1_i32_74 dim 1 : vector<8x1280xf32>, i32 -> vector<8x1280xf32>
    %283 = vector.extract_strided_slice %65 {offsets = [0, 37], sizes = [8, 1], strides = [1, 1]} : vector<8x81xf32> to vector<8x1xf32>
    %284 = vector.broadcast %283 : vector<8x1xf32> to vector<8x1280xf32>
    %285 = arith.mulf %282, %284 : vector<8x1280xf32>
    %286 = arith.addf %281, %285 : vector<8x1280xf32>
    %c1_i32_75 = arith.constant 1 : i32
    %287 = tpu.dynamic_rotate %282 by %c1_i32_75 dim 1 : vector<8x1280xf32>, i32 -> vector<8x1280xf32>
    %288 = vector.extract_strided_slice %65 {offsets = [0, 36], sizes = [8, 1], strides = [1, 1]} : vector<8x81xf32> to vector<8x1xf32>
    %289 = vector.broadcast %288 : vector<8x1xf32> to vector<8x1280xf32>
    %290 = arith.mulf %287, %289 : vector<8x1280xf32>
    %291 = arith.addf %286, %290 : vector<8x1280xf32>
    %c24_i32_76 = arith.constant 24 : i32
    %292 = tpu.dynamic_rotate %247 by %c24_i32_76 dim 1 : vector<8x1280xf32>, i32 -> vector<8x1280xf32>
    %293 = vector.extract_strided_slice %65 {offsets = [0, 35], sizes = [8, 1], strides = [1, 1]} : vector<8x81xf32> to vector<8x1xf32>
    %294 = vector.broadcast %293 : vector<8x1xf32> to vector<8x1280xf32>
    %295 = arith.mulf %292, %294 : vector<8x1280xf32>
    %296 = arith.addf %291, %295 : vector<8x1280xf32>
    %c1_i32_77 = arith.constant 1 : i32
    %297 = tpu.dynamic_rotate %292 by %c1_i32_77 dim 1 : vector<8x1280xf32>, i32 -> vector<8x1280xf32>
    %298 = vector.extract_strided_slice %65 {offsets = [0, 34], sizes = [8, 1], strides = [1, 1]} : vector<8x81xf32> to vector<8x1xf32>
    %299 = vector.broadcast %298 : vector<8x1xf32> to vector<8x1280xf32>
    %300 = arith.mulf %297, %299 : vector<8x1280xf32>
    %301 = arith.addf %296, %300 : vector<8x1280xf32>
    %c1_i32_78 = arith.constant 1 : i32
    %302 = tpu.dynamic_rotate %297 by %c1_i32_78 dim 1 : vector<8x1280xf32>, i32 -> vector<8x1280xf32>
    %303 = vector.extract_strided_slice %65 {offsets = [0, 33], sizes = [8, 1], strides = [1, 1]} : vector<8x81xf32> to vector<8x1xf32>
    %304 = vector.broadcast %303 : vector<8x1xf32> to vector<8x1280xf32>
    %305 = arith.mulf %302, %304 : vector<8x1280xf32>
    %306 = arith.addf %301, %305 : vector<8x1280xf32>
    %c1_i32_79 = arith.constant 1 : i32
    %307 = tpu.dynamic_rotate %302 by %c1_i32_79 dim 1 : vector<8x1280xf32>, i32 -> vector<8x1280xf32>
    %308 = vector.extract_strided_slice %65 {offsets = [0, 32], sizes = [8, 1], strides = [1, 1]} : vector<8x81xf32> to vector<8x1xf32>
    %309 = vector.broadcast %308 : vector<8x1xf32> to vector<8x1280xf32>
    %310 = arith.mulf %307, %309 : vector<8x1280xf32>
    %311 = arith.addf %306, %310 : vector<8x1280xf32>
    %c1_i32_80 = arith.constant 1 : i32
    %312 = tpu.dynamic_rotate %307 by %c1_i32_80 dim 1 : vector<8x1280xf32>, i32 -> vector<8x1280xf32>
    %313 = vector.extract_strided_slice %65 {offsets = [0, 31], sizes = [8, 1], strides = [1, 1]} : vector<8x81xf32> to vector<8x1xf32>
    %314 = vector.broadcast %313 : vector<8x1xf32> to vector<8x1280xf32>
    %315 = arith.mulf %312, %314 : vector<8x1280xf32>
    %316 = arith.addf %311, %315 : vector<8x1280xf32>
    %c1_i32_81 = arith.constant 1 : i32
    %317 = tpu.dynamic_rotate %312 by %c1_i32_81 dim 1 : vector<8x1280xf32>, i32 -> vector<8x1280xf32>
    %318 = vector.extract_strided_slice %65 {offsets = [0, 30], sizes = [8, 1], strides = [1, 1]} : vector<8x81xf32> to vector<8x1xf32>
    %319 = vector.broadcast %318 : vector<8x1xf32> to vector<8x1280xf32>
    %320 = arith.mulf %317, %319 : vector<8x1280xf32>
    %321 = arith.addf %316, %320 : vector<8x1280xf32>
    %c1_i32_82 = arith.constant 1 : i32
    %322 = tpu.dynamic_rotate %317 by %c1_i32_82 dim 1 : vector<8x1280xf32>, i32 -> vector<8x1280xf32>
    %323 = vector.extract_strided_slice %65 {offsets = [0, 29], sizes = [8, 1], strides = [1, 1]} : vector<8x81xf32> to vector<8x1xf32>
    %324 = vector.broadcast %323 : vector<8x1xf32> to vector<8x1280xf32>
    %325 = arith.mulf %322, %324 : vector<8x1280xf32>
    %326 = arith.addf %321, %325 : vector<8x1280xf32>
    %c1_i32_83 = arith.constant 1 : i32
    %327 = tpu.dynamic_rotate %322 by %c1_i32_83 dim 1 : vector<8x1280xf32>, i32 -> vector<8x1280xf32>
    %328 = vector.extract_strided_slice %65 {offsets = [0, 28], sizes = [8, 1], strides = [1, 1]} : vector<8x81xf32> to vector<8x1xf32>
    %329 = vector.broadcast %328 : vector<8x1xf32> to vector<8x1280xf32>
    %330 = arith.mulf %327, %329 : vector<8x1280xf32>
    %331 = arith.addf %326, %330 : vector<8x1280xf32>
    %c1_i32_84 = arith.constant 1 : i32
    %332 = tpu.dynamic_rotate %327 by %c1_i32_84 dim 1 : vector<8x1280xf32>, i32 -> vector<8x1280xf32>
    %333 = vector.extract_strided_slice %65 {offsets = [0, 27], sizes = [8, 1], strides = [1, 1]} : vector<8x81xf32> to vector<8x1xf32>
    %334 = vector.broadcast %333 : vector<8x1xf32> to vector<8x1280xf32>
    %335 = arith.mulf %332, %334 : vector<8x1280xf32>
    %336 = arith.addf %331, %335 : vector<8x1280xf32>
    %c24_i32_85 = arith.constant 24 : i32
    %337 = tpu.dynamic_rotate %292 by %c24_i32_85 dim 1 : vector<8x1280xf32>, i32 -> vector<8x1280xf32>
    %338 = vector.extract_strided_slice %65 {offsets = [0, 26], sizes = [8, 1], strides = [1, 1]} : vector<8x81xf32> to vector<8x1xf32>
    %339 = vector.broadcast %338 : vector<8x1xf32> to vector<8x1280xf32>
    %340 = arith.mulf %337, %339 : vector<8x1280xf32>
    %341 = arith.addf %336, %340 : vector<8x1280xf32>
    %c1_i32_86 = arith.constant 1 : i32
    %342 = tpu.dynamic_rotate %337 by %c1_i32_86 dim 1 : vector<8x1280xf32>, i32 -> vector<8x1280xf32>
    %343 = vector.extract_strided_slice %65 {offsets = [0, 25], sizes = [8, 1], strides = [1, 1]} : vector<8x81xf32> to vector<8x1xf32>
    %344 = vector.broadcast %343 : vector<8x1xf32> to vector<8x1280xf32>
    %345 = arith.mulf %342, %344 : vector<8x1280xf32>
    %346 = arith.addf %341, %345 : vector<8x1280xf32>
    %c1_i32_87 = arith.constant 1 : i32
    %347 = tpu.dynamic_rotate %342 by %c1_i32_87 dim 1 : vector<8x1280xf32>, i32 -> vector<8x1280xf32>
    %348 = vector.extract_strided_slice %65 {offsets = [0, 24], sizes = [8, 1], strides = [1, 1]} : vector<8x81xf32> to vector<8x1xf32>
    %349 = vector.broadcast %348 : vector<8x1xf32> to vector<8x1280xf32>
    %350 = arith.mulf %347, %349 : vector<8x1280xf32>
    %351 = arith.addf %346, %350 : vector<8x1280xf32>
    %c1_i32_88 = arith.constant 1 : i32
    %352 = tpu.dynamic_rotate %347 by %c1_i32_88 dim 1 : vector<8x1280xf32>, i32 -> vector<8x1280xf32>
    %353 = vector.extract_strided_slice %65 {offsets = [0, 23], sizes = [8, 1], strides = [1, 1]} : vector<8x81xf32> to vector<8x1xf32>
    %354 = vector.broadcast %353 : vector<8x1xf32> to vector<8x1280xf32>
    %355 = arith.mulf %352, %354 : vector<8x1280xf32>
    %356 = arith.addf %351, %355 : vector<8x1280xf32>
    %c1_i32_89 = arith.constant 1 : i32
    %357 = tpu.dynamic_rotate %352 by %c1_i32_89 dim 1 : vector<8x1280xf32>, i32 -> vector<8x1280xf32>
    %358 = vector.extract_strided_slice %65 {offsets = [0, 22], sizes = [8, 1], strides = [1, 1]} : vector<8x81xf32> to vector<8x1xf32>
    %359 = vector.broadcast %358 : vector<8x1xf32> to vector<8x1280xf32>
    %360 = arith.mulf %357, %359 : vector<8x1280xf32>
    %361 = arith.addf %356, %360 : vector<8x1280xf32>
    %c1_i32_90 = arith.constant 1 : i32
    %362 = tpu.dynamic_rotate %357 by %c1_i32_90 dim 1 : vector<8x1280xf32>, i32 -> vector<8x1280xf32>
    %363 = vector.extract_strided_slice %65 {offsets = [0, 21], sizes = [8, 1], strides = [1, 1]} : vector<8x81xf32> to vector<8x1xf32>
    %364 = vector.broadcast %363 : vector<8x1xf32> to vector<8x1280xf32>
    %365 = arith.mulf %362, %364 : vector<8x1280xf32>
    %366 = arith.addf %361, %365 : vector<8x1280xf32>
    %c1_i32_91 = arith.constant 1 : i32
    %367 = tpu.dynamic_rotate %362 by %c1_i32_91 dim 1 : vector<8x1280xf32>, i32 -> vector<8x1280xf32>
    %368 = vector.extract_strided_slice %65 {offsets = [0, 20], sizes = [8, 1], strides = [1, 1]} : vector<8x81xf32> to vector<8x1xf32>
    %369 = vector.broadcast %368 : vector<8x1xf32> to vector<8x1280xf32>
    %370 = arith.mulf %367, %369 : vector<8x1280xf32>
    %371 = arith.addf %366, %370 : vector<8x1280xf32>
    %c1_i32_92 = arith.constant 1 : i32
    %372 = tpu.dynamic_rotate %367 by %c1_i32_92 dim 1 : vector<8x1280xf32>, i32 -> vector<8x1280xf32>
    %373 = vector.extract_strided_slice %65 {offsets = [0, 19], sizes = [8, 1], strides = [1, 1]} : vector<8x81xf32> to vector<8x1xf32>
    %374 = vector.broadcast %373 : vector<8x1xf32> to vector<8x1280xf32>
    %375 = arith.mulf %372, %374 : vector<8x1280xf32>
    %376 = arith.addf %371, %375 : vector<8x1280xf32>
    %c1_i32_93 = arith.constant 1 : i32
    %377 = tpu.dynamic_rotate %372 by %c1_i32_93 dim 1 : vector<8x1280xf32>, i32 -> vector<8x1280xf32>
    %378 = vector.extract_strided_slice %65 {offsets = [0, 18], sizes = [8, 1], strides = [1, 1]} : vector<8x81xf32> to vector<8x1xf32>
    %379 = vector.broadcast %378 : vector<8x1xf32> to vector<8x1280xf32>
    %380 = arith.mulf %377, %379 : vector<8x1280xf32>
    %381 = arith.addf %376, %380 : vector<8x1280xf32>
    %c24_i32_94 = arith.constant 24 : i32
    %382 = tpu.dynamic_rotate %337 by %c24_i32_94 dim 1 : vector<8x1280xf32>, i32 -> vector<8x1280xf32>
    %383 = vector.extract_strided_slice %65 {offsets = [0, 17], sizes = [8, 1], strides = [1, 1]} : vector<8x81xf32> to vector<8x1xf32>
    %384 = vector.broadcast %383 : vector<8x1xf32> to vector<8x1280xf32>
    %385 = arith.mulf %382, %384 : vector<8x1280xf32>
    %386 = arith.addf %381, %385 : vector<8x1280xf32>
    %c1_i32_95 = arith.constant 1 : i32
    %387 = tpu.dynamic_rotate %382 by %c1_i32_95 dim 1 : vector<8x1280xf32>, i32 -> vector<8x1280xf32>
    %388 = vector.extract_strided_slice %65 {offsets = [0, 16], sizes = [8, 1], strides = [1, 1]} : vector<8x81xf32> to vector<8x1xf32>
    %389 = vector.broadcast %388 : vector<8x1xf32> to vector<8x1280xf32>
    %390 = arith.mulf %387, %389 : vector<8x1280xf32>
    %391 = arith.addf %386, %390 : vector<8x1280xf32>
    %c1_i32_96 = arith.constant 1 : i32
    %392 = tpu.dynamic_rotate %387 by %c1_i32_96 dim 1 : vector<8x1280xf32>, i32 -> vector<8x1280xf32>
    %393 = vector.extract_strided_slice %65 {offsets = [0, 15], sizes = [8, 1], strides = [1, 1]} : vector<8x81xf32> to vector<8x1xf32>
    %394 = vector.broadcast %393 : vector<8x1xf32> to vector<8x1280xf32>
    %395 = arith.mulf %392, %394 : vector<8x1280xf32>
    %396 = arith.addf %391, %395 : vector<8x1280xf32>
    %c1_i32_97 = arith.constant 1 : i32
    %397 = tpu.dynamic_rotate %392 by %c1_i32_97 dim 1 : vector<8x1280xf32>, i32 -> vector<8x1280xf32>
    %398 = vector.extract_strided_slice %65 {offsets = [0, 14], sizes = [8, 1], strides = [1, 1]} : vector<8x81xf32> to vector<8x1xf32>
    %399 = vector.broadcast %398 : vector<8x1xf32> to vector<8x1280xf32>
    %400 = arith.mulf %397, %399 : vector<8x1280xf32>
    %401 = arith.addf %396, %400 : vector<8x1280xf32>
    %c1_i32_98 = arith.constant 1 : i32
    %402 = tpu.dynamic_rotate %397 by %c1_i32_98 dim 1 : vector<8x1280xf32>, i32 -> vector<8x1280xf32>
    %403 = vector.extract_strided_slice %65 {offsets = [0, 13], sizes = [8, 1], strides = [1, 1]} : vector<8x81xf32> to vector<8x1xf32>
    %404 = vector.broadcast %403 : vector<8x1xf32> to vector<8x1280xf32>
    %405 = arith.mulf %402, %404 : vector<8x1280xf32>
    %406 = arith.addf %401, %405 : vector<8x1280xf32>
    %c1_i32_99 = arith.constant 1 : i32
    %407 = tpu.dynamic_rotate %402 by %c1_i32_99 dim 1 : vector<8x1280xf32>, i32 -> vector<8x1280xf32>
    %408 = vector.extract_strided_slice %65 {offsets = [0, 12], sizes = [8, 1], strides = [1, 1]} : vector<8x81xf32> to vector<8x1xf32>
    %409 = vector.broadcast %408 : vector<8x1xf32> to vector<8x1280xf32>
    %410 = arith.mulf %407, %409 : vector<8x1280xf32>
    %411 = arith.addf %406, %410 : vector<8x1280xf32>
    %c1_i32_100 = arith.constant 1 : i32
    %412 = tpu.dynamic_rotate %407 by %c1_i32_100 dim 1 : vector<8x1280xf32>, i32 -> vector<8x1280xf32>
    %413 = vector.extract_strided_slice %65 {offsets = [0, 11], sizes = [8, 1], strides = [1, 1]} : vector<8x81xf32> to vector<8x1xf32>
    %414 = vector.broadcast %413 : vector<8x1xf32> to vector<8x1280xf32>
    %415 = arith.mulf %412, %414 : vector<8x1280xf32>
    %416 = arith.addf %411, %415 : vector<8x1280xf32>
    %c1_i32_101 = arith.constant 1 : i32
    %417 = tpu.dynamic_rotate %412 by %c1_i32_101 dim 1 : vector<8x1280xf32>, i32 -> vector<8x1280xf32>
    %418 = vector.extract_strided_slice %65 {offsets = [0, 10], sizes = [8, 1], strides = [1, 1]} : vector<8x81xf32> to vector<8x1xf32>
    %419 = vector.broadcast %418 : vector<8x1xf32> to vector<8x1280xf32>
    %420 = arith.mulf %417, %419 : vector<8x1280xf32>
    %421 = arith.addf %416, %420 : vector<8x1280xf32>
    %c1_i32_102 = arith.constant 1 : i32
    %422 = tpu.dynamic_rotate %417 by %c1_i32_102 dim 1 : vector<8x1280xf32>, i32 -> vector<8x1280xf32>
    %423 = vector.extract_strided_slice %65 {offsets = [0, 9], sizes = [8, 1], strides = [1, 1]} : vector<8x81xf32> to vector<8x1xf32>
    %424 = vector.broadcast %423 : vector<8x1xf32> to vector<8x1280xf32>
    %425 = arith.mulf %422, %424 : vector<8x1280xf32>
    %426 = arith.addf %421, %425 : vector<8x1280xf32>
    %c24_i32_103 = arith.constant 24 : i32
    %427 = tpu.dynamic_rotate %382 by %c24_i32_103 dim 1 : vector<8x1280xf32>, i32 -> vector<8x1280xf32>
    %428 = vector.extract_strided_slice %65 {offsets = [0, 8], sizes = [8, 1], strides = [1, 1]} : vector<8x81xf32> to vector<8x1xf32>
    %429 = vector.broadcast %428 : vector<8x1xf32> to vector<8x1280xf32>
    %430 = arith.mulf %427, %429 : vector<8x1280xf32>
    %431 = arith.addf %426, %430 : vector<8x1280xf32>
    %c1_i32_104 = arith.constant 1 : i32
    %432 = tpu.dynamic_rotate %427 by %c1_i32_104 dim 1 : vector<8x1280xf32>, i32 -> vector<8x1280xf32>
    %433 = vector.extract_strided_slice %65 {offsets = [0, 7], sizes = [8, 1], strides = [1, 1]} : vector<8x81xf32> to vector<8x1xf32>
    %434 = vector.broadcast %433 : vector<8x1xf32> to vector<8x1280xf32>
    %435 = arith.mulf %432, %434 : vector<8x1280xf32>
    %436 = arith.addf %431, %435 : vector<8x1280xf32>
    %c1_i32_105 = arith.constant 1 : i32
    %437 = tpu.dynamic_rotate %432 by %c1_i32_105 dim 1 : vector<8x1280xf32>, i32 -> vector<8x1280xf32>
    %438 = vector.extract_strided_slice %65 {offsets = [0, 6], sizes = [8, 1], strides = [1, 1]} : vector<8x81xf32> to vector<8x1xf32>
    %439 = vector.broadcast %438 : vector<8x1xf32> to vector<8x1280xf32>
    %440 = arith.mulf %437, %439 : vector<8x1280xf32>
    %441 = arith.addf %436, %440 : vector<8x1280xf32>
    %c1_i32_106 = arith.constant 1 : i32
    %442 = tpu.dynamic_rotate %437 by %c1_i32_106 dim 1 : vector<8x1280xf32>, i32 -> vector<8x1280xf32>
    %443 = vector.extract_strided_slice %65 {offsets = [0, 5], sizes = [8, 1], strides = [1, 1]} : vector<8x81xf32> to vector<8x1xf32>
    %444 = vector.broadcast %443 : vector<8x1xf32> to vector<8x1280xf32>
    %445 = arith.mulf %442, %444 : vector<8x1280xf32>
    %446 = arith.addf %441, %445 : vector<8x1280xf32>
    %c1_i32_107 = arith.constant 1 : i32
    %447 = tpu.dynamic_rotate %442 by %c1_i32_107 dim 1 : vector<8x1280xf32>, i32 -> vector<8x1280xf32>
    %448 = vector.extract_strided_slice %65 {offsets = [0, 4], sizes = [8, 1], strides = [1, 1]} : vector<8x81xf32> to vector<8x1xf32>
    %449 = vector.broadcast %448 : vector<8x1xf32> to vector<8x1280xf32>
    %450 = arith.mulf %447, %449 : vector<8x1280xf32>
    %451 = arith.addf %446, %450 : vector<8x1280xf32>
    %c1_i32_108 = arith.constant 1 : i32
    %452 = tpu.dynamic_rotate %447 by %c1_i32_108 dim 1 : vector<8x1280xf32>, i32 -> vector<8x1280xf32>
    %453 = vector.extract_strided_slice %65 {offsets = [0, 3], sizes = [8, 1], strides = [1, 1]} : vector<8x81xf32> to vector<8x1xf32>
    %454 = vector.broadcast %453 : vector<8x1xf32> to vector<8x1280xf32>
    %455 = arith.mulf %452, %454 : vector<8x1280xf32>
    %456 = arith.addf %451, %455 : vector<8x1280xf32>
    %c1_i32_109 = arith.constant 1 : i32
    %457 = tpu.dynamic_rotate %452 by %c1_i32_109 dim 1 : vector<8x1280xf32>, i32 -> vector<8x1280xf32>
    %458 = vector.extract_strided_slice %65 {offsets = [0, 2], sizes = [8, 1], strides = [1, 1]} : vector<8x81xf32> to vector<8x1xf32>
    %459 = vector.broadcast %458 : vector<8x1xf32> to vector<8x1280xf32>
    %460 = arith.mulf %457, %459 : vector<8x1280xf32>
    %461 = arith.addf %456, %460 : vector<8x1280xf32>
    %c1_i32_110 = arith.constant 1 : i32
    %462 = tpu.dynamic_rotate %457 by %c1_i32_110 dim 1 : vector<8x1280xf32>, i32 -> vector<8x1280xf32>
    %463 = vector.extract_strided_slice %65 {offsets = [0, 1], sizes = [8, 1], strides = [1, 1]} : vector<8x81xf32> to vector<8x1xf32>
    %464 = vector.broadcast %463 : vector<8x1xf32> to vector<8x1280xf32>
    %465 = arith.mulf %462, %464 : vector<8x1280xf32>
    %466 = arith.addf %461, %465 : vector<8x1280xf32>
    %c1_i32_111 = arith.constant 1 : i32
    %467 = tpu.dynamic_rotate %462 by %c1_i32_111 dim 1 : vector<8x1280xf32>, i32 -> vector<8x1280xf32>
    %468 = vector.extract_strided_slice %65 {offsets = [0, 0], sizes = [8, 1], strides = [1, 1]} : vector<8x81xf32> to vector<8x1xf32>
    %469 = vector.broadcast %468 : vector<8x1xf32> to vector<8x1280xf32>
    %470 = arith.mulf %467, %469 : vector<8x1280xf32>
    %471 = arith.addf %466, %470 : vector<8x1280xf32>
    %c0_112 = arith.constant 0 : index
    %c0_113 = arith.constant 0 : index
    %472 = vector.load %arg12[%c0_112, %c0_113] : memref<8x2xf32, #tpu.memory_space<vmem>>, vector<8x2xf32>
    %473 = vector.extract_strided_slice %472 {offsets = [0, 0], sizes = [8, 1], strides = [1, 1]} : vector<8x2xf32> to vector<8x1xf32>
    %474 = vector.extract_strided_slice %472 {offsets = [0, 1], sizes = [8, 1], strides = [1, 1]} : vector<8x2xf32> to vector<8x1xf32>
    %475 = vector.broadcast %473 : vector<8x1xf32> to vector<8x1280xf32>
    %476 = arith.mulf %471, %475 : vector<8x1280xf32>
    %477 = vector.broadcast %474 : vector<8x1xf32> to vector<8x1280xf32>
    %478 = arith.addf %476, %477 : vector<8x1280xf32>
    %cst_114 = arith.constant 0.000000e+00 : f32
    %479 = vector.broadcast %cst_114 : f32 to vector<8x1280xf32>
    %480 = arith.maximumf %478, %479 : vector<8x1280xf32>
    %481 = arith.negf %480 : vector<8x1280xf32>
    %482 = math.exp %481 : vector<8x1280xf32>
    %cst_115 = arith.constant 1.000000e+00 : f32
    %483 = vector.broadcast %cst_115 : f32 to vector<8x1280xf32>
    %484 = arith.addf %483, %482 : vector<8x1280xf32>
    %485 = arith.divf %483, %484 : vector<8x1280xf32>
    %486 = vector.extract_strided_slice %15 {offsets = [0, 0], sizes = [8, 640], strides = [1, 1]} : vector<8x1280xf32> to vector<8x640xf32>
    %487 = vector.extract_strided_slice %51 {offsets = [0, 0], sizes = [8, 1], strides = [1, 1]} : vector<8x2xf32> to vector<8x1xf32>
    %488 = vector.extract_strided_slice %485 {offsets = [0, 0], sizes = [8, 640], strides = [1, 1]} : vector<8x1280xf32> to vector<8x640xf32>
    %489 = vector.broadcast %487 : vector<8x1xf32> to vector<8x640xf32>
    %490 = arith.mulf %489, %488 : vector<8x640xf32>
    %cst_116 = arith.constant 1.000000e+00 : f32
    %491 = vector.broadcast %cst_116 : f32 to vector<8x640xf32>
    %492 = arith.addf %491, %490 : vector<8x640xf32>
    %493 = arith.mulf %486, %492 : vector<8x640xf32>
    %c0_117 = arith.constant 0 : index
    %c0_118 = arith.constant 0 : index
    %c0_119 = arith.constant 0 : index
    %494 = vector.load %arg13[%c0_117, %c0_118, %c0_119] : memref<1x8x1280xf32, #tpu.memory_space<vmem>>, vector<1x8x640xf32>
    %495 = vector.shape_cast %494 : vector<1x8x640xf32> to vector<8x640xf32>
    %496 = vector.shape_cast %493 : vector<8x640xf32> to vector<1x8x640xf32>
    tpu.vector_store %arg13[%c0_117, %c0_118, %c0_119], %496 {strides = array<i32>} : memref<1x8x1280xf32, #tpu.memory_space<vmem>>, vector<1x8x640xf32>,
    %497 = vector.extract_strided_slice %15 {offsets = [0, 640], sizes = [8, 640], strides = [1, 1]} : vector<8x1280xf32> to vector<8x640xf32>
    %498 = vector.extract_strided_slice %51 {offsets = [0, 1], sizes = [8, 1], strides = [1, 1]} : vector<8x2xf32> to vector<8x1xf32>
    %499 = vector.extract_strided_slice %485 {offsets = [0, 640], sizes = [8, 640], strides = [1, 1]} : vector<8x1280xf32> to vector<8x640xf32>
    %500 = vector.broadcast %498 : vector<8x1xf32> to vector<8x640xf32>
    %501 = arith.mulf %500, %499 : vector<8x640xf32>
    %cst_120 = arith.constant 1.000000e+00 : f32
    %502 = vector.broadcast %cst_120 : f32 to vector<8x640xf32>
    %503 = arith.addf %502, %501 : vector<8x640xf32>
    %504 = arith.mulf %497, %503 : vector<8x640xf32>
    %c0_121 = arith.constant 0 : index
    %c0_122 = arith.constant 0 : index
    %c640 = arith.constant 640 : index
    %505 = vector.load %arg13[%c0_121, %c0_122, %c640] : memref<1x8x1280xf32, #tpu.memory_space<vmem>>, vector<1x8x640xf32>
    %506 = vector.shape_cast %505 : vector<1x8x640xf32> to vector<8x640xf32>
    %507 = vector.shape_cast %504 : vector<8x640xf32> to vector<1x8x640xf32>
    tpu.vector_store %arg13[%c0_121, %c0_122, %c640], %507 {strides = array<i32>} : memref<1x8x1280xf32, #tpu.memory_space<vmem>>, vector<1x8x640xf32>,
    return
  }
  func.func @transform_0(%arg0: i32) -> (i32, i32, i32) {
    %c0_i32 = arith.constant 0 : i32
    %c0_i32_0 = arith.constant 0 : i32
    %c0_i32_1 = arith.constant 0 : i32
    return %arg0, %c0_i32, %c0_i32_0 : i32, i32, i32
  }
  func.func @transform_1(%arg0: i32) -> (i32, i32) {
    %c0_i32 = arith.constant 0 : i32
    %c0_i32_0 = arith.constant 0 : i32
    %c0_i32_1 = arith.constant 0 : i32
    return %c0_i32, %c0_i32_0 : i32, i32
  }
  func.func @transform_2(%arg0: i32) -> (i32, i32) {
    %c0_i32 = arith.constant 0 : i32
    %c0_i32_0 = arith.constant 0 : i32
    %c0_i32_1 = arith.constant 0 : i32
    return %c0_i32, %c0_i32_0 : i32, i32
  }
  func.func @transform_3(%arg0: i32) -> (i32, i32) {
    %c0_i32 = arith.constant 0 : i32
    %c0_i32_0 = arith.constant 0 : i32
    %c0_i32_1 = arith.constant 0 : i32
    return %c0_i32, %c0_i32_0 : i32, i32
  }
  func.func @transform_4(%arg0: i32) -> (i32, i32) {
    %c0_i32 = arith.constant 0 : i32
    %c0_i32_0 = arith.constant 0 : i32
    %c0_i32_1 = arith.constant 0 : i32
    return %c0_i32, %c0_i32_0 : i32, i32
  }
  func.func @transform_5(%arg0: i32) -> (i32, i32) {
    %c0_i32 = arith.constant 0 : i32
    %c0_i32_0 = arith.constant 0 : i32
    %c0_i32_1 = arith.constant 0 : i32
    return %c0_i32, %c0_i32_0 : i32, i32
  }
  func.func @transform_6(%arg0: i32) -> (i32, i32) {
    %c0_i32 = arith.constant 0 : i32
    %c0_i32_0 = arith.constant 0 : i32
    %c0_i32_1 = arith.constant 0 : i32
    return %c0_i32, %c0_i32_0 : i32, i32
  }
  func.func @transform_7(%arg0: i32) -> (i32, i32) {
    %c0_i32 = arith.constant 0 : i32
    %c0_i32_0 = arith.constant 0 : i32
    %c0_i32_1 = arith.constant 0 : i32
    return %c0_i32, %c0_i32_0 : i32, i32
  }
  func.func @transform_8(%arg0: i32) -> (i32, i32) {
    %c0_i32 = arith.constant 0 : i32
    %c0_i32_0 = arith.constant 0 : i32
    %c0_i32_1 = arith.constant 0 : i32
    return %c0_i32, %c0_i32_0 : i32, i32
  }
  func.func @transform_9(%arg0: i32) -> (i32, i32) {
    %c0_i32 = arith.constant 0 : i32
    %c0_i32_0 = arith.constant 0 : i32
    %c0_i32_1 = arith.constant 0 : i32
    return %c0_i32, %c0_i32_0 : i32, i32
  }
  func.func @transform_10(%arg0: i32) -> (i32, i32) {
    %c0_i32 = arith.constant 0 : i32
    %c0_i32_0 = arith.constant 0 : i32
    %c0_i32_1 = arith.constant 0 : i32
    return %c0_i32, %c0_i32_0 : i32, i32
  }
  func.func @transform_11(%arg0: i32) -> (i32, i32) {
    %c0_i32 = arith.constant 0 : i32
    %c0_i32_0 = arith.constant 0 : i32
    %c0_i32_1 = arith.constant 0 : i32
    return %c0_i32, %c0_i32_0 : i32, i32
  }
  func.func @transform_12(%arg0: i32) -> (i32, i32, i32) {
    %c0_i32 = arith.constant 0 : i32
    %c0_i32_0 = arith.constant 0 : i32
    %c0_i32_1 = arith.constant 0 : i32
    return %arg0, %c0_i32, %c0_i32_0 : i32, i32, i32
  }
}

</mosaic_0001>

<llo_original>
// kernel: rsn_attention_forward.1
$region0: #{rsn_attention_forward.1}
  #allocation0 [shape = 'u32[]', space=smem, size = 0x4, offset = 0x4, fixed_abs, tag = 'smem constant byte address 0x4 - core index']
  #allocation1 [shape = 'u32[144,128]{1,0:T(1,128)}', space=vmem, size = 0x12000, scoped, tag = 'internal scratch']
  %s0 = inlined_call_operand.vmem [shape: f32[1,72,1280], index: 0, kind: input, shape index: {}]
  %s1 = inlined_call_operand.vmem [shape: f32[1,1280], index: 1, kind: input, shape index: {}]
  %s2 = inlined_call_operand.vmem [shape: f32[8,72], index: 2, kind: input, shape index: {}]
  %s3 = inlined_call_operand.vmem [shape: f32[8,2], index: 3, kind: input, shape index: {}]
  %s4 = inlined_call_operand.vmem [shape: f32[8,8], index: 4, kind: input, shape index: {}]
  %s5 = inlined_call_operand.vmem [shape: f32[8,2], index: 5, kind: input, shape index: {}]
  %s6 = inlined_call_operand.vmem [shape: f32[8,8], index: 6, kind: input, shape index: {}]
  %s7 = inlined_call_operand.vmem [shape: f32[8,2], index: 7, kind: input, shape index: {}]
  %s8 = inlined_call_operand.vmem [shape: f32[8,8], index: 8, kind: input, shape index: {}]
  %s9 = inlined_call_operand.vmem [shape: f32[8,2], index: 9, kind: input, shape index: {}]
  %s10 = inlined_call_operand.vmem [shape: f32[8,81], index: 10, kind: input, shape index: {}]
  %s11 = inlined_call_operand.vmem [shape: f32[8,2], index: 11, kind: input, shape index: {}]
  %s12 = inlined_call_operand.vmem [shape: f32[1,8,1280], index: 12, kind: output, shape index: {}]
  %s13 = sld [smem:[#allocation0]]
  $region58: #{rsn_attention_forward.1} parent=0
    _
  %s15 = ssub.s32 1, %s13
  %s16 = scalar_select 0, %s15, %s13
  // Predicated region
  $region2: #{rsn_attention_forward.1} parent=0 // pred_check
    _
  $region3: #{rsn_attention_forward.1} parent=0 // pred_check_branch
    %18 = sbr.rel (0) target = $region5
  $region4: #{rsn_attention_forward.1} parent=0 // pred_region
    _
  $region5: #{rsn_attention_forward.1} parent=0 // pred_fallthru
    _
  // Predicated region
  $region6: #{rsn_attention_forward.1} parent=0 // pred_check
    _
  $region7: #{rsn_attention_forward.1} parent=0 // pred_check_branch
    %20 = sbr.rel (0) target = $region9
  $region8: #{rsn_attention_forward.1} parent=0 // pred_region
    _
  $region9: #{rsn_attention_forward.1} parent=0 // pred_fallthru
    _
  // Predicated region
  $region10: #{rsn_attention_forward.1} parent=0 // pred_check
    _
  $region11: #{rsn_attention_forward.1} parent=0 // pred_check_branch
    %22 = sbr.rel (0) target = $region13
  $region12: #{rsn_attention_forward.1} parent=0 // pred_region
    _
  $region13: #{rsn_attention_forward.1} parent=0 // pred_fallthru
    _
  // Predicated region
  $region14: #{rsn_attention_forward.1} parent=0 // pred_check
    _
  $region15: #{rsn_attention_forward.1} parent=0 // pred_check_branch
    %24 = sbr.rel (0) target = $region17
  $region16: #{rsn_attention_forward.1} parent=0 // pred_region
    _
  $region17: #{rsn_attention_forward.1} parent=0 // pred_fallthru
    _
  // Predicated region
  $region18: #{rsn_attention_forward.1} parent=0 // pred_check
    _
  $region19: #{rsn_attention_forward.1} parent=0 // pred_check_branch
    %26 = sbr.rel (0) target = $region21
  $region20: #{rsn_attention_forward.1} parent=0 // pred_region
    _
  $region21: #{rsn_attention_forward.1} parent=0 // pred_fallthru
    _
  // Predicated region
  $region22: #{rsn_attention_forward.1} parent=0 // pred_check
    _
  $region23: #{rsn_attention_forward.1} parent=0 // pred_check_branch
    %28 = sbr.rel (0) target = $region25
  $region24: #{rsn_attention_forward.1} parent=0 // pred_region
    _
  $region25: #{rsn_attention_forward.1} parent=0 // pred_fallthru
    _
  // Predicated region
  $region26: #{rsn_attention_forward.1} parent=0 // pred_check
    _
  $region27: #{rsn_attention_forward.1} parent=0 // pred_check_branch
    %30 = sbr.rel (0) target = $region29
  $region28: #{rsn_attention_forward.1} parent=0 // pred_region
    _
  $region29: #{rsn_attention_forward.1} parent=0 // pred_fallthru
    _
  // Predicated region
  $region30: #{rsn_attention_forward.1} parent=0 // pred_check
    _
  $region31: #{rsn_attention_forward.1} parent=0 // pred_check_branch
    %32 = sbr.rel (0) target = $region33
  $region32: #{rsn_attention_forward.1} parent=0 // pred_region
    _
  $region33: #{rsn_attention_forward.1} parent=0 // pred_fallthru
    _
  // Predicated region
  $region34: #{rsn_attention_forward.1} parent=0 // pred_check
    _
  $region35: #{rsn_attention_forward.1} parent=0 // pred_check_branch
    %34 = sbr.rel (0) target = $region37
  $region36: #{rsn_attention_forward.1} parent=0 // pred_region
    _
  $region37: #{rsn_attention_forward.1} parent=0 // pred_fallthru
    _
  // Predicated region
  $region38: #{rsn_attention_forward.1} parent=0 // pred_check
    _
  $region39: #{rsn_attention_forward.1} parent=0 // pred_check_branch
    %36 = sbr.rel (0) target = $region41
  $region40: #{rsn_attention_forward.1} parent=0 // pred_region
    _
  $region41: #{rsn_attention_forward.1} parent=0 // pred_fallthru
    _
  // Predicated region
  $region42: #{rsn_attention_forward.1} parent=0 // pred_check
    _
  $region43: #{rsn_attention_forward.1} parent=0 // pred_check_branch
    %38 = sbr.rel (0) target = $region45
  $region44: #{rsn_attention_forward.1} parent=0 // pred_region
    _
  $region45: #{rsn_attention_forward.1} parent=0 // pred_fallthru
    _
  // Predicated region
  $region46: #{rsn_attention_forward.1} parent=0 // pred_check
    _
  $region47: #{rsn_attention_forward.1} parent=0 // pred_check_branch
    %40 = sbr.rel (0) target = $region49
  $region48: #{rsn_attention_forward.1} parent=0 // pred_region
    _
  $region49: #{rsn_attention_forward.1} parent=0 // pred_fallthru
    _
  %v41 = vld [vmem:[%s1] sm:$0xff]
  %v42 = vld [vmem:[%s1 + $0x8] sm:$0x3]
  %v43 = vld [vmem:[%s3] sm:$0xff]
  %v44 = vld [vmem:[%s2] sm:$0xff]
  %v45 = vld [vmem:[%s0] sm:$0xff]
  %v46 = vld [vmem:[%s0 + $0x8] sm:$0xff]
  %v47 = vld [vmem:[%s0 + $0x10] sm:$0xff]
  %v48 = vld [vmem:[%s0 + $0x18] sm:$0xff]
  %v49 = vld [vmem:[%s0 + $0x20] sm:$0xff]
  %v50 = vld [vmem:[%s0 + $0x28] sm:$0xff]
  %v51 = vld [vmem:[%s0 + $0x30] sm:$0xff]
  %v52 = vld [vmem:[%s0 + $0x38] sm:$0xff]
  %v53 = vld [vmem:[%s0 + $0x40] sm:$0xff]
  %v54 = vld [vmem:[%s0 + $0x48] sm:$0xff]
  %v55 = vld [vmem:[%s0 + $0x50] sm:$0xff]
  %v56 = vld [vmem:[%s0 + $0x58] sm:$0xff]
  %v57 = vld [vmem:[%s0 + $0x60] sm:$0xff]
  %v58 = vld [vmem:[%s0 + $0x68] sm:$0xff]
  %v59 = vld [vmem:[%s0 + $0x70] sm:$0xff]
  %v60 = vld [vmem:[%s0 + $0x78] sm:$0xff]
  %v61 = vld [vmem:[%s0 + $0x80] sm:$0xff]
  %v62 = vld [vmem:[%s0 + $0x88] sm:$0xff]
  %v63 = vld [vmem:[%s0 + $0x90] sm:$0xff]
  %v64 = vld [vmem:[%s0 + $0x98] sm:$0xff]
  %v65 = vld [vmem:[%s0 + $0xa0] sm:$0xff]
  %v66 = vld [vmem:[%s0 + $0xa8] sm:$0xff]
  %v67 = vld [vmem:[%s0 + $0xb0] sm:$0xff]
  %v68 = vld [vmem:[%s0 + $0xb8] sm:$0xff]
  %v69 = vld [vmem:[%s0 + $0xc0] sm:$0xff]
  %v70 = vld [vmem:[%s0 + $0xc8] sm:$0xff]
  %v71 = vld [vmem:[%s0 + $0xd0] sm:$0xff]
  %v72 = vld [vmem:[%s0 + $0xd8] sm:$0xff]
  %v73 = vld [vmem:[%s0 + $0xe0] sm:$0xff]
  %v74 = vld [vmem:[%s0 + $0xe8] sm:$0xff]
  %v75 = vld [vmem:[%s0 + $0xf0] sm:$0xff]
  %v76 = vld [vmem:[%s0 + $0xf8] sm:$0xff]
  %v77 = vld [vmem:[%s0 + $0x100] sm:$0xff]
  %v78 = vld [vmem:[%s0 + $0x108] sm:$0xff]
  %v79 = vld [vmem:[%s0 + $0x110] sm:$0xff]
  %v80 = vld [vmem:[%s0 + $0x118] sm:$0xff]
  %v81 = vld [vmem:[%s0 + $0x120] sm:$0xff]
  %v82 = vld [vmem:[%s0 + $0x128] sm:$0xff]
  %v83 = vld [vmem:[%s0 + $0x130] sm:$0xff]
  %v84 = vld [vmem:[%s0 + $0x138] sm:$0xff]
  %v85 = vld [vmem:[%s0 + $0x140] sm:$0xff]
  %v86 = vld [vmem:[%s0 + $0x148] sm:$0xff]
  %v87 = vld [vmem:[%s0 + $0x150] sm:$0xff]
  %v88 = vld [vmem:[%s0 + $0x158] sm:$0xff]
  %v89 = vld [vmem:[%s0 + $0x160] sm:$0xff]
  %v90 = vld [vmem:[%s0 + $0x168] sm:$0xff]
  %v91 = vld [vmem:[%s0 + $0x170] sm:$0xff]
  %v92 = vld [vmem:[%s0 + $0x178] sm:$0xff]
  %v93 = vld [vmem:[%s0 + $0x180] sm:$0xff]
  %v94 = vld [vmem:[%s0 + $0x188] sm:$0xff]
  %v95 = vld [vmem:[%s0 + $0x190] sm:$0xff]
  %v96 = vld [vmem:[%s0 + $0x198] sm:$0xff]
  %v97 = vld [vmem:[%s0 + $0x1a0] sm:$0xff]
  %v98 = vld [vmem:[%s0 + $0x1a8] sm:$0xff]
  %v99 = vld [vmem:[%s0 + $0x1b0] sm:$0xff]
  %v100 = vld [vmem:[%s0 + $0x1b8] sm:$0xff]
  %v101 = vld [vmem:[%s0 + $0x1c0] sm:$0xff]
  %v102 = vld [vmem:[%s0 + $0x1c8] sm:$0xff]
  %v103 = vld [vmem:[%s0 + $0x1d0] sm:$0xff]
  %v104 = vld [vmem:[%s0 + $0x1d8] sm:$0xff]
  %v105 = vld [vmem:[%s0 + $0x1e0] sm:$0xff]
  %v106 = vld [vmem:[%s0 + $0x1e8] sm:$0xff]
  %v107 = vld [vmem:[%s0 + $0x1f0] sm:$0xff]
  %v108 = vld [vmem:[%s0 + $0x1f8] sm:$0xff]
  %v109 = vld [vmem:[%s0 + $0x200] sm:$0xff]
  %v110 = vld [vmem:[%s0 + $0x208] sm:$0xff]
  %v111 = vld [vmem:[%s0 + $0x210] sm:$0xff]
  %v112 = vld [vmem:[%s0 + $0x218] sm:$0xff]
  %v113 = vld [vmem:[%s0 + $0x220] sm:$0xff]
  %v114 = vld [vmem:[%s0 + $0x228] sm:$0xff]
  %v115 = vld [vmem:[%s0 + $0x230] sm:$0xff]
  %v116 = vld [vmem:[%s0 + $0x238] sm:$0xff]
  %v117 = vld [vmem:[%s0 + $0x240] sm:$0xff]
  %v118 = vld [vmem:[%s0 + $0x248] sm:$0xff]
  %v119 = vld [vmem:[%s0 + $0x250] sm:$0xff]
  %v120 = vld [vmem:[%s0 + $0x258] sm:$0xff]
  %v121 = vld [vmem:[%s0 + $0x260] sm:$0xff]
  %v122 = vld [vmem:[%s0 + $0x268] sm:$0xff]
  %v123 = vld [vmem:[%s0 + $0x270] sm:$0xff]
  %v124 = vld [vmem:[%s0 + $0x278] sm:$0xff]
  %v125 = vld [vmem:[%s0 + $0x280] sm:$0xff]
  %v126 = vld [vmem:[%s0 + $0x288] sm:$0xff]
  %v127 = vld [vmem:[%s0 + $0x290] sm:$0xff]
  %v128 = vld [vmem:[%s0 + $0x298] sm:$0xff]
  %v129 = vld [vmem:[%s0 + $0x2a0] sm:$0xff]
  %v130 = vld [vmem:[%s0 + $0x2a8] sm:$0xff]
  %v131 = vld [vmem:[%s0 + $0x2b0] sm:$0xff]
  %v132 = vld [vmem:[%s0 + $0x2b8] sm:$0xff]
  %v133 = vld [vmem:[%s0 + $0x2c0] sm:$0xff]
  %v134 = vld [vmem:[%s0 + $0x2c8] sm:$0xff]
  %vm135 = vcmask 588800
  %v137 = vsel %vm135, %v44, 0
  %139 = vmatprep.subr.mxu0 %v46
  %140 = vmatpush1.msra.mxu0 %v45
  %141 = vmatprep.subr.mxu0 %v56
  %142 = vmatpush1.msra.mxu0 %v55
  %143 = vmatprep.subr.mxu0 %v66
  %144 = vmatpush1.msra.mxu0 %v65
  %145 = vmatprep.subr.mxu0 %v76
  %146 = vmatpush1.msra.mxu0 %v75
  %147 = vmatprep.subr.mxu0 %v86
  %148 = vmatpush1.msra.mxu0 %v85
  %149 = vmatprep.subr.mxu0 %v96
  %150 = vmatpush1.msra.mxu0 %v95
  %151 = vmatprep.subr.mxu0 %v106
  %152 = vmatpush1.msra.mxu0 %v105
  %153 = vmatprep.subr.mxu0 %v116
  %154 = vmatpush1.msra.mxu0 %v115
  %155 = vmatprep.subr.mxu0 %v126
  %156 = vmatpush1.msra.mxu0 %v125
  %157 = vmatprep.subr.mxu0 0.0
  %158 = vmatpush1.msra.mxu0 0.0
  %159 = vmatprep.subr.mxu0 0.0
  %160 = vmatpush1.msra.mxu0 0.0
  %161 = vmatprep.subr.mxu0 0.0
  %162 = vmatpush1.msra.mxu0 0.0
  %163 = vmatprep.subr.mxu0 0.0
  %164 = vmatpush1.msra.mxu0 0.0
  %165 = vmatprep.subr.mxu0 0.0
  %166 = vmatpush1.msra.mxu0 0.0
  %167 = vmatprep.subr.mxu0 0.0
  %168 = vmatpush1.msra.mxu0 0.0
  %169 = vmatprep.subr.mxu0 0.0
  %170 = vmatpush1.msra.mxu0 0.0
  %171 = vmatprep.subr.mxu0 0.0
  %172 = vmatpush1.msra.mxu0 0.0
  %173 = vmatprep.subr.mxu0 0.0
  %174 = vmatpush1.msra.mxu0 0.0
  %175 = vmatprep.subr.mxu0 0.0
  %176 = vmatpush1.msra.mxu0 0.0
  %177 = vmatprep.subr.mxu0 0.0
  %178 = vmatpush1.msra.mxu0 0.0
  %179 = vmatprep.subr.mxu0 0.0
  %180 = vmatpush1.msra.mxu0 0.0
  %181 = vmatprep.subr.mxu0 0.0
  %182 = vmatpush1.msra.mxu0 0.0
  %183 = vmatprep.subr.mxu0 0.0
  %184 = vmatpush1.msra.mxu0 0.0
  %185 = vmatprep.subr.mxu0 0.0
  %186 = vmatpush1.msra.mxu0 0.0
  %187 = vmatprep.subr.mxu0 0.0
  %188 = vmatpush1.msra.mxu0 0.0
  %189 = vmatprep.subr.mxu0 0.0
  %190 = vmatpush1.msra.mxu0 0.0
  %191 = vmatprep.subr.mxu0 0.0
  %192 = vmatpush1.msra.mxu0 0.0
  %193 = vmatprep.subr.mxu0 0.0
  %194 = vmatpush1.msra.mxu0 0.0
  %195 = vmatprep.subr.mxu0 0.0
  %196 = vmatpush1.msra.mxu0 0.0
  %197 = vmatprep.subr.mxu0 0.0
  %198 = vmatpush1.msra.mxu0 0.0
  %199 = vmatprep.subr.mxu0 0.0
  %200 = vmatpush1.msra.mxu0 0.0
  %201 = vmatprep.subr.mxu0 0.0
  %202 = vmatpush1.msra.mxu0 0.0
  %203 = vmatprep.mubr.f32.mxu0 0.0
  %204 = vmatmul.mubr.f32.gmra.mrb[0].mxu0 %v137
  %v205 = vpop.f32.mrb[0].mxu0
  %v206 = vadd.f32 0.0, %v205
  %v207 = vpop.f32.mrb[0].mxu0
  %v208 = vadd.f32 0.0, %v207
  %209 = vdwg.mxu0
  %210 = vmatprep.subr.mxu0 %v48
  %211 = vmatpush1.msra.mxu0 %v47
  %212 = vmatprep.subr.mxu0 %v58
  %213 = vmatpush1.msra.mxu0 %v57
  %214 = vmatprep.subr.mxu0 %v68
  %215 = vmatpush1.msra.mxu0 %v67
  %216 = vmatprep.subr.mxu0 %v78
  %217 = vmatpush1.msra.mxu0 %v77
  %218 = vmatprep.subr.mxu0 %v88
  %219 = vmatpush1.msra.mxu0 %v87
  %220 = vmatprep.subr.mxu0 %v98
  %221 = vmatpush1.msra.mxu0 %v97
  %222 = vmatprep.subr.mxu0 %v108
  %223 = vmatpush1.msra.mxu0 %v107
  %224 = vmatprep.subr.mxu0 %v118
  %225 = vmatpush1.msra.mxu0 %v117
  %226 = vmatprep.subr.mxu0 %v128
  %227 = vmatpush1.msra.mxu0 %v127
  %228 = vmatprep.subr.mxu0 0.0
  %229 = vmatpush1.msra.mxu0 0.0
  %230 = vmatprep.subr.mxu0 0.0
  %231 = vmatpush1.msra.mxu0 0.0
  %232 = vmatprep.subr.mxu0 0.0
  %233 = vmatpush1.msra.mxu0 0.0
  %234 = vmatprep.subr.mxu0 0.0
  %235 = vmatpush1.msra.mxu0 0.0
  %236 = vmatprep.subr.mxu0 0.0
  %237 = vmatpush1.msra.mxu0 0.0
  %238 = vmatprep.subr.mxu0 0.0
  %239 = vmatpush1.msra.mxu0 0.0
  %240 = vmatprep.subr.mxu0 0.0
  %241 = vmatpush1.msra.mxu0 0.0
  %242 = vmatprep.subr.mxu0 0.0
  %243 = vmatpush1.msra.mxu0 0.0
  %244 = vmatprep.subr.mxu0 0.0
  %245 = vmatpush1.msra.mxu0 0.0
  %246 = vmatprep.subr.mxu0 0.0
  %247 = vmatpush1.msra.mxu0 0.0
  %248 = vmatprep.subr.mxu0 0.0
  %249 = vmatpush1.msra.mxu0 0.0
  %250 = vmatprep.subr.mxu0 0.0
  %251 = vmatpush1.msra.mxu0 0.0
  %252 = vmatprep.subr.mxu0 0.0
  %253 = vmatpush1.msra.mxu0 0.0
  %254 = vmatprep.subr.mxu0 0.0
  %255 = vmatpush1.msra.mxu0 0.0
  %256 = vmatprep.subr.mxu0 0.0
  %257 = vmatpush1.msra.mxu0 0.0
  %258 = vmatprep.subr.mxu0 0.0
  %259 = vmatpush1.msra.mxu0 0.0
  %260 = vmatprep.subr.mxu0 0.0
  %261 = vmatpush1.msra.mxu0 0.0
  %262 = vmatprep.subr.mxu0 0.0
  %263 = vmatpush1.msra.mxu0 0.0
  %264 = vmatprep.subr.mxu0 0.0
  %265 = vmatpush1.msra.mxu0 0.0
  %266 = vmatprep.subr.mxu0 0.0
  %267 = vmatpush1.msra.mxu0 0.0
  %268 = vmatprep.subr.mxu0 0.0
  %269 = vmatpush1.msra.mxu0 0.0
  %270 = vmatprep.subr.mxu0 0.0
  %271 = vmatpush1.msra.mxu0 0.0
  %272 = vmatprep.subr.mxu0 0.0
  %273 = vmatpush1.msra.mxu0 0.0
  %274 = vmatprep.mubr.f32.mxu0 0.0
  %275 = vmatmul.mubr.f32.gmra.mrb[0].mxu0 %v137
  %v276 = vpop.f32.mrb[0].mxu0
  %v277 = vadd.f32 0.0, %v276
  %v278 = vpop.f32.mrb[0].mxu0
  %v279 = vadd.f32 0.0, %v278
  %280 = vdwg.mxu0
  %281 = vmatprep.subr.mxu0 %v50
  %282 = vmatpush1.msra.mxu0 %v49
  %283 = vmatprep.subr.mxu0 %v60
  %284 = vmatpush1.msra.mxu0 %v59
  %285 = vmatprep.subr.mxu0 %v70
  %286 = vmatpush1.msra.mxu0 %v69
  %287 = vmatprep.subr.mxu0 %v80
  %288 = vmatpush1.msra.mxu0 %v79
  %289 = vmatprep.subr.mxu0 %v90
  %290 = vmatpush1.msra.mxu0 %v89
  %291 = vmatprep.subr.mxu0 %v100
  %292 = vmatpush1.msra.mxu0 %v99
  %293 = vmatprep.subr.mxu0 %v110
  %294 = vmatpush1.msra.mxu0 %v109
  %295 = vmatprep.subr.mxu0 %v120
  %296 = vmatpush1.msra.mxu0 %v119
  %297 = vmatprep.subr.mxu0 %v130
  %298 = vmatpush1.msra.mxu0 %v129
  %299 = vmatprep.subr.mxu0 0.0
  %300 = vmatpush1.msra.mxu0 0.0
  %301 = vmatprep.subr.mxu0 0.0
  %302 = vmatpush1.msra.mxu0 0.0
  %303 = vmatprep.subr.mxu0 0.0
  %304 = vmatpush1.msra.mxu0 0.0
  %305 = vmatprep.subr.mxu0 0.0
  %306 = vmatpush1.msra.mxu0 0.0
  %307 = vmatprep.subr.mxu0 0.0
  %308 = vmatpush1.msra.mxu0 0.0
  %309 = vmatprep.subr.mxu0 0.0
  %310 = vmatpush1.msra.mxu0 0.0
  %311 = vmatprep.subr.mxu0 0.0
  %312 = vmatpush1.msra.mxu0 0.0
  %313 = vmatprep.subr.mxu0 0.0
  %314 = vmatpush1.msra.mxu0 0.0
  %315 = vmatprep.subr.mxu0 0.0
  %316 = vmatpush1.msra.mxu0 0.0
  %317 = vmatprep.subr.mxu0 0.0
  %318 = vmatpush1.msra.mxu0 0.0
  %319 = vmatprep.subr.mxu0 0.0
  %320 = vmatpush1.msra.mxu0 0.0
  %321 = vmatprep.subr.mxu0 0.0
  %322 = vmatpush1.msra.mxu0 0.0
  %323 = vmatprep.subr.mxu0 0.0
  %324 = vmatpush1.msra.mxu0 0.0
  %325 = vmatprep.subr.mxu0 0.0
  %326 = vmatpush1.msra.mxu0 0.0
  %327 = vmatprep.subr.mxu0 0.0
  %328 = vmatpush1.msra.mxu0 0.0
  %329 = vmatprep.subr.mxu0 0.0
  %330 = vmatpush1.msra.mxu0 0.0
  %331 = vmatprep.subr.mxu0 0.0
  %332 = vmatpush1.msra.mxu0 0.0
  %333 = vmatprep.subr.mxu0 0.0
  %334 = vmatpush1.msra.mxu0 0.0
  %335 = vmatprep.subr.mxu0 0.0
  %336 = vmatpush1.msra.mxu0 0.0
  %337 = vmatprep.subr.mxu0 0.0
  %338 = vmatpush1.msra.mxu0 0.0
  %339 = vmatprep.subr.mxu0 0.0
  %340 = vmatpush1.msra.mxu0 0.0
  %341 = vmatprep.subr.mxu0 0.0
  %342 = vmatpush1.msra.mxu0 0.0
  %343 = vmatprep.subr.mxu0 0.0
  %344 = vmatpush1.msra.mxu0 0.0
  %345 = vmatprep.mubr.f32.mxu0 0.0
  %346 = vmatmul.mubr.f32.gmra.mrb[0].mxu0 %v137
  %v347 = vpop.f32.mrb[0].mxu0
  %v348 = vadd.f32 0.0, %v347
  %v349 = vpop.f32.mrb[0].mxu0
  %v350 = vadd.f32 0.0, %v349
  %351 = vdwg.mxu0
  %352 = vmatprep.subr.mxu0 %v52
  %353 = vmatpush1.msra.mxu0 %v51
  %354 = vmatprep.subr.mxu0 %v62
  %355 = vmatpush1.msra.mxu0 %v61
  %356 = vmatprep.subr.mxu0 %v72
  %357 = vmatpush1.msra.mxu0 %v71
  %358 = vmatprep.subr.mxu0 %v82
  %359 = vmatpush1.msra.mxu0 %v81
  %360 = vmatprep.subr.mxu0 %v92
  %361 = vmatpush1.msra.mxu0 %v91
  %362 = vmatprep.subr.mxu0 %v102
  %363 = vmatpush1.msra.mxu0 %v101
  %364 = vmatprep.subr.mxu0 %v112
  %365 = vmatpush1.msra.mxu0 %v111
  %366 = vmatprep.subr.mxu0 %v122
  %367 = vmatpush1.msra.mxu0 %v121
  %368 = vmatprep.subr.mxu0 %v132
  %369 = vmatpush1.msra.mxu0 %v131
  %370 = vmatprep.subr.mxu0 0.0
  %371 = vmatpush1.msra.mxu0 0.0
  %372 = vmatprep.subr.mxu0 0.0
  %373 = vmatpush1.msra.mxu0 0.0
  %374 = vmatprep.subr.mxu0 0.0
  %375 = vmatpush1.msra.mxu0 0.0
  %376 = vmatprep.subr.mxu0 0.0
  %377 = vmatpush1.msra.mxu0 0.0
  %378 = vmatprep.subr.mxu0 0.0
  %379 = vmatpush1.msra.mxu0 0.0
  %380 = vmatprep.subr.mxu0 0.0
  %381 = vmatpush1.msra.mxu0 0.0
  %382 = vmatprep.subr.mxu0 0.0
  %383 = vmatpush1.msra.mxu0 0.0
  %384 = vmatprep.subr.mxu0 0.0
  %385 = vmatpush1.msra.mxu0 0.0
  %386 = vmatprep.subr.mxu0 0.0
  %387 = vmatpush1.msra.mxu0 0.0
  %388 = vmatprep.subr.mxu0 0.0
  %389 = vmatpush1.msra.mxu0 0.0
  %390 = vmatprep.subr.mxu0 0.0
  %391 = vmatpush1.msra.mxu0 0.0
  %392 = vmatprep.subr.mxu0 0.0
  %393 = vmatpush1.msra.mxu0 0.0
  %394 = vmatprep.subr.mxu0 0.0
  %395 = vmatpush1.msra.mxu0 0.0
  %396 = vmatprep.subr.mxu0 0.0
  %397 = vmatpush1.msra.mxu0 0.0
  %398 = vmatprep.subr.mxu0 0.0
  %399 = vmatpush1.msra.mxu0 0.0
  %400 = vmatprep.subr.mxu0 0.0
  %401 = vmatpush1.msra.mxu0 0.0
  %402 = vmatprep.subr.mxu0 0.0
  %403 = vmatpush1.msra.mxu0 0.0
  %404 = vmatprep.subr.mxu0 0.0
  %405 = vmatpush1.msra.mxu0 0.0
  %406 = vmatprep.subr.mxu0 0.0
  %407 = vmatpush1.msra.mxu0 0.0
  %408 = vmatprep.subr.mxu0 0.0
  %409 = vmatpush1.msra.mxu0 0.0
  %410 = vmatprep.subr.mxu0 0.0
  %411 = vmatpush1.msra.mxu0 0.0
  %412 = vmatprep.subr.mxu0 0.0
  %413 = vmatpush1.msra.mxu0 0.0
  %414 = vmatprep.subr.mxu0 0.0
  %415 = vmatpush1.msra.mxu0 0.0
  %416 = vmatprep.mubr.f32.mxu0 0.0
  %417 = vmatmul.mubr.f32.gmra.mrb[0].mxu0 %v137
  %v418 = vpop.f32.mrb[0].mxu0
  %v419 = vadd.f32 0.0, %v418
  %v420 = vpop.f32.mrb[0].mxu0
  %v421 = vadd.f32 0.0, %v420
  %422 = vdwg.mxu0
  %423 = vmatprep.subr.mxu0 %v54
  %424 = vmatpush1.msra.mxu0 %v53
  %425 = vmatprep.subr.mxu0 %v64
  %426 = vmatpush1.msra.mxu0 %v63
  %427 = vmatprep.subr.mxu0 %v74
  %428 = vmatpush1.msra.mxu0 %v73
  %429 = vmatprep.subr.mxu0 %v84
  %430 = vmatpush1.msra.mxu0 %v83
  %431 = vmatprep.subr.mxu0 %v94
  %432 = vmatpush1.msra.mxu0 %v93
  %433 = vmatprep.subr.mxu0 %v104
  %434 = vmatpush1.msra.mxu0 %v103
  %435 = vmatprep.subr.mxu0 %v114
  %436 = vmatpush1.msra.mxu0 %v113
  %437 = vmatprep.subr.mxu0 %v124
  %438 = vmatpush1.msra.mxu0 %v123
  %439 = vmatprep.subr.mxu0 %v134
  %440 = vmatpush1.msra.mxu0 %v133
  %441 = vmatprep.subr.mxu0 0.0
  %442 = vmatpush1.msra.mxu0 0.0
  %443 = vmatprep.subr.mxu0 0.0
  %444 = vmatpush1.msra.mxu0 0.0
  %445 = vmatprep.subr.mxu0 0.0
  %446 = vmatpush1.msra.mxu0 0.0
  %447 = vmatprep.subr.mxu0 0.0
  %448 = vmatpush1.msra.mxu0 0.0
  %449 = vmatprep.subr.mxu0 0.0
  %450 = vmatpush1.msra.mxu0 0.0
  %451 = vmatprep.subr.mxu0 0.0
  %452 = vmatpush1.msra.mxu0 0.0
  %453 = vmatprep.subr.mxu0 0.0
  %454 = vmatpush1.msra.mxu0 0.0
  %455 = vmatprep.subr.mxu0 0.0
  %456 = vmatpush1.msra.mxu0 0.0
  %457 = vmatprep.subr.mxu0 0.0
  %458 = vmatpush1.msra.mxu0 0.0
  %459 = vmatprep.subr.mxu0 0.0
  %460 = vmatpush1.msra.mxu0 0.0
  %461 = vmatprep.subr.mxu0 0.0
  %462 = vmatpush1.msra.mxu0 0.0
  %463 = vmatprep.subr.mxu0 0.0
  %464 = vmatpush1.msra.mxu0 0.0
  %465 = vmatprep.subr.mxu0 0.0
  %466 = vmatpush1.msra.mxu0 0.0
  %467 = vmatprep.subr.mxu0 0.0
  %468 = vmatpush1.msra.mxu0 0.0
  %469 = vmatprep.subr.mxu0 0.0
  %470 = vmatpush1.msra.mxu0 0.0
  %471 = vmatprep.subr.mxu0 0.0
  %472 = vmatpush1.msra.mxu0 0.0
  %473 = vmatprep.subr.mxu0 0.0
  %474 = vmatpush1.msra.mxu0 0.0
  %475 = vmatprep.subr.mxu0 0.0
  %476 = vmatpush1.msra.mxu0 0.0
  %477 = vmatprep.subr.mxu0 0.0
  %478 = vmatpush1.msra.mxu0 0.0
  %479 = vmatprep.subr.mxu0 0.0
  %480 = vmatpush1.msra.mxu0 0.0
  %481 = vmatprep.subr.mxu0 0.0
  %482 = vmatpush1.msra.mxu0 0.0
  %483 = vmatprep.subr.mxu0 0.0
  %484 = vmatpush1.msra.mxu0 0.0
  %485 = vmatprep.subr.mxu0 0.0
  %486 = vmatpush1.msra.mxu0 0.0
  %487 = vmatprep.mubr.f32.mxu0 0.0
  %488 = vmatmul.mubr.f32.gmra.mrb[0].mxu0 %v137
  %v489 = vpop.f32.mrb[0].mxu0
  %v490 = vadd.f32 0.0, %v489
  %v491 = vpop.f32.mrb[0].mxu0
  %v492 = vadd.f32 0.0, %v491
  %493 = vdwg.mxu0
  %495 = vset.pattern.permute.xlu0 0
  %496 = vperm.xlu0 %495, %v43
  %v497 = vpop.permute.xlu0 %496
  %v499 = vmul.f32 %v206, %v497
  %v500 = vmul.f32 %v208, %v497
  %v501 = vmul.f32 %v277, %v497
  %v502 = vmul.f32 %v279, %v497
  %v503 = vmul.f32 %v348, %v497
  %v504 = vmul.f32 %v350, %v497
  %v505 = vmul.f32 %v419, %v497
  %v506 = vmul.f32 %v421, %v497
  %v507 = vmul.f32 %v490, %v497
  %v508 = vmul.f32 %v492, %v497
  %509 = vset.pattern.permute.xlu0 1
  %510 = vperm.xlu0 %509, %v43
  %v511 = vpop.permute.xlu0 %510
  %v513 = vadd.f32 %v499, %v511
  %v514 = vadd.f32 %v500, %v511
  %v515 = vadd.f32 %v501, %v511
  %v516 = vadd.f32 %v502, %v511
  %v517 = vadd.f32 %v503, %v511
  %v518 = vadd.f32 %v504, %v511
  %v519 = vadd.f32 %v505, %v511
  %v520 = vadd.f32 %v506, %v511
  %v521 = vadd.f32 %v507, %v511
  %v522 = vadd.f32 %v508, %v511
  %v523 = vmax.f32 %v513, 0.0
  %v524 = vmax.f32 %v514, 0.0
  %v525 = vmax.f32 %v515, 0.0
  %v526 = vmax.f32 %v516, 0.0
  %v527 = vmax.f32 %v517, 0.0
  %v528 = vmax.f32 %v518, 0.0
  %v529 = vmax.f32 %v519, 0.0
  %v530 = vmax.f32 %v520, 0.0
  %v531 = vmax.f32 %v521, 0.0
  %v532 = vmax.f32 %v522, 0.0
  %v535 = vlaneseq
  %v536 = vshrl.u32 %v535, 7
  %v537 = vsub.s32 0, %v536
  %v538 = vrot.slane %v41, %v537
  %v539 = vlaneseq
  %v540 = vshrl.u32 %v539, 7
  %v541 = vsub.s32 1, %v540
  %v542 = vrot.slane %v41, %v541
  %v543 = vlaneseq
  %v544 = vshrl.u32 %v543, 7
  %v545 = vsub.s32 2, %v544
  %v546 = vrot.slane %v41, %v545
  %v547 = vlaneseq
  %v548 = vshrl.u32 %v547, 7
  %v549 = vsub.s32 3, %v548
  %v550 = vrot.slane %v41, %v549
  %v551 = vlaneseq
  %v552 = vshrl.u32 %v551, 7
  %v553 = vsub.s32 4, %v552
  %v554 = vrot.slane %v41, %v553
  %v555 = vlaneseq
  %v556 = vshrl.u32 %v555, 7
  %v557 = vsub.s32 5, %v556
  %v558 = vrot.slane %v41, %v557
  %v559 = vlaneseq
  %v560 = vshrl.u32 %v559, 7
  %v561 = vsub.s32 6, %v560
  %v562 = vrot.slane %v41, %v561
  %v563 = vlaneseq
  %v564 = vshrl.u32 %v563, 7
  %v565 = vsub.s32 7, %v564
  %v566 = vrot.slane %v41, %v565
  %v567 = vlaneseq
  %v568 = vshrl.u32 %v567, 7
  %v569 = vsub.s32 0, %v568
  %v570 = vrot.slane %v42, %v569
  %v571 = vlaneseq
  %v572 = vshrl.u32 %v571, 7
  %v573 = vsub.s32 1, %v572
  %v574 = vrot.slane %v42, %v573
  %v585 = vmul.f32 %v523, %v538
  %v586 = vmul.f32 %v524, %v542
  %v587 = vmul.f32 %v525, %v546
  %v588 = vmul.f32 %v526, %v550
  %v589 = vmul.f32 %v527, %v554
  %v590 = vmul.f32 %v528, %v558
  %v591 = vmul.f32 %v529, %v562
  %v592 = vmul.f32 %v530, %v566
  %v593 = vmul.f32 %v531, %v570
  %v594 = vmul.f32 %v532, %v574
  %v595 = vadd.f32 %v585, %v586
  %v596 = vadd.f32 %v595, %v587
  %v597 = vadd.f32 %v596, %v588
  %v598 = vadd.f32 %v597, %v589
  %599 = vadd.xlane.f32.xlu0 %v598
  %v600 = vpop.xlane.xlu0 %599
  %v601 = vadd.f32 %v590, %v591
  %v602 = vadd.f32 %v601, %v592
  %v603 = vadd.f32 %v602, %v593
  %v604 = vadd.f32 %v603, %v594
  %605 = vadd.xlane.f32.xlu0 %v604
  %v606 = vpop.xlane.xlu0 %605
  %vm607 = vcmask 7168
  %v608 = vsel %vm607, %v600, %v606
  %v609 = vmul.f32 %v608, 0.00390625
  %v610 = vld [vmem:[%s5] sm:$0xff]
  %v611 = vld [vmem:[%s7] sm:$0xff]
  %v612 = vld [vmem:[%s4] sm:$0xff]
  %vm613 = vcmask 64512
  %v615 = vsel %vm613, %v612, 0
  %617 = vmatprep.subr.mxu0 0.0
  %618 = vmatpush1.msra.mxu0 %v609
  %619 = vmatprep.subr.mxu0 0.0
  %620 = vmatpush1.msra.mxu0 0.0
  %621 = vmatprep.subr.mxu0 0.0
  %622 = vmatpush1.msra.mxu0 0.0
  %623 = vmatprep.subr.mxu0 0.0
  %624 = vmatpush1.msra.mxu0 0.0
  %625 = vmatprep.subr.mxu0 0.0
  %626 = vmatpush1.msra.mxu0 0.0
  %627 = vmatprep.subr.mxu0 0.0
  %628 = vmatpush1.msra.mxu0 0.0
  %629 = vmatprep.subr.mxu0 0.0
  %630 = vmatpush1.msra.mxu0 0.0
  %631 = vmatprep.subr.mxu0 0.0
  %632 = vmatpush1.msra.mxu0 0.0
  %633 = vmatprep.subr.mxu0 0.0
  %634 = vmatpush1.msra.mxu0 0.0
  %635 = vmatprep.subr.mxu0 0.0
  %636 = vmatpush1.msra.mxu0 0.0
  %637 = vmatprep.subr.mxu0 0.0
  %638 = vmatpush1.msra.mxu0 0.0
  %639 = vmatprep.subr.mxu0 0.0
  %640 = vmatpush1.msra.mxu0 0.0
  %641 = vmatprep.subr.mxu0 0.0
  %642 = vmatpush1.msra.mxu0 0.0
  %643 = vmatprep.subr.mxu0 0.0
  %644 = vmatpush1.msra.mxu0 0.0
  %645 = vmatprep.subr.mxu0 0.0
  %646 = vmatpush1.msra.mxu0 0.0
  %647 = vmatprep.subr.mxu0 0.0
  %648 = vmatpush1.msra.mxu0 0.0
  %649 = vmatprep.subr.mxu0 0.0
  %650 = vmatpush1.msra.mxu0 0.0
  %651 = vmatprep.subr.mxu0 0.0
  %652 = vmatpush1.msra.mxu0 0.0
  %653 = vmatprep.subr.mxu0 0.0
  %654 = vmatpush1.msra.mxu0 0.0
  %655 = vmatprep.subr.mxu0 0.0
  %656 = vmatpush1.msra.mxu0 0.0
  %657 = vmatprep.subr.mxu0 0.0
  %658 = vmatpush1.msra.mxu0 0.0
  %659 = vmatprep.subr.mxu0 0.0
  %660 = vmatpush1.msra.mxu0 0.0
  %661 = vmatprep.subr.mxu0 0.0
  %662 = vmatpush1.msra.mxu0 0.0
  %663 = vmatprep.subr.mxu0 0.0
  %664 = vmatpush1.msra.mxu0 0.0
  %665 = vmatprep.subr.mxu0 0.0
  %666 = vmatpush1.msra.mxu0 0.0
  %667 = vmatprep.subr.mxu0 0.0
  %668 = vmatpush1.msra.mxu0 0.0
  %669 = vmatprep.subr.mxu0 0.0
  %670 = vmatpush1.msra.mxu0 0.0
  %671 = vmatprep.subr.mxu0 0.0
  %672 = vmatpush1.msra.mxu0 0.0
  %673 = vmatprep.subr.mxu0 0.0
  %674 = vmatpush1.msra.mxu0 0.0
  %675 = vmatprep.subr.mxu0 0.0
  %676 = vmatpush1.msra.mxu0 0.0
  %677 = vmatprep.subr.mxu0 0.0
  %678 = vmatpush1.msra.mxu0 0.0
  %679 = vmatprep.subr.mxu0 0.0
  %680 = vmatpush1.msra.mxu0 0.0
  %681 = vmatprep.mubr.f32.mxu0 0.0
  %682 = vmatmul.mubr.f32.gmra.mrb[0].mxu0 %v615
  %v683 = vpop.f32.mrb[0].mxu0
  %v684 = vadd.f32 0.0, %v683
  %v685 = vpop.f32.mrb[0].mxu0
  %686 = vdwg.mxu0
  %688 = vset.pattern.permute.xlu0 0
  %689 = vperm.xlu0 %688, %v610
  %v690 = vpop.permute.xlu0 %689
  %v692 = vmul.f32 %v684, %v690
  %693 = vset.pattern.permute.xlu0 1
  %694 = vperm.xlu0 %693, %v610
  %v695 = vpop.permute.xlu0 %694
  %v697 = vadd.f32 %v692, %v695
  %v698 = vmax.f32 %v697, 0.0
  %v699 = vld [vmem:[%s6] sm:$0xff]
  %v701 = vsel %vm613, %v699, 0
  %703 = vmatprep.subr.mxu0 0.0
  %704 = vmatpush1.msra.mxu0 %v698
  %705 = vmatprep.subr.mxu0 0.0
  %706 = vmatpush1.msra.mxu0 0.0
  %707 = vmatprep.subr.mxu0 0.0
  %708 = vmatpush1.msra.mxu0 0.0
  %709 = vmatprep.subr.mxu0 0.0
  %710 = vmatpush1.msra.mxu0 0.0
  %711 = vmatprep.subr.mxu0 0.0
  %712 = vmatpush1.msra.mxu0 0.0
  %713 = vmatprep.subr.mxu0 0.0
  %714 = vmatpush1.msra.mxu0 0.0
  %715 = vmatprep.subr.mxu0 0.0
  %716 = vmatpush1.msra.mxu0 0.0
  %717 = vmatprep.subr.mxu0 0.0
  %718 = vmatpush1.msra.mxu0 0.0
  %719 = vmatprep.subr.mxu0 0.0
  %720 = vmatpush1.msra.mxu0 0.0
  %721 = vmatprep.subr.mxu0 0.0
  %722 = vmatpush1.msra.mxu0 0.0
  %723 = vmatprep.subr.mxu0 0.0
  %724 = vmatpush1.msra.mxu0 0.0
  %725 = vmatprep.subr.mxu0 0.0
  %726 = vmatpush1.msra.mxu0 0.0
  %727 = vmatprep.subr.mxu0 0.0
  %728 = vmatpush1.msra.mxu0 0.0
  %729 = vmatprep.subr.mxu0 0.0
  %730 = vmatpush1.msra.mxu0 0.0
  %731 = vmatprep.subr.mxu0 0.0
  %732 = vmatpush1.msra.mxu0 0.0
  %733 = vmatprep.subr.mxu0 0.0
  %734 = vmatpush1.msra.mxu0 0.0
  %735 = vmatprep.subr.mxu0 0.0
  %736 = vmatpush1.msra.mxu0 0.0
  %737 = vmatprep.subr.mxu0 0.0
  %738 = vmatpush1.msra.mxu0 0.0
  %739 = vmatprep.subr.mxu0 0.0
  %740 = vmatpush1.msra.mxu0 0.0
  %741 = vmatprep.subr.mxu0 0.0
  %742 = vmatpush1.msra.mxu0 0.0
  %743 = vmatprep.subr.mxu0 0.0
  %744 = vmatpush1.msra.mxu0 0.0
  %745 = vmatprep.subr.mxu0 0.0
  %746 = vmatpush1.msra.mxu0 0.0
  %747 = vmatprep.subr.mxu0 0.0
  %748 = vmatpush1.msra.mxu0 0.0
  %749 = vmatprep.subr.mxu0 0.0
  %750 = vmatpush1.msra.mxu0 0.0
  %751 = vmatprep.subr.mxu0 0.0
  %752 = vmatpush1.msra.mxu0 0.0
  %753 = vmatprep.subr.mxu0 0.0
  %754 = vmatpush1.msra.mxu0 0.0
  %755 = vmatprep.subr.mxu0 0.0
  %756 = vmatpush1.msra.mxu0 0.0
  %757 = vmatprep.subr.mxu0 0.0
  %758 = vmatpush1.msra.mxu0 0.0
  %759 = vmatprep.subr.mxu0 0.0
  %760 = vmatpush1.msra.mxu0 0.0
  %761 = vmatprep.subr.mxu0 0.0
  %762 = vmatpush1.msra.mxu0 0.0
  %763 = vmatprep.subr.mxu0 0.0
  %764 = vmatpush1.msra.mxu0 0.0
  %765 = vmatprep.subr.mxu0 0.0
  %766 = vmatpush1.msra.mxu0 0.0
  %767 = vmatprep.mubr.f32.mxu0 0.0
  %768 = vmatmul.mubr.f32.gmra.mrb[0].mxu0 %v701
  %v769 = vpop.f32.mrb[0].mxu0
  %v770 = vadd.f32 0.0, %v769
  %v771 = vpop.f32.mrb[0].mxu0
  %772 = vdwg.mxu0
  %774 = vset.pattern.permute.xlu0 0
  %775 = vperm.xlu0 %774, %v611
  %v776 = vpop.permute.xlu0 %775
  %v778 = vmul.f32 %v770, %v776
  %779 = vset.pattern.permute.xlu0 1
  %780 = vperm.xlu0 %779, %v611
  %v781 = vpop.permute.xlu0 %780
  %v783 = vadd.f32 %v778, %v781
  %v784 = vmax.f32 %v783, 0.0
  %v785 = vxor.u32 %v784, 2147483648
  %v786 = vmul.f32 %v785, 1.442695
  %v787 = vpow.pop %v786
  %v788 = vadd.f32 %v787, 1.0
  %v789 = vrcp.pop %v788
  %v790 = vmul.f32 1.0, %v789
  %v791 = vld [vmem:[%s9] sm:$0xff]
  %v792 = vld [vmem:[%s8] sm:$0xff]
  %v794 = vsel %vm613, %v792, 0
  %796 = vmatprep.subr.mxu0 %v586
  %797 = vmatpush1.msra.mxu0 %v585
  %798 = vmatprep.subr.mxu0 0.0
  %799 = vmatpush1.msra.mxu0 0.0
  %800 = vmatprep.subr.mxu0 0.0
  %801 = vmatpush1.msra.mxu0 0.0
  %802 = vmatprep.subr.mxu0 0.0
  %803 = vmatpush1.msra.mxu0 0.0
  %804 = vmatprep.subr.mxu0 0.0
  %805 = vmatpush1.msra.mxu0 0.0
  %806 = vmatprep.subr.mxu0 0.0
  %807 = vmatpush1.msra.mxu0 0.0
  %808 = vmatprep.subr.mxu0 0.0
  %809 = vmatpush1.msra.mxu0 0.0
  %810 = vmatprep.subr.mxu0 0.0
  %811 = vmatpush1.msra.mxu0 0.0
  %812 = vmatprep.subr.mxu0 0.0
  %813 = vmatpush1.msra.mxu0 0.0
  %814 = vmatprep.subr.mxu0 0.0
  %815 = vmatpush1.msra.mxu0 0.0
  %816 = vmatprep.subr.mxu0 0.0
  %817 = vmatpush1.msra.mxu0 0.0
  %818 = vmatprep.subr.mxu0 0.0
  %819 = vmatpush1.msra.mxu0 0.0
  %820 = vmatprep.subr.mxu0 0.0
  %821 = vmatpush1.msra.mxu0 0.0
  %822 = vmatprep.subr.mxu0 0.0
  %823 = vmatpush1.msra.mxu0 0.0
  %824 = vmatprep.subr.mxu0 0.0
  %825 = vmatpush1.msra.mxu0 0.0
  %826 = vmatprep.subr.mxu0 0.0
  %827 = vmatpush1.msra.mxu0 0.0
  %828 = vmatprep.subr.mxu0 0.0
  %829 = vmatpush1.msra.mxu0 0.0
  %830 = vmatprep.subr.mxu0 0.0
  %831 = vmatpush1.msra.mxu0 0.0
  %832 = vmatprep.subr.mxu0 0.0
  %833 = vmatpush1.msra.mxu0 0.0
  %834 = vmatprep.subr.mxu0 0.0
  %835 = vmatpush1.msra.mxu0 0.0
  %836 = vmatprep.subr.mxu0 0.0
  %837 = vmatpush1.msra.mxu0 0.0
  %838 = vmatprep.subr.mxu0 0.0
  %839 = vmatpush1.msra.mxu0 0.0
  %840 = vmatprep.subr.mxu0 0.0
  %841 = vmatpush1.msra.mxu0 0.0
  %842 = vmatprep.subr.mxu0 0.0
  %843 = vmatpush1.msra.mxu0 0.0
  %844 = vmatprep.subr.mxu0 0.0
  %845 = vmatpush1.msra.mxu0 0.0
  %846 = vmatprep.subr.mxu0 0.0
  %847 = vmatpush1.msra.mxu0 0.0
  %848 = vmatprep.subr.mxu0 0.0
  %849 = vmatpush1.msra.mxu0 0.0
  %850 = vmatprep.subr.mxu0 0.0
  %851 = vmatpush1.msra.mxu0 0.0
  %852 = vmatprep.subr.mxu0 0.0
  %853 = vmatpush1.msra.mxu0 0.0
  %854 = vmatprep.subr.mxu0 0.0
  %855 = vmatpush1.msra.mxu0 0.0
  %856 = vmatprep.subr.mxu0 0.0
  %857 = vmatpush1.msra.mxu0 0.0
  %858 = vmatprep.subr.mxu0 0.0
  %859 = vmatpush1.msra.mxu0 0.0
  %860 = vmatprep.mubr.f32.mxu0 0.0
  %861 = vmatmul.mubr.f32.gmra.mrb[0].mxu0 %v794
  %v862 = vpop.f32.mrb[0].mxu0
  %v863 = vadd.f32 0.0, %v862
  %v864 = vpop.f32.mrb[0].mxu0
  %v865 = vadd.f32 0.0, %v864
  %866 = vdwg.mxu0
  %867 = vmatprep.subr.mxu0 %v588
  %868 = vmatpush1.msra.mxu0 %v587
  %869 = vmatprep.subr.mxu0 0.0
  %870 = vmatpush1.msra.mxu0 0.0
  %871 = vmatprep.subr.mxu0 0.0
  %872 = vmatpush1.msra.mxu0 0.0
  %873 = vmatprep.subr.mxu0 0.0
  %874 = vmatpush1.msra.mxu0 0.0
  %875 = vmatprep.subr.mxu0 0.0
  %876 = vmatpush1.msra.mxu0 0.0
  %877 = vmatprep.subr.mxu0 0.0
  %878 = vmatpush1.msra.mxu0 0.0
  %879 = vmatprep.subr.mxu0 0.0
  %880 = vmatpush1.msra.mxu0 0.0
  %881 = vmatprep.subr.mxu0 0.0
  %882 = vmatpush1.msra.mxu0 0.0
  %883 = vmatprep.subr.mxu0 0.0
  %884 = vmatpush1.msra.mxu0 0.0
  %885 = vmatprep.subr.mxu0 0.0
  %886 = vmatpush1.msra.mxu0 0.0
  %887 = vmatprep.subr.mxu0 0.0
  %888 = vmatpush1.msra.mxu0 0.0
  %889 = vmatprep.subr.mxu0 0.0
  %890 = vmatpush1.msra.mxu0 0.0
  %891 = vmatprep.subr.mxu0 0.0
  %892 = vmatpush1.msra.mxu0 0.0
  %893 = vmatprep.subr.mxu0 0.0
  %894 = vmatpush1.msra.mxu0 0.0
  %895 = vmatprep.subr.mxu0 0.0
  %896 = vmatpush1.msra.mxu0 0.0
  %897 = vmatprep.subr.mxu0 0.0
  %898 = vmatpush1.msra.mxu0 0.0
  %899 = vmatprep.subr.mxu0 0.0
  %900 = vmatpush1.msra.mxu0 0.0
  %901 = vmatprep.subr.mxu0 0.0
  %902 = vmatpush1.msra.mxu0 0.0
  %903 = vmatprep.subr.mxu0 0.0
  %904 = vmatpush1.msra.mxu0 0.0
  %905 = vmatprep.subr.mxu0 0.0
  %906 = vmatpush1.msra.mxu0 0.0
  %907 = vmatprep.subr.mxu0 0.0
  %908 = vmatpush1.msra.mxu0 0.0
  %909 = vmatprep.subr.mxu0 0.0
  %910 = vmatpush1.msra.mxu0 0.0
  %911 = vmatprep.subr.mxu0 0.0
  %912 = vmatpush1.msra.mxu0 0.0
  %913 = vmatprep.subr.mxu0 0.0
  %914 = vmatpush1.msra.mxu0 0.0
  %915 = vmatprep.subr.mxu0 0.0
  %916 = vmatpush1.msra.mxu0 0.0
  %917 = vmatprep.subr.mxu0 0.0
  %918 = vmatpush1.msra.mxu0 0.0
  %919 = vmatprep.subr.mxu0 0.0
  %920 = vmatpush1.msra.mxu0 0.0
  %921 = vmatprep.subr.mxu0 0.0
  %922 = vmatpush1.msra.mxu0 0.0
  %923 = vmatprep.subr.mxu0 0.0
  %924 = vmatpush1.msra.mxu0 0.0
  %925 = vmatprep.subr.mxu0 0.0
  %926 = vmatpush1.msra.mxu0 0.0
  %927 = vmatprep.subr.mxu0 0.0
  %928 = vmatpush1.msra.mxu0 0.0
  %929 = vmatprep.subr.mxu0 0.0
  %930 = vmatpush1.msra.mxu0 0.0
  %931 = vmatprep.mubr.f32.mxu0 0.0
  %932 = vmatmul.mubr.f32.gmra.mrb[0].mxu0 %v794
  %v933 = vpop.f32.mrb[0].mxu0
  %v934 = vadd.f32 0.0, %v933
  %v935 = vpop.f32.mrb[0].mxu0
  %v936 = vadd.f32 0.0, %v935
  %937 = vdwg.mxu0
  %938 = vmatprep.subr.mxu0 %v590
  %939 = vmatpush1.msra.mxu0 %v589
  %940 = vmatprep.subr.mxu0 0.0
  %941 = vmatpush1.msra.mxu0 0.0
  %942 = vmatprep.subr.mxu0 0.0
  %943 = vmatpush1.msra.mxu0 0.0
  %944 = vmatprep.subr.mxu0 0.0
  %945 = vmatpush1.msra.mxu0 0.0
  %946 = vmatprep.subr.mxu0 0.0
  %947 = vmatpush1.msra.mxu0 0.0
  %948 = vmatprep.subr.mxu0 0.0
  %949 = vmatpush1.msra.mxu0 0.0
  %950 = vmatprep.subr.mxu0 0.0
  %951 = vmatpush1.msra.mxu0 0.0
  %952 = vmatprep.subr.mxu0 0.0
  %953 = vmatpush1.msra.mxu0 0.0
  %954 = vmatprep.subr.mxu0 0.0
  %955 = vmatpush1.msra.mxu0 0.0
  %956 = vmatprep.subr.mxu0 0.0
  %957 = vmatpush1.msra.mxu0 0.0
  %958 = vmatprep.subr.mxu0 0.0
  %959 = vmatpush1.msra.mxu0 0.0
  %960 = vmatprep.subr.mxu0 0.0
  %961 = vmatpush1.msra.mxu0 0.0
  %962 = vmatprep.subr.mxu0 0.0
  %963 = vmatpush1.msra.mxu0 0.0
  %964 = vmatprep.subr.mxu0 0.0
  %965 = vmatpush1.msra.mxu0 0.0
  %966 = vmatprep.subr.mxu0 0.0
  %967 = vmatpush1.msra.mxu0 0.0
  %968 = vmatprep.subr.mxu0 0.0
  %969 = vmatpush1.msra.mxu0 0.0
  %970 = vmatprep.subr.mxu0 0.0
  %971 = vmatpush1.msra.mxu0 0.0
  %972 = vmatprep.subr.mxu0 0.0
  %973 = vmatpush1.msra.mxu0 0.0
  %974 = vmatprep.subr.mxu0 0.0
  %975 = vmatpush1.msra.mxu0 0.0
  %976 = vmatprep.subr.mxu0 0.0
  %977 = vmatpush1.msra.mxu0 0.0
  %978 = vmatprep.subr.mxu0 0.0
  %979 = vmatpush1.msra.mxu0 0.0
  %980 = vmatprep.subr.mxu0 0.0
  %981 = vmatpush1.msra.mxu0 0.0
  %982 = vmatprep.subr.mxu0 0.0
  %983 = vmatpush1.msra.mxu0 0.0
  %984 = vmatprep.subr.mxu0 0.0
  %985 = vmatpush1.msra.mxu0 0.0
  %986 = vmatprep.subr.mxu0 0.0
  %987 = vmatpush1.msra.mxu0 0.0
  %988 = vmatprep.subr.mxu0 0.0
  %989 = vmatpush1.msra.mxu0 0.0
  %990 = vmatprep.subr.mxu0 0.0
  %991 = vmatpush1.msra.mxu0 0.0
  %992 = vmatprep.subr.mxu0 0.0
  %993 = vmatpush1.msra.mxu0 0.0
  %994 = vmatprep.subr.mxu0 0.0
  %995 = vmatpush1.msra.mxu0 0.0
  %996 = vmatprep.subr.mxu0 0.0
  %997 = vmatpush1.msra.mxu0 0.0
  %998 = vmatprep.subr.mxu0 0.0
  %999 = vmatpush1.msra.mxu0 0.0
  %1000 = vmatprep.subr.mxu0 0.0
  %1001 = vmatpush1.msra.mxu0 0.0
  %1002 = vmatprep.mubr.f32.mxu0 0.0
  %1003 = vmatmul.mubr.f32.gmra.mrb[0].mxu0 %v794
  %v1004 = vpop.f32.mrb[0].mxu0
  %v1005 = vadd.f32 0.0, %v1004
  %v1006 = vpop.f32.mrb[0].mxu0
  %v1007 = vadd.f32 0.0, %v1006
  %1008 = vdwg.mxu0
  %1009 = vmatprep.subr.mxu0 %v592
  %1010 = vmatpush1.msra.mxu0 %v591
  %1011 = vmatprep.subr.mxu0 0.0
  %1012 = vmatpush1.msra.mxu0 0.0
  %1013 = vmatprep.subr.mxu0 0.0
  %1014 = vmatpush1.msra.mxu0 0.0
  %1015 = vmatprep.subr.mxu0 0.0
  %1016 = vmatpush1.msra.mxu0 0.0
  %1017 = vmatprep.subr.mxu0 0.0
  %1018 = vmatpush1.msra.mxu0 0.0
  %1019 = vmatprep.subr.mxu0 0.0
  %1020 = vmatpush1.msra.mxu0 0.0
  %1021 = vmatprep.subr.mxu0 0.0
  %1022 = vmatpush1.msra.mxu0 0.0
  %1023 = vmatprep.subr.mxu0 0.0
  %1024 = vmatpush1.msra.mxu0 0.0
  %1025 = vmatprep.subr.mxu0 0.0
  %1026 = vmatpush1.msra.mxu0 0.0
  %1027 = vmatprep.subr.mxu0 0.0
  %1028 = vmatpush1.msra.mxu0 0.0
  %1029 = vmatprep.subr.mxu0 0.0
  %1030 = vmatpush1.msra.mxu0 0.0
  %1031 = vmatprep.subr.mxu0 0.0
  %1032 = vmatpush1.msra.mxu0 0.0
  %1033 = vmatprep.subr.mxu0 0.0
  %1034 = vmatpush1.msra.mxu0 0.0
  %1035 = vmatprep.subr.mxu0 0.0
  %1036 = vmatpush1.msra.mxu0 0.0
  %1037 = vmatprep.subr.mxu0 0.0
  %1038 = vmatpush1.msra.mxu0 0.0
  %1039 = vmatprep.subr.mxu0 0.0
  %1040 = vmatpush1.msra.mxu0 0.0
  %1041 = vmatprep.subr.mxu0 0.0
  %1042 = vmatpush1.msra.mxu0 0.0
  %1043 = vmatprep.subr.mxu0 0.0
  %1044 = vmatpush1.msra.mxu0 0.0
  %1045 = vmatprep.subr.mxu0 0.0
  %1046 = vmatpush1.msra.mxu0 0.0
  %1047 = vmatprep.subr.mxu0 0.0
  %1048 = vmatpush1.msra.mxu0 0.0
  %1049 = vmatprep.subr.mxu0 0.0
  %1050 = vmatpush1.msra.mxu0 0.0
  %1051 = vmatprep.subr.mxu0 0.0
  %1052 = vmatpush1.msra.mxu0 0.0
  %1053 = vmatprep.subr.mxu0 0.0
  %1054 = vmatpush1.msra.mxu0 0.0
  %1055 = vmatprep.subr.mxu0 0.0
  %1056 = vmatpush1.msra.mxu0 0.0
  %1057 = vmatprep.subr.mxu0 0.0
  %1058 = vmatpush1.msra.mxu0 0.0
  %1059 = vmatprep.subr.mxu0 0.0
  %1060 = vmatpush1.msra.mxu0 0.0
  %1061 = vmatprep.subr.mxu0 0.0
  %1062 = vmatpush1.msra.mxu0 0.0
  %1063 = vmatprep.subr.mxu0 0.0
  %1064 = vmatpush1.msra.mxu0 0.0
  %1065 = vmatprep.subr.mxu0 0.0
  %1066 = vmatpush1.msra.mxu0 0.0
  %1067 = vmatprep.subr.mxu0 0.0
  %1068 = vmatpush1.msra.mxu0 0.0
  %1069 = vmatprep.subr.mxu0 0.0
  %1070 = vmatpush1.msra.mxu0 0.0
  %1071 = vmatprep.subr.mxu0 0.0
  %1072 = vmatpush1.msra.mxu0 0.0
  %1073 = vmatprep.mubr.f32.mxu0 0.0
  %1074 = vmatmul.mubr.f32.gmra.mrb[0].mxu0 %v794
  %v1075 = vpop.f32.mrb[0].mxu0
  %v1076 = vadd.f32 0.0, %v1075
  %v1077 = vpop.f32.mrb[0].mxu0
  %v1078 = vadd.f32 0.0, %v1077
  %1079 = vdwg.mxu0
  %1080 = vmatprep.subr.mxu0 %v594
  %1081 = vmatpush1.msra.mxu0 %v593
  %1082 = vmatprep.subr.mxu0 0.0
  %1083 = vmatpush1.msra.mxu0 0.0
  %1084 = vmatprep.subr.mxu0 0.0
  %1085 = vmatpush1.msra.mxu0 0.0
  %1086 = vmatprep.subr.mxu0 0.0
  %1087 = vmatpush1.msra.mxu0 0.0
  %1088 = vmatprep.subr.mxu0 0.0
  %1089 = vmatpush1.msra.mxu0 0.0
  %1090 = vmatprep.subr.mxu0 0.0
  %1091 = vmatpush1.msra.mxu0 0.0
  %1092 = vmatprep.subr.mxu0 0.0
  %1093 = vmatpush1.msra.mxu0 0.0
  %1094 = vmatprep.subr.mxu0 0.0
  %1095 = vmatpush1.msra.mxu0 0.0
  %1096 = vmatprep.subr.mxu0 0.0
  %1097 = vmatpush1.msra.mxu0 0.0
  %1098 = vmatprep.subr.mxu0 0.0
  %1099 = vmatpush1.msra.mxu0 0.0
  %1100 = vmatprep.subr.mxu0 0.0
  %1101 = vmatpush1.msra.mxu0 0.0
  %1102 = vmatprep.subr.mxu0 0.0
  %1103 = vmatpush1.msra.mxu0 0.0
  %1104 = vmatprep.subr.mxu0 0.0
  %1105 = vmatpush1.msra.mxu0 0.0
  %1106 = vmatprep.subr.mxu0 0.0
  %1107 = vmatpush1.msra.mxu0 0.0
  %1108 = vmatprep.subr.mxu0 0.0
  %1109 = vmatpush1.msra.mxu0 0.0
  %1110 = vmatprep.subr.mxu0 0.0
  %1111 = vmatpush1.msra.mxu0 0.0
  %1112 = vmatprep.subr.mxu0 0.0
  %1113 = vmatpush1.msra.mxu0 0.0
  %1114 = vmatprep.subr.mxu0 0.0
  %1115 = vmatpush1.msra.mxu0 0.0
  %1116 = vmatprep.subr.mxu0 0.0
  %1117 = vmatpush1.msra.mxu0 0.0
  %1118 = vmatprep.subr.mxu0 0.0
  %1119 = vmatpush1.msra.mxu0 0.0
  %1120 = vmatprep.subr.mxu0 0.0
  %1121 = vmatpush1.msra.mxu0 0.0
  %1122 = vmatprep.subr.mxu0 0.0
  %1123 = vmatpush1.msra.mxu0 0.0
  %1124 = vmatprep.subr.mxu0 0.0
  %1125 = vmatpush1.msra.mxu0 0.0
  %1126 = vmatprep.subr.mxu0 0.0
  %1127 = vmatpush1.msra.mxu0 0.0
  %1128 = vmatprep.subr.mxu0 0.0
  %1129 = vmatpush1.msra.mxu0 0.0
  %1130 = vmatprep.subr.mxu0 0.0
  %1131 = vmatpush1.msra.mxu0 0.0
  %1132 = vmatprep.subr.mxu0 0.0
  %1133 = vmatpush1.msra.mxu0 0.0
  %1134 = vmatprep.subr.mxu0 0.0
  %1135 = vmatpush1.msra.mxu0 0.0
  %1136 = vmatprep.subr.mxu0 0.0
  %1137 = vmatpush1.msra.mxu0 0.0
  %1138 = vmatprep.subr.mxu0 0.0
  %1139 = vmatpush1.msra.mxu0 0.0
  %1140 = vmatprep.subr.mxu0 0.0
  %1141 = vmatpush1.msra.mxu0 0.0
  %1142 = vmatprep.subr.mxu0 0.0
  %1143 = vmatpush1.msra.mxu0 0.0
  %1144 = vmatprep.mubr.f32.mxu0 0.0
  %1145 = vmatmul.mubr.f32.gmra.mrb[0].mxu0 %v794
  %v1146 = vpop.f32.mrb[0].mxu0
  %v1147 = vadd.f32 0.0, %v1146
  %v1148 = vpop.f32.mrb[0].mxu0
  %v1149 = vadd.f32 0.0, %v1148
  %1150 = vdwg.mxu0
  %1152 = vset.pattern.permute.xlu0 0
  %1153 = vperm.xlu0 %1152, %v791
  %v1154 = vpop.permute.xlu0 %1153
  %v1156 = vmul.f32 %v863, %v1154
  %v1157 = vmul.f32 %v865, %v1154
  %v1158 = vmul.f32 %v934, %v1154
  %v1159 = vmul.f32 %v936, %v1154
  %v1160 = vmul.f32 %v1005, %v1154
  %v1161 = vmul.f32 %v1007, %v1154
  %v1162 = vmul.f32 %v1076, %v1154
  %v1163 = vmul.f32 %v1078, %v1154
  %v1164 = vmul.f32 %v1147, %v1154
  %v1165 = vmul.f32 %v1149, %v1154
  %1166 = vset.pattern.permute.xlu0 1
  %1167 = vperm.xlu0 %1166, %v791
  %v1168 = vpop.permute.xlu0 %1167
  %v1170 = vadd.f32 %v1156, %v1168
  %v1171 = vadd.f32 %v1157, %v1168
  %v1172 = vadd.f32 %v1158, %v1168
  %v1173 = vadd.f32 %v1159, %v1168
  %v1174 = vadd.f32 %v1160, %v1168
  %v1175 = vadd.f32 %v1161, %v1168
  %v1176 = vadd.f32 %v1162, %v1168
  %v1177 = vadd.f32 %v1163, %v1168
  %v1178 = vadd.f32 %v1164, %v1168
  %v1179 = vadd.f32 %v1165, %v1168
  %v1180 = vmax.f32 %v1170, 0.0
  %v1181 = vmax.f32 %v1171, 0.0
  %v1182 = vmax.f32 %v1172, 0.0
  %v1183 = vmax.f32 %v1173, 0.0
  %v1184 = vmax.f32 %v1174, 0.0
  %v1185 = vmax.f32 %v1175, 0.0
  %v1186 = vmax.f32 %v1176, 0.0
  %v1187 = vmax.f32 %v1177, 0.0
  %v1188 = vmax.f32 %v1178, 0.0
  %v1189 = vmax.f32 %v1179, 0.0
  %v1190 = vmul.f32 %v1180, %v538
  %v1191 = vmul.f32 %v1181, %v542
  %v1192 = vmul.f32 %v1182, %v546
  %v1193 = vmul.f32 %v1183, %v550
  %v1194 = vmul.f32 %v1184, %v554
  %v1195 = vmul.f32 %v1185, %v558
  %v1196 = vmul.f32 %v1186, %v562
  %v1197 = vmul.f32 %v1187, %v566
  %v1198 = vmul.f32 %v1188, %v570
  %v1199 = vmul.f32 %v1189, %v574
  %v1200 = vld [vmem:[%s10] sm:$0xff]
  %1201 = vrot.lane.b32.xlu0 %v1190, 28
  %v1202 = vpop.permute.xlu0 %1201
  %1203 = vrot.lane.b32.xlu0 %v1191, 28
  %v1204 = vpop.permute.xlu0 %1203
  %1205 = vrot.lane.b32.xlu0 %v1192, 28
  %v1206 = vpop.permute.xlu0 %1205
  %1207 = vrot.lane.b32.xlu0 %v1193, 28
  %v1208 = vpop.permute.xlu0 %1207
  %1209 = vrot.lane.b32.xlu0 %v1194, 28
  %v1210 = vpop.permute.xlu0 %1209
  %1211 = vrot.lane.b32.xlu0 %v1195, 28
  %v1212 = vpop.permute.xlu0 %1211
  %1213 = vrot.lane.b32.xlu0 %v1196, 28
  %v1214 = vpop.permute.xlu0 %1213
  %1215 = vrot.lane.b32.xlu0 %v1197, 28
  %v1216 = vpop.permute.xlu0 %1215
  %1217 = vrot.lane.b32.xlu0 %v1198, 28
  %v1218 = vpop.permute.xlu0 %1217
  %1219 = vrot.lane.b32.xlu0 %v1199, 28
  %v1220 = vpop.permute.xlu0 %1219
  %v1221 = vlaneseq
  %v1222 = vand.u32 %v1221, 127
  %vm1223 = vcmp.lt.s32.totalorder %v1222, 28
  %v1224 = vsel %vm1223, %v1218, %v1220
  %v1225 = vsel %vm1223, %v1216, %v1218
  %v1226 = vsel %vm1223, %v1214, %v1216
  %v1227 = vsel %vm1223, %v1212, %v1214
  %v1228 = vsel %vm1223, %v1210, %v1212
  %v1229 = vsel %vm1223, %v1208, %v1210
  %v1230 = vsel %vm1223, %v1206, %v1208
  %v1231 = vsel %vm1223, %v1204, %v1206
  %v1232 = vsel %vm1223, %v1202, %v1204
  %v1233 = vsel %vm1223, %v1220, %v1202
  %1235 = vset.pattern.permute.xlu0 80
  %1236 = vperm.xlu0 %1235, %v1200
  %v1237 = vpop.permute.xlu0 %1236
  %v1239 = vmul.f32 %v1232, %v1237
  %v1240 = vmul.f32 %v1231, %v1237
  %v1241 = vmul.f32 %v1230, %v1237
  %v1242 = vmul.f32 %v1229, %v1237
  %v1243 = vmul.f32 %v1228, %v1237
  %v1244 = vmul.f32 %v1227, %v1237
  %v1245 = vmul.f32 %v1226, %v1237
  %v1246 = vmul.f32 %v1225, %v1237
  %v1247 = vmul.f32 %v1224, %v1237
  %v1248 = vmul.f32 %v1233, %v1237
  %v1249 = vadd.f32 %v1239, 0.0
  %v1250 = vadd.f32 %v1240, 0.0
  %v1251 = vadd.f32 %v1241, 0.0
  %v1252 = vadd.f32 %v1242, 0.0
  %v1253 = vadd.f32 %v1243, 0.0
  %v1254 = vadd.f32 %v1244, 0.0
  %v1255 = vadd.f32 %v1245, 0.0
  %v1256 = vadd.f32 %v1246, 0.0
  %v1257 = vadd.f32 %v1247, 0.0
  %v1258 = vadd.f32 %v1248, 0.0
  %1259 = vrot.lane.b32.xlu0 %v1232, 1
  %v1260 = vpop.permute.xlu0 %1259
  %1261 = vrot.lane.b32.xlu0 %v1231, 1
  %v1262 = vpop.permute.xlu0 %1261
  %1263 = vrot.lane.b32.xlu0 %v1230, 1
  %v1264 = vpop.permute.xlu0 %1263
  %1265 = vrot.lane.b32.xlu0 %v1229, 1
  %v1266 = vpop.permute.xlu0 %1265
  %1267 = vrot.lane.b32.xlu0 %v1228, 1
  %v1268 = vpop.permute.xlu0 %1267
  %1269 = vrot.lane.b32.xlu0 %v1227, 1
  %v1270 = vpop.permute.xlu0 %1269
  %1271 = vrot.lane.b32.xlu0 %v1226, 1
  %v1272 = vpop.permute.xlu0 %1271
  %1273 = vrot.lane.b32.xlu0 %v1225, 1
  %v1274 = vpop.permute.xlu0 %1273
  %1275 = vrot.lane.b32.xlu0 %v1224, 1
  %v1276 = vpop.permute.xlu0 %1275
  %1277 = vrot.lane.b32.xlu0 %v1233, 1
  %v1278 = vpop.permute.xlu0 %1277
  %vm1279 = vcmp.lt.s32.totalorder %v1222, 1
  %v1280 = vsel %vm1279, %v1276, %v1278
  %v1281 = vsel %vm1279, %v1274, %v1276
  %v1282 = vsel %vm1279, %v1272, %v1274
  %v1283 = vsel %vm1279, %v1270, %v1272
  %v1284 = vsel %vm1279, %v1268, %v1270
  %v1285 = vsel %vm1279, %v1266, %v1268
  %v1286 = vsel %vm1279, %v1264, %v1266
  %v1287 = vsel %vm1279, %v1262, %v1264
  %v1288 = vsel %vm1279, %v1260, %v1262
  %v1289 = vsel %vm1279, %v1278, %v1260
  %1290 = vset.pattern.permute.xlu0 79
  %1291 = vperm.xlu0 %1290, %v1200
  %v1292 = vpop.permute.xlu0 %1291
  %v1294 = vmul.f32 %v1289, %v1292
  %v1295 = vmul.f32 %v1288, %v1292
  %v1296 = vmul.f32 %v1287, %v1292
  %v1297 = vmul.f32 %v1286, %v1292
  %v1298 = vmul.f32 %v1285, %v1292
  %v1299 = vmul.f32 %v1284, %v1292
  %v1300 = vmul.f32 %v1283, %v1292
  %v1301 = vmul.f32 %v1282, %v1292
  %v1302 = vmul.f32 %v1281, %v1292
  %v1303 = vmul.f32 %v1280, %v1292
  %v1304 = vadd.f32 %v1249, %v1294
  %v1305 = vadd.f32 %v1250, %v1295
  %v1306 = vadd.f32 %v1251, %v1296
  %v1307 = vadd.f32 %v1252, %v1297
  %v1308 = vadd.f32 %v1253, %v1298
  %v1309 = vadd.f32 %v1254, %v1299
  %v1310 = vadd.f32 %v1255, %v1300
  %v1311 = vadd.f32 %v1256, %v1301
  %v1312 = vadd.f32 %v1257, %v1302
  %v1313 = vadd.f32 %v1258, %v1303
  %1314 = vrot.lane.b32.xlu0 %v1289, 1
  %v1315 = vpop.permute.xlu0 %1314
  %1316 = vrot.lane.b32.xlu0 %v1288, 1
  %v1317 = vpop.permute.xlu0 %1316
  %1318 = vrot.lane.b32.xlu0 %v1287, 1
  %v1319 = vpop.permute.xlu0 %1318
  %1320 = vrot.lane.b32.xlu0 %v1286, 1
  %v1321 = vpop.permute.xlu0 %1320
  %1322 = vrot.lane.b32.xlu0 %v1285, 1
  %v1323 = vpop.permute.xlu0 %1322
  %1324 = vrot.lane.b32.xlu0 %v1284, 1
  %v1325 = vpop.permute.xlu0 %1324
  %1326 = vrot.lane.b32.xlu0 %v1283, 1
  %v1327 = vpop.permute.xlu0 %1326
  %1328 = vrot.lane.b32.xlu0 %v1282, 1
  %v1329 = vpop.permute.xlu0 %1328
  %1330 = vrot.lane.b32.xlu0 %v1281, 1
  %v1331 = vpop.permute.xlu0 %1330
  %1332 = vrot.lane.b32.xlu0 %v1280, 1
  %v1333 = vpop.permute.xlu0 %1332
  %v1334 = vsel %vm1279, %v1331, %v1333
  %v1335 = vsel %vm1279, %v1329, %v1331
  %v1336 = vsel %vm1279, %v1327, %v1329
  %v1337 = vsel %vm1279, %v1325, %v1327
  %v1338 = vsel %vm1279, %v1323, %v1325
  %v1339 = vsel %vm1279, %v1321, %v1323
  %v1340 = vsel %vm1279, %v1319, %v1321
  %v1341 = vsel %vm1279, %v1317, %v1319
  %v1342 = vsel %vm1279, %v1315, %v1317
  %v1343 = vsel %vm1279, %v1333, %v1315
  %1344 = vset.pattern.permute.xlu0 78
  %1345 = vperm.xlu0 %1344, %v1200
  %v1346 = vpop.permute.xlu0 %1345
  %v1348 = vmul.f32 %v1343, %v1346
  %v1349 = vmul.f32 %v1342, %v1346
  %v1350 = vmul.f32 %v1341, %v1346
  %v1351 = vmul.f32 %v1340, %v1346
  %v1352 = vmul.f32 %v1339, %v1346
  %v1353 = vmul.f32 %v1338, %v1346
  %v1354 = vmul.f32 %v1337, %v1346
  %v1355 = vmul.f32 %v1336, %v1346
  %v1356 = vmul.f32 %v1335, %v1346
  %v1357 = vmul.f32 %v1334, %v1346
  %v1358 = vadd.f32 %v1304, %v1348
  %v1359 = vadd.f32 %v1305, %v1349
  %v1360 = vadd.f32 %v1306, %v1350
  %v1361 = vadd.f32 %v1307, %v1351
  %v1362 = vadd.f32 %v1308, %v1352
  %v1363 = vadd.f32 %v1309, %v1353
  %v1364 = vadd.f32 %v1310, %v1354
  %v1365 = vadd.f32 %v1311, %v1355
  %v1366 = vadd.f32 %v1312, %v1356
  %v1367 = vadd.f32 %v1313, %v1357
  %1368 = vrot.lane.b32.xlu0 %v1343, 1
  %v1369 = vpop.permute.xlu0 %1368
  %1370 = vrot.lane.b32.xlu0 %v1342, 1
  %v1371 = vpop.permute.xlu0 %1370
  %1372 = vrot.lane.b32.xlu0 %v1341, 1
  %v1373 = vpop.permute.xlu0 %1372
  %1374 = vrot.lane.b32.xlu0 %v1340, 1
  %v1375 = vpop.permute.xlu0 %1374
  %1376 = vrot.lane.b32.xlu0 %v1339, 1
  %v1377 = vpop.permute.xlu0 %1376
  %1378 = vrot.lane.b32.xlu0 %v1338, 1
  %v1379 = vpop.permute.xlu0 %1378
  %1380 = vrot.lane.b32.xlu0 %v1337, 1
  %v1381 = vpop.permute.xlu0 %1380
  %1382 = vrot.lane.b32.xlu0 %v1336, 1
  %v1383 = vpop.permute.xlu0 %1382
  %1384 = vrot.lane.b32.xlu0 %v1335, 1
  %v1385 = vpop.permute.xlu0 %1384
  %1386 = vrot.lane.b32.xlu0 %v1334, 1
  %v1387 = vpop.permute.xlu0 %1386
  %v1388 = vsel %vm1279, %v1385, %v1387
  %v1389 = vsel %vm1279, %v1383, %v1385
  %v1390 = vsel %vm1279, %v1381, %v1383
  %v1391 = vsel %vm1279, %v1379, %v1381
  %v1392 = vsel %vm1279, %v1377, %v1379
  %v1393 = vsel %vm1279, %v1375, %v1377
  %v1394 = vsel %vm1279, %v1373, %v1375
  %v1395 = vsel %vm1279, %v1371, %v1373
  %v1396 = vsel %vm1279, %v1369, %v1371
  %v1397 = vsel %vm1279, %v1387, %v1369
  %1398 = vset.pattern.permute.xlu0 77
  %1399 = vperm.xlu0 %1398, %v1200
  %v1400 = vpop.permute.xlu0 %1399
  %v1402 = vmul.f32 %v1397, %v1400
  %v1403 = vmul.f32 %v1396, %v1400
  %v1404 = vmul.f32 %v1395, %v1400
  %v1405 = vmul.f32 %v1394, %v1400
  %v1406 = vmul.f32 %v1393, %v1400
  %v1407 = vmul.f32 %v1392, %v1400
  %v1408 = vmul.f32 %v1391, %v1400
  %v1409 = vmul.f32 %v1390, %v1400
  %v1410 = vmul.f32 %v1389, %v1400
  %v1411 = vmul.f32 %v1388, %v1400
  %v1412 = vadd.f32 %v1358, %v1402
  %v1413 = vadd.f32 %v1359, %v1403
  %v1414 = vadd.f32 %v1360, %v1404
  %v1415 = vadd.f32 %v1361, %v1405
  %v1416 = vadd.f32 %v1362, %v1406
  %v1417 = vadd.f32 %v1363, %v1407
  %v1418 = vadd.f32 %v1364, %v1408
  %v1419 = vadd.f32 %v1365, %v1409
  %v1420 = vadd.f32 %v1366, %v1410
  %v1421 = vadd.f32 %v1367, %v1411
  %1422 = vrot.lane.b32.xlu0 %v1397, 1
  %v1423 = vpop.permute.xlu0 %1422
  %1424 = vrot.lane.b32.xlu0 %v1396, 1
  %v1425 = vpop.permute.xlu0 %1424
  %1426 = vrot.lane.b32.xlu0 %v1395, 1
  %v1427 = vpop.permute.xlu0 %1426
  %1428 = vrot.lane.b32.xlu0 %v1394, 1
  %v1429 = vpop.permute.xlu0 %1428
  %1430 = vrot.lane.b32.xlu0 %v1393, 1
  %v1431 = vpop.permute.xlu0 %1430
  %1432 = vrot.lane.b32.xlu0 %v1392, 1
  %v1433 = vpop.permute.xlu0 %1432
  %1434 = vrot.lane.b32.xlu0 %v1391, 1
  %v1435 = vpop.permute.xlu0 %1434
  %1436 = vrot.lane.b32.xlu0 %v1390, 1
  %v1437 = vpop.permute.xlu0 %1436
  %1438 = vrot.lane.b32.xlu0 %v1389, 1
  %v1439 = vpop.permute.xlu0 %1438
  %1440 = vrot.lane.b32.xlu0 %v1388, 1
  %v1441 = vpop.permute.xlu0 %1440
  %v1442 = vsel %vm1279, %v1439, %v1441
  %v1443 = vsel %vm1279, %v1437, %v1439
  %v1444 = vsel %vm1279, %v1435, %v1437
  %v1445 = vsel %vm1279, %v1433, %v1435
  %v1446 = vsel %vm1279, %v1431, %v1433
  %v1447 = vsel %vm1279, %v1429, %v1431
  %v1448 = vsel %vm1279, %v1427, %v1429
  %v1449 = vsel %vm1279, %v1425, %v1427
  %v1450 = vsel %vm1279, %v1423, %v1425
  %v1451 = vsel %vm1279, %v1441, %v1423
  %1452 = vset.pattern.permute.xlu0 76
  %1453 = vperm.xlu0 %1452, %v1200
  %v1454 = vpop.permute.xlu0 %1453
  %v1456 = vmul.f32 %v1451, %v1454
  %v1457 = vmul.f32 %v1450, %v1454
  %v1458 = vmul.f32 %v1449, %v1454
  %v1459 = vmul.f32 %v1448, %v1454
  %v1460 = vmul.f32 %v1447, %v1454
  %v1461 = vmul.f32 %v1446, %v1454
  %v1462 = vmul.f32 %v1445, %v1454
  %v1463 = vmul.f32 %v1444, %v1454
  %v1464 = vmul.f32 %v1443, %v1454
  %v1465 = vmul.f32 %v1442, %v1454
  %v1466 = vadd.f32 %v1412, %v1456
  %v1467 = vadd.f32 %v1413, %v1457
  %v1468 = vadd.f32 %v1414, %v1458
  %v1469 = vadd.f32 %v1415, %v1459
  %v1470 = vadd.f32 %v1416, %v1460
  %v1471 = vadd.f32 %v1417, %v1461
  %v1472 = vadd.f32 %v1418, %v1462
  %v1473 = vadd.f32 %v1419, %v1463
  %v1474 = vadd.f32 %v1420, %v1464
  %v1475 = vadd.f32 %v1421, %v1465
  %1476 = vrot.lane.b32.xlu0 %v1451, 1
  %v1477 = vpop.permute.xlu0 %1476
  %1478 = vrot.lane.b32.xlu0 %v1450, 1
  %v1479 = vpop.permute.xlu0 %1478
  %1480 = vrot.lane.b32.xlu0 %v1449, 1
  %v1481 = vpop.permute.xlu0 %1480
  %1482 = vrot.lane.b32.xlu0 %v1448, 1
  %v1483 = vpop.permute.xlu0 %1482
  %1484 = vrot.lane.b32.xlu0 %v1447, 1
  %v1485 = vpop.permute.xlu0 %1484
  %1486 = vrot.lane.b32.xlu0 %v1446, 1
  %v1487 = vpop.permute.xlu0 %1486
  %1488 = vrot.lane.b32.xlu0 %v1445, 1
  %v1489 = vpop.permute.xlu0 %1488
  %1490 = vrot.lane.b32.xlu0 %v1444, 1
  %v1491 = vpop.permute.xlu0 %1490
  %1492 = vrot.lane.b32.xlu0 %v1443, 1
  %v1493 = vpop.permute.xlu0 %1492
  %1494 = vrot.lane.b32.xlu0 %v1442, 1
  %v1495 = vpop.permute.xlu0 %1494
  %v1496 = vsel %vm1279, %v1493, %v1495
  %v1497 = vsel %vm1279, %v1491, %v1493
  %v1498 = vsel %vm1279, %v1489, %v1491
  %v1499 = vsel %vm1279, %v1487, %v1489
  %v1500 = vsel %vm1279, %v1485, %v1487
  %v1501 = vsel %vm1279, %v1483, %v1485
  %v1502 = vsel %vm1279, %v1481, %v1483
  %v1503 = vsel %vm1279, %v1479, %v1481
  %v1504 = vsel %vm1279, %v1477, %v1479
  %v1505 = vsel %vm1279, %v1495, %v1477
  %1506 = vset.pattern.permute.xlu0 75
  %1507 = vperm.xlu0 %1506, %v1200
  %v1508 = vpop.permute.xlu0 %1507
  %v1510 = vmul.f32 %v1505, %v1508
  %v1511 = vmul.f32 %v1504, %v1508
  %v1512 = vmul.f32 %v1503, %v1508
  %v1513 = vmul.f32 %v1502, %v1508
  %v1514 = vmul.f32 %v1501, %v1508
  %v1515 = vmul.f32 %v1500, %v1508
  %v1516 = vmul.f32 %v1499, %v1508
  %v1517 = vmul.f32 %v1498, %v1508
  %v1518 = vmul.f32 %v1497, %v1508
  %v1519 = vmul.f32 %v1496, %v1508
  %v1520 = vadd.f32 %v1466, %v1510
  %v1521 = vadd.f32 %v1467, %v1511
  %v1522 = vadd.f32 %v1468, %v1512
  %v1523 = vadd.f32 %v1469, %v1513
  %v1524 = vadd.f32 %v1470, %v1514
  %v1525 = vadd.f32 %v1471, %v1515
  %v1526 = vadd.f32 %v1472, %v1516
  %v1527 = vadd.f32 %v1473, %v1517
  %v1528 = vadd.f32 %v1474, %v1518
  %v1529 = vadd.f32 %v1475, %v1519
  %1530 = vrot.lane.b32.xlu0 %v1505, 1
  %v1531 = vpop.permute.xlu0 %1530
  %1532 = vrot.lane.b32.xlu0 %v1504, 1
  %v1533 = vpop.permute.xlu0 %1532
  %1534 = vrot.lane.b32.xlu0 %v1503, 1
  %v1535 = vpop.permute.xlu0 %1534
  %1536 = vrot.lane.b32.xlu0 %v1502, 1
  %v1537 = vpop.permute.xlu0 %1536
  %1538 = vrot.lane.b32.xlu0 %v1501, 1
  %v1539 = vpop.permute.xlu0 %1538
  %1540 = vrot.lane.b32.xlu0 %v1500, 1
  %v1541 = vpop.permute.xlu0 %1540
  %1542 = vrot.lane.b32.xlu0 %v1499, 1
  %v1543 = vpop.permute.xlu0 %1542
  %1544 = vrot.lane.b32.xlu0 %v1498, 1
  %v1545 = vpop.permute.xlu0 %1544
  %1546 = vrot.lane.b32.xlu0 %v1497, 1
  %v1547 = vpop.permute.xlu0 %1546
  %1548 = vrot.lane.b32.xlu0 %v1496, 1
  %v1549 = vpop.permute.xlu0 %1548
  %v1550 = vsel %vm1279, %v1547, %v1549
  %v1551 = vsel %vm1279, %v1545, %v1547
  %v1552 = vsel %vm1279, %v1543, %v1545
  %v1553 = vsel %vm1279, %v1541, %v1543
  %v1554 = vsel %vm1279, %v1539, %v1541
  %v1555 = vsel %vm1279, %v1537, %v1539
  %v1556 = vsel %vm1279, %v1535, %v1537
  %v1557 = vsel %vm1279, %v1533, %v1535
  %v1558 = vsel %vm1279, %v1531, %v1533
  %v1559 = vsel %vm1279, %v1549, %v1531
  %1560 = vset.pattern.permute.xlu0 74
  %1561 = vperm.xlu0 %1560, %v1200
  %v1562 = vpop.permute.xlu0 %1561
  %v1564 = vmul.f32 %v1559, %v1562
  %v1565 = vmul.f32 %v1558, %v1562
  %v1566 = vmul.f32 %v1557, %v1562
  %v1567 = vmul.f32 %v1556, %v1562
  %v1568 = vmul.f32 %v1555, %v1562
  %v1569 = vmul.f32 %v1554, %v1562
  %v1570 = vmul.f32 %v1553, %v1562
  %v1571 = vmul.f32 %v1552, %v1562
  %v1572 = vmul.f32 %v1551, %v1562
  %v1573 = vmul.f32 %v1550, %v1562
  %v1574 = vadd.f32 %v1520, %v1564
  %v1575 = vadd.f32 %v1521, %v1565
  %v1576 = vadd.f32 %v1522, %v1566
  %v1577 = vadd.f32 %v1523, %v1567
  %v1578 = vadd.f32 %v1524, %v1568
  %v1579 = vadd.f32 %v1525, %v1569
  %v1580 = vadd.f32 %v1526, %v1570
  %v1581 = vadd.f32 %v1527, %v1571
  %v1582 = vadd.f32 %v1528, %v1572
  %v1583 = vadd.f32 %v1529, %v1573
  %1584 = vrot.lane.b32.xlu0 %v1559, 1
  %v1585 = vpop.permute.xlu0 %1584
  %1586 = vrot.lane.b32.xlu0 %v1558, 1
  %v1587 = vpop.permute.xlu0 %1586
  %1588 = vrot.lane.b32.xlu0 %v1557, 1
  %v1589 = vpop.permute.xlu0 %1588
  %1590 = vrot.lane.b32.xlu0 %v1556, 1
  %v1591 = vpop.permute.xlu0 %1590
  %1592 = vrot.lane.b32.xlu0 %v1555, 1
  %v1593 = vpop.permute.xlu0 %1592
  %1594 = vrot.lane.b32.xlu0 %v1554, 1
  %v1595 = vpop.permute.xlu0 %1594
  %1596 = vrot.lane.b32.xlu0 %v1553, 1
  %v1597 = vpop.permute.xlu0 %1596
  %1598 = vrot.lane.b32.xlu0 %v1552, 1
  %v1599 = vpop.permute.xlu0 %1598
  %1600 = vrot.lane.b32.xlu0 %v1551, 1
  %v1601 = vpop.permute.xlu0 %1600
  %1602 = vrot.lane.b32.xlu0 %v1550, 1
  %v1603 = vpop.permute.xlu0 %1602
  %v1604 = vsel %vm1279, %v1601, %v1603
  %v1605 = vsel %vm1279, %v1599, %v1601
  %v1606 = vsel %vm1279, %v1597, %v1599
  %v1607 = vsel %vm1279, %v1595, %v1597
  %v1608 = vsel %vm1279, %v1593, %v1595
  %v1609 = vsel %vm1279, %v1591, %v1593
  %v1610 = vsel %vm1279, %v1589, %v1591
  %v1611 = vsel %vm1279, %v1587, %v1589
  %v1612 = vsel %vm1279, %v1585, %v1587
  %v1613 = vsel %vm1279, %v1603, %v1585
  %1614 = vset.pattern.permute.xlu0 73
  %1615 = vperm.xlu0 %1614, %v1200
  %v1616 = vpop.permute.xlu0 %1615
  %v1618 = vmul.f32 %v1613, %v1616
  %v1619 = vmul.f32 %v1612, %v1616
  %v1620 = vmul.f32 %v1611, %v1616
  %v1621 = vmul.f32 %v1610, %v1616
  %v1622 = vmul.f32 %v1609, %v1616
  %v1623 = vmul.f32 %v1608, %v1616
  %v1624 = vmul.f32 %v1607, %v1616
  %v1625 = vmul.f32 %v1606, %v1616
  %v1626 = vmul.f32 %v1605, %v1616
  %v1627 = vmul.f32 %v1604, %v1616
  %v1628 = vadd.f32 %v1574, %v1618
  %v1629 = vadd.f32 %v1575, %v1619
  %v1630 = vadd.f32 %v1576, %v1620
  %v1631 = vadd.f32 %v1577, %v1621
  %v1632 = vadd.f32 %v1578, %v1622
  %v1633 = vadd.f32 %v1579, %v1623
  %v1634 = vadd.f32 %v1580, %v1624
  %v1635 = vadd.f32 %v1581, %v1625
  %v1636 = vadd.f32 %v1582, %v1626
  %v1637 = vadd.f32 %v1583, %v1627
  %1638 = vrot.lane.b32.xlu0 %v1613, 1
  %v1639 = vpop.permute.xlu0 %1638
  %1640 = vrot.lane.b32.xlu0 %v1612, 1
  %v1641 = vpop.permute.xlu0 %1640
  %1642 = vrot.lane.b32.xlu0 %v1611, 1
  %v1643 = vpop.permute.xlu0 %1642
  %1644 = vrot.lane.b32.xlu0 %v1610, 1
  %v1645 = vpop.permute.xlu0 %1644
  %1646 = vrot.lane.b32.xlu0 %v1609, 1
  %v1647 = vpop.permute.xlu0 %1646
  %1648 = vrot.lane.b32.xlu0 %v1608, 1
  %v1649 = vpop.permute.xlu0 %1648
  %1650 = vrot.lane.b32.xlu0 %v1607, 1
  %v1651 = vpop.permute.xlu0 %1650
  %1652 = vrot.lane.b32.xlu0 %v1606, 1
  %v1653 = vpop.permute.xlu0 %1652
  %1654 = vrot.lane.b32.xlu0 %v1605, 1
  %v1655 = vpop.permute.xlu0 %1654
  %1656 = vrot.lane.b32.xlu0 %v1604, 1
  %v1657 = vpop.permute.xlu0 %1656
  %v1658 = vsel %vm1279, %v1655, %v1657
  %v1659 = vsel %vm1279, %v1653, %v1655
  %v1660 = vsel %vm1279, %v1651, %v1653
  %v1661 = vsel %vm1279, %v1649, %v1651
  %v1662 = vsel %vm1279, %v1647, %v1649
  %v1663 = vsel %vm1279, %v1645, %v1647
  %v1664 = vsel %vm1279, %v1643, %v1645
  %v1665 = vsel %vm1279, %v1641, %v1643
  %v1666 = vsel %vm1279, %v1639, %v1641
  %v1667 = vsel %vm1279, %v1657, %v1639
  %1668 = vset.pattern.permute.xlu0 72
  %1669 = vperm.xlu0 %1668, %v1200
  %v1670 = vpop.permute.xlu0 %1669
  %v1672 = vmul.f32 %v1667, %v1670
  %v1673 = vmul.f32 %v1666, %v1670
  %v1674 = vmul.f32 %v1665, %v1670
  %v1675 = vmul.f32 %v1664, %v1670
  %v1676 = vmul.f32 %v1663, %v1670
  %v1677 = vmul.f32 %v1662, %v1670
  %v1678 = vmul.f32 %v1661, %v1670
  %v1679 = vmul.f32 %v1660, %v1670
  %v1680 = vmul.f32 %v1659, %v1670
  %v1681 = vmul.f32 %v1658, %v1670
  %v1682 = vadd.f32 %v1628, %v1672
  %v1683 = vadd.f32 %v1629, %v1673
  %v1684 = vadd.f32 %v1630, %v1674
  %v1685 = vadd.f32 %v1631, %v1675
  %v1686 = vadd.f32 %v1632, %v1676
  %v1687 = vadd.f32 %v1633, %v1677
  %v1688 = vadd.f32 %v1634, %v1678
  %v1689 = vadd.f32 %v1635, %v1679
  %v1690 = vadd.f32 %v1636, %v1680
  %v1691 = vadd.f32 %v1637, %v1681
  %1692 = vrot.lane.b32.xlu0 %v1232, 24
  %v1693 = vpop.permute.xlu0 %1692
  %1694 = vrot.lane.b32.xlu0 %v1231, 24
  %v1695 = vpop.permute.xlu0 %1694
  %1696 = vrot.lane.b32.xlu0 %v1230, 24
  %v1697 = vpop.permute.xlu0 %1696
  %1698 = vrot.lane.b32.xlu0 %v1229, 24
  %v1699 = vpop.permute.xlu0 %1698
  %1700 = vrot.lane.b32.xlu0 %v1228, 24
  %v1701 = vpop.permute.xlu0 %1700
  %1702 = vrot.lane.b32.xlu0 %v1227, 24
  %v1703 = vpop.permute.xlu0 %1702
  %1704 = vrot.lane.b32.xlu0 %v1226, 24
  %v1705 = vpop.permute.xlu0 %1704
  %1706 = vrot.lane.b32.xlu0 %v1225, 24
  %v1707 = vpop.permute.xlu0 %1706
  %1708 = vrot.lane.b32.xlu0 %v1224, 24
  %v1709 = vpop.permute.xlu0 %1708
  %1710 = vrot.lane.b32.xlu0 %v1233, 24
  %v1711 = vpop.permute.xlu0 %1710
  %vm1712 = vcmp.lt.s32.totalorder %v1222, 24
  %v1713 = vsel %vm1712, %v1709, %v1711
  %v1714 = vsel %vm1712, %v1707, %v1709
  %v1715 = vsel %vm1712, %v1705, %v1707
  %v1716 = vsel %vm1712, %v1703, %v1705
  %v1717 = vsel %vm1712, %v1701, %v1703
  %v1718 = vsel %vm1712, %v1699, %v1701
  %v1719 = vsel %vm1712, %v1697, %v1699
  %v1720 = vsel %vm1712, %v1695, %v1697
  %v1721 = vsel %vm1712, %v1693, %v1695
  %v1722 = vsel %vm1712, %v1711, %v1693
  %1723 = vset.pattern.permute.xlu0 71
  %1724 = vperm.xlu0 %1723, %v1200
  %v1725 = vpop.permute.xlu0 %1724
  %v1727 = vmul.f32 %v1722, %v1725
  %v1728 = vmul.f32 %v1721, %v1725
  %v1729 = vmul.f32 %v1720, %v1725
  %v1730 = vmul.f32 %v1719, %v1725
  %v1731 = vmul.f32 %v1718, %v1725
  %v1732 = vmul.f32 %v1717, %v1725
  %v1733 = vmul.f32 %v1716, %v1725
  %v1734 = vmul.f32 %v1715, %v1725
  %v1735 = vmul.f32 %v1714, %v1725
  %v1736 = vmul.f32 %v1713, %v1725
  %v1737 = vadd.f32 %v1682, %v1727
  %v1738 = vadd.f32 %v1683, %v1728
  %v1739 = vadd.f32 %v1684, %v1729
  %v1740 = vadd.f32 %v1685, %v1730
  %v1741 = vadd.f32 %v1686, %v1731
  %v1742 = vadd.f32 %v1687, %v1732
  %v1743 = vadd.f32 %v1688, %v1733
  %v1744 = vadd.f32 %v1689, %v1734
  %v1745 = vadd.f32 %v1690, %v1735
  %v1746 = vadd.f32 %v1691, %v1736
  %1747 = vrot.lane.b32.xlu0 %v1722, 1
  %v1748 = vpop.permute.xlu0 %1747
  %1749 = vrot.lane.b32.xlu0 %v1721, 1
  %v1750 = vpop.permute.xlu0 %1749
  %1751 = vrot.lane.b32.xlu0 %v1720, 1
  %v1752 = vpop.permute.xlu0 %1751
  %1753 = vrot.lane.b32.xlu0 %v1719, 1
  %v1754 = vpop.permute.xlu0 %1753
  %1755 = vrot.lane.b32.xlu0 %v1718, 1
  %v1756 = vpop.permute.xlu0 %1755
  %1757 = vrot.lane.b32.xlu0 %v1717, 1
  %v1758 = vpop.permute.xlu0 %1757
  %1759 = vrot.lane.b32.xlu0 %v1716, 1
  %v1760 = vpop.permute.xlu0 %1759
  %1761 = vrot.lane.b32.xlu0 %v1715, 1
  %v1762 = vpop.permute.xlu0 %1761
  %1763 = vrot.lane.b32.xlu0 %v1714, 1
  %v1764 = vpop.permute.xlu0 %1763
  %1765 = vrot.lane.b32.xlu0 %v1713, 1
  %v1766 = vpop.permute.xlu0 %1765
  %v1767 = vsel %vm1279, %v1764, %v1766
  %v1768 = vsel %vm1279, %v1762, %v1764
  %v1769 = vsel %vm1279, %v1760, %v1762
  %v1770 = vsel %vm1279, %v1758, %v1760
  %v1771 = vsel %vm1279, %v1756, %v1758
  %v1772 = vsel %vm1279, %v1754, %v1756
  %v1773 = vsel %vm1279, %v1752, %v1754
  %v1774 = vsel %vm1279, %v1750, %v1752
  %v1775 = vsel %vm1279, %v1748, %v1750
  %v1776 = vsel %vm1279, %v1766, %v1748
  %1777 = vset.pattern.permute.xlu0 70
  %1778 = vperm.xlu0 %1777, %v1200
  %v1779 = vpop.permute.xlu0 %1778
  %v1781 = vmul.f32 %v1776, %v1779
  %v1782 = vmul.f32 %v1775, %v1779
  %v1783 = vmul.f32 %v1774, %v1779
  %v1784 = vmul.f32 %v1773, %v1779
  %v1785 = vmul.f32 %v1772, %v1779
  %v1786 = vmul.f32 %v1771, %v1779
  %v1787 = vmul.f32 %v1770, %v1779
  %v1788 = vmul.f32 %v1769, %v1779
  %v1789 = vmul.f32 %v1768, %v1779
  %v1790 = vmul.f32 %v1767, %v1779
  %v1791 = vadd.f32 %v1737, %v1781
  %v1792 = vadd.f32 %v1738, %v1782
  %v1793 = vadd.f32 %v1739, %v1783
  %v1794 = vadd.f32 %v1740, %v1784
  %v1795 = vadd.f32 %v1741, %v1785
  %v1796 = vadd.f32 %v1742, %v1786
  %v1797 = vadd.f32 %v1743, %v1787
  %v1798 = vadd.f32 %v1744, %v1788
  %v1799 = vadd.f32 %v1745, %v1789
  %v1800 = vadd.f32 %v1746, %v1790
  %1801 = vrot.lane.b32.xlu0 %v1776, 1
  %v1802 = vpop.permute.xlu0 %1801
  %1803 = vrot.lane.b32.xlu0 %v1775, 1
  %v1804 = vpop.permute.xlu0 %1803
  %1805 = vrot.lane.b32.xlu0 %v1774, 1
  %v1806 = vpop.permute.xlu0 %1805
  %1807 = vrot.lane.b32.xlu0 %v1773, 1
  %v1808 = vpop.permute.xlu0 %1807
  %1809 = vrot.lane.b32.xlu0 %v1772, 1
  %v1810 = vpop.permute.xlu0 %1809
  %1811 = vrot.lane.b32.xlu0 %v1771, 1
  %v1812 = vpop.permute.xlu0 %1811
  %1813 = vrot.lane.b32.xlu0 %v1770, 1
  %v1814 = vpop.permute.xlu0 %1813
  %1815 = vrot.lane.b32.xlu0 %v1769, 1
  %v1816 = vpop.permute.xlu0 %1815
  %1817 = vrot.lane.b32.xlu0 %v1768, 1
  %v1818 = vpop.permute.xlu0 %1817
  %1819 = vrot.lane.b32.xlu0 %v1767, 1
  %v1820 = vpop.permute.xlu0 %1819
  %v1821 = vsel %vm1279, %v1818, %v1820
  %v1822 = vsel %vm1279, %v1816, %v1818
  %v1823 = vsel %vm1279, %v1814, %v1816
  %v1824 = vsel %vm1279, %v1812, %v1814
  %v1825 = vsel %vm1279, %v1810, %v1812
  %v1826 = vsel %vm1279, %v1808, %v1810
  %v1827 = vsel %vm1279, %v1806, %v1808
  %v1828 = vsel %vm1279, %v1804, %v1806
  %v1829 = vsel %vm1279, %v1802, %v1804
  %v1830 = vsel %vm1279, %v1820, %v1802
  %1831 = vset.pattern.permute.xlu0 69
  %1832 = vperm.xlu0 %1831, %v1200
  %v1833 = vpop.permute.xlu0 %1832
  %v1835 = vmul.f32 %v1830, %v1833
  %v1836 = vmul.f32 %v1829, %v1833
  %v1837 = vmul.f32 %v1828, %v1833
  %v1838 = vmul.f32 %v1827, %v1833
  %v1839 = vmul.f32 %v1826, %v1833
  %v1840 = vmul.f32 %v1825, %v1833
  %v1841 = vmul.f32 %v1824, %v1833
  %v1842 = vmul.f32 %v1823, %v1833
  %v1843 = vmul.f32 %v1822, %v1833
  %v1844 = vmul.f32 %v1821, %v1833
  %v1845 = vadd.f32 %v1791, %v1835
  %v1846 = vadd.f32 %v1792, %v1836
  %v1847 = vadd.f32 %v1793, %v1837
  %v1848 = vadd.f32 %v1794, %v1838
  %v1849 = vadd.f32 %v1795, %v1839
  %v1850 = vadd.f32 %v1796, %v1840
  %v1851 = vadd.f32 %v1797, %v1841
  %v1852 = vadd.f32 %v1798, %v1842
  %v1853 = vadd.f32 %v1799, %v1843
  %v1854 = vadd.f32 %v1800, %v1844
  %1855 = vrot.lane.b32.xlu0 %v1830, 1
  %v1856 = vpop.permute.xlu0 %1855
  %1857 = vrot.lane.b32.xlu0 %v1829, 1
  %v1858 = vpop.permute.xlu0 %1857
  %1859 = vrot.lane.b32.xlu0 %v1828, 1
  %v1860 = vpop.permute.xlu0 %1859
  %1861 = vrot.lane.b32.xlu0 %v1827, 1
  %v1862 = vpop.permute.xlu0 %1861
  %1863 = vrot.lane.b32.xlu0 %v1826, 1
  %v1864 = vpop.permute.xlu0 %1863
  %1865 = vrot.lane.b32.xlu0 %v1825, 1
  %v1866 = vpop.permute.xlu0 %1865
  %1867 = vrot.lane.b32.xlu0 %v1824, 1
  %v1868 = vpop.permute.xlu0 %1867
  %1869 = vrot.lane.b32.xlu0 %v1823, 1
  %v1870 = vpop.permute.xlu0 %1869
  %1871 = vrot.lane.b32.xlu0 %v1822, 1
  %v1872 = vpop.permute.xlu0 %1871
  %1873 = vrot.lane.b32.xlu0 %v1821, 1
  %v1874 = vpop.permute.xlu0 %1873
  %v1875 = vsel %vm1279, %v1872, %v1874
  %v1876 = vsel %vm1279, %v1870, %v1872
  %v1877 = vsel %vm1279, %v1868, %v1870
  %v1878 = vsel %vm1279, %v1866, %v1868
  %v1879 = vsel %vm1279, %v1864, %v1866
  %v1880 = vsel %vm1279, %v1862, %v1864
  %v1881 = vsel %vm1279, %v1860, %v1862
  %v1882 = vsel %vm1279, %v1858, %v1860
  %v1883 = vsel %vm1279, %v1856, %v1858
  %v1884 = vsel %vm1279, %v1874, %v1856
  %1885 = vset.pattern.permute.xlu0 68
  %1886 = vperm.xlu0 %1885, %v1200
  %v1887 = vpop.permute.xlu0 %1886
  %v1889 = vmul.f32 %v1884, %v1887
  %v1890 = vmul.f32 %v1883, %v1887
  %v1891 = vmul.f32 %v1882, %v1887
  %v1892 = vmul.f32 %v1881, %v1887
  %v1893 = vmul.f32 %v1880, %v1887
  %v1894 = vmul.f32 %v1879, %v1887
  %v1895 = vmul.f32 %v1878, %v1887
  %v1896 = vmul.f32 %v1877, %v1887
  %v1897 = vmul.f32 %v1876, %v1887
  %v1898 = vmul.f32 %v1875, %v1887
  %v1899 = vadd.f32 %v1845, %v1889
  %v1900 = vadd.f32 %v1846, %v1890
  %v1901 = vadd.f32 %v1847, %v1891
  %v1902 = vadd.f32 %v1848, %v1892
  %v1903 = vadd.f32 %v1849, %v1893
  %v1904 = vadd.f32 %v1850, %v1894
  %v1905 = vadd.f32 %v1851, %v1895
  %v1906 = vadd.f32 %v1852, %v1896
  %v1907 = vadd.f32 %v1853, %v1897
  %v1908 = vadd.f32 %v1854, %v1898
  %1909 = vrot.lane.b32.xlu0 %v1884, 1
  %v1910 = vpop.permute.xlu0 %1909
  %1911 = vrot.lane.b32.xlu0 %v1883, 1
  %v1912 = vpop.permute.xlu0 %1911
  %1913 = vrot.lane.b32.xlu0 %v1882, 1
  %v1914 = vpop.permute.xlu0 %1913
  %1915 = vrot.lane.b32.xlu0 %v1881, 1
  %v1916 = vpop.permute.xlu0 %1915
  %1917 = vrot.lane.b32.xlu0 %v1880, 1
  %v1918 = vpop.permute.xlu0 %1917
  %1919 = vrot.lane.b32.xlu0 %v1879, 1
  %v1920 = vpop.permute.xlu0 %1919
  %1921 = vrot.lane.b32.xlu0 %v1878, 1
  %v1922 = vpop.permute.xlu0 %1921
  %1923 = vrot.lane.b32.xlu0 %v1877, 1
  %v1924 = vpop.permute.xlu0 %1923
  %1925 = vrot.lane.b32.xlu0 %v1876, 1
  %v1926 = vpop.permute.xlu0 %1925
  %1927 = vrot.lane.b32.xlu0 %v1875, 1
  %v1928 = vpop.permute.xlu0 %1927
  %v1929 = vsel %vm1279, %v1926, %v1928
  %v1930 = vsel %vm1279, %v1924, %v1926
  %v1931 = vsel %vm1279, %v1922, %v1924
  %v1932 = vsel %vm1279, %v1920, %v1922
  %v1933 = vsel %vm1279, %v1918, %v1920
  %v1934 = vsel %vm1279, %v1916, %v1918
  %v1935 = vsel %vm1279, %v1914, %v1916
  %v1936 = vsel %vm1279, %v1912, %v1914
  %v1937 = vsel %vm1279, %v1910, %v1912
  %v1938 = vsel %vm1279, %v1928, %v1910
  %1939 = vset.pattern.permute.xlu0 67
  %1940 = vperm.xlu0 %1939, %v1200
  %v1941 = vpop.permute.xlu0 %1940
  %v1943 = vmul.f32 %v1938, %v1941
  %v1944 = vmul.f32 %v1937, %v1941
  %v1945 = vmul.f32 %v1936, %v1941
  %v1946 = vmul.f32 %v1935, %v1941
  %v1947 = vmul.f32 %v1934, %v1941
  %v1948 = vmul.f32 %v1933, %v1941
  %v1949 = vmul.f32 %v1932, %v1941
  %v1950 = vmul.f32 %v1931, %v1941
  %v1951 = vmul.f32 %v1930, %v1941
  %v1952 = vmul.f32 %v1929, %v1941
  %v1953 = vadd.f32 %v1899, %v1943
  %v1954 = vadd.f32 %v1900, %v1944
  %v1955 = vadd.f32 %v1901, %v1945
  %v1956 = vadd.f32 %v1902, %v1946
  %v1957 = vadd.f32 %v1903, %v1947
  %v1958 = vadd.f32 %v1904, %v1948
  %v1959 = vadd.f32 %v1905, %v1949
  %v1960 = vadd.f32 %v1906, %v1950
  %v1961 = vadd.f32 %v1907, %v1951
  %v1962 = vadd.f32 %v1908, %v1952
  %1963 = vrot.lane.b32.xlu0 %v1938, 1
  %v1964 = vpop.permute.xlu0 %1963
  %1965 = vrot.lane.b32.xlu0 %v1937, 1
  %v1966 = vpop.permute.xlu0 %1965
  %1967 = vrot.lane.b32.xlu0 %v1936, 1
  %v1968 = vpop.permute.xlu0 %1967
  %1969 = vrot.lane.b32.xlu0 %v1935, 1
  %v1970 = vpop.permute.xlu0 %1969
  %1971 = vrot.lane.b32.xlu0 %v1934, 1
  %v1972 = vpop.permute.xlu0 %1971
  %1973 = vrot.lane.b32.xlu0 %v1933, 1
  %v1974 = vpop.permute.xlu0 %1973
  %1975 = vrot.lane.b32.xlu0 %v1932, 1
  %v1976 = vpop.permute.xlu0 %1975
  %1977 = vrot.lane.b32.xlu0 %v1931, 1
  %v1978 = vpop.permute.xlu0 %1977
  %1979 = vrot.lane.b32.xlu0 %v1930, 1
  %v1980 = vpop.permute.xlu0 %1979
  %1981 = vrot.lane.b32.xlu0 %v1929, 1
  %v1982 = vpop.permute.xlu0 %1981
  %v1983 = vsel %vm1279, %v1980, %v1982
  %v1984 = vsel %vm1279, %v1978, %v1980
  %v1985 = vsel %vm1279, %v1976, %v1978
  %v1986 = vsel %vm1279, %v1974, %v1976
  %v1987 = vsel %vm1279, %v1972, %v1974
  %v1988 = vsel %vm1279, %v1970, %v1972
  %v1989 = vsel %vm1279, %v1968, %v1970
  %v1990 = vsel %vm1279, %v1966, %v1968
  %v1991 = vsel %vm1279, %v1964, %v1966
  %v1992 = vsel %vm1279, %v1982, %v1964
  %1993 = vset.pattern.permute.xlu0 66
  %1994 = vperm.xlu0 %1993, %v1200
  %v1995 = vpop.permute.xlu0 %1994
  %v1997 = vmul.f32 %v1992, %v1995
  %v1998 = vmul.f32 %v1991, %v1995
  %v1999 = vmul.f32 %v1990, %v1995
  %v2000 = vmul.f32 %v1989, %v1995
  %v2001 = vmul.f32 %v1988, %v1995
  %v2002 = vmul.f32 %v1987, %v1995
  %v2003 = vmul.f32 %v1986, %v1995
  %v2004 = vmul.f32 %v1985, %v1995
  %v2005 = vmul.f32 %v1984, %v1995
  %v2006 = vmul.f32 %v1983, %v1995
  %v2007 = vadd.f32 %v1953, %v1997
  %v2008 = vadd.f32 %v1954, %v1998
  %v2009 = vadd.f32 %v1955, %v1999
  %v2010 = vadd.f32 %v1956, %v2000
  %v2011 = vadd.f32 %v1957, %v2001
  %v2012 = vadd.f32 %v1958, %v2002
  %v2013 = vadd.f32 %v1959, %v2003
  %v2014 = vadd.f32 %v1960, %v2004
  %v2015 = vadd.f32 %v1961, %v2005
  %v2016 = vadd.f32 %v1962, %v2006
  %2017 = vrot.lane.b32.xlu0 %v1992, 1
  %v2018 = vpop.permute.xlu0 %2017
  %2019 = vrot.lane.b32.xlu0 %v1991, 1
  %v2020 = vpop.permute.xlu0 %2019
  %2021 = vrot.lane.b32.xlu0 %v1990, 1
  %v2022 = vpop.permute.xlu0 %2021
  %2023 = vrot.lane.b32.xlu0 %v1989, 1
  %v2024 = vpop.permute.xlu0 %2023
  %2025 = vrot.lane.b32.xlu0 %v1988, 1
  %v2026 = vpop.permute.xlu0 %2025
  %2027 = vrot.lane.b32.xlu0 %v1987, 1
  %v2028 = vpop.permute.xlu0 %2027
  %2029 = vrot.lane.b32.xlu0 %v1986, 1
  %v2030 = vpop.permute.xlu0 %2029
  %2031 = vrot.lane.b32.xlu0 %v1985, 1
  %v2032 = vpop.permute.xlu0 %2031
  %2033 = vrot.lane.b32.xlu0 %v1984, 1
  %v2034 = vpop.permute.xlu0 %2033
  %2035 = vrot.lane.b32.xlu0 %v1983, 1
  %v2036 = vpop.permute.xlu0 %2035
  %v2037 = vsel %vm1279, %v2034, %v2036
  %v2038 = vsel %vm1279, %v2032, %v2034
  %v2039 = vsel %vm1279, %v2030, %v2032
  %v2040 = vsel %vm1279, %v2028, %v2030
  %v2041 = vsel %vm1279, %v2026, %v2028
  %v2042 = vsel %vm1279, %v2024, %v2026
  %v2043 = vsel %vm1279, %v2022, %v2024
  %v2044 = vsel %vm1279, %v2020, %v2022
  %v2045 = vsel %vm1279, %v2018, %v2020
  %v2046 = vsel %vm1279, %v2036, %v2018
  %2047 = vset.pattern.permute.xlu0 65
  %2048 = vperm.xlu0 %2047, %v1200
  %v2049 = vpop.permute.xlu0 %2048
  %v2051 = vmul.f32 %v2046, %v2049
  %v2052 = vmul.f32 %v2045, %v2049
  %v2053 = vmul.f32 %v2044, %v2049
  %v2054 = vmul.f32 %v2043, %v2049
  %v2055 = vmul.f32 %v2042, %v2049
  %v2056 = vmul.f32 %v2041, %v2049
  %v2057 = vmul.f32 %v2040, %v2049
  %v2058 = vmul.f32 %v2039, %v2049
  %v2059 = vmul.f32 %v2038, %v2049
  %v2060 = vmul.f32 %v2037, %v2049
  %v2061 = vadd.f32 %v2007, %v2051
  %v2062 = vadd.f32 %v2008, %v2052
  %v2063 = vadd.f32 %v2009, %v2053
  %v2064 = vadd.f32 %v2010, %v2054
  %v2065 = vadd.f32 %v2011, %v2055
  %v2066 = vadd.f32 %v2012, %v2056
  %v2067 = vadd.f32 %v2013, %v2057
  %v2068 = vadd.f32 %v2014, %v2058
  %v2069 = vadd.f32 %v2015, %v2059
  %v2070 = vadd.f32 %v2016, %v2060
  %2071 = vrot.lane.b32.xlu0 %v2046, 1
  %v2072 = vpop.permute.xlu0 %2071
  %2073 = vrot.lane.b32.xlu0 %v2045, 1
  %v2074 = vpop.permute.xlu0 %2073
  %2075 = vrot.lane.b32.xlu0 %v2044, 1
  %v2076 = vpop.permute.xlu0 %2075
  %2077 = vrot.lane.b32.xlu0 %v2043, 1
  %v2078 = vpop.permute.xlu0 %2077
  %2079 = vrot.lane.b32.xlu0 %v2042, 1
  %v2080 = vpop.permute.xlu0 %2079
  %2081 = vrot.lane.b32.xlu0 %v2041, 1
  %v2082 = vpop.permute.xlu0 %2081
  %2083 = vrot.lane.b32.xlu0 %v2040, 1
  %v2084 = vpop.permute.xlu0 %2083
  %2085 = vrot.lane.b32.xlu0 %v2039, 1
  %v2086 = vpop.permute.xlu0 %2085
  %2087 = vrot.lane.b32.xlu0 %v2038, 1
  %v2088 = vpop.permute.xlu0 %2087
  %2089 = vrot.lane.b32.xlu0 %v2037, 1
  %v2090 = vpop.permute.xlu0 %2089
  %v2091 = vsel %vm1279, %v2088, %v2090
  %v2092 = vsel %vm1279, %v2086, %v2088
  %v2093 = vsel %vm1279, %v2084, %v2086
  %v2094 = vsel %vm1279, %v2082, %v2084
  %v2095 = vsel %vm1279, %v2080, %v2082
  %v2096 = vsel %vm1279, %v2078, %v2080
  %v2097 = vsel %vm1279, %v2076, %v2078
  %v2098 = vsel %vm1279, %v2074, %v2076
  %v2099 = vsel %vm1279, %v2072, %v2074
  %v2100 = vsel %vm1279, %v2090, %v2072
  %2101 = vset.pattern.permute.xlu0 64
  %2102 = vperm.xlu0 %2101, %v1200
  %v2103 = vpop.permute.xlu0 %2102
  %v2105 = vmul.f32 %v2100, %v2103
  %v2106 = vmul.f32 %v2099, %v2103
  %v2107 = vmul.f32 %v2098, %v2103
  %v2108 = vmul.f32 %v2097, %v2103
  %v2109 = vmul.f32 %v2096, %v2103
  %v2110 = vmul.f32 %v2095, %v2103
  %v2111 = vmul.f32 %v2094, %v2103
  %v2112 = vmul.f32 %v2093, %v2103
  %v2113 = vmul.f32 %v2092, %v2103
  %v2114 = vmul.f32 %v2091, %v2103
  %v2115 = vadd.f32 %v2061, %v2105
  %v2116 = vadd.f32 %v2062, %v2106
  %v2117 = vadd.f32 %v2063, %v2107
  %v2118 = vadd.f32 %v2064, %v2108
  %v2119 = vadd.f32 %v2065, %v2109
  %v2120 = vadd.f32 %v2066, %v2110
  %v2121 = vadd.f32 %v2067, %v2111
  %v2122 = vadd.f32 %v2068, %v2112
  %v2123 = vadd.f32 %v2069, %v2113
  %v2124 = vadd.f32 %v2070, %v2114
  %2125 = vrot.lane.b32.xlu0 %v2100, 1
  %v2126 = vpop.permute.xlu0 %2125
  %2127 = vrot.lane.b32.xlu0 %v2099, 1
  %v2128 = vpop.permute.xlu0 %2127
  %2129 = vrot.lane.b32.xlu0 %v2098, 1
  %v2130 = vpop.permute.xlu0 %2129
  %2131 = vrot.lane.b32.xlu0 %v2097, 1
  %v2132 = vpop.permute.xlu0 %2131
  %2133 = vrot.lane.b32.xlu0 %v2096, 1
  %v2134 = vpop.permute.xlu0 %2133
  %2135 = vrot.lane.b32.xlu0 %v2095, 1
  %v2136 = vpop.permute.xlu0 %2135
  %2137 = vrot.lane.b32.xlu0 %v2094, 1
  %v2138 = vpop.permute.xlu0 %2137
  %2139 = vrot.lane.b32.xlu0 %v2093, 1
  %v2140 = vpop.permute.xlu0 %2139
  %2141 = vrot.lane.b32.xlu0 %v2092, 1
  %v2142 = vpop.permute.xlu0 %2141
  %2143 = vrot.lane.b32.xlu0 %v2091, 1
  %v2144 = vpop.permute.xlu0 %2143
  %v2145 = vsel %vm1279, %v2142, %v2144
  %v2146 = vsel %vm1279, %v2140, %v2142
  %v2147 = vsel %vm1279, %v2138, %v2140
  %v2148 = vsel %vm1279, %v2136, %v2138
  %v2149 = vsel %vm1279, %v2134, %v2136
  %v2150 = vsel %vm1279, %v2132, %v2134
  %v2151 = vsel %vm1279, %v2130, %v2132
  %v2152 = vsel %vm1279, %v2128, %v2130
  %v2153 = vsel %vm1279, %v2126, %v2128
  %v2154 = vsel %vm1279, %v2144, %v2126
  %2155 = vset.pattern.permute.xlu0 63
  %2156 = vperm.xlu0 %2155, %v1200
  %v2157 = vpop.permute.xlu0 %2156
  %v2159 = vmul.f32 %v2154, %v2157
  %v2160 = vmul.f32 %v2153, %v2157
  %v2161 = vmul.f32 %v2152, %v2157
  %v2162 = vmul.f32 %v2151, %v2157
  %v2163 = vmul.f32 %v2150, %v2157
  %v2164 = vmul.f32 %v2149, %v2157
  %v2165 = vmul.f32 %v2148, %v2157
  %v2166 = vmul.f32 %v2147, %v2157
  %v2167 = vmul.f32 %v2146, %v2157
  %v2168 = vmul.f32 %v2145, %v2157
  %v2169 = vadd.f32 %v2115, %v2159
  %v2170 = vadd.f32 %v2116, %v2160
  %v2171 = vadd.f32 %v2117, %v2161
  %v2172 = vadd.f32 %v2118, %v2162
  %v2173 = vadd.f32 %v2119, %v2163
  %v2174 = vadd.f32 %v2120, %v2164
  %v2175 = vadd.f32 %v2121, %v2165
  %v2176 = vadd.f32 %v2122, %v2166
  %v2177 = vadd.f32 %v2123, %v2167
  %v2178 = vadd.f32 %v2124, %v2168
  %2179 = vrot.lane.b32.xlu0 %v1722, 24
  %v2180 = vpop.permute.xlu0 %2179
  %2181 = vrot.lane.b32.xlu0 %v1721, 24
  %v2182 = vpop.permute.xlu0 %2181
  %2183 = vrot.lane.b32.xlu0 %v1720, 24
  %v2184 = vpop.permute.xlu0 %2183
  %2185 = vrot.lane.b32.xlu0 %v1719, 24
  %v2186 = vpop.permute.xlu0 %2185
  %2187 = vrot.lane.b32.xlu0 %v1718, 24
  %v2188 = vpop.permute.xlu0 %2187
  %2189 = vrot.lane.b32.xlu0 %v1717, 24
  %v2190 = vpop.permute.xlu0 %2189
  %2191 = vrot.lane.b32.xlu0 %v1716, 24
  %v2192 = vpop.permute.xlu0 %2191
  %2193 = vrot.lane.b32.xlu0 %v1715, 24
  %v2194 = vpop.permute.xlu0 %2193
  %2195 = vrot.lane.b32.xlu0 %v1714, 24
  %v2196 = vpop.permute.xlu0 %2195
  %2197 = vrot.lane.b32.xlu0 %v1713, 24
  %v2198 = vpop.permute.xlu0 %2197
  %v2199 = vsel %vm1712, %v2196, %v2198
  %v2200 = vsel %vm1712, %v2194, %v2196
  %v2201 = vsel %vm1712, %v2192, %v2194
  %v2202 = vsel %vm1712, %v2190, %v2192
  %v2203 = vsel %vm1712, %v2188, %v2190
  %v2204 = vsel %vm1712, %v2186, %v2188
  %v2205 = vsel %vm1712, %v2184, %v2186
  %v2206 = vsel %vm1712, %v2182, %v2184
  %v2207 = vsel %vm1712, %v2180, %v2182
  %v2208 = vsel %vm1712, %v2198, %v2180
  %2209 = vset.pattern.permute.xlu0 62
  %2210 = vperm.xlu0 %2209, %v1200
  %v2211 = vpop.permute.xlu0 %2210
  %v2213 = vmul.f32 %v2208, %v2211
  %v2214 = vmul.f32 %v2207, %v2211
  %v2215 = vmul.f32 %v2206, %v2211
  %v2216 = vmul.f32 %v2205, %v2211
  %v2217 = vmul.f32 %v2204, %v2211
  %v2218 = vmul.f32 %v2203, %v2211
  %v2219 = vmul.f32 %v2202, %v2211
  %v2220 = vmul.f32 %v2201, %v2211
  %v2221 = vmul.f32 %v2200, %v2211
  %v2222 = vmul.f32 %v2199, %v2211
  %v2223 = vadd.f32 %v2169, %v2213
  %v2224 = vadd.f32 %v2170, %v2214
  %v2225 = vadd.f32 %v2171, %v2215
  %v2226 = vadd.f32 %v2172, %v2216
  %v2227 = vadd.f32 %v2173, %v2217
  %v2228 = vadd.f32 %v2174, %v2218
  %v2229 = vadd.f32 %v2175, %v2219
  %v2230 = vadd.f32 %v2176, %v2220
  %v2231 = vadd.f32 %v2177, %v2221
  %v2232 = vadd.f32 %v2178, %v2222
  %2233 = vrot.lane.b32.xlu0 %v2208, 1
  %v2234 = vpop.permute.xlu0 %2233
  %2235 = vrot.lane.b32.xlu0 %v2207, 1
  %v2236 = vpop.permute.xlu0 %2235
  %2237 = vrot.lane.b32.xlu0 %v2206, 1
  %v2238 = vpop.permute.xlu0 %2237
  %2239 = vrot.lane.b32.xlu0 %v2205, 1
  %v2240 = vpop.permute.xlu0 %2239
  %2241 = vrot.lane.b32.xlu0 %v2204, 1
  %v2242 = vpop.permute.xlu0 %2241
  %2243 = vrot.lane.b32.xlu0 %v2203, 1
  %v2244 = vpop.permute.xlu0 %2243
  %2245 = vrot.lane.b32.xlu0 %v2202, 1
  %v2246 = vpop.permute.xlu0 %2245
  %2247 = vrot.lane.b32.xlu0 %v2201, 1
  %v2248 = vpop.permute.xlu0 %2247
  %2249 = vrot.lane.b32.xlu0 %v2200, 1
  %v2250 = vpop.permute.xlu0 %2249
  %2251 = vrot.lane.b32.xlu0 %v2199, 1
  %v2252 = vpop.permute.xlu0 %2251
  %v2253 = vsel %vm1279, %v2250, %v2252
  %v2254 = vsel %vm1279, %v2248, %v2250
  %v2255 = vsel %vm1279, %v2246, %v2248
  %v2256 = vsel %vm1279, %v2244, %v2246
  %v2257 = vsel %vm1279, %v2242, %v2244
  %v2258 = vsel %vm1279, %v2240, %v2242
  %v2259 = vsel %vm1279, %v2238, %v2240
  %v2260 = vsel %vm1279, %v2236, %v2238
  %v2261 = vsel %vm1279, %v2234, %v2236
  %v2262 = vsel %vm1279, %v2252, %v2234
  %2263 = vset.pattern.permute.xlu0 61
  %2264 = vperm.xlu0 %2263, %v1200
  %v2265 = vpop.permute.xlu0 %2264
  %v2267 = vmul.f32 %v2262, %v2265
  %v2268 = vmul.f32 %v2261, %v2265
  %v2269 = vmul.f32 %v2260, %v2265
  %v2270 = vmul.f32 %v2259, %v2265
  %v2271 = vmul.f32 %v2258, %v2265
  %v2272 = vmul.f32 %v2257, %v2265
  %v2273 = vmul.f32 %v2256, %v2265
  %v2274 = vmul.f32 %v2255, %v2265
  %v2275 = vmul.f32 %v2254, %v2265
  %v2276 = vmul.f32 %v2253, %v2265
  %v2277 = vadd.f32 %v2223, %v2267
  %v2278 = vadd.f32 %v2224, %v2268
  %v2279 = vadd.f32 %v2225, %v2269
  %v2280 = vadd.f32 %v2226, %v2270
  %v2281 = vadd.f32 %v2227, %v2271
  %v2282 = vadd.f32 %v2228, %v2272
  %v2283 = vadd.f32 %v2229, %v2273
  %v2284 = vadd.f32 %v2230, %v2274
  %v2285 = vadd.f32 %v2231, %v2275
  %v2286 = vadd.f32 %v2232, %v2276
  %2287 = vrot.lane.b32.xlu0 %v2262, 1
  %v2288 = vpop.permute.xlu0 %2287
  %2289 = vrot.lane.b32.xlu0 %v2261, 1
  %v2290 = vpop.permute.xlu0 %2289
  %2291 = vrot.lane.b32.xlu0 %v2260, 1
  %v2292 = vpop.permute.xlu0 %2291
  %2293 = vrot.lane.b32.xlu0 %v2259, 1
  %v2294 = vpop.permute.xlu0 %2293
  %2295 = vrot.lane.b32.xlu0 %v2258, 1
  %v2296 = vpop.permute.xlu0 %2295
  %2297 = vrot.lane.b32.xlu0 %v2257, 1
  %v2298 = vpop.permute.xlu0 %2297
  %2299 = vrot.lane.b32.xlu0 %v2256, 1
  %v2300 = vpop.permute.xlu0 %2299
  %2301 = vrot.lane.b32.xlu0 %v2255, 1
  %v2302 = vpop.permute.xlu0 %2301
  %2303 = vrot.lane.b32.xlu0 %v2254, 1
  %v2304 = vpop.permute.xlu0 %2303
  %2305 = vrot.lane.b32.xlu0 %v2253, 1
  %v2306 = vpop.permute.xlu0 %2305
  %v2307 = vsel %vm1279, %v2304, %v2306
  %v2308 = vsel %vm1279, %v2302, %v2304
  %v2309 = vsel %vm1279, %v2300, %v2302
  %v2310 = vsel %vm1279, %v2298, %v2300
  %v2311 = vsel %vm1279, %v2296, %v2298
  %v2312 = vsel %vm1279, %v2294, %v2296
  %v2313 = vsel %vm1279, %v2292, %v2294
  %v2314 = vsel %vm1279, %v2290, %v2292
  %v2315 = vsel %vm1279, %v2288, %v2290
  %v2316 = vsel %vm1279, %v2306, %v2288
  %2317 = vset.pattern.permute.xlu0 60
  %2318 = vperm.xlu0 %2317, %v1200
  %v2319 = vpop.permute.xlu0 %2318
  %v2321 = vmul.f32 %v2316, %v2319
  %v2322 = vmul.f32 %v2315, %v2319
  %v2323 = vmul.f32 %v2314, %v2319
  %v2324 = vmul.f32 %v2313, %v2319
  %v2325 = vmul.f32 %v2312, %v2319
  %v2326 = vmul.f32 %v2311, %v2319
  %v2327 = vmul.f32 %v2310, %v2319
  %v2328 = vmul.f32 %v2309, %v2319
  %v2329 = vmul.f32 %v2308, %v2319
  %v2330 = vmul.f32 %v2307, %v2319
  %v2331 = vadd.f32 %v2277, %v2321
  %v2332 = vadd.f32 %v2278, %v2322
  %v2333 = vadd.f32 %v2279, %v2323
  %v2334 = vadd.f32 %v2280, %v2324
  %v2335 = vadd.f32 %v2281, %v2325
  %v2336 = vadd.f32 %v2282, %v2326
  %v2337 = vadd.f32 %v2283, %v2327
  %v2338 = vadd.f32 %v2284, %v2328
  %v2339 = vadd.f32 %v2285, %v2329
  %v2340 = vadd.f32 %v2286, %v2330
  %2341 = vrot.lane.b32.xlu0 %v2316, 1
  %v2342 = vpop.permute.xlu0 %2341
  %2343 = vrot.lane.b32.xlu0 %v2315, 1
  %v2344 = vpop.permute.xlu0 %2343
  %2345 = vrot.lane.b32.xlu0 %v2314, 1
  %v2346 = vpop.permute.xlu0 %2345
  %2347 = vrot.lane.b32.xlu0 %v2313, 1
  %v2348 = vpop.permute.xlu0 %2347
  %2349 = vrot.lane.b32.xlu0 %v2312, 1
  %v2350 = vpop.permute.xlu0 %2349
  %2351 = vrot.lane.b32.xlu0 %v2311, 1
  %v2352 = vpop.permute.xlu0 %2351
  %2353 = vrot.lane.b32.xlu0 %v2310, 1
  %v2354 = vpop.permute.xlu0 %2353
  %2355 = vrot.lane.b32.xlu0 %v2309, 1
  %v2356 = vpop.permute.xlu0 %2355
  %2357 = vrot.lane.b32.xlu0 %v2308, 1
  %v2358 = vpop.permute.xlu0 %2357
  %2359 = vrot.lane.b32.xlu0 %v2307, 1
  %v2360 = vpop.permute.xlu0 %2359
  %v2361 = vsel %vm1279, %v2358, %v2360
  %v2362 = vsel %vm1279, %v2356, %v2358
  %v2363 = vsel %vm1279, %v2354, %v2356
  %v2364 = vsel %vm1279, %v2352, %v2354
  %v2365 = vsel %vm1279, %v2350, %v2352
  %v2366 = vsel %vm1279, %v2348, %v2350
  %v2367 = vsel %vm1279, %v2346, %v2348
  %v2368 = vsel %vm1279, %v2344, %v2346
  %v2369 = vsel %vm1279, %v2342, %v2344
  %v2370 = vsel %vm1279, %v2360, %v2342
  %2371 = vset.pattern.permute.xlu0 59
  %2372 = vperm.xlu0 %2371, %v1200
  %v2373 = vpop.permute.xlu0 %2372
  %v2375 = vmul.f32 %v2370, %v2373
  %v2376 = vmul.f32 %v2369, %v2373
  %v2377 = vmul.f32 %v2368, %v2373
  %v2378 = vmul.f32 %v2367, %v2373
  %v2379 = vmul.f32 %v2366, %v2373
  %v2380 = vmul.f32 %v2365, %v2373
  %v2381 = vmul.f32 %v2364, %v2373
  %v2382 = vmul.f32 %v2363, %v2373
  %v2383 = vmul.f32 %v2362, %v2373
  %v2384 = vmul.f32 %v2361, %v2373
  %v2385 = vadd.f32 %v2331, %v2375
  %v2386 = vadd.f32 %v2332, %v2376
  %v2387 = vadd.f32 %v2333, %v2377
  %v2388 = vadd.f32 %v2334, %v2378
  %v2389 = vadd.f32 %v2335, %v2379
  %v2390 = vadd.f32 %v2336, %v2380
  %v2391 = vadd.f32 %v2337, %v2381
  %v2392 = vadd.f32 %v2338, %v2382
  %v2393 = vadd.f32 %v2339, %v2383
  %v2394 = vadd.f32 %v2340, %v2384
  %2395 = vrot.lane.b32.xlu0 %v2370, 1
  %v2396 = vpop.permute.xlu0 %2395
  %2397 = vrot.lane.b32.xlu0 %v2369, 1
  %v2398 = vpop.permute.xlu0 %2397
  %2399 = vrot.lane.b32.xlu0 %v2368, 1
  %v2400 = vpop.permute.xlu0 %2399
  %2401 = vrot.lane.b32.xlu0 %v2367, 1
  %v2402 = vpop.permute.xlu0 %2401
  %2403 = vrot.lane.b32.xlu0 %v2366, 1
  %v2404 = vpop.permute.xlu0 %2403
  %2405 = vrot.lane.b32.xlu0 %v2365, 1
  %v2406 = vpop.permute.xlu0 %2405
  %2407 = vrot.lane.b32.xlu0 %v2364, 1
  %v2408 = vpop.permute.xlu0 %2407
  %2409 = vrot.lane.b32.xlu0 %v2363, 1
  %v2410 = vpop.permute.xlu0 %2409
  %2411 = vrot.lane.b32.xlu0 %v2362, 1
  %v2412 = vpop.permute.xlu0 %2411
  %2413 = vrot.lane.b32.xlu0 %v2361, 1
  %v2414 = vpop.permute.xlu0 %2413
  %v2415 = vsel %vm1279, %v2412, %v2414
  %v2416 = vsel %vm1279, %v2410, %v2412
  %v2417 = vsel %vm1279, %v2408, %v2410
  %v2418 = vsel %vm1279, %v2406, %v2408
  %v2419 = vsel %vm1279, %v2404, %v2406
  %v2420 = vsel %vm1279, %v2402, %v2404
  %v2421 = vsel %vm1279, %v2400, %v2402
  %v2422 = vsel %vm1279, %v2398, %v2400
  %v2423 = vsel %vm1279, %v2396, %v2398
  %v2424 = vsel %vm1279, %v2414, %v2396
  %2425 = vset.pattern.permute.xlu0 58
  %2426 = vperm.xlu0 %2425, %v1200
  %v2427 = vpop.permute.xlu0 %2426
  %v2429 = vmul.f32 %v2424, %v2427
  %v2430 = vmul.f32 %v2423, %v2427
  %v2431 = vmul.f32 %v2422, %v2427
  %v2432 = vmul.f32 %v2421, %v2427
  %v2433 = vmul.f32 %v2420, %v2427
  %v2434 = vmul.f32 %v2419, %v2427
  %v2435 = vmul.f32 %v2418, %v2427
  %v2436 = vmul.f32 %v2417, %v2427
  %v2437 = vmul.f32 %v2416, %v2427
  %v2438 = vmul.f32 %v2415, %v2427
  %v2439 = vadd.f32 %v2385, %v2429
  %v2440 = vadd.f32 %v2386, %v2430
  %v2441 = vadd.f32 %v2387, %v2431
  %v2442 = vadd.f32 %v2388, %v2432
  %v2443 = vadd.f32 %v2389, %v2433
  %v2444 = vadd.f32 %v2390, %v2434
  %v2445 = vadd.f32 %v2391, %v2435
  %v2446 = vadd.f32 %v2392, %v2436
  %v2447 = vadd.f32 %v2393, %v2437
  %v2448 = vadd.f32 %v2394, %v2438
  %2449 = vrot.lane.b32.xlu0 %v2424, 1
  %v2450 = vpop.permute.xlu0 %2449
  %2451 = vrot.lane.b32.xlu0 %v2423, 1
  %v2452 = vpop.permute.xlu0 %2451
  %2453 = vrot.lane.b32.xlu0 %v2422, 1
  %v2454 = vpop.permute.xlu0 %2453
  %2455 = vrot.lane.b32.xlu0 %v2421, 1
  %v2456 = vpop.permute.xlu0 %2455
  %2457 = vrot.lane.b32.xlu0 %v2420, 1
  %v2458 = vpop.permute.xlu0 %2457
  %2459 = vrot.lane.b32.xlu0 %v2419, 1
  %v2460 = vpop.permute.xlu0 %2459
  %2461 = vrot.lane.b32.xlu0 %v2418, 1
  %v2462 = vpop.permute.xlu0 %2461
  %2463 = vrot.lane.b32.xlu0 %v2417, 1
  %v2464 = vpop.permute.xlu0 %2463
  %2465 = vrot.lane.b32.xlu0 %v2416, 1
  %v2466 = vpop.permute.xlu0 %2465
  %2467 = vrot.lane.b32.xlu0 %v2415, 1
  %v2468 = vpop.permute.xlu0 %2467
  %v2469 = vsel %vm1279, %v2466, %v2468
  %v2470 = vsel %vm1279, %v2464, %v2466
  %v2471 = vsel %vm1279, %v2462, %v2464
  %v2472 = vsel %vm1279, %v2460, %v2462
  %v2473 = vsel %vm1279, %v2458, %v2460
  %v2474 = vsel %vm1279, %v2456, %v2458
  %v2475 = vsel %vm1279, %v2454, %v2456
  %v2476 = vsel %vm1279, %v2452, %v2454
  %v2477 = vsel %vm1279, %v2450, %v2452
  %v2478 = vsel %vm1279, %v2468, %v2450
  %2479 = vset.pattern.permute.xlu0 57
  %2480 = vperm.xlu0 %2479, %v1200
  %v2481 = vpop.permute.xlu0 %2480
  %v2483 = vmul.f32 %v2478, %v2481
  %v2484 = vmul.f32 %v2477, %v2481
  %v2485 = vmul.f32 %v2476, %v2481
  %v2486 = vmul.f32 %v2475, %v2481
  %v2487 = vmul.f32 %v2474, %v2481
  %v2488 = vmul.f32 %v2473, %v2481
  %v2489 = vmul.f32 %v2472, %v2481
  %v2490 = vmul.f32 %v2471, %v2481
  %v2491 = vmul.f32 %v2470, %v2481
  %v2492 = vmul.f32 %v2469, %v2481
  %v2493 = vadd.f32 %v2439, %v2483
  %v2494 = vadd.f32 %v2440, %v2484
  %v2495 = vadd.f32 %v2441, %v2485
  %v2496 = vadd.f32 %v2442, %v2486
  %v2497 = vadd.f32 %v2443, %v2487
  %v2498 = vadd.f32 %v2444, %v2488
  %v2499 = vadd.f32 %v2445, %v2489
  %v2500 = vadd.f32 %v2446, %v2490
  %v2501 = vadd.f32 %v2447, %v2491
  %v2502 = vadd.f32 %v2448, %v2492
  %2503 = vrot.lane.b32.xlu0 %v2478, 1
  %v2504 = vpop.permute.xlu0 %2503
  %2505 = vrot.lane.b32.xlu0 %v2477, 1
  %v2506 = vpop.permute.xlu0 %2505
  %2507 = vrot.lane.b32.xlu0 %v2476, 1
  %v2508 = vpop.permute.xlu0 %2507
  %2509 = vrot.lane.b32.xlu0 %v2475, 1
  %v2510 = vpop.permute.xlu0 %2509
  %2511 = vrot.lane.b32.xlu0 %v2474, 1
  %v2512 = vpop.permute.xlu0 %2511
  %2513 = vrot.lane.b32.xlu0 %v2473, 1
  %v2514 = vpop.permute.xlu0 %2513
  %2515 = vrot.lane.b32.xlu0 %v2472, 1
  %v2516 = vpop.permute.xlu0 %2515
  %2517 = vrot.lane.b32.xlu0 %v2471, 1
  %v2518 = vpop.permute.xlu0 %2517
  %2519 = vrot.lane.b32.xlu0 %v2470, 1
  %v2520 = vpop.permute.xlu0 %2519
  %2521 = vrot.lane.b32.xlu0 %v2469, 1
  %v2522 = vpop.permute.xlu0 %2521
  %v2523 = vsel %vm1279, %v2520, %v2522
  %v2524 = vsel %vm1279, %v2518, %v2520
  %v2525 = vsel %vm1279, %v2516, %v2518
  %v2526 = vsel %vm1279, %v2514, %v2516
  %v2527 = vsel %vm1279, %v2512, %v2514
  %v2528 = vsel %vm1279, %v2510, %v2512
  %v2529 = vsel %vm1279, %v2508, %v2510
  %v2530 = vsel %vm1279, %v2506, %v2508
  %v2531 = vsel %vm1279, %v2504, %v2506
  %v2532 = vsel %vm1279, %v2522, %v2504
  %2533 = vset.pattern.permute.xlu0 56
  %2534 = vperm.xlu0 %2533, %v1200
  %v2535 = vpop.permute.xlu0 %2534
  %v2537 = vmul.f32 %v2532, %v2535
  %v2538 = vmul.f32 %v2531, %v2535
  %v2539 = vmul.f32 %v2530, %v2535
  %v2540 = vmul.f32 %v2529, %v2535
  %v2541 = vmul.f32 %v2528, %v2535
  %v2542 = vmul.f32 %v2527, %v2535
  %v2543 = vmul.f32 %v2526, %v2535
  %v2544 = vmul.f32 %v2525, %v2535
  %v2545 = vmul.f32 %v2524, %v2535
  %v2546 = vmul.f32 %v2523, %v2535
  %v2547 = vadd.f32 %v2493, %v2537
  %v2548 = vadd.f32 %v2494, %v2538
  %v2549 = vadd.f32 %v2495, %v2539
  %v2550 = vadd.f32 %v2496, %v2540
  %v2551 = vadd.f32 %v2497, %v2541
  %v2552 = vadd.f32 %v2498, %v2542
  %v2553 = vadd.f32 %v2499, %v2543
  %v2554 = vadd.f32 %v2500, %v2544
  %v2555 = vadd.f32 %v2501, %v2545
  %v2556 = vadd.f32 %v2502, %v2546
  %2557 = vrot.lane.b32.xlu0 %v2532, 1
  %v2558 = vpop.permute.xlu0 %2557
  %2559 = vrot.lane.b32.xlu0 %v2531, 1
  %v2560 = vpop.permute.xlu0 %2559
  %2561 = vrot.lane.b32.xlu0 %v2530, 1
  %v2562 = vpop.permute.xlu0 %2561
  %2563 = vrot.lane.b32.xlu0 %v2529, 1
  %v2564 = vpop.permute.xlu0 %2563
  %2565 = vrot.lane.b32.xlu0 %v2528, 1
  %v2566 = vpop.permute.xlu0 %2565
  %2567 = vrot.lane.b32.xlu0 %v2527, 1
  %v2568 = vpop.permute.xlu0 %2567
  %2569 = vrot.lane.b32.xlu0 %v2526, 1
  %v2570 = vpop.permute.xlu0 %2569
  %2571 = vrot.lane.b32.xlu0 %v2525, 1
  %v2572 = vpop.permute.xlu0 %2571
  %2573 = vrot.lane.b32.xlu0 %v2524, 1
  %v2574 = vpop.permute.xlu0 %2573
  %2575 = vrot.lane.b32.xlu0 %v2523, 1
  %v2576 = vpop.permute.xlu0 %2575
  %v2577 = vsel %vm1279, %v2574, %v2576
  %v2578 = vsel %vm1279, %v2572, %v2574
  %v2579 = vsel %vm1279, %v2570, %v2572
  %v2580 = vsel %vm1279, %v2568, %v2570
  %v2581 = vsel %vm1279, %v2566, %v2568
  %v2582 = vsel %vm1279, %v2564, %v2566
  %v2583 = vsel %vm1279, %v2562, %v2564
  %v2584 = vsel %vm1279, %v2560, %v2562
  %v2585 = vsel %vm1279, %v2558, %v2560
  %v2586 = vsel %vm1279, %v2576, %v2558
  %2587 = vset.pattern.permute.xlu0 55
  %2588 = vperm.xlu0 %2587, %v1200
  %v2589 = vpop.permute.xlu0 %2588
  %v2591 = vmul.f32 %v2586, %v2589
  %v2592 = vmul.f32 %v2585, %v2589
  %v2593 = vmul.f32 %v2584, %v2589
  %v2594 = vmul.f32 %v2583, %v2589
  %v2595 = vmul.f32 %v2582, %v2589
  %v2596 = vmul.f32 %v2581, %v2589
  %v2597 = vmul.f32 %v2580, %v2589
  %v2598 = vmul.f32 %v2579, %v2589
  %v2599 = vmul.f32 %v2578, %v2589
  %v2600 = vmul.f32 %v2577, %v2589
  %v2601 = vadd.f32 %v2547, %v2591
  %v2602 = vadd.f32 %v2548, %v2592
  %v2603 = vadd.f32 %v2549, %v2593
  %v2604 = vadd.f32 %v2550, %v2594
  %v2605 = vadd.f32 %v2551, %v2595
  %v2606 = vadd.f32 %v2552, %v2596
  %v2607 = vadd.f32 %v2553, %v2597
  %v2608 = vadd.f32 %v2554, %v2598
  %v2609 = vadd.f32 %v2555, %v2599
  %v2610 = vadd.f32 %v2556, %v2600
  %2611 = vrot.lane.b32.xlu0 %v2586, 1
  %v2612 = vpop.permute.xlu0 %2611
  %2613 = vrot.lane.b32.xlu0 %v2585, 1
  %v2614 = vpop.permute.xlu0 %2613
  %2615 = vrot.lane.b32.xlu0 %v2584, 1
  %v2616 = vpop.permute.xlu0 %2615
  %2617 = vrot.lane.b32.xlu0 %v2583, 1
  %v2618 = vpop.permute.xlu0 %2617
  %2619 = vrot.lane.b32.xlu0 %v2582, 1
  %v2620 = vpop.permute.xlu0 %2619
  %2621 = vrot.lane.b32.xlu0 %v2581, 1
  %v2622 = vpop.permute.xlu0 %2621
  %2623 = vrot.lane.b32.xlu0 %v2580, 1
  %v2624 = vpop.permute.xlu0 %2623
  %2625 = vrot.lane.b32.xlu0 %v2579, 1
  %v2626 = vpop.permute.xlu0 %2625
  %2627 = vrot.lane.b32.xlu0 %v2578, 1
  %v2628 = vpop.permute.xlu0 %2627
  %2629 = vrot.lane.b32.xlu0 %v2577, 1
  %v2630 = vpop.permute.xlu0 %2629
  %v2631 = vsel %vm1279, %v2628, %v2630
  %v2632 = vsel %vm1279, %v2626, %v2628
  %v2633 = vsel %vm1279, %v2624, %v2626
  %v2634 = vsel %vm1279, %v2622, %v2624
  %v2635 = vsel %vm1279, %v2620, %v2622
  %v2636 = vsel %vm1279, %v2618, %v2620
  %v2637 = vsel %vm1279, %v2616, %v2618
  %v2638 = vsel %vm1279, %v2614, %v2616
  %v2639 = vsel %vm1279, %v2612, %v2614
  %v2640 = vsel %vm1279, %v2630, %v2612
  %2641 = vset.pattern.permute.xlu0 54
  %2642 = vperm.xlu0 %2641, %v1200
  %v2643 = vpop.permute.xlu0 %2642
  %v2645 = vmul.f32 %v2640, %v2643
  %v2646 = vmul.f32 %v2639, %v2643
  %v2647 = vmul.f32 %v2638, %v2643
  %v2648 = vmul.f32 %v2637, %v2643
  %v2649 = vmul.f32 %v2636, %v2643
  %v2650 = vmul.f32 %v2635, %v2643
  %v2651 = vmul.f32 %v2634, %v2643
  %v2652 = vmul.f32 %v2633, %v2643
  %v2653 = vmul.f32 %v2632, %v2643
  %v2654 = vmul.f32 %v2631, %v2643
  %v2655 = vadd.f32 %v2601, %v2645
  %v2656 = vadd.f32 %v2602, %v2646
  %v2657 = vadd.f32 %v2603, %v2647
  %v2658 = vadd.f32 %v2604, %v2648
  %v2659 = vadd.f32 %v2605, %v2649
  %v2660 = vadd.f32 %v2606, %v2650
  %v2661 = vadd.f32 %v2607, %v2651
  %v2662 = vadd.f32 %v2608, %v2652
  %v2663 = vadd.f32 %v2609, %v2653
  %v2664 = vadd.f32 %v2610, %v2654
  %2665 = vrot.lane.b32.xlu0 %v2208, 24
  %v2666 = vpop.permute.xlu0 %2665
  %2667 = vrot.lane.b32.xlu0 %v2207, 24
  %v2668 = vpop.permute.xlu0 %2667
  %2669 = vrot.lane.b32.xlu0 %v2206, 24
  %v2670 = vpop.permute.xlu0 %2669
  %2671 = vrot.lane.b32.xlu0 %v2205, 24
  %v2672 = vpop.permute.xlu0 %2671
  %2673 = vrot.lane.b32.xlu0 %v2204, 24
  %v2674 = vpop.permute.xlu0 %2673
  %2675 = vrot.lane.b32.xlu0 %v2203, 24
  %v2676 = vpop.permute.xlu0 %2675
  %2677 = vrot.lane.b32.xlu0 %v2202, 24
  %v2678 = vpop.permute.xlu0 %2677
  %2679 = vrot.lane.b32.xlu0 %v2201, 24
  %v2680 = vpop.permute.xlu0 %2679
  %2681 = vrot.lane.b32.xlu0 %v2200, 24
  %v2682 = vpop.permute.xlu0 %2681
  %2683 = vrot.lane.b32.xlu0 %v2199, 24
  %v2684 = vpop.permute.xlu0 %2683
  %v2685 = vsel %vm1712, %v2682, %v2684
  %v2686 = vsel %vm1712, %v2680, %v2682
  %v2687 = vsel %vm1712, %v2678, %v2680
  %v2688 = vsel %vm1712, %v2676, %v2678
  %v2689 = vsel %vm1712, %v2674, %v2676
  %v2690 = vsel %vm1712, %v2672, %v2674
  %v2691 = vsel %vm1712, %v2670, %v2672
  %v2692 = vsel %vm1712, %v2668, %v2670
  %v2693 = vsel %vm1712, %v2666, %v2668
  %v2694 = vsel %vm1712, %v2684, %v2666
  %2695 = vset.pattern.permute.xlu0 53
  %2696 = vperm.xlu0 %2695, %v1200
  %v2697 = vpop.permute.xlu0 %2696
  %v2699 = vmul.f32 %v2694, %v2697
  %v2700 = vmul.f32 %v2693, %v2697
  %v2701 = vmul.f32 %v2692, %v2697
  %v2702 = vmul.f32 %v2691, %v2697
  %v2703 = vmul.f32 %v2690, %v2697
  %v2704 = vmul.f32 %v2689, %v2697
  %v2705 = vmul.f32 %v2688, %v2697
  %v2706 = vmul.f32 %v2687, %v2697
  %v2707 = vmul.f32 %v2686, %v2697
  %v2708 = vmul.f32 %v2685, %v2697
  %v2709 = vadd.f32 %v2655, %v2699
  %v2710 = vadd.f32 %v2656, %v2700
  %v2711 = vadd.f32 %v2657, %v2701
  %v2712 = vadd.f32 %v2658, %v2702
  %v2713 = vadd.f32 %v2659, %v2703
  %v2714 = vadd.f32 %v2660, %v2704
  %v2715 = vadd.f32 %v2661, %v2705
  %v2716 = vadd.f32 %v2662, %v2706
  %v2717 = vadd.f32 %v2663, %v2707
  %v2718 = vadd.f32 %v2664, %v2708
  %2719 = vrot.lane.b32.xlu0 %v2694, 1
  %v2720 = vpop.permute.xlu0 %2719
  %2721 = vrot.lane.b32.xlu0 %v2693, 1
  %v2722 = vpop.permute.xlu0 %2721
  %2723 = vrot.lane.b32.xlu0 %v2692, 1
  %v2724 = vpop.permute.xlu0 %2723
  %2725 = vrot.lane.b32.xlu0 %v2691, 1
  %v2726 = vpop.permute.xlu0 %2725
  %2727 = vrot.lane.b32.xlu0 %v2690, 1
  %v2728 = vpop.permute.xlu0 %2727
  %2729 = vrot.lane.b32.xlu0 %v2689, 1
  %v2730 = vpop.permute.xlu0 %2729
  %2731 = vrot.lane.b32.xlu0 %v2688, 1
  %v2732 = vpop.permute.xlu0 %2731
  %2733 = vrot.lane.b32.xlu0 %v2687, 1
  %v2734 = vpop.permute.xlu0 %2733
  %2735 = vrot.lane.b32.xlu0 %v2686, 1
  %v2736 = vpop.permute.xlu0 %2735
  %2737 = vrot.lane.b32.xlu0 %v2685, 1
  %v2738 = vpop.permute.xlu0 %2737
  %v2739 = vsel %vm1279, %v2736, %v2738
  %v2740 = vsel %vm1279, %v2734, %v2736
  %v2741 = vsel %vm1279, %v2732, %v2734
  %v2742 = vsel %vm1279, %v2730, %v2732
  %v2743 = vsel %vm1279, %v2728, %v2730
  %v2744 = vsel %vm1279, %v2726, %v2728
  %v2745 = vsel %vm1279, %v2724, %v2726
  %v2746 = vsel %vm1279, %v2722, %v2724
  %v2747 = vsel %vm1279, %v2720, %v2722
  %v2748 = vsel %vm1279, %v2738, %v2720
  %2749 = vset.pattern.permute.xlu0 52
  %2750 = vperm.xlu0 %2749, %v1200
  %v2751 = vpop.permute.xlu0 %2750
  %v2753 = vmul.f32 %v2748, %v2751
  %v2754 = vmul.f32 %v2747, %v2751
  %v2755 = vmul.f32 %v2746, %v2751
  %v2756 = vmul.f32 %v2745, %v2751
  %v2757 = vmul.f32 %v2744, %v2751
  %v2758 = vmul.f32 %v2743, %v2751
  %v2759 = vmul.f32 %v2742, %v2751
  %v2760 = vmul.f32 %v2741, %v2751
  %v2761 = vmul.f32 %v2740, %v2751
  %v2762 = vmul.f32 %v2739, %v2751
  %v2763 = vadd.f32 %v2709, %v2753
  %v2764 = vadd.f32 %v2710, %v2754
  %v2765 = vadd.f32 %v2711, %v2755
  %v2766 = vadd.f32 %v2712, %v2756
  %v2767 = vadd.f32 %v2713, %v2757
  %v2768 = vadd.f32 %v2714, %v2758
  %v2769 = vadd.f32 %v2715, %v2759
  %v2770 = vadd.f32 %v2716, %v2760
  %v2771 = vadd.f32 %v2717, %v2761
  %v2772 = vadd.f32 %v2718, %v2762
  %2773 = vrot.lane.b32.xlu0 %v2748, 1
  %v2774 = vpop.permute.xlu0 %2773
  %2775 = vrot.lane.b32.xlu0 %v2747, 1
  %v2776 = vpop.permute.xlu0 %2775
  %2777 = vrot.lane.b32.xlu0 %v2746, 1
  %v2778 = vpop.permute.xlu0 %2777
  %2779 = vrot.lane.b32.xlu0 %v2745, 1
  %v2780 = vpop.permute.xlu0 %2779
  %2781 = vrot.lane.b32.xlu0 %v2744, 1
  %v2782 = vpop.permute.xlu0 %2781
  %2783 = vrot.lane.b32.xlu0 %v2743, 1
  %v2784 = vpop.permute.xlu0 %2783
  %2785 = vrot.lane.b32.xlu0 %v2742, 1
  %v2786 = vpop.permute.xlu0 %2785
  %2787 = vrot.lane.b32.xlu0 %v2741, 1
  %v2788 = vpop.permute.xlu0 %2787
  %2789 = vrot.lane.b32.xlu0 %v2740, 1
  %v2790 = vpop.permute.xlu0 %2789
  %2791 = vrot.lane.b32.xlu0 %v2739, 1
  %v2792 = vpop.permute.xlu0 %2791
  %v2793 = vsel %vm1279, %v2790, %v2792
  %v2794 = vsel %vm1279, %v2788, %v2790
  %v2795 = vsel %vm1279, %v2786, %v2788
  %v2796 = vsel %vm1279, %v2784, %v2786
  %v2797 = vsel %vm1279, %v2782, %v2784
  %v2798 = vsel %vm1279, %v2780, %v2782
  %v2799 = vsel %vm1279, %v2778, %v2780
  %v2800 = vsel %vm1279, %v2776, %v2778
  %v2801 = vsel %vm1279, %v2774, %v2776
  %v2802 = vsel %vm1279, %v2792, %v2774
  %2803 = vset.pattern.permute.xlu0 51
  %2804 = vperm.xlu0 %2803, %v1200
  %v2805 = vpop.permute.xlu0 %2804
  %v2807 = vmul.f32 %v2802, %v2805
  %v2808 = vmul.f32 %v2801, %v2805
  %v2809 = vmul.f32 %v2800, %v2805
  %v2810 = vmul.f32 %v2799, %v2805
  %v2811 = vmul.f32 %v2798, %v2805
  %v2812 = vmul.f32 %v2797, %v2805
  %v2813 = vmul.f32 %v2796, %v2805
  %v2814 = vmul.f32 %v2795, %v2805
  %v2815 = vmul.f32 %v2794, %v2805
  %v2816 = vmul.f32 %v2793, %v2805
  %v2817 = vadd.f32 %v2763, %v2807
  %v2818 = vadd.f32 %v2764, %v2808
  %v2819 = vadd.f32 %v2765, %v2809
  %v2820 = vadd.f32 %v2766, %v2810
  %v2821 = vadd.f32 %v2767, %v2811
  %v2822 = vadd.f32 %v2768, %v2812
  %v2823 = vadd.f32 %v2769, %v2813
  %v2824 = vadd.f32 %v2770, %v2814
  %v2825 = vadd.f32 %v2771, %v2815
  %v2826 = vadd.f32 %v2772, %v2816
  %2827 = vrot.lane.b32.xlu0 %v2802, 1
  %v2828 = vpop.permute.xlu0 %2827
  %2829 = vrot.lane.b32.xlu0 %v2801, 1
  %v2830 = vpop.permute.xlu0 %2829
  %2831 = vrot.lane.b32.xlu0 %v2800, 1
  %v2832 = vpop.permute.xlu0 %2831
  %2833 = vrot.lane.b32.xlu0 %v2799, 1
  %v2834 = vpop.permute.xlu0 %2833
  %2835 = vrot.lane.b32.xlu0 %v2798, 1
  %v2836 = vpop.permute.xlu0 %2835
  %2837 = vrot.lane.b32.xlu0 %v2797, 1
  %v2838 = vpop.permute.xlu0 %2837
  %2839 = vrot.lane.b32.xlu0 %v2796, 1
  %v2840 = vpop.permute.xlu0 %2839
  %2841 = vrot.lane.b32.xlu0 %v2795, 1
  %v2842 = vpop.permute.xlu0 %2841
  %2843 = vrot.lane.b32.xlu0 %v2794, 1
  %v2844 = vpop.permute.xlu0 %2843
  %2845 = vrot.lane.b32.xlu0 %v2793, 1
  %v2846 = vpop.permute.xlu0 %2845
  %v2847 = vsel %vm1279, %v2844, %v2846
  %v2848 = vsel %vm1279, %v2842, %v2844
  %v2849 = vsel %vm1279, %v2840, %v2842
  %v2850 = vsel %vm1279, %v2838, %v2840
  %v2851 = vsel %vm1279, %v2836, %v2838
  %v2852 = vsel %vm1279, %v2834, %v2836
  %v2853 = vsel %vm1279, %v2832, %v2834
  %v2854 = vsel %vm1279, %v2830, %v2832
  %v2855 = vsel %vm1279, %v2828, %v2830
  %v2856 = vsel %vm1279, %v2846, %v2828
  %2857 = vset.pattern.permute.xlu0 50
  %2858 = vperm.xlu0 %2857, %v1200
  %v2859 = vpop.permute.xlu0 %2858
  %v2861 = vmul.f32 %v2856, %v2859
  %v2862 = vmul.f32 %v2855, %v2859
  %v2863 = vmul.f32 %v2854, %v2859
  %v2864 = vmul.f32 %v2853, %v2859
  %v2865 = vmul.f32 %v2852, %v2859
  %v2866 = vmul.f32 %v2851, %v2859
  %v2867 = vmul.f32 %v2850, %v2859
  %v2868 = vmul.f32 %v2849, %v2859
  %v2869 = vmul.f32 %v2848, %v2859
  %v2870 = vmul.f32 %v2847, %v2859
  %v2871 = vadd.f32 %v2817, %v2861
  %v2872 = vadd.f32 %v2818, %v2862
  %v2873 = vadd.f32 %v2819, %v2863
  %v2874 = vadd.f32 %v2820, %v2864
  %v2875 = vadd.f32 %v2821, %v2865
  %v2876 = vadd.f32 %v2822, %v2866
  %v2877 = vadd.f32 %v2823, %v2867
  %v2878 = vadd.f32 %v2824, %v2868
  %v2879 = vadd.f32 %v2825, %v2869
  %v2880 = vadd.f32 %v2826, %v2870
  %2881 = vrot.lane.b32.xlu0 %v2856, 1
  %v2882 = vpop.permute.xlu0 %2881
  %2883 = vrot.lane.b32.xlu0 %v2855, 1
  %v2884 = vpop.permute.xlu0 %2883
  %2885 = vrot.lane.b32.xlu0 %v2854, 1
  %v2886 = vpop.permute.xlu0 %2885
  %2887 = vrot.lane.b32.xlu0 %v2853, 1
  %v2888 = vpop.permute.xlu0 %2887
  %2889 = vrot.lane.b32.xlu0 %v2852, 1
  %v2890 = vpop.permute.xlu0 %2889
  %2891 = vrot.lane.b32.xlu0 %v2851, 1
  %v2892 = vpop.permute.xlu0 %2891
  %2893 = vrot.lane.b32.xlu0 %v2850, 1
  %v2894 = vpop.permute.xlu0 %2893
  %2895 = vrot.lane.b32.xlu0 %v2849, 1
  %v2896 = vpop.permute.xlu0 %2895
  %2897 = vrot.lane.b32.xlu0 %v2848, 1
  %v2898 = vpop.permute.xlu0 %2897
  %2899 = vrot.lane.b32.xlu0 %v2847, 1
  %v2900 = vpop.permute.xlu0 %2899
  %v2901 = vsel %vm1279, %v2898, %v2900
  %v2902 = vsel %vm1279, %v2896, %v2898
  %v2903 = vsel %vm1279, %v2894, %v2896
  %v2904 = vsel %vm1279, %v2892, %v2894
  %v2905 = vsel %vm1279, %v2890, %v2892
  %v2906 = vsel %vm1279, %v2888, %v2890
  %v2907 = vsel %vm1279, %v2886, %v2888
  %v2908 = vsel %vm1279, %v2884, %v2886
  %v2909 = vsel %vm1279, %v2882, %v2884
  %v2910 = vsel %vm1279, %v2900, %v2882
  %2911 = vset.pattern.permute.xlu0 49
  %2912 = vperm.xlu0 %2911, %v1200
  %v2913 = vpop.permute.xlu0 %2912
  %v2915 = vmul.f32 %v2910, %v2913
  %v2916 = vmul.f32 %v2909, %v2913
  %v2917 = vmul.f32 %v2908, %v2913
  %v2918 = vmul.f32 %v2907, %v2913
  %v2919 = vmul.f32 %v2906, %v2913
  %v2920 = vmul.f32 %v2905, %v2913
  %v2921 = vmul.f32 %v2904, %v2913
  %v2922 = vmul.f32 %v2903, %v2913
  %v2923 = vmul.f32 %v2902, %v2913
  %v2924 = vmul.f32 %v2901, %v2913
  %v2925 = vadd.f32 %v2871, %v2915
  %v2926 = vadd.f32 %v2872, %v2916
  %v2927 = vadd.f32 %v2873, %v2917
  %v2928 = vadd.f32 %v2874, %v2918
  %v2929 = vadd.f32 %v2875, %v2919
  %v2930 = vadd.f32 %v2876, %v2920
  %v2931 = vadd.f32 %v2877, %v2921
  %v2932 = vadd.f32 %v2878, %v2922
  %v2933 = vadd.f32 %v2879, %v2923
  %v2934 = vadd.f32 %v2880, %v2924
  %2935 = vrot.lane.b32.xlu0 %v2910, 1
  %v2936 = vpop.permute.xlu0 %2935
  %2937 = vrot.lane.b32.xlu0 %v2909, 1
  %v2938 = vpop.permute.xlu0 %2937
  %2939 = vrot.lane.b32.xlu0 %v2908, 1
  %v2940 = vpop.permute.xlu0 %2939
  %2941 = vrot.lane.b32.xlu0 %v2907, 1
  %v2942 = vpop.permute.xlu0 %2941
  %2943 = vrot.lane.b32.xlu0 %v2906, 1
  %v2944 = vpop.permute.xlu0 %2943
  %2945 = vrot.lane.b32.xlu0 %v2905, 1
  %v2946 = vpop.permute.xlu0 %2945
  %2947 = vrot.lane.b32.xlu0 %v2904, 1
  %v2948 = vpop.permute.xlu0 %2947
  %2949 = vrot.lane.b32.xlu0 %v2903, 1
  %v2950 = vpop.permute.xlu0 %2949
  %2951 = vrot.lane.b32.xlu0 %v2902, 1
  %v2952 = vpop.permute.xlu0 %2951
  %2953 = vrot.lane.b32.xlu0 %v2901, 1
  %v2954 = vpop.permute.xlu0 %2953
  %v2955 = vsel %vm1279, %v2952, %v2954
  %v2956 = vsel %vm1279, %v2950, %v2952
  %v2957 = vsel %vm1279, %v2948, %v2950
  %v2958 = vsel %vm1279, %v2946, %v2948
  %v2959 = vsel %vm1279, %v2944, %v2946
  %v2960 = vsel %vm1279, %v2942, %v2944
  %v2961 = vsel %vm1279, %v2940, %v2942
  %v2962 = vsel %vm1279, %v2938, %v2940
  %v2963 = vsel %vm1279, %v2936, %v2938
  %v2964 = vsel %vm1279, %v2954, %v2936
  %2965 = vset.pattern.permute.xlu0 48
  %2966 = vperm.xlu0 %2965, %v1200
  %v2967 = vpop.permute.xlu0 %2966
  %v2969 = vmul.f32 %v2964, %v2967
  %v2970 = vmul.f32 %v2963, %v2967
  %v2971 = vmul.f32 %v2962, %v2967
  %v2972 = vmul.f32 %v2961, %v2967
  %v2973 = vmul.f32 %v2960, %v2967
  %v2974 = vmul.f32 %v2959, %v2967
  %v2975 = vmul.f32 %v2958, %v2967
  %v2976 = vmul.f32 %v2957, %v2967
  %v2977 = vmul.f32 %v2956, %v2967
  %v2978 = vmul.f32 %v2955, %v2967
  %v2979 = vadd.f32 %v2925, %v2969
  %v2980 = vadd.f32 %v2926, %v2970
  %v2981 = vadd.f32 %v2927, %v2971
  %v2982 = vadd.f32 %v2928, %v2972
  %v2983 = vadd.f32 %v2929, %v2973
  %v2984 = vadd.f32 %v2930, %v2974
  %v2985 = vadd.f32 %v2931, %v2975
  %v2986 = vadd.f32 %v2932, %v2976
  %v2987 = vadd.f32 %v2933, %v2977
  %v2988 = vadd.f32 %v2934, %v2978
  %2989 = vrot.lane.b32.xlu0 %v2964, 1
  %v2990 = vpop.permute.xlu0 %2989
  %2991 = vrot.lane.b32.xlu0 %v2963, 1
  %v2992 = vpop.permute.xlu0 %2991
  %2993 = vrot.lane.b32.xlu0 %v2962, 1
  %v2994 = vpop.permute.xlu0 %2993
  %2995 = vrot.lane.b32.xlu0 %v2961, 1
  %v2996 = vpop.permute.xlu0 %2995
  %2997 = vrot.lane.b32.xlu0 %v2960, 1
  %v2998 = vpop.permute.xlu0 %2997
  %2999 = vrot.lane.b32.xlu0 %v2959, 1
  %v3000 = vpop.permute.xlu0 %2999
  %3001 = vrot.lane.b32.xlu0 %v2958, 1
  %v3002 = vpop.permute.xlu0 %3001
  %3003 = vrot.lane.b32.xlu0 %v2957, 1
  %v3004 = vpop.permute.xlu0 %3003
  %3005 = vrot.lane.b32.xlu0 %v2956, 1
  %v3006 = vpop.permute.xlu0 %3005
  %3007 = vrot.lane.b32.xlu0 %v2955, 1
  %v3008 = vpop.permute.xlu0 %3007
  %v3009 = vsel %vm1279, %v3006, %v3008
  %v3010 = vsel %vm1279, %v3004, %v3006
  %v3011 = vsel %vm1279, %v3002, %v3004
  %v3012 = vsel %vm1279, %v3000, %v3002
  %v3013 = vsel %vm1279, %v2998, %v3000
  %v3014 = vsel %vm1279, %v2996, %v2998
  %v3015 = vsel %vm1279, %v2994, %v2996
  %v3016 = vsel %vm1279, %v2992, %v2994
  %v3017 = vsel %vm1279, %v2990, %v2992
  %v3018 = vsel %vm1279, %v3008, %v2990
  %3019 = vset.pattern.permute.xlu0 47
  %3020 = vperm.xlu0 %3019, %v1200
  %v3021 = vpop.permute.xlu0 %3020
  %v3023 = vmul.f32 %v3018, %v3021
  %v3024 = vmul.f32 %v3017, %v3021
  %v3025 = vmul.f32 %v3016, %v3021
  %v3026 = vmul.f32 %v3015, %v3021
  %v3027 = vmul.f32 %v3014, %v3021
  %v3028 = vmul.f32 %v3013, %v3021
  %v3029 = vmul.f32 %v3012, %v3021
  %v3030 = vmul.f32 %v3011, %v3021
  %v3031 = vmul.f32 %v3010, %v3021
  %v3032 = vmul.f32 %v3009, %v3021
  %v3033 = vadd.f32 %v2979, %v3023
  %v3034 = vadd.f32 %v2980, %v3024
  %v3035 = vadd.f32 %v2981, %v3025
  %v3036 = vadd.f32 %v2982, %v3026
  %v3037 = vadd.f32 %v2983, %v3027
  %v3038 = vadd.f32 %v2984, %v3028
  %v3039 = vadd.f32 %v2985, %v3029
  %v3040 = vadd.f32 %v2986, %v3030
  %v3041 = vadd.f32 %v2987, %v3031
  %v3042 = vadd.f32 %v2988, %v3032
  %3043 = vrot.lane.b32.xlu0 %v3018, 1
  %v3044 = vpop.permute.xlu0 %3043
  %3045 = vrot.lane.b32.xlu0 %v3017, 1
  %v3046 = vpop.permute.xlu0 %3045
  %3047 = vrot.lane.b32.xlu0 %v3016, 1
  %v3048 = vpop.permute.xlu0 %3047
  %3049 = vrot.lane.b32.xlu0 %v3015, 1
  %v3050 = vpop.permute.xlu0 %3049
  %3051 = vrot.lane.b32.xlu0 %v3014, 1
  %v3052 = vpop.permute.xlu0 %3051
  %3053 = vrot.lane.b32.xlu0 %v3013, 1
  %v3054 = vpop.permute.xlu0 %3053
  %3055 = vrot.lane.b32.xlu0 %v3012, 1
  %v3056 = vpop.permute.xlu0 %3055
  %3057 = vrot.lane.b32.xlu0 %v3011, 1
  %v3058 = vpop.permute.xlu0 %3057
  %3059 = vrot.lane.b32.xlu0 %v3010, 1
  %v3060 = vpop.permute.xlu0 %3059
  %3061 = vrot.lane.b32.xlu0 %v3009, 1
  %v3062 = vpop.permute.xlu0 %3061
  %v3063 = vsel %vm1279, %v3060, %v3062
  %v3064 = vsel %vm1279, %v3058, %v3060
  %v3065 = vsel %vm1279, %v3056, %v3058
  %v3066 = vsel %vm1279, %v3054, %v3056
  %v3067 = vsel %vm1279, %v3052, %v3054
  %v3068 = vsel %vm1279, %v3050, %v3052
  %v3069 = vsel %vm1279, %v3048, %v3050
  %v3070 = vsel %vm1279, %v3046, %v3048
  %v3071 = vsel %vm1279, %v3044, %v3046
  %v3072 = vsel %vm1279, %v3062, %v3044
  %3073 = vset.pattern.permute.xlu0 46
  %3074 = vperm.xlu0 %3073, %v1200
  %v3075 = vpop.permute.xlu0 %3074
  %v3077 = vmul.f32 %v3072, %v3075
  %v3078 = vmul.f32 %v3071, %v3075
  %v3079 = vmul.f32 %v3070, %v3075
  %v3080 = vmul.f32 %v3069, %v3075
  %v3081 = vmul.f32 %v3068, %v3075
  %v3082 = vmul.f32 %v3067, %v3075
  %v3083 = vmul.f32 %v3066, %v3075
  %v3084 = vmul.f32 %v3065, %v3075
  %v3085 = vmul.f32 %v3064, %v3075
  %v3086 = vmul.f32 %v3063, %v3075
  %v3087 = vadd.f32 %v3033, %v3077
  %v3088 = vadd.f32 %v3034, %v3078
  %v3089 = vadd.f32 %v3035, %v3079
  %v3090 = vadd.f32 %v3036, %v3080
  %v3091 = vadd.f32 %v3037, %v3081
  %v3092 = vadd.f32 %v3038, %v3082
  %v3093 = vadd.f32 %v3039, %v3083
  %v3094 = vadd.f32 %v3040, %v3084
  %v3095 = vadd.f32 %v3041, %v3085
  %v3096 = vadd.f32 %v3042, %v3086
  %3097 = vrot.lane.b32.xlu0 %v3072, 1
  %v3098 = vpop.permute.xlu0 %3097
  %3099 = vrot.lane.b32.xlu0 %v3071, 1
  %v3100 = vpop.permute.xlu0 %3099
  %3101 = vrot.lane.b32.xlu0 %v3070, 1
  %v3102 = vpop.permute.xlu0 %3101
  %3103 = vrot.lane.b32.xlu0 %v3069, 1
  %v3104 = vpop.permute.xlu0 %3103
  %3105 = vrot.lane.b32.xlu0 %v3068, 1
  %v3106 = vpop.permute.xlu0 %3105
  %3107 = vrot.lane.b32.xlu0 %v3067, 1
  %v3108 = vpop.permute.xlu0 %3107
  %3109 = vrot.lane.b32.xlu0 %v3066, 1
  %v3110 = vpop.permute.xlu0 %3109
  %3111 = vrot.lane.b32.xlu0 %v3065, 1
  %v3112 = vpop.permute.xlu0 %3111
  %3113 = vrot.lane.b32.xlu0 %v3064, 1
  %v3114 = vpop.permute.xlu0 %3113
  %3115 = vrot.lane.b32.xlu0 %v3063, 1
  %v3116 = vpop.permute.xlu0 %3115
  %v3117 = vsel %vm1279, %v3114, %v3116
  %v3118 = vsel %vm1279, %v3112, %v3114
  %v3119 = vsel %vm1279, %v3110, %v3112
  %v3120 = vsel %vm1279, %v3108, %v3110
  %v3121 = vsel %vm1279, %v3106, %v3108
  %v3122 = vsel %vm1279, %v3104, %v3106
  %v3123 = vsel %vm1279, %v3102, %v3104
  %v3124 = vsel %vm1279, %v3100, %v3102
  %v3125 = vsel %vm1279, %v3098, %v3100
  %v3126 = vsel %vm1279, %v3116, %v3098
  %3127 = vset.pattern.permute.xlu0 45
  %3128 = vperm.xlu0 %3127, %v1200
  %v3129 = vpop.permute.xlu0 %3128
  %v3131 = vmul.f32 %v3126, %v3129
  %v3132 = vmul.f32 %v3125, %v3129
  %v3133 = vmul.f32 %v3124, %v3129
  %v3134 = vmul.f32 %v3123, %v3129
  %v3135 = vmul.f32 %v3122, %v3129
  %v3136 = vmul.f32 %v3121, %v3129
  %v3137 = vmul.f32 %v3120, %v3129
  %v3138 = vmul.f32 %v3119, %v3129
  %v3139 = vmul.f32 %v3118, %v3129
  %v3140 = vmul.f32 %v3117, %v3129
  %v3141 = vadd.f32 %v3087, %v3131
  %v3142 = vadd.f32 %v3088, %v3132
  %v3143 = vadd.f32 %v3089, %v3133
  %v3144 = vadd.f32 %v3090, %v3134
  %v3145 = vadd.f32 %v3091, %v3135
  %v3146 = vadd.f32 %v3092, %v3136
  %v3147 = vadd.f32 %v3093, %v3137
  %v3148 = vadd.f32 %v3094, %v3138
  %v3149 = vadd.f32 %v3095, %v3139
  %v3150 = vadd.f32 %v3096, %v3140
  %3151 = vrot.lane.b32.xlu0 %v2694, 24
  %v3152 = vpop.permute.xlu0 %3151
  %3153 = vrot.lane.b32.xlu0 %v2693, 24
  %v3154 = vpop.permute.xlu0 %3153
  %3155 = vrot.lane.b32.xlu0 %v2692, 24
  %v3156 = vpop.permute.xlu0 %3155
  %3157 = vrot.lane.b32.xlu0 %v2691, 24
  %v3158 = vpop.permute.xlu0 %3157
  %3159 = vrot.lane.b32.xlu0 %v2690, 24
  %v3160 = vpop.permute.xlu0 %3159
  %3161 = vrot.lane.b32.xlu0 %v2689, 24
  %v3162 = vpop.permute.xlu0 %3161
  %3163 = vrot.lane.b32.xlu0 %v2688, 24
  %v3164 = vpop.permute.xlu0 %3163
  %3165 = vrot.lane.b32.xlu0 %v2687, 24
  %v3166 = vpop.permute.xlu0 %3165
  %3167 = vrot.lane.b32.xlu0 %v2686, 24
  %v3168 = vpop.permute.xlu0 %3167
  %3169 = vrot.lane.b32.xlu0 %v2685, 24
  %v3170 = vpop.permute.xlu0 %3169
  %v3171 = vsel %vm1712, %v3168, %v3170
  %v3172 = vsel %vm1712, %v3166, %v3168
  %v3173 = vsel %vm1712, %v3164, %v3166
  %v3174 = vsel %vm1712, %v3162, %v3164
  %v3175 = vsel %vm1712, %v3160, %v3162
  %v3176 = vsel %vm1712, %v3158, %v3160
  %v3177 = vsel %vm1712, %v3156, %v3158
  %v3178 = vsel %vm1712, %v3154, %v3156
  %v3179 = vsel %vm1712, %v3152, %v3154
  %v3180 = vsel %vm1712, %v3170, %v3152
  %3181 = vset.pattern.permute.xlu0 44
  %3182 = vperm.xlu0 %3181, %v1200
  %v3183 = vpop.permute.xlu0 %3182
  %v3185 = vmul.f32 %v3180, %v3183
  %v3186 = vmul.f32 %v3179, %v3183
  %v3187 = vmul.f32 %v3178, %v3183
  %v3188 = vmul.f32 %v3177, %v3183
  %v3189 = vmul.f32 %v3176, %v3183
  %v3190 = vmul.f32 %v3175, %v3183
  %v3191 = vmul.f32 %v3174, %v3183
  %v3192 = vmul.f32 %v3173, %v3183
  %v3193 = vmul.f32 %v3172, %v3183
  %v3194 = vmul.f32 %v3171, %v3183
  %v3195 = vadd.f32 %v3141, %v3185
  %v3196 = vadd.f32 %v3142, %v3186
  %v3197 = vadd.f32 %v3143, %v3187
  %v3198 = vadd.f32 %v3144, %v3188
  %v3199 = vadd.f32 %v3145, %v3189
  %v3200 = vadd.f32 %v3146, %v3190
  %v3201 = vadd.f32 %v3147, %v3191
  %v3202 = vadd.f32 %v3148, %v3192
  %v3203 = vadd.f32 %v3149, %v3193
  %v3204 = vadd.f32 %v3150, %v3194
  %3205 = vrot.lane.b32.xlu0 %v3180, 1
  %v3206 = vpop.permute.xlu0 %3205
  %3207 = vrot.lane.b32.xlu0 %v3179, 1
  %v3208 = vpop.permute.xlu0 %3207
  %3209 = vrot.lane.b32.xlu0 %v3178, 1
  %v3210 = vpop.permute.xlu0 %3209
  %3211 = vrot.lane.b32.xlu0 %v3177, 1
  %v3212 = vpop.permute.xlu0 %3211
  %3213 = vrot.lane.b32.xlu0 %v3176, 1
  %v3214 = vpop.permute.xlu0 %3213
  %3215 = vrot.lane.b32.xlu0 %v3175, 1
  %v3216 = vpop.permute.xlu0 %3215
  %3217 = vrot.lane.b32.xlu0 %v3174, 1
  %v3218 = vpop.permute.xlu0 %3217
  %3219 = vrot.lane.b32.xlu0 %v3173, 1
  %v3220 = vpop.permute.xlu0 %3219
  %3221 = vrot.lane.b32.xlu0 %v3172, 1
  %v3222 = vpop.permute.xlu0 %3221
  %3223 = vrot.lane.b32.xlu0 %v3171, 1
  %v3224 = vpop.permute.xlu0 %3223
  %v3225 = vsel %vm1279, %v3222, %v3224
  %v3226 = vsel %vm1279, %v3220, %v3222
  %v3227 = vsel %vm1279, %v3218, %v3220
  %v3228 = vsel %vm1279, %v3216, %v3218
  %v3229 = vsel %vm1279, %v3214, %v3216
  %v3230 = vsel %vm1279, %v3212, %v3214
  %v3231 = vsel %vm1279, %v3210, %v3212
  %v3232 = vsel %vm1279, %v3208, %v3210
  %v3233 = vsel %vm1279, %v3206, %v3208
  %v3234 = vsel %vm1279, %v3224, %v3206
  %3235 = vset.pattern.permute.xlu0 43
  %3236 = vperm.xlu0 %3235, %v1200
  %v3237 = vpop.permute.xlu0 %3236
  %v3239 = vmul.f32 %v3234, %v3237
  %v3240 = vmul.f32 %v3233, %v3237
  %v3241 = vmul.f32 %v3232, %v3237
  %v3242 = vmul.f32 %v3231, %v3237
  %v3243 = vmul.f32 %v3230, %v3237
  %v3244 = vmul.f32 %v3229, %v3237
  %v3245 = vmul.f32 %v3228, %v3237
  %v3246 = vmul.f32 %v3227, %v3237
  %v3247 = vmul.f32 %v3226, %v3237
  %v3248 = vmul.f32 %v3225, %v3237
  %v3249 = vadd.f32 %v3195, %v3239
  %v3250 = vadd.f32 %v3196, %v3240
  %v3251 = vadd.f32 %v3197, %v3241
  %v3252 = vadd.f32 %v3198, %v3242
  %v3253 = vadd.f32 %v3199, %v3243
  %v3254 = vadd.f32 %v3200, %v3244
  %v3255 = vadd.f32 %v3201, %v3245
  %v3256 = vadd.f32 %v3202, %v3246
  %v3257 = vadd.f32 %v3203, %v3247
  %v3258 = vadd.f32 %v3204, %v3248
  %3259 = vrot.lane.b32.xlu0 %v3234, 1
  %v3260 = vpop.permute.xlu0 %3259
  %3261 = vrot.lane.b32.xlu0 %v3233, 1
  %v3262 = vpop.permute.xlu0 %3261
  %3263 = vrot.lane.b32.xlu0 %v3232, 1
  %v3264 = vpop.permute.xlu0 %3263
  %3265 = vrot.lane.b32.xlu0 %v3231, 1
  %v3266 = vpop.permute.xlu0 %3265
  %3267 = vrot.lane.b32.xlu0 %v3230, 1
  %v3268 = vpop.permute.xlu0 %3267
  %3269 = vrot.lane.b32.xlu0 %v3229, 1
  %v3270 = vpop.permute.xlu0 %3269
  %3271 = vrot.lane.b32.xlu0 %v3228, 1
  %v3272 = vpop.permute.xlu0 %3271
  %3273 = vrot.lane.b32.xlu0 %v3227, 1
  %v3274 = vpop.permute.xlu0 %3273
  %3275 = vrot.lane.b32.xlu0 %v3226, 1
  %v3276 = vpop.permute.xlu0 %3275
  %3277 = vrot.lane.b32.xlu0 %v3225, 1
  %v3278 = vpop.permute.xlu0 %3277
  %v3279 = vsel %vm1279, %v3276, %v3278
  %v3280 = vsel %vm1279, %v3274, %v3276
  %v3281 = vsel %vm1279, %v3272, %v3274
  %v3282 = vsel %vm1279, %v3270, %v3272
  %v3283 = vsel %vm1279, %v3268, %v3270
  %v3284 = vsel %vm1279, %v3266, %v3268
  %v3285 = vsel %vm1279, %v3264, %v3266
  %v3286 = vsel %vm1279, %v3262, %v3264
  %v3287 = vsel %vm1279, %v3260, %v3262
  %v3288 = vsel %vm1279, %v3278, %v3260
  %3289 = vset.pattern.permute.xlu0 42
  %3290 = vperm.xlu0 %3289, %v1200
  %v3291 = vpop.permute.xlu0 %3290
  %v3293 = vmul.f32 %v3288, %v3291
  %v3294 = vmul.f32 %v3287, %v3291
  %v3295 = vmul.f32 %v3286, %v3291
  %v3296 = vmul.f32 %v3285, %v3291
  %v3297 = vmul.f32 %v3284, %v3291
  %v3298 = vmul.f32 %v3283, %v3291
  %v3299 = vmul.f32 %v3282, %v3291
  %v3300 = vmul.f32 %v3281, %v3291
  %v3301 = vmul.f32 %v3280, %v3291
  %v3302 = vmul.f32 %v3279, %v3291
  %v3303 = vadd.f32 %v3249, %v3293
  %v3304 = vadd.f32 %v3250, %v3294
  %v3305 = vadd.f32 %v3251, %v3295
  %v3306 = vadd.f32 %v3252, %v3296
  %v3307 = vadd.f32 %v3253, %v3297
  %v3308 = vadd.f32 %v3254, %v3298
  %v3309 = vadd.f32 %v3255, %v3299
  %v3310 = vadd.f32 %v3256, %v3300
  %v3311 = vadd.f32 %v3257, %v3301
  %v3312 = vadd.f32 %v3258, %v3302
  %3313 = vrot.lane.b32.xlu0 %v3288, 1
  %v3314 = vpop.permute.xlu0 %3313
  %3315 = vrot.lane.b32.xlu0 %v3287, 1
  %v3316 = vpop.permute.xlu0 %3315
  %3317 = vrot.lane.b32.xlu0 %v3286, 1
  %v3318 = vpop.permute.xlu0 %3317
  %3319 = vrot.lane.b32.xlu0 %v3285, 1
  %v3320 = vpop.permute.xlu0 %3319
  %3321 = vrot.lane.b32.xlu0 %v3284, 1
  %v3322 = vpop.permute.xlu0 %3321
  %3323 = vrot.lane.b32.xlu0 %v3283, 1
  %v3324 = vpop.permute.xlu0 %3323
  %3325 = vrot.lane.b32.xlu0 %v3282, 1
  %v3326 = vpop.permute.xlu0 %3325
  %3327 = vrot.lane.b32.xlu0 %v3281, 1
  %v3328 = vpop.permute.xlu0 %3327
  %3329 = vrot.lane.b32.xlu0 %v3280, 1
  %v3330 = vpop.permute.xlu0 %3329
  %3331 = vrot.lane.b32.xlu0 %v3279, 1
  %v3332 = vpop.permute.xlu0 %3331
  %v3333 = vsel %vm1279, %v3330, %v3332
  %v3334 = vsel %vm1279, %v3328, %v3330
  %v3335 = vsel %vm1279, %v3326, %v3328
  %v3336 = vsel %vm1279, %v3324, %v3326
  %v3337 = vsel %vm1279, %v3322, %v3324
  %v3338 = vsel %vm1279, %v3320, %v3322
  %v3339 = vsel %vm1279, %v3318, %v3320
  %v3340 = vsel %vm1279, %v3316, %v3318
  %v3341 = vsel %vm1279, %v3314, %v3316
  %v3342 = vsel %vm1279, %v3332, %v3314
  %3343 = vset.pattern.permute.xlu0 41
  %3344 = vperm.xlu0 %3343, %v1200
  %v3345 = vpop.permute.xlu0 %3344
  %v3347 = vmul.f32 %v3342, %v3345
  %v3348 = vmul.f32 %v3341, %v3345
  %v3349 = vmul.f32 %v3340, %v3345
  %v3350 = vmul.f32 %v3339, %v3345
  %v3351 = vmul.f32 %v3338, %v3345
  %v3352 = vmul.f32 %v3337, %v3345
  %v3353 = vmul.f32 %v3336, %v3345
  %v3354 = vmul.f32 %v3335, %v3345
  %v3355 = vmul.f32 %v3334, %v3345
  %v3356 = vmul.f32 %v3333, %v3345
  %v3357 = vadd.f32 %v3303, %v3347
  %v3358 = vadd.f32 %v3304, %v3348
  %v3359 = vadd.f32 %v3305, %v3349
  %v3360 = vadd.f32 %v3306, %v3350
  %v3361 = vadd.f32 %v3307, %v3351
  %v3362 = vadd.f32 %v3308, %v3352
  %v3363 = vadd.f32 %v3309, %v3353
  %v3364 = vadd.f32 %v3310, %v3354
  %v3365 = vadd.f32 %v3311, %v3355
  %v3366 = vadd.f32 %v3312, %v3356
  %3367 = vrot.lane.b32.xlu0 %v3342, 1
  %v3368 = vpop.permute.xlu0 %3367
  %3369 = vrot.lane.b32.xlu0 %v3341, 1
  %v3370 = vpop.permute.xlu0 %3369
  %3371 = vrot.lane.b32.xlu0 %v3340, 1
  %v3372 = vpop.permute.xlu0 %3371
  %3373 = vrot.lane.b32.xlu0 %v3339, 1
  %v3374 = vpop.permute.xlu0 %3373
  %3375 = vrot.lane.b32.xlu0 %v3338, 1
  %v3376 = vpop.permute.xlu0 %3375
  %3377 = vrot.lane.b32.xlu0 %v3337, 1
  %v3378 = vpop.permute.xlu0 %3377
  %3379 = vrot.lane.b32.xlu0 %v3336, 1
  %v3380 = vpop.permute.xlu0 %3379
  %3381 = vrot.lane.b32.xlu0 %v3335, 1
  %v3382 = vpop.permute.xlu0 %3381
  %3383 = vrot.lane.b32.xlu0 %v3334, 1
  %v3384 = vpop.permute.xlu0 %3383
  %3385 = vrot.lane.b32.xlu0 %v3333, 1
  %v3386 = vpop.permute.xlu0 %3385
  %v3387 = vsel %vm1279, %v3384, %v3386
  %v3388 = vsel %vm1279, %v3382, %v3384
  %v3389 = vsel %vm1279, %v3380, %v3382
  %v3390 = vsel %vm1279, %v3378, %v3380
  %v3391 = vsel %vm1279, %v3376, %v3378
  %v3392 = vsel %vm1279, %v3374, %v3376
  %v3393 = vsel %vm1279, %v3372, %v3374
  %v3394 = vsel %vm1279, %v3370, %v3372
  %v3395 = vsel %vm1279, %v3368, %v3370
  %v3396 = vsel %vm1279, %v3386, %v3368
  %3397 = vset.pattern.permute.xlu0 40
  %3398 = vperm.xlu0 %3397, %v1200
  %v3399 = vpop.permute.xlu0 %3398
  %v3401 = vmul.f32 %v3396, %v3399
  %v3402 = vmul.f32 %v3395, %v3399
  %v3403 = vmul.f32 %v3394, %v3399
  %v3404 = vmul.f32 %v3393, %v3399
  %v3405 = vmul.f32 %v3392, %v3399
  %v3406 = vmul.f32 %v3391, %v3399
  %v3407 = vmul.f32 %v3390, %v3399
  %v3408 = vmul.f32 %v3389, %v3399
  %v3409 = vmul.f32 %v3388, %v3399
  %v3410 = vmul.f32 %v3387, %v3399
  %v3411 = vadd.f32 %v3357, %v3401
  %v3412 = vadd.f32 %v3358, %v3402
  %v3413 = vadd.f32 %v3359, %v3403
  %v3414 = vadd.f32 %v3360, %v3404
  %v3415 = vadd.f32 %v3361, %v3405
  %v3416 = vadd.f32 %v3362, %v3406
  %v3417 = vadd.f32 %v3363, %v3407
  %v3418 = vadd.f32 %v3364, %v3408
  %v3419 = vadd.f32 %v3365, %v3409
  %v3420 = vadd.f32 %v3366, %v3410
  %3421 = vrot.lane.b32.xlu0 %v3396, 1
  %v3422 = vpop.permute.xlu0 %3421
  %3423 = vrot.lane.b32.xlu0 %v3395, 1
  %v3424 = vpop.permute.xlu0 %3423
  %3425 = vrot.lane.b32.xlu0 %v3394, 1
  %v3426 = vpop.permute.xlu0 %3425
  %3427 = vrot.lane.b32.xlu0 %v3393, 1
  %v3428 = vpop.permute.xlu0 %3427
  %3429 = vrot.lane.b32.xlu0 %v3392, 1
  %v3430 = vpop.permute.xlu0 %3429
  %3431 = vrot.lane.b32.xlu0 %v3391, 1
  %v3432 = vpop.permute.xlu0 %3431
  %3433 = vrot.lane.b32.xlu0 %v3390, 1
  %v3434 = vpop.permute.xlu0 %3433
  %3435 = vrot.lane.b32.xlu0 %v3389, 1
  %v3436 = vpop.permute.xlu0 %3435
  %3437 = vrot.lane.b32.xlu0 %v3388, 1
  %v3438 = vpop.permute.xlu0 %3437
  %3439 = vrot.lane.b32.xlu0 %v3387, 1
  %v3440 = vpop.permute.xlu0 %3439
  %v3441 = vsel %vm1279, %v3438, %v3440
  %v3442 = vsel %vm1279, %v3436, %v3438
  %v3443 = vsel %vm1279, %v3434, %v3436
  %v3444 = vsel %vm1279, %v3432, %v3434
  %v3445 = vsel %vm1279, %v3430, %v3432
  %v3446 = vsel %vm1279, %v3428, %v3430
  %v3447 = vsel %vm1279, %v3426, %v3428
  %v3448 = vsel %vm1279, %v3424, %v3426
  %v3449 = vsel %vm1279, %v3422, %v3424
  %v3450 = vsel %vm1279, %v3440, %v3422
  %3451 = vset.pattern.permute.xlu0 39
  %3452 = vperm.xlu0 %3451, %v1200
  %v3453 = vpop.permute.xlu0 %3452
  %v3455 = vmul.f32 %v3450, %v3453
  %v3456 = vmul.f32 %v3449, %v3453
  %v3457 = vmul.f32 %v3448, %v3453
  %v3458 = vmul.f32 %v3447, %v3453
  %v3459 = vmul.f32 %v3446, %v3453
  %v3460 = vmul.f32 %v3445, %v3453
  %v3461 = vmul.f32 %v3444, %v3453
  %v3462 = vmul.f32 %v3443, %v3453
  %v3463 = vmul.f32 %v3442, %v3453
  %v3464 = vmul.f32 %v3441, %v3453
  %v3465 = vadd.f32 %v3411, %v3455
  %v3466 = vadd.f32 %v3412, %v3456
  %v3467 = vadd.f32 %v3413, %v3457
  %v3468 = vadd.f32 %v3414, %v3458
  %v3469 = vadd.f32 %v3415, %v3459
  %v3470 = vadd.f32 %v3416, %v3460
  %v3471 = vadd.f32 %v3417, %v3461
  %v3472 = vadd.f32 %v3418, %v3462
  %v3473 = vadd.f32 %v3419, %v3463
  %v3474 = vadd.f32 %v3420, %v3464
  %3475 = vrot.lane.b32.xlu0 %v3450, 1
  %v3476 = vpop.permute.xlu0 %3475
  %3477 = vrot.lane.b32.xlu0 %v3449, 1
  %v3478 = vpop.permute.xlu0 %3477
  %3479 = vrot.lane.b32.xlu0 %v3448, 1
  %v3480 = vpop.permute.xlu0 %3479
  %3481 = vrot.lane.b32.xlu0 %v3447, 1
  %v3482 = vpop.permute.xlu0 %3481
  %3483 = vrot.lane.b32.xlu0 %v3446, 1
  %v3484 = vpop.permute.xlu0 %3483
  %3485 = vrot.lane.b32.xlu0 %v3445, 1
  %v3486 = vpop.permute.xlu0 %3485
  %3487 = vrot.lane.b32.xlu0 %v3444, 1
  %v3488 = vpop.permute.xlu0 %3487
  %3489 = vrot.lane.b32.xlu0 %v3443, 1
  %v3490 = vpop.permute.xlu0 %3489
  %3491 = vrot.lane.b32.xlu0 %v3442, 1
  %v3492 = vpop.permute.xlu0 %3491
  %3493 = vrot.lane.b32.xlu0 %v3441, 1
  %v3494 = vpop.permute.xlu0 %3493
  %v3495 = vsel %vm1279, %v3492, %v3494
  %v3496 = vsel %vm1279, %v3490, %v3492
  %v3497 = vsel %vm1279, %v3488, %v3490
  %v3498 = vsel %vm1279, %v3486, %v3488
  %v3499 = vsel %vm1279, %v3484, %v3486
  %v3500 = vsel %vm1279, %v3482, %v3484
  %v3501 = vsel %vm1279, %v3480, %v3482
  %v3502 = vsel %vm1279, %v3478, %v3480
  %v3503 = vsel %vm1279, %v3476, %v3478
  %v3504 = vsel %vm1279, %v3494, %v3476
  %3505 = vset.pattern.permute.xlu0 38
  %3506 = vperm.xlu0 %3505, %v1200
  %v3507 = vpop.permute.xlu0 %3506
  %v3509 = vmul.f32 %v3504, %v3507
  %v3510 = vmul.f32 %v3503, %v3507
  %v3511 = vmul.f32 %v3502, %v3507
  %v3512 = vmul.f32 %v3501, %v3507
  %v3513 = vmul.f32 %v3500, %v3507
  %v3514 = vmul.f32 %v3499, %v3507
  %v3515 = vmul.f32 %v3498, %v3507
  %v3516 = vmul.f32 %v3497, %v3507
  %v3517 = vmul.f32 %v3496, %v3507
  %v3518 = vmul.f32 %v3495, %v3507
  %v3519 = vadd.f32 %v3465, %v3509
  %v3520 = vadd.f32 %v3466, %v3510
  %v3521 = vadd.f32 %v3467, %v3511
  %v3522 = vadd.f32 %v3468, %v3512
  %v3523 = vadd.f32 %v3469, %v3513
  %v3524 = vadd.f32 %v3470, %v3514
  %v3525 = vadd.f32 %v3471, %v3515
  %v3526 = vadd.f32 %v3472, %v3516
  %v3527 = vadd.f32 %v3473, %v3517
  %v3528 = vadd.f32 %v3474, %v3518
  %3529 = vrot.lane.b32.xlu0 %v3504, 1
  %v3530 = vpop.permute.xlu0 %3529
  %3531 = vrot.lane.b32.xlu0 %v3503, 1
  %v3532 = vpop.permute.xlu0 %3531
  %3533 = vrot.lane.b32.xlu0 %v3502, 1
  %v3534 = vpop.permute.xlu0 %3533
  %3535 = vrot.lane.b32.xlu0 %v3501, 1
  %v3536 = vpop.permute.xlu0 %3535
  %3537 = vrot.lane.b32.xlu0 %v3500, 1
  %v3538 = vpop.permute.xlu0 %3537
  %3539 = vrot.lane.b32.xlu0 %v3499, 1
  %v3540 = vpop.permute.xlu0 %3539
  %3541 = vrot.lane.b32.xlu0 %v3498, 1
  %v3542 = vpop.permute.xlu0 %3541
  %3543 = vrot.lane.b32.xlu0 %v3497, 1
  %v3544 = vpop.permute.xlu0 %3543
  %3545 = vrot.lane.b32.xlu0 %v3496, 1
  %v3546 = vpop.permute.xlu0 %3545
  %3547 = vrot.lane.b32.xlu0 %v3495, 1
  %v3548 = vpop.permute.xlu0 %3547
  %v3549 = vsel %vm1279, %v3546, %v3548
  %v3550 = vsel %vm1279, %v3544, %v3546
  %v3551 = vsel %vm1279, %v3542, %v3544
  %v3552 = vsel %vm1279, %v3540, %v3542
  %v3553 = vsel %vm1279, %v3538, %v3540
  %v3554 = vsel %vm1279, %v3536, %v3538
  %v3555 = vsel %vm1279, %v3534, %v3536
  %v3556 = vsel %vm1279, %v3532, %v3534
  %v3557 = vsel %vm1279, %v3530, %v3532
  %v3558 = vsel %vm1279, %v3548, %v3530
  %3559 = vset.pattern.permute.xlu0 37
  %3560 = vperm.xlu0 %3559, %v1200
  %v3561 = vpop.permute.xlu0 %3560
  %v3563 = vmul.f32 %v3558, %v3561
  %v3564 = vmul.f32 %v3557, %v3561
  %v3565 = vmul.f32 %v3556, %v3561
  %v3566 = vmul.f32 %v3555, %v3561
  %v3567 = vmul.f32 %v3554, %v3561
  %v3568 = vmul.f32 %v3553, %v3561
  %v3569 = vmul.f32 %v3552, %v3561
  %v3570 = vmul.f32 %v3551, %v3561
  %v3571 = vmul.f32 %v3550, %v3561
  %v3572 = vmul.f32 %v3549, %v3561
  %v3573 = vadd.f32 %v3519, %v3563
  %v3574 = vadd.f32 %v3520, %v3564
  %v3575 = vadd.f32 %v3521, %v3565
  %v3576 = vadd.f32 %v3522, %v3566
  %v3577 = vadd.f32 %v3523, %v3567
  %v3578 = vadd.f32 %v3524, %v3568
  %v3579 = vadd.f32 %v3525, %v3569
  %v3580 = vadd.f32 %v3526, %v3570
  %v3581 = vadd.f32 %v3527, %v3571
  %v3582 = vadd.f32 %v3528, %v3572
  %3583 = vrot.lane.b32.xlu0 %v3558, 1
  %v3584 = vpop.permute.xlu0 %3583
  %3585 = vrot.lane.b32.xlu0 %v3557, 1
  %v3586 = vpop.permute.xlu0 %3585
  %3587 = vrot.lane.b32.xlu0 %v3556, 1
  %v3588 = vpop.permute.xlu0 %3587
  %3589 = vrot.lane.b32.xlu0 %v3555, 1
  %v3590 = vpop.permute.xlu0 %3589
  %3591 = vrot.lane.b32.xlu0 %v3554, 1
  %v3592 = vpop.permute.xlu0 %3591
  %3593 = vrot.lane.b32.xlu0 %v3553, 1
  %v3594 = vpop.permute.xlu0 %3593
  %3595 = vrot.lane.b32.xlu0 %v3552, 1
  %v3596 = vpop.permute.xlu0 %3595
  %3597 = vrot.lane.b32.xlu0 %v3551, 1
  %v3598 = vpop.permute.xlu0 %3597
  %3599 = vrot.lane.b32.xlu0 %v3550, 1
  %v3600 = vpop.permute.xlu0 %3599
  %3601 = vrot.lane.b32.xlu0 %v3549, 1
  %v3602 = vpop.permute.xlu0 %3601
  %v3603 = vsel %vm1279, %v3600, %v3602
  %v3604 = vsel %vm1279, %v3598, %v3600
  %v3605 = vsel %vm1279, %v3596, %v3598
  %v3606 = vsel %vm1279, %v3594, %v3596
  %v3607 = vsel %vm1279, %v3592, %v3594
  %v3608 = vsel %vm1279, %v3590, %v3592
  %v3609 = vsel %vm1279, %v3588, %v3590
  %v3610 = vsel %vm1279, %v3586, %v3588
  %v3611 = vsel %vm1279, %v3584, %v3586
  %v3612 = vsel %vm1279, %v3602, %v3584
  %3613 = vset.pattern.permute.xlu0 36
  %3614 = vperm.xlu0 %3613, %v1200
  %v3615 = vpop.permute.xlu0 %3614
  %v3617 = vmul.f32 %v3612, %v3615
  %v3618 = vmul.f32 %v3611, %v3615
  %v3619 = vmul.f32 %v3610, %v3615
  %v3620 = vmul.f32 %v3609, %v3615
  %v3621 = vmul.f32 %v3608, %v3615
  %v3622 = vmul.f32 %v3607, %v3615
  %v3623 = vmul.f32 %v3606, %v3615
  %v3624 = vmul.f32 %v3605, %v3615
  %v3625 = vmul.f32 %v3604, %v3615
  %v3626 = vmul.f32 %v3603, %v3615
  %v3627 = vadd.f32 %v3573, %v3617
  %v3628 = vadd.f32 %v3574, %v3618
  %v3629 = vadd.f32 %v3575, %v3619
  %v3630 = vadd.f32 %v3576, %v3620
  %v3631 = vadd.f32 %v3577, %v3621
  %v3632 = vadd.f32 %v3578, %v3622
  %v3633 = vadd.f32 %v3579, %v3623
  %v3634 = vadd.f32 %v3580, %v3624
  %v3635 = vadd.f32 %v3581, %v3625
  %v3636 = vadd.f32 %v3582, %v3626
  %3637 = vrot.lane.b32.xlu0 %v3180, 24
  %v3638 = vpop.permute.xlu0 %3637
  %3639 = vrot.lane.b32.xlu0 %v3179, 24
  %v3640 = vpop.permute.xlu0 %3639
  %3641 = vrot.lane.b32.xlu0 %v3178, 24
  %v3642 = vpop.permute.xlu0 %3641
  %3643 = vrot.lane.b32.xlu0 %v3177, 24
  %v3644 = vpop.permute.xlu0 %3643
  %3645 = vrot.lane.b32.xlu0 %v3176, 24
  %v3646 = vpop.permute.xlu0 %3645
  %3647 = vrot.lane.b32.xlu0 %v3175, 24
  %v3648 = vpop.permute.xlu0 %3647
  %3649 = vrot.lane.b32.xlu0 %v3174, 24
  %v3650 = vpop.permute.xlu0 %3649
  %3651 = vrot.lane.b32.xlu0 %v3173, 24
  %v3652 = vpop.permute.xlu0 %3651
  %3653 = vrot.lane.b32.xlu0 %v3172, 24
  %v3654 = vpop.permute.xlu0 %3653
  %3655 = vrot.lane.b32.xlu0 %v3171, 24
  %v3656 = vpop.permute.xlu0 %3655
  %v3657 = vsel %vm1712, %v3654, %v3656
  %v3658 = vsel %vm1712, %v3652, %v3654
  %v3659 = vsel %vm1712, %v3650, %v3652
  %v3660 = vsel %vm1712, %v3648, %v3650
  %v3661 = vsel %vm1712, %v3646, %v3648
  %v3662 = vsel %vm1712, %v3644, %v3646
  %v3663 = vsel %vm1712, %v3642, %v3644
  %v3664 = vsel %vm1712, %v3640, %v3642
  %v3665 = vsel %vm1712, %v3638, %v3640
  %v3666 = vsel %vm1712, %v3656, %v3638
  %3667 = vset.pattern.permute.xlu0 35
  %3668 = vperm.xlu0 %3667, %v1200
  %v3669 = vpop.permute.xlu0 %3668
  %v3671 = vmul.f32 %v3666, %v3669
  %v3672 = vmul.f32 %v3665, %v3669
  %v3673 = vmul.f32 %v3664, %v3669
  %v3674 = vmul.f32 %v3663, %v3669
  %v3675 = vmul.f32 %v3662, %v3669
  %v3676 = vmul.f32 %v3661, %v3669
  %v3677 = vmul.f32 %v3660, %v3669
  %v3678 = vmul.f32 %v3659, %v3669
  %v3679 = vmul.f32 %v3658, %v3669
  %v3680 = vmul.f32 %v3657, %v3669
  %v3681 = vadd.f32 %v3627, %v3671
  %v3682 = vadd.f32 %v3628, %v3672
  %v3683 = vadd.f32 %v3629, %v3673
  %v3684 = vadd.f32 %v3630, %v3674
  %v3685 = vadd.f32 %v3631, %v3675
  %v3686 = vadd.f32 %v3632, %v3676
  %v3687 = vadd.f32 %v3633, %v3677
  %v3688 = vadd.f32 %v3634, %v3678
  %v3689 = vadd.f32 %v3635, %v3679
  %v3690 = vadd.f32 %v3636, %v3680
  %3691 = vrot.lane.b32.xlu0 %v3666, 1
  %v3692 = vpop.permute.xlu0 %3691
  %3693 = vrot.lane.b32.xlu0 %v3665, 1
  %v3694 = vpop.permute.xlu0 %3693
  %3695 = vrot.lane.b32.xlu0 %v3664, 1
  %v3696 = vpop.permute.xlu0 %3695
  %3697 = vrot.lane.b32.xlu0 %v3663, 1
  %v3698 = vpop.permute.xlu0 %3697
  %3699 = vrot.lane.b32.xlu0 %v3662, 1
  %v3700 = vpop.permute.xlu0 %3699
  %3701 = vrot.lane.b32.xlu0 %v3661, 1
  %v3702 = vpop.permute.xlu0 %3701
  %3703 = vrot.lane.b32.xlu0 %v3660, 1
  %v3704 = vpop.permute.xlu0 %3703
  %3705 = vrot.lane.b32.xlu0 %v3659, 1
  %v3706 = vpop.permute.xlu0 %3705
  %3707 = vrot.lane.b32.xlu0 %v3658, 1
  %v3708 = vpop.permute.xlu0 %3707
  %3709 = vrot.lane.b32.xlu0 %v3657, 1
  %v3710 = vpop.permute.xlu0 %3709
  %v3711 = vsel %vm1279, %v3708, %v3710
  %v3712 = vsel %vm1279, %v3706, %v3708
  %v3713 = vsel %vm1279, %v3704, %v3706
  %v3714 = vsel %vm1279, %v3702, %v3704
  %v3715 = vsel %vm1279, %v3700, %v3702
  %v3716 = vsel %vm1279, %v3698, %v3700
  %v3717 = vsel %vm1279, %v3696, %v3698
  %v3718 = vsel %vm1279, %v3694, %v3696
  %v3719 = vsel %vm1279, %v3692, %v3694
  %v3720 = vsel %vm1279, %v3710, %v3692
  %3721 = vset.pattern.permute.xlu0 34
  %3722 = vperm.xlu0 %3721, %v1200
  %v3723 = vpop.permute.xlu0 %3722
  %v3725 = vmul.f32 %v3720, %v3723
  %v3726 = vmul.f32 %v3719, %v3723
  %v3727 = vmul.f32 %v3718, %v3723
  %v3728 = vmul.f32 %v3717, %v3723
  %v3729 = vmul.f32 %v3716, %v3723
  %v3730 = vmul.f32 %v3715, %v3723
  %v3731 = vmul.f32 %v3714, %v3723
  %v3732 = vmul.f32 %v3713, %v3723
  %v3733 = vmul.f32 %v3712, %v3723
  %v3734 = vmul.f32 %v3711, %v3723
  %v3735 = vadd.f32 %v3681, %v3725
  %v3736 = vadd.f32 %v3682, %v3726
  %v3737 = vadd.f32 %v3683, %v3727
  %v3738 = vadd.f32 %v3684, %v3728
  %v3739 = vadd.f32 %v3685, %v3729
  %v3740 = vadd.f32 %v3686, %v3730
  %v3741 = vadd.f32 %v3687, %v3731
  %v3742 = vadd.f32 %v3688, %v3732
  %v3743 = vadd.f32 %v3689, %v3733
  %v3744 = vadd.f32 %v3690, %v3734
  %3745 = vrot.lane.b32.xlu0 %v3720, 1
  %v3746 = vpop.permute.xlu0 %3745
  %3747 = vrot.lane.b32.xlu0 %v3719, 1
  %v3748 = vpop.permute.xlu0 %3747
  %3749 = vrot.lane.b32.xlu0 %v3718, 1
  %v3750 = vpop.permute.xlu0 %3749
  %3751 = vrot.lane.b32.xlu0 %v3717, 1
  %v3752 = vpop.permute.xlu0 %3751
  %3753 = vrot.lane.b32.xlu0 %v3716, 1
  %v3754 = vpop.permute.xlu0 %3753
  %3755 = vrot.lane.b32.xlu0 %v3715, 1
  %v3756 = vpop.permute.xlu0 %3755
  %3757 = vrot.lane.b32.xlu0 %v3714, 1
  %v3758 = vpop.permute.xlu0 %3757
  %3759 = vrot.lane.b32.xlu0 %v3713, 1
  %v3760 = vpop.permute.xlu0 %3759
  %3761 = vrot.lane.b32.xlu0 %v3712, 1
  %v3762 = vpop.permute.xlu0 %3761
  %3763 = vrot.lane.b32.xlu0 %v3711, 1
  %v3764 = vpop.permute.xlu0 %3763
  %v3765 = vsel %vm1279, %v3762, %v3764
  %v3766 = vsel %vm1279, %v3760, %v3762
  %v3767 = vsel %vm1279, %v3758, %v3760
  %v3768 = vsel %vm1279, %v3756, %v3758
  %v3769 = vsel %vm1279, %v3754, %v3756
  %v3770 = vsel %vm1279, %v3752, %v3754
  %v3771 = vsel %vm1279, %v3750, %v3752
  %v3772 = vsel %vm1279, %v3748, %v3750
  %v3773 = vsel %vm1279, %v3746, %v3748
  %v3774 = vsel %vm1279, %v3764, %v3746
  %3775 = vset.pattern.permute.xlu0 33
  %3776 = vperm.xlu0 %3775, %v1200
  %v3777 = vpop.permute.xlu0 %3776
  %v3779 = vmul.f32 %v3774, %v3777
  %v3780 = vmul.f32 %v3773, %v3777
  %v3781 = vmul.f32 %v3772, %v3777
  %v3782 = vmul.f32 %v3771, %v3777
  %v3783 = vmul.f32 %v3770, %v3777
  %v3784 = vmul.f32 %v3769, %v3777
  %v3785 = vmul.f32 %v3768, %v3777
  %v3786 = vmul.f32 %v3767, %v3777
  %v3787 = vmul.f32 %v3766, %v3777
  %v3788 = vmul.f32 %v3765, %v3777
  %v3789 = vadd.f32 %v3735, %v3779
  %v3790 = vadd.f32 %v3736, %v3780
  %v3791 = vadd.f32 %v3737, %v3781
  %v3792 = vadd.f32 %v3738, %v3782
  %v3793 = vadd.f32 %v3739, %v3783
  %v3794 = vadd.f32 %v3740, %v3784
  %v3795 = vadd.f32 %v3741, %v3785
  %v3796 = vadd.f32 %v3742, %v3786
  %v3797 = vadd.f32 %v3743, %v3787
  %v3798 = vadd.f32 %v3744, %v3788
  %3799 = vrot.lane.b32.xlu0 %v3774, 1
  %v3800 = vpop.permute.xlu0 %3799
  %3801 = vrot.lane.b32.xlu0 %v3773, 1
  %v3802 = vpop.permute.xlu0 %3801
  %3803 = vrot.lane.b32.xlu0 %v3772, 1
  %v3804 = vpop.permute.xlu0 %3803
  %3805 = vrot.lane.b32.xlu0 %v3771, 1
  %v3806 = vpop.permute.xlu0 %3805
  %3807 = vrot.lane.b32.xlu0 %v3770, 1
  %v3808 = vpop.permute.xlu0 %3807
  %3809 = vrot.lane.b32.xlu0 %v3769, 1
  %v3810 = vpop.permute.xlu0 %3809
  %3811 = vrot.lane.b32.xlu0 %v3768, 1
  %v3812 = vpop.permute.xlu0 %3811
  %3813 = vrot.lane.b32.xlu0 %v3767, 1
  %v3814 = vpop.permute.xlu0 %3813
  %3815 = vrot.lane.b32.xlu0 %v3766, 1
  %v3816 = vpop.permute.xlu0 %3815
  %3817 = vrot.lane.b32.xlu0 %v3765, 1
  %v3818 = vpop.permute.xlu0 %3817
  %v3819 = vsel %vm1279, %v3816, %v3818
  %v3820 = vsel %vm1279, %v3814, %v3816
  %v3821 = vsel %vm1279, %v3812, %v3814
  %v3822 = vsel %vm1279, %v3810, %v3812
  %v3823 = vsel %vm1279, %v3808, %v3810
  %v3824 = vsel %vm1279, %v3806, %v3808
  %v3825 = vsel %vm1279, %v3804, %v3806
  %v3826 = vsel %vm1279, %v3802, %v3804
  %v3827 = vsel %vm1279, %v3800, %v3802
  %v3828 = vsel %vm1279, %v3818, %v3800
  %3829 = vset.pattern.permute.xlu0 32
  %3830 = vperm.xlu0 %3829, %v1200
  %v3831 = vpop.permute.xlu0 %3830
  %v3833 = vmul.f32 %v3828, %v3831
  %v3834 = vmul.f32 %v3827, %v3831
  %v3835 = vmul.f32 %v3826, %v3831
  %v3836 = vmul.f32 %v3825, %v3831
  %v3837 = vmul.f32 %v3824, %v3831
  %v3838 = vmul.f32 %v3823, %v3831
  %v3839 = vmul.f32 %v3822, %v3831
  %v3840 = vmul.f32 %v3821, %v3831
  %v3841 = vmul.f32 %v3820, %v3831
  %v3842 = vmul.f32 %v3819, %v3831
  %v3843 = vadd.f32 %v3789, %v3833
  %v3844 = vadd.f32 %v3790, %v3834
  %v3845 = vadd.f32 %v3791, %v3835
  %v3846 = vadd.f32 %v3792, %v3836
  %v3847 = vadd.f32 %v3793, %v3837
  %v3848 = vadd.f32 %v3794, %v3838
  %v3849 = vadd.f32 %v3795, %v3839
  %v3850 = vadd.f32 %v3796, %v3840
  %v3851 = vadd.f32 %v3797, %v3841
  %v3852 = vadd.f32 %v3798, %v3842
  %3853 = vrot.lane.b32.xlu0 %v3828, 1
  %v3854 = vpop.permute.xlu0 %3853
  %3855 = vrot.lane.b32.xlu0 %v3827, 1
  %v3856 = vpop.permute.xlu0 %3855
  %3857 = vrot.lane.b32.xlu0 %v3826, 1
  %v3858 = vpop.permute.xlu0 %3857
  %3859 = vrot.lane.b32.xlu0 %v3825, 1
  %v3860 = vpop.permute.xlu0 %3859
  %3861 = vrot.lane.b32.xlu0 %v3824, 1
  %v3862 = vpop.permute.xlu0 %3861
  %3863 = vrot.lane.b32.xlu0 %v3823, 1
  %v3864 = vpop.permute.xlu0 %3863
  %3865 = vrot.lane.b32.xlu0 %v3822, 1
  %v3866 = vpop.permute.xlu0 %3865
  %3867 = vrot.lane.b32.xlu0 %v3821, 1
  %v3868 = vpop.permute.xlu0 %3867
  %3869 = vrot.lane.b32.xlu0 %v3820, 1
  %v3870 = vpop.permute.xlu0 %3869
  %3871 = vrot.lane.b32.xlu0 %v3819, 1
  %v3872 = vpop.permute.xlu0 %3871
  %v3873 = vsel %vm1279, %v3870, %v3872
  %v3874 = vsel %vm1279, %v3868, %v3870
  %v3875 = vsel %vm1279, %v3866, %v3868
  %v3876 = vsel %vm1279, %v3864, %v3866
  %v3877 = vsel %vm1279, %v3862, %v3864
  %v3878 = vsel %vm1279, %v3860, %v3862
  %v3879 = vsel %vm1279, %v3858, %v3860
  %v3880 = vsel %vm1279, %v3856, %v3858
  %v3881 = vsel %vm1279, %v3854, %v3856
  %v3882 = vsel %vm1279, %v3872, %v3854
  %3883 = vset.pattern.permute.xlu0 31
  %3884 = vperm.xlu0 %3883, %v1200
  %v3885 = vpop.permute.xlu0 %3884
  %v3887 = vmul.f32 %v3882, %v3885
  %v3888 = vmul.f32 %v3881, %v3885
  %v3889 = vmul.f32 %v3880, %v3885
  %v3890 = vmul.f32 %v3879, %v3885
  %v3891 = vmul.f32 %v3878, %v3885
  %v3892 = vmul.f32 %v3877, %v3885
  %v3893 = vmul.f32 %v3876, %v3885
  %v3894 = vmul.f32 %v3875, %v3885
  %v3895 = vmul.f32 %v3874, %v3885
  %v3896 = vmul.f32 %v3873, %v3885
  %v3897 = vadd.f32 %v3843, %v3887
  %v3898 = vadd.f32 %v3844, %v3888
  %v3899 = vadd.f32 %v3845, %v3889
  %v3900 = vadd.f32 %v3846, %v3890
  %v3901 = vadd.f32 %v3847, %v3891
  %v3902 = vadd.f32 %v3848, %v3892
  %v3903 = vadd.f32 %v3849, %v3893
  %v3904 = vadd.f32 %v3850, %v3894
  %v3905 = vadd.f32 %v3851, %v3895
  %v3906 = vadd.f32 %v3852, %v3896
  %3907 = vrot.lane.b32.xlu0 %v3882, 1
  %v3908 = vpop.permute.xlu0 %3907
  %3909 = vrot.lane.b32.xlu0 %v3881, 1
  %v3910 = vpop.permute.xlu0 %3909
  %3911 = vrot.lane.b32.xlu0 %v3880, 1
  %v3912 = vpop.permute.xlu0 %3911
  %3913 = vrot.lane.b32.xlu0 %v3879, 1
  %v3914 = vpop.permute.xlu0 %3913
  %3915 = vrot.lane.b32.xlu0 %v3878, 1
  %v3916 = vpop.permute.xlu0 %3915
  %3917 = vrot.lane.b32.xlu0 %v3877, 1
  %v3918 = vpop.permute.xlu0 %3917
  %3919 = vrot.lane.b32.xlu0 %v3876, 1
  %v3920 = vpop.permute.xlu0 %3919
  %3921 = vrot.lane.b32.xlu0 %v3875, 1
  %v3922 = vpop.permute.xlu0 %3921
  %3923 = vrot.lane.b32.xlu0 %v3874, 1
  %v3924 = vpop.permute.xlu0 %3923
  %3925 = vrot.lane.b32.xlu0 %v3873, 1
  %v3926 = vpop.permute.xlu0 %3925
  %v3927 = vsel %vm1279, %v3924, %v3926
  %v3928 = vsel %vm1279, %v3922, %v3924
  %v3929 = vsel %vm1279, %v3920, %v3922
  %v3930 = vsel %vm1279, %v3918, %v3920
  %v3931 = vsel %vm1279, %v3916, %v3918
  %v3932 = vsel %vm1279, %v3914, %v3916
  %v3933 = vsel %vm1279, %v3912, %v3914
  %v3934 = vsel %vm1279, %v3910, %v3912
  %v3935 = vsel %vm1279, %v3908, %v3910
  %v3936 = vsel %vm1279, %v3926, %v3908
  %3937 = vset.pattern.permute.xlu0 30
  %3938 = vperm.xlu0 %3937, %v1200
  %v3939 = vpop.permute.xlu0 %3938
  %v3941 = vmul.f32 %v3936, %v3939
  %v3942 = vmul.f32 %v3935, %v3939
  %v3943 = vmul.f32 %v3934, %v3939
  %v3944 = vmul.f32 %v3933, %v3939
  %v3945 = vmul.f32 %v3932, %v3939
  %v3946 = vmul.f32 %v3931, %v3939
  %v3947 = vmul.f32 %v3930, %v3939
  %v3948 = vmul.f32 %v3929, %v3939
  %v3949 = vmul.f32 %v3928, %v3939
  %v3950 = vmul.f32 %v3927, %v3939
  %v3951 = vadd.f32 %v3897, %v3941
  %v3952 = vadd.f32 %v3898, %v3942
  %v3953 = vadd.f32 %v3899, %v3943
  %v3954 = vadd.f32 %v3900, %v3944
  %v3955 = vadd.f32 %v3901, %v3945
  %v3956 = vadd.f32 %v3902, %v3946
  %v3957 = vadd.f32 %v3903, %v3947
  %v3958 = vadd.f32 %v3904, %v3948
  %v3959 = vadd.f32 %v3905, %v3949
  %v3960 = vadd.f32 %v3906, %v3950
  %3961 = vrot.lane.b32.xlu0 %v3936, 1
  %v3962 = vpop.permute.xlu0 %3961
  %3963 = vrot.lane.b32.xlu0 %v3935, 1
  %v3964 = vpop.permute.xlu0 %3963
  %3965 = vrot.lane.b32.xlu0 %v3934, 1
  %v3966 = vpop.permute.xlu0 %3965
  %3967 = vrot.lane.b32.xlu0 %v3933, 1
  %v3968 = vpop.permute.xlu0 %3967
  %3969 = vrot.lane.b32.xlu0 %v3932, 1
  %v3970 = vpop.permute.xlu0 %3969
  %3971 = vrot.lane.b32.xlu0 %v3931, 1
  %v3972 = vpop.permute.xlu0 %3971
  %3973 = vrot.lane.b32.xlu0 %v3930, 1
  %v3974 = vpop.permute.xlu0 %3973
  %3975 = vrot.lane.b32.xlu0 %v3929, 1
  %v3976 = vpop.permute.xlu0 %3975
  %3977 = vrot.lane.b32.xlu0 %v3928, 1
  %v3978 = vpop.permute.xlu0 %3977
  %3979 = vrot.lane.b32.xlu0 %v3927, 1
  %v3980 = vpop.permute.xlu0 %3979
  %v3981 = vsel %vm1279, %v3978, %v3980
  %v3982 = vsel %vm1279, %v3976, %v3978
  %v3983 = vsel %vm1279, %v3974, %v3976
  %v3984 = vsel %vm1279, %v3972, %v3974
  %v3985 = vsel %vm1279, %v3970, %v3972
  %v3986 = vsel %vm1279, %v3968, %v3970
  %v3987 = vsel %vm1279, %v3966, %v3968
  %v3988 = vsel %vm1279, %v3964, %v3966
  %v3989 = vsel %vm1279, %v3962, %v3964
  %v3990 = vsel %vm1279, %v3980, %v3962
  %3991 = vset.pattern.permute.xlu0 29
  %3992 = vperm.xlu0 %3991, %v1200
  %v3993 = vpop.permute.xlu0 %3992
  %v3995 = vmul.f32 %v3990, %v3993
  %v3996 = vmul.f32 %v3989, %v3993
  %v3997 = vmul.f32 %v3988, %v3993
  %v3998 = vmul.f32 %v3987, %v3993
  %v3999 = vmul.f32 %v3986, %v3993
  %v4000 = vmul.f32 %v3985, %v3993
  %v4001 = vmul.f32 %v3984, %v3993
  %v4002 = vmul.f32 %v3983, %v3993
  %v4003 = vmul.f32 %v3982, %v3993
  %v4004 = vmul.f32 %v3981, %v3993
  %v4005 = vadd.f32 %v3951, %v3995
  %v4006 = vadd.f32 %v3952, %v3996
  %v4007 = vadd.f32 %v3953, %v3997
  %v4008 = vadd.f32 %v3954, %v3998
  %v4009 = vadd.f32 %v3955, %v3999
  %v4010 = vadd.f32 %v3956, %v4000
  %v4011 = vadd.f32 %v3957, %v4001
  %v4012 = vadd.f32 %v3958, %v4002
  %v4013 = vadd.f32 %v3959, %v4003
  %v4014 = vadd.f32 %v3960, %v4004
  %4015 = vrot.lane.b32.xlu0 %v3990, 1
  %v4016 = vpop.permute.xlu0 %4015
  %4017 = vrot.lane.b32.xlu0 %v3989, 1
  %v4018 = vpop.permute.xlu0 %4017
  %4019 = vrot.lane.b32.xlu0 %v3988, 1
  %v4020 = vpop.permute.xlu0 %4019
  %4021 = vrot.lane.b32.xlu0 %v3987, 1
  %v4022 = vpop.permute.xlu0 %4021
  %4023 = vrot.lane.b32.xlu0 %v3986, 1
  %v4024 = vpop.permute.xlu0 %4023
  %4025 = vrot.lane.b32.xlu0 %v3985, 1
  %v4026 = vpop.permute.xlu0 %4025
  %4027 = vrot.lane.b32.xlu0 %v3984, 1
  %v4028 = vpop.permute.xlu0 %4027
  %4029 = vrot.lane.b32.xlu0 %v3983, 1
  %v4030 = vpop.permute.xlu0 %4029
  %4031 = vrot.lane.b32.xlu0 %v3982, 1
  %v4032 = vpop.permute.xlu0 %4031
  %4033 = vrot.lane.b32.xlu0 %v3981, 1
  %v4034 = vpop.permute.xlu0 %4033
  %v4035 = vsel %vm1279, %v4032, %v4034
  %v4036 = vsel %vm1279, %v4030, %v4032
  %v4037 = vsel %vm1279, %v4028, %v4030
  %v4038 = vsel %vm1279, %v4026, %v4028
  %v4039 = vsel %vm1279, %v4024, %v4026
  %v4040 = vsel %vm1279, %v4022, %v4024
  %v4041 = vsel %vm1279, %v4020, %v4022
  %v4042 = vsel %vm1279, %v4018, %v4020
  %v4043 = vsel %vm1279, %v4016, %v4018
  %v4044 = vsel %vm1279, %v4034, %v4016
  %4045 = vset.pattern.permute.xlu0 28
  %4046 = vperm.xlu0 %4045, %v1200
  %v4047 = vpop.permute.xlu0 %4046
  %v4049 = vmul.f32 %v4044, %v4047
  %v4050 = vmul.f32 %v4043, %v4047
  %v4051 = vmul.f32 %v4042, %v4047
  %v4052 = vmul.f32 %v4041, %v4047
  %v4053 = vmul.f32 %v4040, %v4047
  %v4054 = vmul.f32 %v4039, %v4047
  %v4055 = vmul.f32 %v4038, %v4047
  %v4056 = vmul.f32 %v4037, %v4047
  %v4057 = vmul.f32 %v4036, %v4047
  %v4058 = vmul.f32 %v4035, %v4047
  %v4059 = vadd.f32 %v4005, %v4049
  %v4060 = vadd.f32 %v4006, %v4050
  %v4061 = vadd.f32 %v4007, %v4051
  %v4062 = vadd.f32 %v4008, %v4052
  %v4063 = vadd.f32 %v4009, %v4053
  %v4064 = vadd.f32 %v4010, %v4054
  %v4065 = vadd.f32 %v4011, %v4055
  %v4066 = vadd.f32 %v4012, %v4056
  %v4067 = vadd.f32 %v4013, %v4057
  %v4068 = vadd.f32 %v4014, %v4058
  %4069 = vrot.lane.b32.xlu0 %v4044, 1
  %v4070 = vpop.permute.xlu0 %4069
  %4071 = vrot.lane.b32.xlu0 %v4043, 1
  %v4072 = vpop.permute.xlu0 %4071
  %4073 = vrot.lane.b32.xlu0 %v4042, 1
  %v4074 = vpop.permute.xlu0 %4073
  %4075 = vrot.lane.b32.xlu0 %v4041, 1
  %v4076 = vpop.permute.xlu0 %4075
  %4077 = vrot.lane.b32.xlu0 %v4040, 1
  %v4078 = vpop.permute.xlu0 %4077
  %4079 = vrot.lane.b32.xlu0 %v4039, 1
  %v4080 = vpop.permute.xlu0 %4079
  %4081 = vrot.lane.b32.xlu0 %v4038, 1
  %v4082 = vpop.permute.xlu0 %4081
  %4083 = vrot.lane.b32.xlu0 %v4037, 1
  %v4084 = vpop.permute.xlu0 %4083
  %4085 = vrot.lane.b32.xlu0 %v4036, 1
  %v4086 = vpop.permute.xlu0 %4085
  %4087 = vrot.lane.b32.xlu0 %v4035, 1
  %v4088 = vpop.permute.xlu0 %4087
  %v4089 = vsel %vm1279, %v4086, %v4088
  %v4090 = vsel %vm1279, %v4084, %v4086
  %v4091 = vsel %vm1279, %v4082, %v4084
  %v4092 = vsel %vm1279, %v4080, %v4082
  %v4093 = vsel %vm1279, %v4078, %v4080
  %v4094 = vsel %vm1279, %v4076, %v4078
  %v4095 = vsel %vm1279, %v4074, %v4076
  %v4096 = vsel %vm1279, %v4072, %v4074
  %v4097 = vsel %vm1279, %v4070, %v4072
  %v4098 = vsel %vm1279, %v4088, %v4070
  %4099 = vset.pattern.permute.xlu0 27
  %4100 = vperm.xlu0 %4099, %v1200
  %v4101 = vpop.permute.xlu0 %4100
  %v4103 = vmul.f32 %v4098, %v4101
  %v4104 = vmul.f32 %v4097, %v4101
  %v4105 = vmul.f32 %v4096, %v4101
  %v4106 = vmul.f32 %v4095, %v4101
  %v4107 = vmul.f32 %v4094, %v4101
  %v4108 = vmul.f32 %v4093, %v4101
  %v4109 = vmul.f32 %v4092, %v4101
  %v4110 = vmul.f32 %v4091, %v4101
  %v4111 = vmul.f32 %v4090, %v4101
  %v4112 = vmul.f32 %v4089, %v4101
  %v4113 = vadd.f32 %v4059, %v4103
  %v4114 = vadd.f32 %v4060, %v4104
  %v4115 = vadd.f32 %v4061, %v4105
  %v4116 = vadd.f32 %v4062, %v4106
  %v4117 = vadd.f32 %v4063, %v4107
  %v4118 = vadd.f32 %v4064, %v4108
  %v4119 = vadd.f32 %v4065, %v4109
  %v4120 = vadd.f32 %v4066, %v4110
  %v4121 = vadd.f32 %v4067, %v4111
  %v4122 = vadd.f32 %v4068, %v4112
  %4123 = vrot.lane.b32.xlu0 %v3666, 24
  %v4124 = vpop.permute.xlu0 %4123
  %4125 = vrot.lane.b32.xlu0 %v3665, 24
  %v4126 = vpop.permute.xlu0 %4125
  %4127 = vrot.lane.b32.xlu0 %v3664, 24
  %v4128 = vpop.permute.xlu0 %4127
  %4129 = vrot.lane.b32.xlu0 %v3663, 24
  %v4130 = vpop.permute.xlu0 %4129
  %4131 = vrot.lane.b32.xlu0 %v3662, 24
  %v4132 = vpop.permute.xlu0 %4131
  %4133 = vrot.lane.b32.xlu0 %v3661, 24
  %v4134 = vpop.permute.xlu0 %4133
  %4135 = vrot.lane.b32.xlu0 %v3660, 24
  %v4136 = vpop.permute.xlu0 %4135
  %4137 = vrot.lane.b32.xlu0 %v3659, 24
  %v4138 = vpop.permute.xlu0 %4137
  %4139 = vrot.lane.b32.xlu0 %v3658, 24
  %v4140 = vpop.permute.xlu0 %4139
  %4141 = vrot.lane.b32.xlu0 %v3657, 24
  %v4142 = vpop.permute.xlu0 %4141
  %v4143 = vsel %vm1712, %v4140, %v4142
  %v4144 = vsel %vm1712, %v4138, %v4140
  %v4145 = vsel %vm1712, %v4136, %v4138
  %v4146 = vsel %vm1712, %v4134, %v4136
  %v4147 = vsel %vm1712, %v4132, %v4134
  %v4148 = vsel %vm1712, %v4130, %v4132
  %v4149 = vsel %vm1712, %v4128, %v4130
  %v4150 = vsel %vm1712, %v4126, %v4128
  %v4151 = vsel %vm1712, %v4124, %v4126
  %v4152 = vsel %vm1712, %v4142, %v4124
  %4153 = vset.pattern.permute.xlu0 26
  %4154 = vperm.xlu0 %4153, %v1200
  %v4155 = vpop.permute.xlu0 %4154
  %v4157 = vmul.f32 %v4152, %v4155
  %v4158 = vmul.f32 %v4151, %v4155
  %v4159 = vmul.f32 %v4150, %v4155
  %v4160 = vmul.f32 %v4149, %v4155
  %v4161 = vmul.f32 %v4148, %v4155
  %v4162 = vmul.f32 %v4147, %v4155
  %v4163 = vmul.f32 %v4146, %v4155
  %v4164 = vmul.f32 %v4145, %v4155
  %v4165 = vmul.f32 %v4144, %v4155
  %v4166 = vmul.f32 %v4143, %v4155
  %v4167 = vadd.f32 %v4113, %v4157
  %v4168 = vadd.f32 %v4114, %v4158
  %v4169 = vadd.f32 %v4115, %v4159
  %v4170 = vadd.f32 %v4116, %v4160
  %v4171 = vadd.f32 %v4117, %v4161
  %v4172 = vadd.f32 %v4118, %v4162
  %v4173 = vadd.f32 %v4119, %v4163
  %v4174 = vadd.f32 %v4120, %v4164
  %v4175 = vadd.f32 %v4121, %v4165
  %v4176 = vadd.f32 %v4122, %v4166
  %4177 = vrot.lane.b32.xlu0 %v4152, 1
  %v4178 = vpop.permute.xlu0 %4177
  %4179 = vrot.lane.b32.xlu0 %v4151, 1
  %v4180 = vpop.permute.xlu0 %4179
  %4181 = vrot.lane.b32.xlu0 %v4150, 1
  %v4182 = vpop.permute.xlu0 %4181
  %4183 = vrot.lane.b32.xlu0 %v4149, 1
  %v4184 = vpop.permute.xlu0 %4183
  %4185 = vrot.lane.b32.xlu0 %v4148, 1
  %v4186 = vpop.permute.xlu0 %4185
  %4187 = vrot.lane.b32.xlu0 %v4147, 1
  %v4188 = vpop.permute.xlu0 %4187
  %4189 = vrot.lane.b32.xlu0 %v4146, 1
  %v4190 = vpop.permute.xlu0 %4189
  %4191 = vrot.lane.b32.xlu0 %v4145, 1
  %v4192 = vpop.permute.xlu0 %4191
  %4193 = vrot.lane.b32.xlu0 %v4144, 1
  %v4194 = vpop.permute.xlu0 %4193
  %4195 = vrot.lane.b32.xlu0 %v4143, 1
  %v4196 = vpop.permute.xlu0 %4195
  %v4197 = vsel %vm1279, %v4194, %v4196
  %v4198 = vsel %vm1279, %v4192, %v4194
  %v4199 = vsel %vm1279, %v4190, %v4192
  %v4200 = vsel %vm1279, %v4188, %v4190
  %v4201 = vsel %vm1279, %v4186, %v4188
  %v4202 = vsel %vm1279, %v4184, %v4186
  %v4203 = vsel %vm1279, %v4182, %v4184
  %v4204 = vsel %vm1279, %v4180, %v4182
  %v4205 = vsel %vm1279, %v4178, %v4180
  %v4206 = vsel %vm1279, %v4196, %v4178
  %4207 = vset.pattern.permute.xlu0 25
  %4208 = vperm.xlu0 %4207, %v1200
  %v4209 = vpop.permute.xlu0 %4208
  %v4211 = vmul.f32 %v4206, %v4209
  %v4212 = vmul.f32 %v4205, %v4209
  %v4213 = vmul.f32 %v4204, %v4209
  %v4214 = vmul.f32 %v4203, %v4209
  %v4215 = vmul.f32 %v4202, %v4209
  %v4216 = vmul.f32 %v4201, %v4209
  %v4217 = vmul.f32 %v4200, %v4209
  %v4218 = vmul.f32 %v4199, %v4209
  %v4219 = vmul.f32 %v4198, %v4209
  %v4220 = vmul.f32 %v4197, %v4209
  %v4221 = vadd.f32 %v4167, %v4211
  %v4222 = vadd.f32 %v4168, %v4212
  %v4223 = vadd.f32 %v4169, %v4213
  %v4224 = vadd.f32 %v4170, %v4214
  %v4225 = vadd.f32 %v4171, %v4215
  %v4226 = vadd.f32 %v4172, %v4216
  %v4227 = vadd.f32 %v4173, %v4217
  %v4228 = vadd.f32 %v4174, %v4218
  %v4229 = vadd.f32 %v4175, %v4219
  %v4230 = vadd.f32 %v4176, %v4220
  %4231 = vrot.lane.b32.xlu0 %v4206, 1
  %v4232 = vpop.permute.xlu0 %4231
  %4233 = vrot.lane.b32.xlu0 %v4205, 1
  %v4234 = vpop.permute.xlu0 %4233
  %4235 = vrot.lane.b32.xlu0 %v4204, 1
  %v4236 = vpop.permute.xlu0 %4235
  %4237 = vrot.lane.b32.xlu0 %v4203, 1
  %v4238 = vpop.permute.xlu0 %4237
  %4239 = vrot.lane.b32.xlu0 %v4202, 1
  %v4240 = vpop.permute.xlu0 %4239
  %4241 = vrot.lane.b32.xlu0 %v4201, 1
  %v4242 = vpop.permute.xlu0 %4241
  %4243 = vrot.lane.b32.xlu0 %v4200, 1
  %v4244 = vpop.permute.xlu0 %4243
  %4245 = vrot.lane.b32.xlu0 %v4199, 1
  %v4246 = vpop.permute.xlu0 %4245
  %4247 = vrot.lane.b32.xlu0 %v4198, 1
  %v4248 = vpop.permute.xlu0 %4247
  %4249 = vrot.lane.b32.xlu0 %v4197, 1
  %v4250 = vpop.permute.xlu0 %4249
  %v4251 = vsel %vm1279, %v4248, %v4250
  %v4252 = vsel %vm1279, %v4246, %v4248
  %v4253 = vsel %vm1279, %v4244, %v4246
  %v4254 = vsel %vm1279, %v4242, %v4244
  %v4255 = vsel %vm1279, %v4240, %v4242
  %v4256 = vsel %vm1279, %v4238, %v4240
  %v4257 = vsel %vm1279, %v4236, %v4238
  %v4258 = vsel %vm1279, %v4234, %v4236
  %v4259 = vsel %vm1279, %v4232, %v4234
  %v4260 = vsel %vm1279, %v4250, %v4232
  %4261 = vset.pattern.permute.xlu0 24
  %4262 = vperm.xlu0 %4261, %v1200
  %v4263 = vpop.permute.xlu0 %4262
  %v4265 = vmul.f32 %v4260, %v4263
  %v4266 = vmul.f32 %v4259, %v4263
  %v4267 = vmul.f32 %v4258, %v4263
  %v4268 = vmul.f32 %v4257, %v4263
  %v4269 = vmul.f32 %v4256, %v4263
  %v4270 = vmul.f32 %v4255, %v4263
  %v4271 = vmul.f32 %v4254, %v4263
  %v4272 = vmul.f32 %v4253, %v4263
  %v4273 = vmul.f32 %v4252, %v4263
  %v4274 = vmul.f32 %v4251, %v4263
  %v4275 = vadd.f32 %v4221, %v4265
  %v4276 = vadd.f32 %v4222, %v4266
  %v4277 = vadd.f32 %v4223, %v4267
  %v4278 = vadd.f32 %v4224, %v4268
  %v4279 = vadd.f32 %v4225, %v4269
  %v4280 = vadd.f32 %v4226, %v4270
  %v4281 = vadd.f32 %v4227, %v4271
  %v4282 = vadd.f32 %v4228, %v4272
  %v4283 = vadd.f32 %v4229, %v4273
  %v4284 = vadd.f32 %v4230, %v4274
  %4285 = vrot.lane.b32.xlu0 %v4260, 1
  %v4286 = vpop.permute.xlu0 %4285
  %4287 = vrot.lane.b32.xlu0 %v4259, 1
  %v4288 = vpop.permute.xlu0 %4287
  %4289 = vrot.lane.b32.xlu0 %v4258, 1
  %v4290 = vpop.permute.xlu0 %4289
  %4291 = vrot.lane.b32.xlu0 %v4257, 1
  %v4292 = vpop.permute.xlu0 %4291
  %4293 = vrot.lane.b32.xlu0 %v4256, 1
  %v4294 = vpop.permute.xlu0 %4293
  %4295 = vrot.lane.b32.xlu0 %v4255, 1
  %v4296 = vpop.permute.xlu0 %4295
  %4297 = vrot.lane.b32.xlu0 %v4254, 1
  %v4298 = vpop.permute.xlu0 %4297
  %4299 = vrot.lane.b32.xlu0 %v4253, 1
  %v4300 = vpop.permute.xlu0 %4299
  %4301 = vrot.lane.b32.xlu0 %v4252, 1
  %v4302 = vpop.permute.xlu0 %4301
  %4303 = vrot.lane.b32.xlu0 %v4251, 1
  %v4304 = vpop.permute.xlu0 %4303
  %v4305 = vsel %vm1279, %v4302, %v4304
  %v4306 = vsel %vm1279, %v4300, %v4302
  %v4307 = vsel %vm1279, %v4298, %v4300
  %v4308 = vsel %vm1279, %v4296, %v4298
  %v4309 = vsel %vm1279, %v4294, %v4296
  %v4310 = vsel %vm1279, %v4292, %v4294
  %v4311 = vsel %vm1279, %v4290, %v4292
  %v4312 = vsel %vm1279, %v4288, %v4290
  %v4313 = vsel %vm1279, %v4286, %v4288
  %v4314 = vsel %vm1279, %v4304, %v4286
  %4315 = vset.pattern.permute.xlu0 23
  %4316 = vperm.xlu0 %4315, %v1200
  %v4317 = vpop.permute.xlu0 %4316
  %v4319 = vmul.f32 %v4314, %v4317
  %v4320 = vmul.f32 %v4313, %v4317
  %v4321 = vmul.f32 %v4312, %v4317
  %v4322 = vmul.f32 %v4311, %v4317
  %v4323 = vmul.f32 %v4310, %v4317
  %v4324 = vmul.f32 %v4309, %v4317
  %v4325 = vmul.f32 %v4308, %v4317
  %v4326 = vmul.f32 %v4307, %v4317
  %v4327 = vmul.f32 %v4306, %v4317
  %v4328 = vmul.f32 %v4305, %v4317
  %v4329 = vadd.f32 %v4275, %v4319
  %v4330 = vadd.f32 %v4276, %v4320
  %v4331 = vadd.f32 %v4277, %v4321
  %v4332 = vadd.f32 %v4278, %v4322
  %v4333 = vadd.f32 %v4279, %v4323
  %v4334 = vadd.f32 %v4280, %v4324
  %v4335 = vadd.f32 %v4281, %v4325
  %v4336 = vadd.f32 %v4282, %v4326
  %v4337 = vadd.f32 %v4283, %v4327
  %v4338 = vadd.f32 %v4284, %v4328
  %4339 = vrot.lane.b32.xlu0 %v4314, 1
  %v4340 = vpop.permute.xlu0 %4339
  %4341 = vrot.lane.b32.xlu0 %v4313, 1
  %v4342 = vpop.permute.xlu0 %4341
  %4343 = vrot.lane.b32.xlu0 %v4312, 1
  %v4344 = vpop.permute.xlu0 %4343
  %4345 = vrot.lane.b32.xlu0 %v4311, 1
  %v4346 = vpop.permute.xlu0 %4345
  %4347 = vrot.lane.b32.xlu0 %v4310, 1
  %v4348 = vpop.permute.xlu0 %4347
  %4349 = vrot.lane.b32.xlu0 %v4309, 1
  %v4350 = vpop.permute.xlu0 %4349
  %4351 = vrot.lane.b32.xlu0 %v4308, 1
  %v4352 = vpop.permute.xlu0 %4351
  %4353 = vrot.lane.b32.xlu0 %v4307, 1
  %v4354 = vpop.permute.xlu0 %4353
  %4355 = vrot.lane.b32.xlu0 %v4306, 1
  %v4356 = vpop.permute.xlu0 %4355
  %4357 = vrot.lane.b32.xlu0 %v4305, 1
  %v4358 = vpop.permute.xlu0 %4357
  %v4359 = vsel %vm1279, %v4356, %v4358
  %v4360 = vsel %vm1279, %v4354, %v4356
  %v4361 = vsel %vm1279, %v4352, %v4354
  %v4362 = vsel %vm1279, %v4350, %v4352
  %v4363 = vsel %vm1279, %v4348, %v4350
  %v4364 = vsel %vm1279, %v4346, %v4348
  %v4365 = vsel %vm1279, %v4344, %v4346
  %v4366 = vsel %vm1279, %v4342, %v4344
  %v4367 = vsel %vm1279, %v4340, %v4342
  %v4368 = vsel %vm1279, %v4358, %v4340
  %4369 = vset.pattern.permute.xlu0 22
  %4370 = vperm.xlu0 %4369, %v1200
  %v4371 = vpop.permute.xlu0 %4370
  %v4373 = vmul.f32 %v4368, %v4371
  %v4374 = vmul.f32 %v4367, %v4371
  %v4375 = vmul.f32 %v4366, %v4371
  %v4376 = vmul.f32 %v4365, %v4371
  %v4377 = vmul.f32 %v4364, %v4371
  %v4378 = vmul.f32 %v4363, %v4371
  %v4379 = vmul.f32 %v4362, %v4371
  %v4380 = vmul.f32 %v4361, %v4371
  %v4381 = vmul.f32 %v4360, %v4371
  %v4382 = vmul.f32 %v4359, %v4371
  %v4383 = vadd.f32 %v4329, %v4373
  %v4384 = vadd.f32 %v4330, %v4374
  %v4385 = vadd.f32 %v4331, %v4375
  %v4386 = vadd.f32 %v4332, %v4376
  %v4387 = vadd.f32 %v4333, %v4377
  %v4388 = vadd.f32 %v4334, %v4378
  %v4389 = vadd.f32 %v4335, %v4379
  %v4390 = vadd.f32 %v4336, %v4380
  %v4391 = vadd.f32 %v4337, %v4381
  %v4392 = vadd.f32 %v4338, %v4382
  %4393 = vrot.lane.b32.xlu0 %v4368, 1
  %v4394 = vpop.permute.xlu0 %4393
  %4395 = vrot.lane.b32.xlu0 %v4367, 1
  %v4396 = vpop.permute.xlu0 %4395
  %4397 = vrot.lane.b32.xlu0 %v4366, 1
  %v4398 = vpop.permute.xlu0 %4397
  %4399 = vrot.lane.b32.xlu0 %v4365, 1
  %v4400 = vpop.permute.xlu0 %4399
  %4401 = vrot.lane.b32.xlu0 %v4364, 1
  %v4402 = vpop.permute.xlu0 %4401
  %4403 = vrot.lane.b32.xlu0 %v4363, 1
  %v4404 = vpop.permute.xlu0 %4403
  %4405 = vrot.lane.b32.xlu0 %v4362, 1
  %v4406 = vpop.permute.xlu0 %4405
  %4407 = vrot.lane.b32.xlu0 %v4361, 1
  %v4408 = vpop.permute.xlu0 %4407
  %4409 = vrot.lane.b32.xlu0 %v4360, 1
  %v4410 = vpop.permute.xlu0 %4409
  %4411 = vrot.lane.b32.xlu0 %v4359, 1
  %v4412 = vpop.permute.xlu0 %4411
  %v4413 = vsel %vm1279, %v4410, %v4412
  %v4414 = vsel %vm1279, %v4408, %v4410
  %v4415 = vsel %vm1279, %v4406, %v4408
  %v4416 = vsel %vm1279, %v4404, %v4406
  %v4417 = vsel %vm1279, %v4402, %v4404
  %v4418 = vsel %vm1279, %v4400, %v4402
  %v4419 = vsel %vm1279, %v4398, %v4400
  %v4420 = vsel %vm1279, %v4396, %v4398
  %v4421 = vsel %vm1279, %v4394, %v4396
  %v4422 = vsel %vm1279, %v4412, %v4394
  %4423 = vset.pattern.permute.xlu0 21
  %4424 = vperm.xlu0 %4423, %v1200
  %v4425 = vpop.permute.xlu0 %4424
  %v4427 = vmul.f32 %v4422, %v4425
  %v4428 = vmul.f32 %v4421, %v4425
  %v4429 = vmul.f32 %v4420, %v4425
  %v4430 = vmul.f32 %v4419, %v4425
  %v4431 = vmul.f32 %v4418, %v4425
  %v4432 = vmul.f32 %v4417, %v4425
  %v4433 = vmul.f32 %v4416, %v4425
  %v4434 = vmul.f32 %v4415, %v4425
  %v4435 = vmul.f32 %v4414, %v4425
  %v4436 = vmul.f32 %v4413, %v4425
  %v4437 = vadd.f32 %v4383, %v4427
  %v4438 = vadd.f32 %v4384, %v4428
  %v4439 = vadd.f32 %v4385, %v4429
  %v4440 = vadd.f32 %v4386, %v4430
  %v4441 = vadd.f32 %v4387, %v4431
  %v4442 = vadd.f32 %v4388, %v4432
  %v4443 = vadd.f32 %v4389, %v4433
  %v4444 = vadd.f32 %v4390, %v4434
  %v4445 = vadd.f32 %v4391, %v4435
  %v4446 = vadd.f32 %v4392, %v4436
  %4447 = vrot.lane.b32.xlu0 %v4422, 1
  %v4448 = vpop.permute.xlu0 %4447
  %4449 = vrot.lane.b32.xlu0 %v4421, 1
  %v4450 = vpop.permute.xlu0 %4449
  %4451 = vrot.lane.b32.xlu0 %v4420, 1
  %v4452 = vpop.permute.xlu0 %4451
  %4453 = vrot.lane.b32.xlu0 %v4419, 1
  %v4454 = vpop.permute.xlu0 %4453
  %4455 = vrot.lane.b32.xlu0 %v4418, 1
  %v4456 = vpop.permute.xlu0 %4455
  %4457 = vrot.lane.b32.xlu0 %v4417, 1
  %v4458 = vpop.permute.xlu0 %4457
  %4459 = vrot.lane.b32.xlu0 %v4416, 1
  %v4460 = vpop.permute.xlu0 %4459
  %4461 = vrot.lane.b32.xlu0 %v4415, 1
  %v4462 = vpop.permute.xlu0 %4461
  %4463 = vrot.lane.b32.xlu0 %v4414, 1
  %v4464 = vpop.permute.xlu0 %4463
  %4465 = vrot.lane.b32.xlu0 %v4413, 1
  %v4466 = vpop.permute.xlu0 %4465
  %v4467 = vsel %vm1279, %v4464, %v4466
  %v4468 = vsel %vm1279, %v4462, %v4464
  %v4469 = vsel %vm1279, %v4460, %v4462
  %v4470 = vsel %vm1279, %v4458, %v4460
  %v4471 = vsel %vm1279, %v4456, %v4458
  %v4472 = vsel %vm1279, %v4454, %v4456
  %v4473 = vsel %vm1279, %v4452, %v4454
  %v4474 = vsel %vm1279, %v4450, %v4452
  %v4475 = vsel %vm1279, %v4448, %v4450
  %v4476 = vsel %vm1279, %v4466, %v4448
  %4477 = vset.pattern.permute.xlu0 20
  %4478 = vperm.xlu0 %4477, %v1200
  %v4479 = vpop.permute.xlu0 %4478
  %v4481 = vmul.f32 %v4476, %v4479
  %v4482 = vmul.f32 %v4475, %v4479
  %v4483 = vmul.f32 %v4474, %v4479
  %v4484 = vmul.f32 %v4473, %v4479
  %v4485 = vmul.f32 %v4472, %v4479
  %v4486 = vmul.f32 %v4471, %v4479
  %v4487 = vmul.f32 %v4470, %v4479
  %v4488 = vmul.f32 %v4469, %v4479
  %v4489 = vmul.f32 %v4468, %v4479
  %v4490 = vmul.f32 %v4467, %v4479
  %v4491 = vadd.f32 %v4437, %v4481
  %v4492 = vadd.f32 %v4438, %v4482
  %v4493 = vadd.f32 %v4439, %v4483
  %v4494 = vadd.f32 %v4440, %v4484
  %v4495 = vadd.f32 %v4441, %v4485
  %v4496 = vadd.f32 %v4442, %v4486
  %v4497 = vadd.f32 %v4443, %v4487
  %v4498 = vadd.f32 %v4444, %v4488
  %v4499 = vadd.f32 %v4445, %v4489
  %v4500 = vadd.f32 %v4446, %v4490
  %4501 = vrot.lane.b32.xlu0 %v4476, 1
  %v4502 = vpop.permute.xlu0 %4501
  %4503 = vrot.lane.b32.xlu0 %v4475, 1
  %v4504 = vpop.permute.xlu0 %4503
  %4505 = vrot.lane.b32.xlu0 %v4474, 1
  %v4506 = vpop.permute.xlu0 %4505
  %4507 = vrot.lane.b32.xlu0 %v4473, 1
  %v4508 = vpop.permute.xlu0 %4507
  %4509 = vrot.lane.b32.xlu0 %v4472, 1
  %v4510 = vpop.permute.xlu0 %4509
  %4511 = vrot.lane.b32.xlu0 %v4471, 1
  %v4512 = vpop.permute.xlu0 %4511
  %4513 = vrot.lane.b32.xlu0 %v4470, 1
  %v4514 = vpop.permute.xlu0 %4513
  %4515 = vrot.lane.b32.xlu0 %v4469, 1
  %v4516 = vpop.permute.xlu0 %4515
  %4517 = vrot.lane.b32.xlu0 %v4468, 1
  %v4518 = vpop.permute.xlu0 %4517
  %4519 = vrot.lane.b32.xlu0 %v4467, 1
  %v4520 = vpop.permute.xlu0 %4519
  %v4521 = vsel %vm1279, %v4518, %v4520
  %v4522 = vsel %vm1279, %v4516, %v4518
  %v4523 = vsel %vm1279, %v4514, %v4516
  %v4524 = vsel %vm1279, %v4512, %v4514
  %v4525 = vsel %vm1279, %v4510, %v4512
  %v4526 = vsel %vm1279, %v4508, %v4510
  %v4527 = vsel %vm1279, %v4506, %v4508
  %v4528 = vsel %vm1279, %v4504, %v4506
  %v4529 = vsel %vm1279, %v4502, %v4504
  %v4530 = vsel %vm1279, %v4520, %v4502
  %4531 = vset.pattern.permute.xlu0 19
  %4532 = vperm.xlu0 %4531, %v1200
  %v4533 = vpop.permute.xlu0 %4532
  %v4535 = vmul.f32 %v4530, %v4533
  %v4536 = vmul.f32 %v4529, %v4533
  %v4537 = vmul.f32 %v4528, %v4533
  %v4538 = vmul.f32 %v4527, %v4533
  %v4539 = vmul.f32 %v4526, %v4533
  %v4540 = vmul.f32 %v4525, %v4533
  %v4541 = vmul.f32 %v4524, %v4533
  %v4542 = vmul.f32 %v4523, %v4533
  %v4543 = vmul.f32 %v4522, %v4533
  %v4544 = vmul.f32 %v4521, %v4533
  %v4545 = vadd.f32 %v4491, %v4535
  %v4546 = vadd.f32 %v4492, %v4536
  %v4547 = vadd.f32 %v4493, %v4537
  %v4548 = vadd.f32 %v4494, %v4538
  %v4549 = vadd.f32 %v4495, %v4539
  %v4550 = vadd.f32 %v4496, %v4540
  %v4551 = vadd.f32 %v4497, %v4541
  %v4552 = vadd.f32 %v4498, %v4542
  %v4553 = vadd.f32 %v4499, %v4543
  %v4554 = vadd.f32 %v4500, %v4544
  %4555 = vrot.lane.b32.xlu0 %v4530, 1
  %v4556 = vpop.permute.xlu0 %4555
  %4557 = vrot.lane.b32.xlu0 %v4529, 1
  %v4558 = vpop.permute.xlu0 %4557
  %4559 = vrot.lane.b32.xlu0 %v4528, 1
  %v4560 = vpop.permute.xlu0 %4559
  %4561 = vrot.lane.b32.xlu0 %v4527, 1
  %v4562 = vpop.permute.xlu0 %4561
  %4563 = vrot.lane.b32.xlu0 %v4526, 1
  %v4564 = vpop.permute.xlu0 %4563
  %4565 = vrot.lane.b32.xlu0 %v4525, 1
  %v4566 = vpop.permute.xlu0 %4565
  %4567 = vrot.lane.b32.xlu0 %v4524, 1
  %v4568 = vpop.permute.xlu0 %4567
  %4569 = vrot.lane.b32.xlu0 %v4523, 1
  %v4570 = vpop.permute.xlu0 %4569
  %4571 = vrot.lane.b32.xlu0 %v4522, 1
  %v4572 = vpop.permute.xlu0 %4571
  %4573 = vrot.lane.b32.xlu0 %v4521, 1
  %v4574 = vpop.permute.xlu0 %4573
  %v4575 = vsel %vm1279, %v4572, %v4574
  %v4576 = vsel %vm1279, %v4570, %v4572
  %v4577 = vsel %vm1279, %v4568, %v4570
  %v4578 = vsel %vm1279, %v4566, %v4568
  %v4579 = vsel %vm1279, %v4564, %v4566
  %v4580 = vsel %vm1279, %v4562, %v4564
  %v4581 = vsel %vm1279, %v4560, %v4562
  %v4582 = vsel %vm1279, %v4558, %v4560
  %v4583 = vsel %vm1279, %v4556, %v4558
  %v4584 = vsel %vm1279, %v4574, %v4556
  %4585 = vset.pattern.permute.xlu0 18
  %4586 = vperm.xlu0 %4585, %v1200
  %v4587 = vpop.permute.xlu0 %4586
  %v4589 = vmul.f32 %v4584, %v4587
  %v4590 = vmul.f32 %v4583, %v4587
  %v4591 = vmul.f32 %v4582, %v4587
  %v4592 = vmul.f32 %v4581, %v4587
  %v4593 = vmul.f32 %v4580, %v4587
  %v4594 = vmul.f32 %v4579, %v4587
  %v4595 = vmul.f32 %v4578, %v4587
  %v4596 = vmul.f32 %v4577, %v4587
  %v4597 = vmul.f32 %v4576, %v4587
  %v4598 = vmul.f32 %v4575, %v4587
  %v4599 = vadd.f32 %v4545, %v4589
  %v4600 = vadd.f32 %v4546, %v4590
  %v4601 = vadd.f32 %v4547, %v4591
  %v4602 = vadd.f32 %v4548, %v4592
  %v4603 = vadd.f32 %v4549, %v4593
  %v4604 = vadd.f32 %v4550, %v4594
  %v4605 = vadd.f32 %v4551, %v4595
  %v4606 = vadd.f32 %v4552, %v4596
  %v4607 = vadd.f32 %v4553, %v4597
  %v4608 = vadd.f32 %v4554, %v4598
  %4609 = vrot.lane.b32.xlu0 %v4152, 24
  %v4610 = vpop.permute.xlu0 %4609
  %4611 = vrot.lane.b32.xlu0 %v4151, 24
  %v4612 = vpop.permute.xlu0 %4611
  %4613 = vrot.lane.b32.xlu0 %v4150, 24
  %v4614 = vpop.permute.xlu0 %4613
  %4615 = vrot.lane.b32.xlu0 %v4149, 24
  %v4616 = vpop.permute.xlu0 %4615
  %4617 = vrot.lane.b32.xlu0 %v4148, 24
  %v4618 = vpop.permute.xlu0 %4617
  %4619 = vrot.lane.b32.xlu0 %v4147, 24
  %v4620 = vpop.permute.xlu0 %4619
  %4621 = vrot.lane.b32.xlu0 %v4146, 24
  %v4622 = vpop.permute.xlu0 %4621
  %4623 = vrot.lane.b32.xlu0 %v4145, 24
  %v4624 = vpop.permute.xlu0 %4623
  %4625 = vrot.lane.b32.xlu0 %v4144, 24
  %v4626 = vpop.permute.xlu0 %4625
  %4627 = vrot.lane.b32.xlu0 %v4143, 24
  %v4628 = vpop.permute.xlu0 %4627
  %v4629 = vsel %vm1712, %v4626, %v4628
  %v4630 = vsel %vm1712, %v4624, %v4626
  %v4631 = vsel %vm1712, %v4622, %v4624
  %v4632 = vsel %vm1712, %v4620, %v4622
  %v4633 = vsel %vm1712, %v4618, %v4620
  %v4634 = vsel %vm1712, %v4616, %v4618
  %v4635 = vsel %vm1712, %v4614, %v4616
  %v4636 = vsel %vm1712, %v4612, %v4614
  %v4637 = vsel %vm1712, %v4610, %v4612
  %v4638 = vsel %vm1712, %v4628, %v4610
  %4639 = vset.pattern.permute.xlu0 17
  %4640 = vperm.xlu0 %4639, %v1200
  %v4641 = vpop.permute.xlu0 %4640
  %v4643 = vmul.f32 %v4638, %v4641
  %v4644 = vmul.f32 %v4637, %v4641
  %v4645 = vmul.f32 %v4636, %v4641
  %v4646 = vmul.f32 %v4635, %v4641
  %v4647 = vmul.f32 %v4634, %v4641
  %v4648 = vmul.f32 %v4633, %v4641
  %v4649 = vmul.f32 %v4632, %v4641
  %v4650 = vmul.f32 %v4631, %v4641
  %v4651 = vmul.f32 %v4630, %v4641
  %v4652 = vmul.f32 %v4629, %v4641
  %v4653 = vadd.f32 %v4599, %v4643
  %v4654 = vadd.f32 %v4600, %v4644
  %v4655 = vadd.f32 %v4601, %v4645
  %v4656 = vadd.f32 %v4602, %v4646
  %v4657 = vadd.f32 %v4603, %v4647
  %v4658 = vadd.f32 %v4604, %v4648
  %v4659 = vadd.f32 %v4605, %v4649
  %v4660 = vadd.f32 %v4606, %v4650
  %v4661 = vadd.f32 %v4607, %v4651
  %v4662 = vadd.f32 %v4608, %v4652
  %4663 = vrot.lane.b32.xlu0 %v4638, 1
  %v4664 = vpop.permute.xlu0 %4663
  %4665 = vrot.lane.b32.xlu0 %v4637, 1
  %v4666 = vpop.permute.xlu0 %4665
  %4667 = vrot.lane.b32.xlu0 %v4636, 1
  %v4668 = vpop.permute.xlu0 %4667
  %4669 = vrot.lane.b32.xlu0 %v4635, 1
  %v4670 = vpop.permute.xlu0 %4669
  %4671 = vrot.lane.b32.xlu0 %v4634, 1
  %v4672 = vpop.permute.xlu0 %4671
  %4673 = vrot.lane.b32.xlu0 %v4633, 1
  %v4674 = vpop.permute.xlu0 %4673
  %4675 = vrot.lane.b32.xlu0 %v4632, 1
  %v4676 = vpop.permute.xlu0 %4675
  %4677 = vrot.lane.b32.xlu0 %v4631, 1
  %v4678 = vpop.permute.xlu0 %4677
  %4679 = vrot.lane.b32.xlu0 %v4630, 1
  %v4680 = vpop.permute.xlu0 %4679
  %4681 = vrot.lane.b32.xlu0 %v4629, 1
  %v4682 = vpop.permute.xlu0 %4681
  %v4683 = vsel %vm1279, %v4680, %v4682
  %v4684 = vsel %vm1279, %v4678, %v4680
  %v4685 = vsel %vm1279, %v4676, %v4678
  %v4686 = vsel %vm1279, %v4674, %v4676
  %v4687 = vsel %vm1279, %v4672, %v4674
  %v4688 = vsel %vm1279, %v4670, %v4672
  %v4689 = vsel %vm1279, %v4668, %v4670
  %v4690 = vsel %vm1279, %v4666, %v4668
  %v4691 = vsel %vm1279, %v4664, %v4666
  %v4692 = vsel %vm1279, %v4682, %v4664
  %4693 = vset.pattern.permute.xlu0 16
  %4694 = vperm.xlu0 %4693, %v1200
  %v4695 = vpop.permute.xlu0 %4694
  %v4697 = vmul.f32 %v4692, %v4695
  %v4698 = vmul.f32 %v4691, %v4695
  %v4699 = vmul.f32 %v4690, %v4695
  %v4700 = vmul.f32 %v4689, %v4695
  %v4701 = vmul.f32 %v4688, %v4695
  %v4702 = vmul.f32 %v4687, %v4695
  %v4703 = vmul.f32 %v4686, %v4695
  %v4704 = vmul.f32 %v4685, %v4695
  %v4705 = vmul.f32 %v4684, %v4695
  %v4706 = vmul.f32 %v4683, %v4695
  %v4707 = vadd.f32 %v4653, %v4697
  %v4708 = vadd.f32 %v4654, %v4698
  %v4709 = vadd.f32 %v4655, %v4699
  %v4710 = vadd.f32 %v4656, %v4700
  %v4711 = vadd.f32 %v4657, %v4701
  %v4712 = vadd.f32 %v4658, %v4702
  %v4713 = vadd.f32 %v4659, %v4703
  %v4714 = vadd.f32 %v4660, %v4704
  %v4715 = vadd.f32 %v4661, %v4705
  %v4716 = vadd.f32 %v4662, %v4706
  %4717 = vrot.lane.b32.xlu0 %v4692, 1
  %v4718 = vpop.permute.xlu0 %4717
  %4719 = vrot.lane.b32.xlu0 %v4691, 1
  %v4720 = vpop.permute.xlu0 %4719
  %4721 = vrot.lane.b32.xlu0 %v4690, 1
  %v4722 = vpop.permute.xlu0 %4721
  %4723 = vrot.lane.b32.xlu0 %v4689, 1
  %v4724 = vpop.permute.xlu0 %4723
  %4725 = vrot.lane.b32.xlu0 %v4688, 1
  %v4726 = vpop.permute.xlu0 %4725
  %4727 = vrot.lane.b32.xlu0 %v4687, 1
  %v4728 = vpop.permute.xlu0 %4727
  %4729 = vrot.lane.b32.xlu0 %v4686, 1
  %v4730 = vpop.permute.xlu0 %4729
  %4731 = vrot.lane.b32.xlu0 %v4685, 1
  %v4732 = vpop.permute.xlu0 %4731
  %4733 = vrot.lane.b32.xlu0 %v4684, 1
  %v4734 = vpop.permute.xlu0 %4733
  %4735 = vrot.lane.b32.xlu0 %v4683, 1
  %v4736 = vpop.permute.xlu0 %4735
  %v4737 = vsel %vm1279, %v4734, %v4736
  %v4738 = vsel %vm1279, %v4732, %v4734
  %v4739 = vsel %vm1279, %v4730, %v4732
  %v4740 = vsel %vm1279, %v4728, %v4730
  %v4741 = vsel %vm1279, %v4726, %v4728
  %v4742 = vsel %vm1279, %v4724, %v4726
  %v4743 = vsel %vm1279, %v4722, %v4724
  %v4744 = vsel %vm1279, %v4720, %v4722
  %v4745 = vsel %vm1279, %v4718, %v4720
  %v4746 = vsel %vm1279, %v4736, %v4718
  %4747 = vset.pattern.permute.xlu0 15
  %4748 = vperm.xlu0 %4747, %v1200
  %v4749 = vpop.permute.xlu0 %4748
  %v4751 = vmul.f32 %v4746, %v4749
  %v4752 = vmul.f32 %v4745, %v4749
  %v4753 = vmul.f32 %v4744, %v4749
  %v4754 = vmul.f32 %v4743, %v4749
  %v4755 = vmul.f32 %v4742, %v4749
  %v4756 = vmul.f32 %v4741, %v4749
  %v4757 = vmul.f32 %v4740, %v4749
  %v4758 = vmul.f32 %v4739, %v4749
  %v4759 = vmul.f32 %v4738, %v4749
  %v4760 = vmul.f32 %v4737, %v4749
  %v4761 = vadd.f32 %v4707, %v4751
  %v4762 = vadd.f32 %v4708, %v4752
  %v4763 = vadd.f32 %v4709, %v4753
  %v4764 = vadd.f32 %v4710, %v4754
  %v4765 = vadd.f32 %v4711, %v4755
  %v4766 = vadd.f32 %v4712, %v4756
  %v4767 = vadd.f32 %v4713, %v4757
  %v4768 = vadd.f32 %v4714, %v4758
  %v4769 = vadd.f32 %v4715, %v4759
  %v4770 = vadd.f32 %v4716, %v4760
  %4771 = vrot.lane.b32.xlu0 %v4746, 1
  %v4772 = vpop.permute.xlu0 %4771
  %4773 = vrot.lane.b32.xlu0 %v4745, 1
  %v4774 = vpop.permute.xlu0 %4773
  %4775 = vrot.lane.b32.xlu0 %v4744, 1
  %v4776 = vpop.permute.xlu0 %4775
  %4777 = vrot.lane.b32.xlu0 %v4743, 1
  %v4778 = vpop.permute.xlu0 %4777
  %4779 = vrot.lane.b32.xlu0 %v4742, 1
  %v4780 = vpop.permute.xlu0 %4779
  %4781 = vrot.lane.b32.xlu0 %v4741, 1
  %v4782 = vpop.permute.xlu0 %4781
  %4783 = vrot.lane.b32.xlu0 %v4740, 1
  %v4784 = vpop.permute.xlu0 %4783
  %4785 = vrot.lane.b32.xlu0 %v4739, 1
  %v4786 = vpop.permute.xlu0 %4785
  %4787 = vrot.lane.b32.xlu0 %v4738, 1
  %v4788 = vpop.permute.xlu0 %4787
  %4789 = vrot.lane.b32.xlu0 %v4737, 1
  %v4790 = vpop.permute.xlu0 %4789
  %v4791 = vsel %vm1279, %v4788, %v4790
  %v4792 = vsel %vm1279, %v4786, %v4788
  %v4793 = vsel %vm1279, %v4784, %v4786
  %v4794 = vsel %vm1279, %v4782, %v4784
  %v4795 = vsel %vm1279, %v4780, %v4782
  %v4796 = vsel %vm1279, %v4778, %v4780
  %v4797 = vsel %vm1279, %v4776, %v4778
  %v4798 = vsel %vm1279, %v4774, %v4776
  %v4799 = vsel %vm1279, %v4772, %v4774
  %v4800 = vsel %vm1279, %v4790, %v4772
  %4801 = vset.pattern.permute.xlu0 14
  %4802 = vperm.xlu0 %4801, %v1200
  %v4803 = vpop.permute.xlu0 %4802
  %v4805 = vmul.f32 %v4800, %v4803
  %v4806 = vmul.f32 %v4799, %v4803
  %v4807 = vmul.f32 %v4798, %v4803
  %v4808 = vmul.f32 %v4797, %v4803
  %v4809 = vmul.f32 %v4796, %v4803
  %v4810 = vmul.f32 %v4795, %v4803
  %v4811 = vmul.f32 %v4794, %v4803
  %v4812 = vmul.f32 %v4793, %v4803
  %v4813 = vmul.f32 %v4792, %v4803
  %v4814 = vmul.f32 %v4791, %v4803
  %v4815 = vadd.f32 %v4761, %v4805
  %v4816 = vadd.f32 %v4762, %v4806
  %v4817 = vadd.f32 %v4763, %v4807
  %v4818 = vadd.f32 %v4764, %v4808
  %v4819 = vadd.f32 %v4765, %v4809
  %v4820 = vadd.f32 %v4766, %v4810
  %v4821 = vadd.f32 %v4767, %v4811
  %v4822 = vadd.f32 %v4768, %v4812
  %v4823 = vadd.f32 %v4769, %v4813
  %v4824 = vadd.f32 %v4770, %v4814
  %4825 = vrot.lane.b32.xlu0 %v4800, 1
  %v4826 = vpop.permute.xlu0 %4825
  %4827 = vrot.lane.b32.xlu0 %v4799, 1
  %v4828 = vpop.permute.xlu0 %4827
  %4829 = vrot.lane.b32.xlu0 %v4798, 1
  %v4830 = vpop.permute.xlu0 %4829
  %4831 = vrot.lane.b32.xlu0 %v4797, 1
  %v4832 = vpop.permute.xlu0 %4831
  %4833 = vrot.lane.b32.xlu0 %v4796, 1
  %v4834 = vpop.permute.xlu0 %4833
  %4835 = vrot.lane.b32.xlu0 %v4795, 1
  %v4836 = vpop.permute.xlu0 %4835
  %4837 = vrot.lane.b32.xlu0 %v4794, 1
  %v4838 = vpop.permute.xlu0 %4837
  %4839 = vrot.lane.b32.xlu0 %v4793, 1
  %v4840 = vpop.permute.xlu0 %4839
  %4841 = vrot.lane.b32.xlu0 %v4792, 1
  %v4842 = vpop.permute.xlu0 %4841
  %4843 = vrot.lane.b32.xlu0 %v4791, 1
  %v4844 = vpop.permute.xlu0 %4843
  %v4845 = vsel %vm1279, %v4842, %v4844
  %v4846 = vsel %vm1279, %v4840, %v4842
  %v4847 = vsel %vm1279, %v4838, %v4840
  %v4848 = vsel %vm1279, %v4836, %v4838
  %v4849 = vsel %vm1279, %v4834, %v4836
  %v4850 = vsel %vm1279, %v4832, %v4834
  %v4851 = vsel %vm1279, %v4830, %v4832
  %v4852 = vsel %vm1279, %v4828, %v4830
  %v4853 = vsel %vm1279, %v4826, %v4828
  %v4854 = vsel %vm1279, %v4844, %v4826
  %4855 = vset.pattern.permute.xlu0 13
  %4856 = vperm.xlu0 %4855, %v1200
  %v4857 = vpop.permute.xlu0 %4856
  %v4859 = vmul.f32 %v4854, %v4857
  %v4860 = vmul.f32 %v4853, %v4857
  %v4861 = vmul.f32 %v4852, %v4857
  %v4862 = vmul.f32 %v4851, %v4857
  %v4863 = vmul.f32 %v4850, %v4857
  %v4864 = vmul.f32 %v4849, %v4857
  %v4865 = vmul.f32 %v4848, %v4857
  %v4866 = vmul.f32 %v4847, %v4857
  %v4867 = vmul.f32 %v4846, %v4857
  %v4868 = vmul.f32 %v4845, %v4857
  %v4869 = vadd.f32 %v4815, %v4859
  %v4870 = vadd.f32 %v4816, %v4860
  %v4871 = vadd.f32 %v4817, %v4861
  %v4872 = vadd.f32 %v4818, %v4862
  %v4873 = vadd.f32 %v4819, %v4863
  %v4874 = vadd.f32 %v4820, %v4864
  %v4875 = vadd.f32 %v4821, %v4865
  %v4876 = vadd.f32 %v4822, %v4866
  %v4877 = vadd.f32 %v4823, %v4867
  %v4878 = vadd.f32 %v4824, %v4868
  %4879 = vrot.lane.b32.xlu0 %v4854, 1
  %v4880 = vpop.permute.xlu0 %4879
  %4881 = vrot.lane.b32.xlu0 %v4853, 1
  %v4882 = vpop.permute.xlu0 %4881
  %4883 = vrot.lane.b32.xlu0 %v4852, 1
  %v4884 = vpop.permute.xlu0 %4883
  %4885 = vrot.lane.b32.xlu0 %v4851, 1
  %v4886 = vpop.permute.xlu0 %4885
  %4887 = vrot.lane.b32.xlu0 %v4850, 1
  %v4888 = vpop.permute.xlu0 %4887
  %4889 = vrot.lane.b32.xlu0 %v4849, 1
  %v4890 = vpop.permute.xlu0 %4889
  %4891 = vrot.lane.b32.xlu0 %v4848, 1
  %v4892 = vpop.permute.xlu0 %4891
  %4893 = vrot.lane.b32.xlu0 %v4847, 1
  %v4894 = vpop.permute.xlu0 %4893
  %4895 = vrot.lane.b32.xlu0 %v4846, 1
  %v4896 = vpop.permute.xlu0 %4895
  %4897 = vrot.lane.b32.xlu0 %v4845, 1
  %v4898 = vpop.permute.xlu0 %4897
  %v4899 = vsel %vm1279, %v4896, %v4898
  %v4900 = vsel %vm1279, %v4894, %v4896
  %v4901 = vsel %vm1279, %v4892, %v4894
  %v4902 = vsel %vm1279, %v4890, %v4892
  %v4903 = vsel %vm1279, %v4888, %v4890
  %v4904 = vsel %vm1279, %v4886, %v4888
  %v4905 = vsel %vm1279, %v4884, %v4886
  %v4906 = vsel %vm1279, %v4882, %v4884
  %v4907 = vsel %vm1279, %v4880, %v4882
  %v4908 = vsel %vm1279, %v4898, %v4880
  %4909 = vset.pattern.permute.xlu0 12
  %4910 = vperm.xlu0 %4909, %v1200
  %v4911 = vpop.permute.xlu0 %4910
  %v4913 = vmul.f32 %v4908, %v4911
  %v4914 = vmul.f32 %v4907, %v4911
  %v4915 = vmul.f32 %v4906, %v4911
  %v4916 = vmul.f32 %v4905, %v4911
  %v4917 = vmul.f32 %v4904, %v4911
  %v4918 = vmul.f32 %v4903, %v4911
  %v4919 = vmul.f32 %v4902, %v4911
  %v4920 = vmul.f32 %v4901, %v4911
  %v4921 = vmul.f32 %v4900, %v4911
  %v4922 = vmul.f32 %v4899, %v4911
  %v4923 = vadd.f32 %v4869, %v4913
  %v4924 = vadd.f32 %v4870, %v4914
  %v4925 = vadd.f32 %v4871, %v4915
  %v4926 = vadd.f32 %v4872, %v4916
  %v4927 = vadd.f32 %v4873, %v4917
  %v4928 = vadd.f32 %v4874, %v4918
  %v4929 = vadd.f32 %v4875, %v4919
  %v4930 = vadd.f32 %v4876, %v4920
  %v4931 = vadd.f32 %v4877, %v4921
  %v4932 = vadd.f32 %v4878, %v4922
  %4933 = vrot.lane.b32.xlu0 %v4908, 1
  %v4934 = vpop.permute.xlu0 %4933
  %4935 = vrot.lane.b32.xlu0 %v4907, 1
  %v4936 = vpop.permute.xlu0 %4935
  %4937 = vrot.lane.b32.xlu0 %v4906, 1
  %v4938 = vpop.permute.xlu0 %4937
  %4939 = vrot.lane.b32.xlu0 %v4905, 1
  %v4940 = vpop.permute.xlu0 %4939
  %4941 = vrot.lane.b32.xlu0 %v4904, 1
  %v4942 = vpop.permute.xlu0 %4941
  %4943 = vrot.lane.b32.xlu0 %v4903, 1
  %v4944 = vpop.permute.xlu0 %4943
  %4945 = vrot.lane.b32.xlu0 %v4902, 1
  %v4946 = vpop.permute.xlu0 %4945
  %4947 = vrot.lane.b32.xlu0 %v4901, 1
  %v4948 = vpop.permute.xlu0 %4947
  %4949 = vrot.lane.b32.xlu0 %v4900, 1
  %v4950 = vpop.permute.xlu0 %4949
  %4951 = vrot.lane.b32.xlu0 %v4899, 1
  %v4952 = vpop.permute.xlu0 %4951
  %v4953 = vsel %vm1279, %v4950, %v4952
  %v4954 = vsel %vm1279, %v4948, %v4950
  %v4955 = vsel %vm1279, %v4946, %v4948
  %v4956 = vsel %vm1279, %v4944, %v4946
  %v4957 = vsel %vm1279, %v4942, %v4944
  %v4958 = vsel %vm1279, %v4940, %v4942
  %v4959 = vsel %vm1279, %v4938, %v4940
  %v4960 = vsel %vm1279, %v4936, %v4938
  %v4961 = vsel %vm1279, %v4934, %v4936
  %v4962 = vsel %vm1279, %v4952, %v4934
  %4963 = vset.pattern.permute.xlu0 11
  %4964 = vperm.xlu0 %4963, %v1200
  %v4965 = vpop.permute.xlu0 %4964
  %v4967 = vmul.f32 %v4962, %v4965
  %v4968 = vmul.f32 %v4961, %v4965
  %v4969 = vmul.f32 %v4960, %v4965
  %v4970 = vmul.f32 %v4959, %v4965
  %v4971 = vmul.f32 %v4958, %v4965
  %v4972 = vmul.f32 %v4957, %v4965
  %v4973 = vmul.f32 %v4956, %v4965
  %v4974 = vmul.f32 %v4955, %v4965
  %v4975 = vmul.f32 %v4954, %v4965
  %v4976 = vmul.f32 %v4953, %v4965
  %v4977 = vadd.f32 %v4923, %v4967
  %v4978 = vadd.f32 %v4924, %v4968
  %v4979 = vadd.f32 %v4925, %v4969
  %v4980 = vadd.f32 %v4926, %v4970
  %v4981 = vadd.f32 %v4927, %v4971
  %v4982 = vadd.f32 %v4928, %v4972
  %v4983 = vadd.f32 %v4929, %v4973
  %v4984 = vadd.f32 %v4930, %v4974
  %v4985 = vadd.f32 %v4931, %v4975
  %v4986 = vadd.f32 %v4932, %v4976
  %4987 = vrot.lane.b32.xlu0 %v4962, 1
  %v4988 = vpop.permute.xlu0 %4987
  %4989 = vrot.lane.b32.xlu0 %v4961, 1
  %v4990 = vpop.permute.xlu0 %4989
  %4991 = vrot.lane.b32.xlu0 %v4960, 1
  %v4992 = vpop.permute.xlu0 %4991
  %4993 = vrot.lane.b32.xlu0 %v4959, 1
  %v4994 = vpop.permute.xlu0 %4993
  %4995 = vrot.lane.b32.xlu0 %v4958, 1
  %v4996 = vpop.permute.xlu0 %4995
  %4997 = vrot.lane.b32.xlu0 %v4957, 1
  %v4998 = vpop.permute.xlu0 %4997
  %4999 = vrot.lane.b32.xlu0 %v4956, 1
  %v5000 = vpop.permute.xlu0 %4999
  %5001 = vrot.lane.b32.xlu0 %v4955, 1
  %v5002 = vpop.permute.xlu0 %5001
  %5003 = vrot.lane.b32.xlu0 %v4954, 1
  %v5004 = vpop.permute.xlu0 %5003
  %5005 = vrot.lane.b32.xlu0 %v4953, 1
  %v5006 = vpop.permute.xlu0 %5005
  %v5007 = vsel %vm1279, %v5004, %v5006
  %v5008 = vsel %vm1279, %v5002, %v5004
  %v5009 = vsel %vm1279, %v5000, %v5002
  %v5010 = vsel %vm1279, %v4998, %v5000
  %v5011 = vsel %vm1279, %v4996, %v4998
  %v5012 = vsel %vm1279, %v4994, %v4996
  %v5013 = vsel %vm1279, %v4992, %v4994
  %v5014 = vsel %vm1279, %v4990, %v4992
  %v5015 = vsel %vm1279, %v4988, %v4990
  %v5016 = vsel %vm1279, %v5006, %v4988
  %5017 = vset.pattern.permute.xlu0 10
  %5018 = vperm.xlu0 %5017, %v1200
  %v5019 = vpop.permute.xlu0 %5018
  %v5021 = vmul.f32 %v5016, %v5019
  %v5022 = vmul.f32 %v5015, %v5019
  %v5023 = vmul.f32 %v5014, %v5019
  %v5024 = vmul.f32 %v5013, %v5019
  %v5025 = vmul.f32 %v5012, %v5019
  %v5026 = vmul.f32 %v5011, %v5019
  %v5027 = vmul.f32 %v5010, %v5019
  %v5028 = vmul.f32 %v5009, %v5019
  %v5029 = vmul.f32 %v5008, %v5019
  %v5030 = vmul.f32 %v5007, %v5019
  %v5031 = vadd.f32 %v4977, %v5021
  %v5032 = vadd.f32 %v4978, %v5022
  %v5033 = vadd.f32 %v4979, %v5023
  %v5034 = vadd.f32 %v4980, %v5024
  %v5035 = vadd.f32 %v4981, %v5025
  %v5036 = vadd.f32 %v4982, %v5026
  %v5037 = vadd.f32 %v4983, %v5027
  %v5038 = vadd.f32 %v4984, %v5028
  %v5039 = vadd.f32 %v4985, %v5029
  %v5040 = vadd.f32 %v4986, %v5030
  %5041 = vrot.lane.b32.xlu0 %v5016, 1
  %v5042 = vpop.permute.xlu0 %5041
  %5043 = vrot.lane.b32.xlu0 %v5015, 1
  %v5044 = vpop.permute.xlu0 %5043
  %5045 = vrot.lane.b32.xlu0 %v5014, 1
  %v5046 = vpop.permute.xlu0 %5045
  %5047 = vrot.lane.b32.xlu0 %v5013, 1
  %v5048 = vpop.permute.xlu0 %5047
  %5049 = vrot.lane.b32.xlu0 %v5012, 1
  %v5050 = vpop.permute.xlu0 %5049
  %5051 = vrot.lane.b32.xlu0 %v5011, 1
  %v5052 = vpop.permute.xlu0 %5051
  %5053 = vrot.lane.b32.xlu0 %v5010, 1
  %v5054 = vpop.permute.xlu0 %5053
  %5055 = vrot.lane.b32.xlu0 %v5009, 1
  %v5056 = vpop.permute.xlu0 %5055
  %5057 = vrot.lane.b32.xlu0 %v5008, 1
  %v5058 = vpop.permute.xlu0 %5057
  %5059 = vrot.lane.b32.xlu0 %v5007, 1
  %v5060 = vpop.permute.xlu0 %5059
  %v5061 = vsel %vm1279, %v5058, %v5060
  %v5062 = vsel %vm1279, %v5056, %v5058
  %v5063 = vsel %vm1279, %v5054, %v5056
  %v5064 = vsel %vm1279, %v5052, %v5054
  %v5065 = vsel %vm1279, %v5050, %v5052
  %v5066 = vsel %vm1279, %v5048, %v5050
  %v5067 = vsel %vm1279, %v5046, %v5048
  %v5068 = vsel %vm1279, %v5044, %v5046
  %v5069 = vsel %vm1279, %v5042, %v5044
  %v5070 = vsel %vm1279, %v5060, %v5042
  %5071 = vset.pattern.permute.xlu0 9
  %5072 = vperm.xlu0 %5071, %v1200
  %v5073 = vpop.permute.xlu0 %5072
  %v5075 = vmul.f32 %v5070, %v5073
  %v5076 = vmul.f32 %v5069, %v5073
  %v5077 = vmul.f32 %v5068, %v5073
  %v5078 = vmul.f32 %v5067, %v5073
  %v5079 = vmul.f32 %v5066, %v5073
  %v5080 = vmul.f32 %v5065, %v5073
  %v5081 = vmul.f32 %v5064, %v5073
  %v5082 = vmul.f32 %v5063, %v5073
  %v5083 = vmul.f32 %v5062, %v5073
  %v5084 = vmul.f32 %v5061, %v5073
  %v5085 = vadd.f32 %v5031, %v5075
  %v5086 = vadd.f32 %v5032, %v5076
  %v5087 = vadd.f32 %v5033, %v5077
  %v5088 = vadd.f32 %v5034, %v5078
  %v5089 = vadd.f32 %v5035, %v5079
  %v5090 = vadd.f32 %v5036, %v5080
  %v5091 = vadd.f32 %v5037, %v5081
  %v5092 = vadd.f32 %v5038, %v5082
  %v5093 = vadd.f32 %v5039, %v5083
  %v5094 = vadd.f32 %v5040, %v5084
  %5095 = vrot.lane.b32.xlu0 %v4638, 24
  %v5096 = vpop.permute.xlu0 %5095
  %5097 = vrot.lane.b32.xlu0 %v4637, 24
  %v5098 = vpop.permute.xlu0 %5097
  %5099 = vrot.lane.b32.xlu0 %v4636, 24
  %v5100 = vpop.permute.xlu0 %5099
  %5101 = vrot.lane.b32.xlu0 %v4635, 24
  %v5102 = vpop.permute.xlu0 %5101
  %5103 = vrot.lane.b32.xlu0 %v4634, 24
  %v5104 = vpop.permute.xlu0 %5103
  %5105 = vrot.lane.b32.xlu0 %v4633, 24
  %v5106 = vpop.permute.xlu0 %5105
  %5107 = vrot.lane.b32.xlu0 %v4632, 24
  %v5108 = vpop.permute.xlu0 %5107
  %5109 = vrot.lane.b32.xlu0 %v4631, 24
  %v5110 = vpop.permute.xlu0 %5109
  %5111 = vrot.lane.b32.xlu0 %v4630, 24
  %v5112 = vpop.permute.xlu0 %5111
  %5113 = vrot.lane.b32.xlu0 %v4629, 24
  %v5114 = vpop.permute.xlu0 %5113
  %v5115 = vsel %vm1712, %v5112, %v5114
  %v5116 = vsel %vm1712, %v5110, %v5112
  %v5117 = vsel %vm1712, %v5108, %v5110
  %v5118 = vsel %vm1712, %v5106, %v5108
  %v5119 = vsel %vm1712, %v5104, %v5106
  %v5120 = vsel %vm1712, %v5102, %v5104
  %v5121 = vsel %vm1712, %v5100, %v5102
  %v5122 = vsel %vm1712, %v5098, %v5100
  %v5123 = vsel %vm1712, %v5096, %v5098
  %v5124 = vsel %vm1712, %v5114, %v5096
  %5125 = vset.pattern.permute.xlu0 8
  %5126 = vperm.xlu0 %5125, %v1200
  %v5127 = vpop.permute.xlu0 %5126
  %v5129 = vmul.f32 %v5124, %v5127
  %v5130 = vmul.f32 %v5123, %v5127
  %v5131 = vmul.f32 %v5122, %v5127
  %v5132 = vmul.f32 %v5121, %v5127
  %v5133 = vmul.f32 %v5120, %v5127
  %v5134 = vmul.f32 %v5119, %v5127
  %v5135 = vmul.f32 %v5118, %v5127
  %v5136 = vmul.f32 %v5117, %v5127
  %v5137 = vmul.f32 %v5116, %v5127
  %v5138 = vmul.f32 %v5115, %v5127
  %v5139 = vadd.f32 %v5085, %v5129
  %v5140 = vadd.f32 %v5086, %v5130
  %v5141 = vadd.f32 %v5087, %v5131
  %v5142 = vadd.f32 %v5088, %v5132
  %v5143 = vadd.f32 %v5089, %v5133
  %v5144 = vadd.f32 %v5090, %v5134
  %v5145 = vadd.f32 %v5091, %v5135
  %v5146 = vadd.f32 %v5092, %v5136
  %v5147 = vadd.f32 %v5093, %v5137
  %v5148 = vadd.f32 %v5094, %v5138
  %5149 = vrot.lane.b32.xlu0 %v5124, 1
  %v5150 = vpop.permute.xlu0 %5149
  %5151 = vrot.lane.b32.xlu0 %v5123, 1
  %v5152 = vpop.permute.xlu0 %5151
  %5153 = vrot.lane.b32.xlu0 %v5122, 1
  %v5154 = vpop.permute.xlu0 %5153
  %5155 = vrot.lane.b32.xlu0 %v5121, 1
  %v5156 = vpop.permute.xlu0 %5155
  %5157 = vrot.lane.b32.xlu0 %v5120, 1
  %v5158 = vpop.permute.xlu0 %5157
  %5159 = vrot.lane.b32.xlu0 %v5119, 1
  %v5160 = vpop.permute.xlu0 %5159
  %5161 = vrot.lane.b32.xlu0 %v5118, 1
  %v5162 = vpop.permute.xlu0 %5161
  %5163 = vrot.lane.b32.xlu0 %v5117, 1
  %v5164 = vpop.permute.xlu0 %5163
  %5165 = vrot.lane.b32.xlu0 %v5116, 1
  %v5166 = vpop.permute.xlu0 %5165
  %5167 = vrot.lane.b32.xlu0 %v5115, 1
  %v5168 = vpop.permute.xlu0 %5167
  %v5169 = vsel %vm1279, %v5166, %v5168
  %v5170 = vsel %vm1279, %v5164, %v5166
  %v5171 = vsel %vm1279, %v5162, %v5164
  %v5172 = vsel %vm1279, %v5160, %v5162
  %v5173 = vsel %vm1279, %v5158, %v5160
  %v5174 = vsel %vm1279, %v5156, %v5158
  %v5175 = vsel %vm1279, %v5154, %v5156
  %v5176 = vsel %vm1279, %v5152, %v5154
  %v5177 = vsel %vm1279, %v5150, %v5152
  %v5178 = vsel %vm1279, %v5168, %v5150
  %5179 = vset.pattern.permute.xlu0 7
  %5180 = vperm.xlu0 %5179, %v1200
  %v5181 = vpop.permute.xlu0 %5180
  %v5183 = vmul.f32 %v5178, %v5181
  %v5184 = vmul.f32 %v5177, %v5181
  %v5185 = vmul.f32 %v5176, %v5181
  %v5186 = vmul.f32 %v5175, %v5181
  %v5187 = vmul.f32 %v5174, %v5181
  %v5188 = vmul.f32 %v5173, %v5181
  %v5189 = vmul.f32 %v5172, %v5181
  %v5190 = vmul.f32 %v5171, %v5181
  %v5191 = vmul.f32 %v5170, %v5181
  %v5192 = vmul.f32 %v5169, %v5181
  %v5193 = vadd.f32 %v5139, %v5183
  %v5194 = vadd.f32 %v5140, %v5184
  %v5195 = vadd.f32 %v5141, %v5185
  %v5196 = vadd.f32 %v5142, %v5186
  %v5197 = vadd.f32 %v5143, %v5187
  %v5198 = vadd.f32 %v5144, %v5188
  %v5199 = vadd.f32 %v5145, %v5189
  %v5200 = vadd.f32 %v5146, %v5190
  %v5201 = vadd.f32 %v5147, %v5191
  %v5202 = vadd.f32 %v5148, %v5192
  %5203 = vrot.lane.b32.xlu0 %v5178, 1
  %v5204 = vpop.permute.xlu0 %5203
  %5205 = vrot.lane.b32.xlu0 %v5177, 1
  %v5206 = vpop.permute.xlu0 %5205
  %5207 = vrot.lane.b32.xlu0 %v5176, 1
  %v5208 = vpop.permute.xlu0 %5207
  %5209 = vrot.lane.b32.xlu0 %v5175, 1
  %v5210 = vpop.permute.xlu0 %5209
  %5211 = vrot.lane.b32.xlu0 %v5174, 1
  %v5212 = vpop.permute.xlu0 %5211
  %5213 = vrot.lane.b32.xlu0 %v5173, 1
  %v5214 = vpop.permute.xlu0 %5213
  %5215 = vrot.lane.b32.xlu0 %v5172, 1
  %v5216 = vpop.permute.xlu0 %5215
  %5217 = vrot.lane.b32.xlu0 %v5171, 1
  %v5218 = vpop.permute.xlu0 %5217
  %5219 = vrot.lane.b32.xlu0 %v5170, 1
  %v5220 = vpop.permute.xlu0 %5219
  %5221 = vrot.lane.b32.xlu0 %v5169, 1
  %v5222 = vpop.permute.xlu0 %5221
  %v5223 = vsel %vm1279, %v5220, %v5222
  %v5224 = vsel %vm1279, %v5218, %v5220
  %v5225 = vsel %vm1279, %v5216, %v5218
  %v5226 = vsel %vm1279, %v5214, %v5216
  %v5227 = vsel %vm1279, %v5212, %v5214
  %v5228 = vsel %vm1279, %v5210, %v5212
  %v5229 = vsel %vm1279, %v5208, %v5210
  %v5230 = vsel %vm1279, %v5206, %v5208
  %v5231 = vsel %vm1279, %v5204, %v5206
  %v5232 = vsel %vm1279, %v5222, %v5204
  %5233 = vset.pattern.permute.xlu0 6
  %5234 = vperm.xlu0 %5233, %v1200
  %v5235 = vpop.permute.xlu0 %5234
  %v5237 = vmul.f32 %v5232, %v5235
  %v5238 = vmul.f32 %v5231, %v5235
  %v5239 = vmul.f32 %v5230, %v5235
  %v5240 = vmul.f32 %v5229, %v5235
  %v5241 = vmul.f32 %v5228, %v5235
  %v5242 = vmul.f32 %v5227, %v5235
  %v5243 = vmul.f32 %v5226, %v5235
  %v5244 = vmul.f32 %v5225, %v5235
  %v5245 = vmul.f32 %v5224, %v5235
  %v5246 = vmul.f32 %v5223, %v5235
  %v5247 = vadd.f32 %v5193, %v5237
  %v5248 = vadd.f32 %v5194, %v5238
  %v5249 = vadd.f32 %v5195, %v5239
  %v5250 = vadd.f32 %v5196, %v5240
  %v5251 = vadd.f32 %v5197, %v5241
  %v5252 = vadd.f32 %v5198, %v5242
  %v5253 = vadd.f32 %v5199, %v5243
  %v5254 = vadd.f32 %v5200, %v5244
  %v5255 = vadd.f32 %v5201, %v5245
  %v5256 = vadd.f32 %v5202, %v5246
  %5257 = vrot.lane.b32.xlu0 %v5232, 1
  %v5258 = vpop.permute.xlu0 %5257
  %5259 = vrot.lane.b32.xlu0 %v5231, 1
  %v5260 = vpop.permute.xlu0 %5259
  %5261 = vrot.lane.b32.xlu0 %v5230, 1
  %v5262 = vpop.permute.xlu0 %5261
  %5263 = vrot.lane.b32.xlu0 %v5229, 1
  %v5264 = vpop.permute.xlu0 %5263
  %5265 = vrot.lane.b32.xlu0 %v5228, 1
  %v5266 = vpop.permute.xlu0 %5265
  %5267 = vrot.lane.b32.xlu0 %v5227, 1
  %v5268 = vpop.permute.xlu0 %5267
  %5269 = vrot.lane.b32.xlu0 %v5226, 1
  %v5270 = vpop.permute.xlu0 %5269
  %5271 = vrot.lane.b32.xlu0 %v5225, 1
  %v5272 = vpop.permute.xlu0 %5271
  %5273 = vrot.lane.b32.xlu0 %v5224, 1
  %v5274 = vpop.permute.xlu0 %5273
  %5275 = vrot.lane.b32.xlu0 %v5223, 1
  %v5276 = vpop.permute.xlu0 %5275
  %v5277 = vsel %vm1279, %v5274, %v5276
  %v5278 = vsel %vm1279, %v5272, %v5274
  %v5279 = vsel %vm1279, %v5270, %v5272
  %v5280 = vsel %vm1279, %v5268, %v5270
  %v5281 = vsel %vm1279, %v5266, %v5268
  %v5282 = vsel %vm1279, %v5264, %v5266
  %v5283 = vsel %vm1279, %v5262, %v5264
  %v5284 = vsel %vm1279, %v5260, %v5262
  %v5285 = vsel %vm1279, %v5258, %v5260
  %v5286 = vsel %vm1279, %v5276, %v5258
  %5287 = vset.pattern.permute.xlu0 5
  %5288 = vperm.xlu0 %5287, %v1200
  %v5289 = vpop.permute.xlu0 %5288
  %v5291 = vmul.f32 %v5286, %v5289
  %v5292 = vmul.f32 %v5285, %v5289
  %v5293 = vmul.f32 %v5284, %v5289
  %v5294 = vmul.f32 %v5283, %v5289
  %v5295 = vmul.f32 %v5282, %v5289
  %v5296 = vmul.f32 %v5281, %v5289
  %v5297 = vmul.f32 %v5280, %v5289
  %v5298 = vmul.f32 %v5279, %v5289
  %v5299 = vmul.f32 %v5278, %v5289
  %v5300 = vmul.f32 %v5277, %v5289
  %v5301 = vadd.f32 %v5247, %v5291
  %v5302 = vadd.f32 %v5248, %v5292
  %v5303 = vadd.f32 %v5249, %v5293
  %v5304 = vadd.f32 %v5250, %v5294
  %v5305 = vadd.f32 %v5251, %v5295
  %v5306 = vadd.f32 %v5252, %v5296
  %v5307 = vadd.f32 %v5253, %v5297
  %v5308 = vadd.f32 %v5254, %v5298
  %v5309 = vadd.f32 %v5255, %v5299
  %v5310 = vadd.f32 %v5256, %v5300
  %5311 = vrot.lane.b32.xlu0 %v5286, 1
  %v5312 = vpop.permute.xlu0 %5311
  %5313 = vrot.lane.b32.xlu0 %v5285, 1
  %v5314 = vpop.permute.xlu0 %5313
  %5315 = vrot.lane.b32.xlu0 %v5284, 1
  %v5316 = vpop.permute.xlu0 %5315
  %5317 = vrot.lane.b32.xlu0 %v5283, 1
  %v5318 = vpop.permute.xlu0 %5317
  %5319 = vrot.lane.b32.xlu0 %v5282, 1
  %v5320 = vpop.permute.xlu0 %5319
  %5321 = vrot.lane.b32.xlu0 %v5281, 1
  %v5322 = vpop.permute.xlu0 %5321
  %5323 = vrot.lane.b32.xlu0 %v5280, 1
  %v5324 = vpop.permute.xlu0 %5323
  %5325 = vrot.lane.b32.xlu0 %v5279, 1
  %v5326 = vpop.permute.xlu0 %5325
  %5327 = vrot.lane.b32.xlu0 %v5278, 1
  %v5328 = vpop.permute.xlu0 %5327
  %5329 = vrot.lane.b32.xlu0 %v5277, 1
  %v5330 = vpop.permute.xlu0 %5329
  %v5331 = vsel %vm1279, %v5328, %v5330
  %v5332 = vsel %vm1279, %v5326, %v5328
  %v5333 = vsel %vm1279, %v5324, %v5326
  %v5334 = vsel %vm1279, %v5322, %v5324
  %v5335 = vsel %vm1279, %v5320, %v5322
  %v5336 = vsel %vm1279, %v5318, %v5320
  %v5337 = vsel %vm1279, %v5316, %v5318
  %v5338 = vsel %vm1279, %v5314, %v5316
  %v5339 = vsel %vm1279, %v5312, %v5314
  %v5340 = vsel %vm1279, %v5330, %v5312
  %5341 = vset.pattern.permute.xlu0 4
  %5342 = vperm.xlu0 %5341, %v1200
  %v5343 = vpop.permute.xlu0 %5342
  %v5345 = vmul.f32 %v5340, %v5343
  %v5346 = vmul.f32 %v5339, %v5343
  %v5347 = vmul.f32 %v5338, %v5343
  %v5348 = vmul.f32 %v5337, %v5343
  %v5349 = vmul.f32 %v5336, %v5343
  %v5350 = vmul.f32 %v5335, %v5343
  %v5351 = vmul.f32 %v5334, %v5343
  %v5352 = vmul.f32 %v5333, %v5343
  %v5353 = vmul.f32 %v5332, %v5343
  %v5354 = vmul.f32 %v5331, %v5343
  %v5355 = vadd.f32 %v5301, %v5345
  %v5356 = vadd.f32 %v5302, %v5346
  %v5357 = vadd.f32 %v5303, %v5347
  %v5358 = vadd.f32 %v5304, %v5348
  %v5359 = vadd.f32 %v5305, %v5349
  %v5360 = vadd.f32 %v5306, %v5350
  %v5361 = vadd.f32 %v5307, %v5351
  %v5362 = vadd.f32 %v5308, %v5352
  %v5363 = vadd.f32 %v5309, %v5353
  %v5364 = vadd.f32 %v5310, %v5354
  %5365 = vrot.lane.b32.xlu0 %v5340, 1
  %v5366 = vpop.permute.xlu0 %5365
  %5367 = vrot.lane.b32.xlu0 %v5339, 1
  %v5368 = vpop.permute.xlu0 %5367
  %5369 = vrot.lane.b32.xlu0 %v5338, 1
  %v5370 = vpop.permute.xlu0 %5369
  %5371 = vrot.lane.b32.xlu0 %v5337, 1
  %v5372 = vpop.permute.xlu0 %5371
  %5373 = vrot.lane.b32.xlu0 %v5336, 1
  %v5374 = vpop.permute.xlu0 %5373
  %5375 = vrot.lane.b32.xlu0 %v5335, 1
  %v5376 = vpop.permute.xlu0 %5375
  %5377 = vrot.lane.b32.xlu0 %v5334, 1
  %v5378 = vpop.permute.xlu0 %5377
  %5379 = vrot.lane.b32.xlu0 %v5333, 1
  %v5380 = vpop.permute.xlu0 %5379
  %5381 = vrot.lane.b32.xlu0 %v5332, 1
  %v5382 = vpop.permute.xlu0 %5381
  %5383 = vrot.lane.b32.xlu0 %v5331, 1
  %v5384 = vpop.permute.xlu0 %5383
  %v5385 = vsel %vm1279, %v5382, %v5384
  %v5386 = vsel %vm1279, %v5380, %v5382
  %v5387 = vsel %vm1279, %v5378, %v5380
  %v5388 = vsel %vm1279, %v5376, %v5378
  %v5389 = vsel %vm1279, %v5374, %v5376
  %v5390 = vsel %vm1279, %v5372, %v5374
  %v5391 = vsel %vm1279, %v5370, %v5372
  %v5392 = vsel %vm1279, %v5368, %v5370
  %v5393 = vsel %vm1279, %v5366, %v5368
  %v5394 = vsel %vm1279, %v5384, %v5366
  %5395 = vset.pattern.permute.xlu0 3
  %5396 = vperm.xlu0 %5395, %v1200
  %v5397 = vpop.permute.xlu0 %5396
  %v5399 = vmul.f32 %v5394, %v5397
  %v5400 = vmul.f32 %v5393, %v5397
  %v5401 = vmul.f32 %v5392, %v5397
  %v5402 = vmul.f32 %v5391, %v5397
  %v5403 = vmul.f32 %v5390, %v5397
  %v5404 = vmul.f32 %v5389, %v5397
  %v5405 = vmul.f32 %v5388, %v5397
  %v5406 = vmul.f32 %v5387, %v5397
  %v5407 = vmul.f32 %v5386, %v5397
  %v5408 = vmul.f32 %v5385, %v5397
  %v5409 = vadd.f32 %v5355, %v5399
  %v5410 = vadd.f32 %v5356, %v5400
  %v5411 = vadd.f32 %v5357, %v5401
  %v5412 = vadd.f32 %v5358, %v5402
  %v5413 = vadd.f32 %v5359, %v5403
  %v5414 = vadd.f32 %v5360, %v5404
  %v5415 = vadd.f32 %v5361, %v5405
  %v5416 = vadd.f32 %v5362, %v5406
  %v5417 = vadd.f32 %v5363, %v5407
  %v5418 = vadd.f32 %v5364, %v5408
  %5419 = vrot.lane.b32.xlu0 %v5394, 1
  %v5420 = vpop.permute.xlu0 %5419
  %5421 = vrot.lane.b32.xlu0 %v5393, 1
  %v5422 = vpop.permute.xlu0 %5421
  %5423 = vrot.lane.b32.xlu0 %v5392, 1
  %v5424 = vpop.permute.xlu0 %5423
  %5425 = vrot.lane.b32.xlu0 %v5391, 1
  %v5426 = vpop.permute.xlu0 %5425
  %5427 = vrot.lane.b32.xlu0 %v5390, 1
  %v5428 = vpop.permute.xlu0 %5427
  %5429 = vrot.lane.b32.xlu0 %v5389, 1
  %v5430 = vpop.permute.xlu0 %5429
  %5431 = vrot.lane.b32.xlu0 %v5388, 1
  %v5432 = vpop.permute.xlu0 %5431
  %5433 = vrot.lane.b32.xlu0 %v5387, 1
  %v5434 = vpop.permute.xlu0 %5433
  %5435 = vrot.lane.b32.xlu0 %v5386, 1
  %v5436 = vpop.permute.xlu0 %5435
  %5437 = vrot.lane.b32.xlu0 %v5385, 1
  %v5438 = vpop.permute.xlu0 %5437
  %v5439 = vsel %vm1279, %v5436, %v5438
  %v5440 = vsel %vm1279, %v5434, %v5436
  %v5441 = vsel %vm1279, %v5432, %v5434
  %v5442 = vsel %vm1279, %v5430, %v5432
  %v5443 = vsel %vm1279, %v5428, %v5430
  %v5444 = vsel %vm1279, %v5426, %v5428
  %v5445 = vsel %vm1279, %v5424, %v5426
  %v5446 = vsel %vm1279, %v5422, %v5424
  %v5447 = vsel %vm1279, %v5420, %v5422
  %v5448 = vsel %vm1279, %v5438, %v5420
  %5449 = vset.pattern.permute.xlu0 2
  %5450 = vperm.xlu0 %5449, %v1200
  %v5451 = vpop.permute.xlu0 %5450
  %v5453 = vmul.f32 %v5448, %v5451
  %v5454 = vmul.f32 %v5447, %v5451
  %v5455 = vmul.f32 %v5446, %v5451
  %v5456 = vmul.f32 %v5445, %v5451
  %v5457 = vmul.f32 %v5444, %v5451
  %v5458 = vmul.f32 %v5443, %v5451
  %v5459 = vmul.f32 %v5442, %v5451
  %v5460 = vmul.f32 %v5441, %v5451
  %v5461 = vmul.f32 %v5440, %v5451
  %v5462 = vmul.f32 %v5439, %v5451
  %v5463 = vadd.f32 %v5409, %v5453
  %v5464 = vadd.f32 %v5410, %v5454
  %v5465 = vadd.f32 %v5411, %v5455
  %v5466 = vadd.f32 %v5412, %v5456
  %v5467 = vadd.f32 %v5413, %v5457
  %v5468 = vadd.f32 %v5414, %v5458
  %v5469 = vadd.f32 %v5415, %v5459
  %v5470 = vadd.f32 %v5416, %v5460
  %v5471 = vadd.f32 %v5417, %v5461
  %v5472 = vadd.f32 %v5418, %v5462
  %5473 = vrot.lane.b32.xlu0 %v5448, 1
  %v5474 = vpop.permute.xlu0 %5473
  %5475 = vrot.lane.b32.xlu0 %v5447, 1
  %v5476 = vpop.permute.xlu0 %5475
  %5477 = vrot.lane.b32.xlu0 %v5446, 1
  %v5478 = vpop.permute.xlu0 %5477
  %5479 = vrot.lane.b32.xlu0 %v5445, 1
  %v5480 = vpop.permute.xlu0 %5479
  %5481 = vrot.lane.b32.xlu0 %v5444, 1
  %v5482 = vpop.permute.xlu0 %5481
  %5483 = vrot.lane.b32.xlu0 %v5443, 1
  %v5484 = vpop.permute.xlu0 %5483
  %5485 = vrot.lane.b32.xlu0 %v5442, 1
  %v5486 = vpop.permute.xlu0 %5485
  %5487 = vrot.lane.b32.xlu0 %v5441, 1
  %v5488 = vpop.permute.xlu0 %5487
  %5489 = vrot.lane.b32.xlu0 %v5440, 1
  %v5490 = vpop.permute.xlu0 %5489
  %5491 = vrot.lane.b32.xlu0 %v5439, 1
  %v5492 = vpop.permute.xlu0 %5491
  %v5493 = vsel %vm1279, %v5490, %v5492
  %v5494 = vsel %vm1279, %v5488, %v5490
  %v5495 = vsel %vm1279, %v5486, %v5488
  %v5496 = vsel %vm1279, %v5484, %v5486
  %v5497 = vsel %vm1279, %v5482, %v5484
  %v5498 = vsel %vm1279, %v5480, %v5482
  %v5499 = vsel %vm1279, %v5478, %v5480
  %v5500 = vsel %vm1279, %v5476, %v5478
  %v5501 = vsel %vm1279, %v5474, %v5476
  %v5502 = vsel %vm1279, %v5492, %v5474
  %5503 = vset.pattern.permute.xlu0 1
  %5504 = vperm.xlu0 %5503, %v1200
  %v5505 = vpop.permute.xlu0 %5504
  %v5507 = vmul.f32 %v5502, %v5505
  %v5508 = vmul.f32 %v5501, %v5505
  %v5509 = vmul.f32 %v5500, %v5505
  %v5510 = vmul.f32 %v5499, %v5505
  %v5511 = vmul.f32 %v5498, %v5505
  %v5512 = vmul.f32 %v5497, %v5505
  %v5513 = vmul.f32 %v5496, %v5505
  %v5514 = vmul.f32 %v5495, %v5505
  %v5515 = vmul.f32 %v5494, %v5505
  %v5516 = vmul.f32 %v5493, %v5505
  %v5517 = vadd.f32 %v5463, %v5507
  %v5518 = vadd.f32 %v5464, %v5508
  %v5519 = vadd.f32 %v5465, %v5509
  %v5520 = vadd.f32 %v5466, %v5510
  %v5521 = vadd.f32 %v5467, %v5511
  %v5522 = vadd.f32 %v5468, %v5512
  %v5523 = vadd.f32 %v5469, %v5513
  %v5524 = vadd.f32 %v5470, %v5514
  %v5525 = vadd.f32 %v5471, %v5515
  %v5526 = vadd.f32 %v5472, %v5516
  %5527 = vrot.lane.b32.xlu0 %v5502, 1
  %v5528 = vpop.permute.xlu0 %5527
  %5529 = vrot.lane.b32.xlu0 %v5501, 1
  %v5530 = vpop.permute.xlu0 %5529
  %5531 = vrot.lane.b32.xlu0 %v5500, 1
  %v5532 = vpop.permute.xlu0 %5531
  %5533 = vrot.lane.b32.xlu0 %v5499, 1
  %v5534 = vpop.permute.xlu0 %5533
  %5535 = vrot.lane.b32.xlu0 %v5498, 1
  %v5536 = vpop.permute.xlu0 %5535
  %5537 = vrot.lane.b32.xlu0 %v5497, 1
  %v5538 = vpop.permute.xlu0 %5537
  %5539 = vrot.lane.b32.xlu0 %v5496, 1
  %v5540 = vpop.permute.xlu0 %5539
  %5541 = vrot.lane.b32.xlu0 %v5495, 1
  %v5542 = vpop.permute.xlu0 %5541
  %5543 = vrot.lane.b32.xlu0 %v5494, 1
  %v5544 = vpop.permute.xlu0 %5543
  %5545 = vrot.lane.b32.xlu0 %v5493, 1
  %v5546 = vpop.permute.xlu0 %5545
  %v5547 = vsel %vm1279, %v5544, %v5546
  %v5548 = vsel %vm1279, %v5542, %v5544
  %v5549 = vsel %vm1279, %v5540, %v5542
  %v5550 = vsel %vm1279, %v5538, %v5540
  %v5551 = vsel %vm1279, %v5536, %v5538
  %v5552 = vsel %vm1279, %v5534, %v5536
  %v5553 = vsel %vm1279, %v5532, %v5534
  %v5554 = vsel %vm1279, %v5530, %v5532
  %v5555 = vsel %vm1279, %v5528, %v5530
  %v5556 = vsel %vm1279, %v5546, %v5528
  %5557 = vset.pattern.permute.xlu0 0
  %5558 = vperm.xlu0 %5557, %v1200
  %v5559 = vpop.permute.xlu0 %5558
  %v5561 = vmul.f32 %v5556, %v5559
  %v5562 = vmul.f32 %v5555, %v5559
  %v5563 = vmul.f32 %v5554, %v5559
  %v5564 = vmul.f32 %v5553, %v5559
  %v5565 = vmul.f32 %v5552, %v5559
  %v5566 = vmul.f32 %v5551, %v5559
  %v5567 = vmul.f32 %v5550, %v5559
  %v5568 = vmul.f32 %v5549, %v5559
  %v5569 = vmul.f32 %v5548, %v5559
  %v5570 = vmul.f32 %v5547, %v5559
  %v5571 = vadd.f32 %v5517, %v5561
  %v5572 = vadd.f32 %v5518, %v5562
  %v5573 = vadd.f32 %v5519, %v5563
  %v5574 = vadd.f32 %v5520, %v5564
  %v5575 = vadd.f32 %v5521, %v5565
  %v5576 = vadd.f32 %v5522, %v5566
  %v5577 = vadd.f32 %v5523, %v5567
  %v5578 = vadd.f32 %v5524, %v5568
  %v5579 = vadd.f32 %v5525, %v5569
  %v5580 = vadd.f32 %v5526, %v5570
  %v5581 = vld [vmem:[%s11] sm:$0xff]
  %5583 = vset.pattern.permute.xlu0 0
  %5584 = vperm.xlu0 %5583, %v5581
  %v5585 = vpop.permute.xlu0 %5584
  %v5587 = vmul.f32 %v5571, %v5585
  %v5588 = vmul.f32 %v5572, %v5585
  %v5589 = vmul.f32 %v5573, %v5585
  %v5590 = vmul.f32 %v5574, %v5585
  %v5591 = vmul.f32 %v5575, %v5585
  %v5592 = vmul.f32 %v5576, %v5585
  %v5593 = vmul.f32 %v5577, %v5585
  %v5594 = vmul.f32 %v5578, %v5585
  %v5595 = vmul.f32 %v5579, %v5585
  %v5596 = vmul.f32 %v5580, %v5585
  %5597 = vset.pattern.permute.xlu0 1
  %5598 = vperm.xlu0 %5597, %v5581
  %v5599 = vpop.permute.xlu0 %5598
  %v5601 = vadd.f32 %v5587, %v5599
  %v5602 = vadd.f32 %v5588, %v5599
  %v5603 = vadd.f32 %v5589, %v5599
  %v5604 = vadd.f32 %v5590, %v5599
  %v5605 = vadd.f32 %v5591, %v5599
  %v5606 = vadd.f32 %v5592, %v5599
  %v5607 = vadd.f32 %v5593, %v5599
  %v5608 = vadd.f32 %v5594, %v5599
  %v5609 = vadd.f32 %v5595, %v5599
  %v5610 = vadd.f32 %v5596, %v5599
  %v5611 = vmax.f32 %v5601, 0.0
  %v5612 = vmax.f32 %v5602, 0.0
  %v5613 = vmax.f32 %v5603, 0.0
  %v5614 = vmax.f32 %v5604, 0.0
  %v5615 = vmax.f32 %v5605, 0.0
  %v5616 = vmax.f32 %v5606, 0.0
  %v5617 = vmax.f32 %v5607, 0.0
  %v5618 = vmax.f32 %v5608, 0.0
  %v5619 = vmax.f32 %v5609, 0.0
  %v5620 = vmax.f32 %v5610, 0.0
  %v5621 = vxor.u32 %v5611, 2147483648
  %v5622 = vxor.u32 %v5612, 2147483648
  %v5623 = vxor.u32 %v5613, 2147483648
  %v5624 = vxor.u32 %v5614, 2147483648
  %v5625 = vxor.u32 %v5615, 2147483648
  %v5626 = vxor.u32 %v5616, 2147483648
  %v5627 = vxor.u32 %v5617, 2147483648
  %v5628 = vxor.u32 %v5618, 2147483648
  %v5629 = vxor.u32 %v5619, 2147483648
  %v5630 = vxor.u32 %v5620, 2147483648
  %v5631 = vmul.f32 %v5621, 1.442695
  %v5632 = vpow.pop %v5631
  %v5633 = vmul.f32 %v5622, 1.442695
  %v5634 = vpow.pop %v5633
  %v5635 = vmul.f32 %v5623, 1.442695
  %v5636 = vpow.pop %v5635
  %v5637 = vmul.f32 %v5624, 1.442695
  %v5638 = vpow.pop %v5637
  %v5639 = vmul.f32 %v5625, 1.442695
  %v5640 = vpow.pop %v5639
  %v5641 = vmul.f32 %v5626, 1.442695
  %v5642 = vpow.pop %v5641
  %v5643 = vmul.f32 %v5627, 1.442695
  %v5644 = vpow.pop %v5643
  %v5645 = vmul.f32 %v5628, 1.442695
  %v5646 = vpow.pop %v5645
  %v5647 = vmul.f32 %v5629, 1.442695
  %v5648 = vpow.pop %v5647
  %v5649 = vmul.f32 %v5630, 1.442695
  %v5650 = vpow.pop %v5649
  %v5651 = vadd.f32 %v5632, 1.0
  %v5652 = vadd.f32 %v5634, 1.0
  %v5653 = vadd.f32 %v5636, 1.0
  %v5654 = vadd.f32 %v5638, 1.0
  %v5655 = vadd.f32 %v5640, 1.0
  %v5656 = vadd.f32 %v5642, 1.0
  %v5657 = vadd.f32 %v5644, 1.0
  %v5658 = vadd.f32 %v5646, 1.0
  %v5659 = vadd.f32 %v5648, 1.0
  %v5660 = vadd.f32 %v5650, 1.0
  %v5661 = vrcp.pop %v5651
  %v5662 = vmul.f32 1.0, %v5661
  %v5663 = vrcp.pop %v5652
  %v5664 = vmul.f32 1.0, %v5663
  %v5665 = vrcp.pop %v5653
  %v5666 = vmul.f32 1.0, %v5665
  %v5667 = vrcp.pop %v5654
  %v5668 = vmul.f32 1.0, %v5667
  %v5669 = vrcp.pop %v5655
  %v5670 = vmul.f32 1.0, %v5669
  %v5671 = vrcp.pop %v5656
  %v5672 = vmul.f32 1.0, %v5671
  %v5673 = vrcp.pop %v5657
  %v5674 = vmul.f32 1.0, %v5673
  %v5675 = vrcp.pop %v5658
  %v5676 = vmul.f32 1.0, %v5675
  %v5677 = vrcp.pop %v5659
  %v5678 = vmul.f32 1.0, %v5677
  %v5679 = vrcp.pop %v5660
  %v5680 = vmul.f32 1.0, %v5679
  %5682 = vset.pattern.permute.xlu0 0
  %5683 = vperm.xlu0 %5682, %v790
  %v5684 = vpop.permute.xlu0 %5683
  %v5686 = vmul.f32 %v5684, %v5662
  %v5687 = vmul.f32 %v5684, %v5664
  %v5688 = vmul.f32 %v5684, %v5666
  %v5689 = vmul.f32 %v5684, %v5668
  %v5690 = vmul.f32 %v5684, %v5670
  %v5691 = vadd.f32 %v5686, 1.0
  %v5692 = vadd.f32 %v5687, 1.0
  %v5693 = vadd.f32 %v5688, 1.0
  %v5694 = vadd.f32 %v5689, 1.0
  %v5695 = vadd.f32 %v5690, 1.0
  %v5696 = vmul.f32 %v585, %v5691
  %v5697 = vmul.f32 %v586, %v5692
  %v5698 = vmul.f32 %v587, %v5693
  %v5699 = vmul.f32 %v588, %v5694
  %v5700 = vmul.f32 %v589, %v5695
  %5701 = vst [vmem:[%s12] sm:$0xff] %v5696
  %5702 = vst [vmem:[%s12 + $0x8] sm:$0xff] %v5697
  %5703 = vst [vmem:[%s12 + $0x10] sm:$0xff] %v5698
  %5704 = vst [vmem:[%s12 + $0x18] sm:$0xff] %v5699
  %5705 = vst [vmem:[%s12 + $0x20] sm:$0xff] %v5700
  %5706 = vset.pattern.permute.xlu0 1
  %5707 = vperm.xlu0 %5706, %v790
  %v5708 = vpop.permute.xlu0 %5707
  %v5710 = vmul.f32 %v5708, %v5672
  %v5711 = vmul.f32 %v5708, %v5674
  %v5712 = vmul.f32 %v5708, %v5676
  %v5713 = vmul.f32 %v5708, %v5678
  %v5714 = vmul.f32 %v5708, %v5680
  %v5715 = vadd.f32 %v5710, 1.0
  %v5716 = vadd.f32 %v5711, 1.0
  %v5717 = vadd.f32 %v5712, 1.0
  %v5718 = vadd.f32 %v5713, 1.0
  %v5719 = vadd.f32 %v5714, 1.0
  %v5720 = vmul.f32 %v590, %v5715
  %v5721 = vmul.f32 %v591, %v5716
  %v5722 = vmul.f32 %v592, %v5717
  %v5723 = vmul.f32 %v593, %v5718
  %v5724 = vmul.f32 %v594, %v5719
  %5725 = vst [vmem:[%s12 + $0x28] sm:$0xff] %v5720
  %5726 = vst [vmem:[%s12 + $0x30] sm:$0xff] %v5721
  %5727 = vst [vmem:[%s12 + $0x38] sm:$0xff] %v5722
  %5728 = vst [vmem:[%s12 + $0x40] sm:$0xff] %v5723
  %5729 = vst [vmem:[%s12 + $0x48] sm:$0xff] %v5724
  // Predicated region
  $region50: #{rsn_attention_forward.1} parent=0 // pred_check
    _
  $region51: #{rsn_attention_forward.1} parent=0 // pred_check_branch
    %5731 = sbr.rel (0) target = $region53
  $region52: #{rsn_attention_forward.1} parent=0 // pred_region
    _
  $region53: #{rsn_attention_forward.1} parent=0 // pred_fallthru
    _
  // Predicated region
  $region54: #{rsn_attention_forward.1} parent=0 // pred_check
    _
  $region55: #{rsn_attention_forward.1} parent=0 // pred_check_branch
    %5733 = sbr.rel (0) target = $region57
  $region56: #{rsn_attention_forward.1} parent=0 // pred_region
    _
  $region57: #{rsn_attention_forward.1} parent=0 // pred_fallthru
    _

</llo_original>
